<compile_context>
chip_gen: v5e
topology: v5e:2x2
jax: 0.10.0
libtpu: 0.0.40
codegen_flags: <defaults>
</compile_context>

<pallas_src>
import functools

import jax
import jax.numpy as jnp
from jax import lax
from jax.experimental import pallas as pl
from jax.experimental.pallas import tpu as pltpu


def _round_up(x, m):
    return ((x + m - 1) // m) * m


def _bn_scale_shift(gamma, beta, rm, rv, eps):
    scale = gamma / jnp.sqrt(rv + eps)
    return scale, beta - rm * scale


_NB = 8  # images per grid step (Nb*LS lanes per block; multiple of 128 by construction)


# ---------------------------------------------------------------------------
# Fused FacConv kernel factory (stride = 1), Nb images per grid step
# ---------------------------------------------------------------------------
def _make_facconv_kernel(c_in, c_out, K, WF, BL, M1, ZL):
    """Conv(Kx1)-BN-PReLU-BN-Conv(1xK)-BN-PReLU on a pre-padded lane-dense slab.

    x_ref   : (c_in, BL)   Nb images, each an (HG, WF) zero-padded grid, BN0 applied
    w1_ref  : (c_in, K*c_in)   stacked-tap conv1 weights (BN1 scale folded in)
    w2_ref  : (c_out, K*c_in)  stacked-tap conv2 weights (BN3 scale folded in)
    mask_ref: (1, M1)      1.0 on interior (real-z) positions, 0.0 elsewhere
    bias_ref: (c_out, BL)  BN3 shift + pre-convolved constant-kappa boundary
    prm_ref : (c_pad, 8)   per-channel scalars (BN1 shift, PReLU1, BN2, PReLU2)
    """

    def kernel(x_ref, w1_ref, w2_ref, mask_ref, bias_ref, prm_ref, o_ref,
               z_ref, t1_ref, t2_ref):
        b1 = prm_ref[:c_in, 0:1]      # BN1 shift (scale folded into w1)
        al1 = prm_ref[:c_in, 1:2]     # PReLU1 slope
        a2 = prm_ref[:c_in, 2:3]      # BN2 scale
        c2 = prm_ref[:c_in, 3:4]      # BN2 shift
        al2 = prm_ref[:c_out, 4:5]    # PReLU2 slope

        # Pad-only scratch init: positions [M1, ZL) of the stage-2 grid are never
        # overwritten and are only read (as zeros) by junk-output taps.  Done every
        # step (a couple of vregs) instead of @pl.when(program_id==0) because the
        # grid axis is "parallel": a second TensorCore's first step has a nonzero
        # program_id and its own scratch instance.
        z_ref[:, M1:] = jnp.zeros((c_in, ZL - M1), jnp.float32)

        # ---- stage 1: Conv(Kx1) as ONE matmul over K*C_in stacked H-shifted taps
        for k in range(K):
            t1_ref[k * c_in:(k + 1) * c_in, :] = x_ref[:, k * WF: k * WF + M1]
        y1 = jnp.dot(w1_ref[...], t1_ref[...],
                     preferred_element_type=jnp.float32)          # (c_in, M1)
        u = y1 + b1
        u = jnp.where(u >= 0.0, u, al1 * u)                       # PReLU1
        # BN2 + interior mask: pad / junk positions become exact zeros so the
        # stage-2 grid holds only real z-values; the constant-kappa boundary of
        # the true conv2 input is folded into bias_ref (precomputed in wrapper).
        z_ref[:, :M1] = (u * a2 + c2) * mask_ref[...]

        # ---- stage 2: Conv(1xK) as ONE matmul over K*C_in stacked W-shifted taps
        for k in range(K):
            t2_ref[k * c_in:(k + 1) * c_in, :] = z_ref[:, k: k + BL]
        y2 = jnp.dot(w2_ref[...], t2_ref[...],
                     preferred_element_type=jnp.float32)          # (c_out, BL)
        y2 = y2 + bias_ref[...]                                   # BN3 shift + kappa profile
        o_ref[...] = jnp.where(y2 >= 0.0, y2, al2 * y2)           # PReLU2, full-block store

    return kernel


# ---------------------------------------------------------------------------
# Public wrapper: NCHW in / NCHW out, eval-mode BN folded to scale/shift
# ---------------------------------------------------------------------------
@functools.partial(jax.jit, static_argnums=(2, 3, 4))
def fac_conv_forward(x_nchw, params, kernel_length, stride, padding):
    if stride != 1:
        # TODO(synk): strided FacConv uses the XLA reference path.
        return _ref_forward(x_nchw, params, stride, padding)

    N, C_in, H, W = x_nchw.shape
    K, P = kernel_length, padding
    C_out = params['w2'].shape[0]
    assert params['w1'].shape == (C_in, C_in, K, 1)
    assert params['w2'].shape == (C_out, C_in, 1, K)
    assert H + 2 * P >= K and W + 4 * P >= K

    # ---- geometry: one per-image (HG, WF) zero-padded grid carries both convs
    H1 = H + 2 * P - K + 1            # conv1 output height
    H2 = H1 + 2 * P                   # final output height
    W2 = W + 4 * P - K + 1            # final output width
    WF = W + 4 * P                    # grid row width
    HG = H + 4 * P                    # grid height (= H2 + K - 1)
    LS0 = HG * WF                     # per-image slab length (lanes)
    LS = _round_up(LS0, 16)           # lane-pad so Nb*LS is a multiple of 128
    Nb = _NB
    N_pad = _round_up(max(N, 1), Nb)
    BL = Nb * LS                      # lanes per grid block (multiple of 128)
    M1 = BL - (K - 1) * WF            # stage-1 compute length (taps stay in-block)
    ZL = _round_up(BL + K - 1, 128)   # stage-2 grid scratch lanes
    KC = K * C_in

    # ---- eval-mode BN -> per-channel scale/shift
    a0, c0 = _bn_scale_shift(params['bn0_g'], params['bn0_b'],
                             params['bn0_rm'], params['bn0_rv'], 1e-5)
    a1, c1 = _bn_scale_shift(params['bn1_g'], params['bn1_b'],
                             params['bn1_rm'], params['bn1_rv'], 1e-3)
    a2, c2 = _bn_scale_shift(params['bn2_g'], params['bn2_b'],
                             params['bn2_rm'], params['bn2_rv'], 1e-5)
    a3, c3 = _bn_scale_shift(params['bn3_g'], params['bn3_b'],
                             params['bn3_rm'], params['bn3_rv'], 1e-3)
    al1 = params['alpha1'].astype(jnp.float32)
    al2 = params['alpha2'].astype(jnp.float32)

    # ---- post-conv BN scales folded into weights; stacked-tap (C_out, K*C_in) layout
    w1f = params['w1'][:, :, :, 0].astype(jnp.float32) * a1[:, None, None]   # (O,I,K)
    w2f = params['w2'][:, :, 0, :].astype(jnp.float32) * a3[:, None, None]   # (O,I,K)
    w1s = jnp.transpose(w1f, (0, 2, 1)).reshape(C_in, KC)
    w2s = jnp.transpose(w2f, (0, 2, 1)).reshape(C_out, KC)

    # ---- constant-kappa boundary of the true conv2 input, pre-convolved with w2
    # kappa = value of BN2(PReLU(BN1(0))) on conv1's zero W-pad columns
    kappa = a2 * jnp.where(c1 >= 0.0, c1, al1 * c1) + c2                      # (C_in,)
    idx = jnp.arange(WF)[:, None] + jnp.arange(K)[None, :]                    # (WF, K)
    in_kappa = (((idx >= P) & (idx < 2 * P)) |
                ((idx >= 2 * P + W) & (idx < 3 * P + W))).astype(jnp.float32)
    wk = jnp.einsum('oik,i->ok', w2f, kappa)                                  # (C_out, K)
    kprof = jnp.einsum('ok,ck->oc', wk, in_kappa)                             # (C_out, WF)

    rows = jnp.arange(HG)
    cols = jnp.arange(WF)
    int_row = ((rows >= P) & (rows < P + H1)).astype(jnp.float32)             # (HG,)
    int_col = ((cols >= 2 * P) & (cols < 2 * P + W)).astype(jnp.float32)      # (WF,)

    bias_slab = c3[:, None, None] + int_row[None, :, None] * kprof[:, None, :]
    bias_slab = jnp.pad(bias_slab.reshape(C_out, LS0), ((0, 0), (0, LS - LS0)))
    bias_blk = jnp.tile(bias_slab, (1, Nb))                                   # (C_out, BL)

    mask_slab = jnp.pad((int_row[:, None] * int_col[None, :]).reshape(1, LS0),
                        ((0, 0), (0, LS - LS0)))
    mask_blk = jnp.tile(mask_slab, (1, Nb))[:, :M1]                           # (1, M1)

    # ---- per-channel scalars used in-kernel, packed into one small operand
    c_pad = max(8, _round_up(max(C_in, C_out), 8))
    prm = jnp.zeros((c_pad, 8), jnp.float32)
    for j, v in enumerate([c1, al1, a2, c2, al2]):
        prm = prm.at[:v.shape[0], j].set(v.astype(jnp.float32))

    # ---- BN0 + layout plumbing (wrapper side): BN0 must be applied *before*
    # conv1's zero padding, so it is fused into the one-time XLA pad/transpose
    # that builds the lane-dense (C, N_pad*LS) grid the kernel consumes.
    x0 = (x_nchw.astype(jnp.float32) * a0[None, :, None, None]
          + c0[None, :, None, None])
    x0 = jnp.pad(x0, ((0, N_pad - N), (0, 0), (2 * P, 2 * P), (2 * P, 2 * P)))
    x0 = jnp.transpose(x0, (1, 0, 2, 3)).reshape(C_in, N_pad, LS0)
    x0 = jnp.pad(x0, ((0, 0), (0, 0), (0, LS - LS0))).reshape(C_in, N_pad * LS)

    kernel = _make_facconv_kernel(C_in, C_out, K, WF, BL, M1, ZL)
    n_blocks = N_pad // Nb

    out_flat = pl.pallas_call(
        kernel,
        out_shape=jax.ShapeDtypeStruct((C_out, N_pad * LS), jnp.float32),
        grid_spec=pltpu.PrefetchScalarGridSpec(
            num_scalar_prefetch=0,
            grid=(n_blocks,),
            in_specs=[
                pl.BlockSpec((C_in, BL), lambda i: (0, i)),     # padded input grid (Nb images)
                pl.BlockSpec((C_in, KC), lambda i: (0, 0)),     # w1, stacked-tap layout
                pl.BlockSpec((C_out, KC), lambda i: (0, 0)),    # w2, stacked-tap layout
                pl.BlockSpec((1, M1), lambda i: (0, 0)),        # interior mask
                pl.BlockSpec((C_out, BL), lambda i: (0, 0)),    # BN3 shift + kappa profile
                pl.BlockSpec((c_pad, 8), lambda i: (0, 0)),     # packed per-channel scalars
            ],
            out_specs=pl.BlockSpec((C_out, BL), lambda i: (0, i)),
            scratch_shapes=[
                pltpu.VMEM((C_in, ZL), jnp.float32),            # stage-2 z grid
                pltpu.VMEM((KC, M1), jnp.float32),              # stage-1 stacked taps
                pltpu.VMEM((KC, BL), jnp.float32),              # stage-2 stacked taps
            ],
        ),
        compiler_params=pltpu.CompilerParams(
            dimension_semantics=("parallel",),                  # batch blocks -> megacore
        ),
    )(x0, w1s, w2s, mask_blk, bias_blk, prm)

    # strip lane padding / junk rows / junk columns, restore NCHW
    out = out_flat.reshape(C_out, N_pad, LS)[:, :N, :LS0]
    out = out.reshape(C_out, N, HG, WF)[:, :, :H2, :W2]
    return jnp.transpose(out, (1, 0, 2, 3))


# ---------------------------------------------------------------------------
# Pure-JAX reference (same eval-mode semantics) for validation / stride!=1 path
# ---------------------------------------------------------------------------
def _ref_forward(x, p, stride, padding):
    def bn(v, g, b, rm, rv, eps):
        sc = g / jnp.sqrt(rv + eps)
        return v * sc[None, :, None, None] + (b - rm * sc)[None, :, None, None]

    def prelu(v, a):
        return jnp.where(v >= 0, v, a[None, :, None, None] * v)

    def conv(v, w):
        return lax.conv_general_dilated(
            v, w, (stride, stride), [(padding, padding), (padding, padding)],
            dimension_numbers=('NCHW', 'OIHW', 'NCHW'),
            precision=lax.Precision.HIGHEST)

    y = bn(x, p['bn0_g'], p['bn0_b'], p['bn0_rm'], p['bn0_rv'], 1e-5)
    y = conv(y, p['w1'])
    y = bn(y, p['bn1_g'], p['bn1_b'], p['bn1_rm'], p['bn1_rv'], 1e-3)
    y = prelu(y, p['alpha1'])
    y = bn(y, p['bn2_g'], p['bn2_b'], p['bn2_rm'], p['bn2_rv'], 1e-5)
    y = conv(y, p['w2'])
    y = bn(y, p['bn3_g'], p['bn3_b'], p['bn3_rm'], p['bn3_rv'], 1e-3)
    y = prelu(y, p['alpha2'])
    return y


# ---------------------------------------------------------------------------
if __name__ == "__main__":
    N, C, H, W = 16, 8, 16, 16         # MixedOp uses C -> C; N=16 -> 2 grid steps
    K, stride, padding = 7, 1, 3       # 'conv_7x1_1x7'

    key = jax.random.PRNGKey(0)
    ks = jax.random.split(key, 21)

    def bn_params(kg, kb, km, kv, ch):
        return (jax.random.uniform(kg, (ch,), jnp.float32, 0.5, 1.5),
                0.1 * jax.random.normal(kb, (ch,), jnp.float32),
                0.1 * jax.random.normal(km, (ch,), jnp.float32),
                jax.random.uniform(kv, (ch,), jnp.float32, 0.5, 1.5))

    params = {}
    params['bn0_g'], params['bn0_b'], params['bn0_rm'], params['bn0_rv'] = bn_params(*ks[0:4], C)
    params['bn1_g'], params['bn1_b'], params['bn1_rm'], params['bn1_rv'] = bn_params(*ks[4:8], C)
    params['bn2_g'], params['bn2_b'], params['bn2_rm'], params['bn2_rv'] = bn_params(*ks[8:12], C)
    params['bn3_g'], params['bn3_b'], params['bn3_rm'], params['bn3_rv'] = bn_params(*ks[12:16], C)
    params['w1'] = jax.random.normal(ks[16], (C, C, K, 1), jnp.float32) / jnp.sqrt(C * K)
    params['w2'] = jax.random.normal(ks[17], (C, C, 1, K), jnp.float32) / jnp.sqrt(C * K)
    params['alpha1'] = 0.25 + 0.05 * jax.random.normal(ks[18], (C,), jnp.float32)
    params['alpha2'] = 0.25 + 0.05 * jax.random.normal(ks[19], (C,), jnp.float32)
    x = jax.random.normal(ks[20], (N, C, H, W), jnp.float32)

    out = jax.block_until_ready(fac_conv_forward(x, params, K, stride, padding))
    ref = jax.block_until_ready(_ref_forward(x, params, stride, padding))

    assert out.shape == ref.shape, (out.shape, ref.shape)
    err = float(jnp.max(jnp.abs(out - ref)))
    assert err < 2e-3, err
    print("KERNEL_OK")
</pallas_src>

<mosaic_0001>
module attributes {stable_mosaic.version = 11 : i64} {
  func.func @kernel(%arg0: i32, %arg1: memref<8x6272xf32, #tpu.memory_space<vmem>>, %arg2: memref<8x56xf32, #tpu.memory_space<vmem>>, %arg3: memref<8x56xf32, #tpu.memory_space<vmem>>, %arg4: memref<1x6104xf32, #tpu.memory_space<vmem>>, %arg5: memref<8x6272xf32, #tpu.memory_space<vmem>>, %arg6: memref<8x8xf32, #tpu.memory_space<vmem>>, %arg7: memref<8x6272xf32, #tpu.memory_space<vmem>>, %arg8: memref<8x6400xf32, #tpu.memory_space<vmem>>, %arg9: memref<56x6104xf32, #tpu.memory_space<vmem>>, %arg10: memref<56x6272xf32, #tpu.memory_space<vmem>>) attributes {dimension_semantics = [#tpu.dimension_semantics<parallel>], iteration_bounds = array<i64: 2>, scalar_prefetch = 0 : i64, scratch_operands = 3 : i64, tpu.core_type = #tpu.core_type<tc>, window_params = [{transform_indices = @transform_0, window_bounds = array<i64: 8, 6272>}, {pipeline_mode = #tpu.pipeline_mode<synchronous>, transform_indices = @transform_1, window_bounds = array<i64: 8, 56>}, {pipeline_mode = #tpu.pipeline_mode<synchronous>, transform_indices = @transform_2, window_bounds = array<i64: 8, 56>}, {pipeline_mode = #tpu.pipeline_mode<synchronous>, transform_indices = @transform_3, window_bounds = array<i64: 1, 6104>}, {pipeline_mode = #tpu.pipeline_mode<synchronous>, transform_indices = @transform_4, window_bounds = array<i64: 8, 6272>}, {pipeline_mode = #tpu.pipeline_mode<synchronous>, transform_indices = @transform_5, window_bounds = array<i64: 8, 8>}, {transform_indices = @transform_6, window_bounds = array<i64: 8, 6272>}]} {
    %c0 = arith.constant 0 : index
    %c0_0 = arith.constant 0 : index
    %0 = vector.load %arg6[%c0, %c0_0] : memref<8x8xf32, #tpu.memory_space<vmem>>, vector<8x1xf32>
    %c0_1 = arith.constant 0 : index
    %c1 = arith.constant 1 : index
    %1 = vector.load %arg6[%c0_1, %c1] : memref<8x8xf32, #tpu.memory_space<vmem>>, vector<8x1xf32>
    %c0_2 = arith.constant 0 : index
    %c2 = arith.constant 2 : index
    %2 = vector.load %arg6[%c0_2, %c2] : memref<8x8xf32, #tpu.memory_space<vmem>>, vector<8x1xf32>
    %c0_3 = arith.constant 0 : index
    %c3 = arith.constant 3 : index
    %3 = vector.load %arg6[%c0_3, %c3] : memref<8x8xf32, #tpu.memory_space<vmem>>, vector<8x1xf32>
    %c0_4 = arith.constant 0 : index
    %c4 = arith.constant 4 : index
    %4 = vector.load %arg6[%c0_4, %c4] : memref<8x8xf32, #tpu.memory_space<vmem>>, vector<8x1xf32>
    %cst = arith.constant 0.000000e+00 : f32
    %5 = vector.broadcast %cst : f32 to vector<8x296xf32>
    %c0_5 = arith.constant 0 : index
    %c6104 = arith.constant 6104 : index
    %6 = vector.load %arg8[%c0_5, %c6104] : memref<8x6400xf32, #tpu.memory_space<vmem>>, vector<8x296xf32>
    tpu.vector_store %arg8[%c0_5, %c6104], %5 {strides = array<i32>} : memref<8x6400xf32, #tpu.memory_space<vmem>>, vector<8x296xf32>,
    %c0_6 = arith.constant 0 : index
    %c0_7 = arith.constant 0 : index
    %7 = vector.load %arg1[%c0_6, %c0_7] : memref<8x6272xf32, #tpu.memory_space<vmem>>, vector<8x6104xf32>
    %c0_8 = arith.constant 0 : index
    %c0_9 = arith.constant 0 : index
    %8 = vector.load %arg9[%c0_8, %c0_9] : memref<56x6104xf32, #tpu.memory_space<vmem>>, vector<8x6104xf32>
    tpu.vector_store %arg9[%c0_8, %c0_9], %7 {strides = array<i32>} : memref<56x6104xf32, #tpu.memory_space<vmem>>, vector<8x6104xf32>,
    %c0_10 = arith.constant 0 : index
    %c28 = arith.constant 28 : index
    %9 = vector.load %arg1[%c0_10, %c28] : memref<8x6272xf32, #tpu.memory_space<vmem>>, vector<8x6104xf32>
    %c8 = arith.constant 8 : index
    %c0_11 = arith.constant 0 : index
    %10 = vector.load %arg9[%c8, %c0_11] : memref<56x6104xf32, #tpu.memory_space<vmem>>, vector<8x6104xf32>
    tpu.vector_store %arg9[%c8, %c0_11], %9 {strides = array<i32>} : memref<56x6104xf32, #tpu.memory_space<vmem>>, vector<8x6104xf32>,
    %c0_12 = arith.constant 0 : index
    %c56 = arith.constant 56 : index
    %11 = vector.load %arg1[%c0_12, %c56] : memref<8x6272xf32, #tpu.memory_space<vmem>>, vector<8x6104xf32>
    %c16 = arith.constant 16 : index
    %c0_13 = arith.constant 0 : index
    %12 = vector.load %arg9[%c16, %c0_13] : memref<56x6104xf32, #tpu.memory_space<vmem>>, vector<8x6104xf32>
    tpu.vector_store %arg9[%c16, %c0_13], %11 {strides = array<i32>} : memref<56x6104xf32, #tpu.memory_space<vmem>>, vector<8x6104xf32>,
    %c0_14 = arith.constant 0 : index
    %c84 = arith.constant 84 : index
    %13 = vector.load %arg1[%c0_14, %c84] : memref<8x6272xf32, #tpu.memory_space<vmem>>, vector<8x6104xf32>
    %c24 = arith.constant 24 : index
    %c0_15 = arith.constant 0 : index
    %14 = vector.load %arg9[%c24, %c0_15] : memref<56x6104xf32, #tpu.memory_space<vmem>>, vector<8x6104xf32>
    tpu.vector_store %arg9[%c24, %c0_15], %13 {strides = array<i32>} : memref<56x6104xf32, #tpu.memory_space<vmem>>, vector<8x6104xf32>,
    %c0_16 = arith.constant 0 : index
    %c112 = arith.constant 112 : index
    %15 = vector.load %arg1[%c0_16, %c112] : memref<8x6272xf32, #tpu.memory_space<vmem>>, vector<8x6104xf32>
    %c32 = arith.constant 32 : index
    %c0_17 = arith.constant 0 : index
    %16 = vector.load %arg9[%c32, %c0_17] : memref<56x6104xf32, #tpu.memory_space<vmem>>, vector<8x6104xf32>
    tpu.vector_store %arg9[%c32, %c0_17], %15 {strides = array<i32>} : memref<56x6104xf32, #tpu.memory_space<vmem>>, vector<8x6104xf32>,
    %c0_18 = arith.constant 0 : index
    %c140 = arith.constant 140 : index
    %17 = vector.load %arg1[%c0_18, %c140] : memref<8x6272xf32, #tpu.memory_space<vmem>>, vector<8x6104xf32>
    %c40 = arith.constant 40 : index
    %c0_19 = arith.constant 0 : index
    %18 = vector.load %arg9[%c40, %c0_19] : memref<56x6104xf32, #tpu.memory_space<vmem>>, vector<8x6104xf32>
    tpu.vector_store %arg9[%c40, %c0_19], %17 {strides = array<i32>} : memref<56x6104xf32, #tpu.memory_space<vmem>>, vector<8x6104xf32>,
    %c0_20 = arith.constant 0 : index
    %c168 = arith.constant 168 : index
    %19 = vector.load %arg1[%c0_20, %c168] : memref<8x6272xf32, #tpu.memory_space<vmem>>, vector<8x6104xf32>
    %c48 = arith.constant 48 : index
    %c0_21 = arith.constant 0 : index
    %20 = vector.load %arg9[%c48, %c0_21] : memref<56x6104xf32, #tpu.memory_space<vmem>>, vector<8x6104xf32>
    tpu.vector_store %arg9[%c48, %c0_21], %19 {strides = array<i32>} : memref<56x6104xf32, #tpu.memory_space<vmem>>, vector<8x6104xf32>,
    %c0_22 = arith.constant 0 : index
    %c0_23 = arith.constant 0 : index
    %21 = vector.load %arg2[%c0_22, %c0_23] : memref<8x56xf32, #tpu.memory_space<vmem>>, vector<8x56xf32>
    %c0_24 = arith.constant 0 : index
    %c0_25 = arith.constant 0 : index
    %22 = vector.load %arg9[%c0_24, %c0_25] : memref<56x6104xf32, #tpu.memory_space<vmem>>, vector<56x6104xf32>
    %cst_26 = arith.constant dense<0.000000e+00> : vector<8x6104xf32>
    %23 = tpu.matmul %21, %22, %cst_26 {dimension_numbers = #tpu.dot_dimension_numbers<[1], [0], [0], [1], [0, 0, 1, 1], [], []>} : vector<8x56xf32>, vector<56x6104xf32>, vector<8x6104xf32> -> vector<8x6104xf32>
    %24 = vector.broadcast %0 : vector<8x1xf32> to vector<8x6104xf32>
    %25 = arith.addf %23, %24 : vector<8x6104xf32>
    %cst_27 = arith.constant 0.000000e+00 : f32
    %26 = vector.broadcast %cst_27 : f32 to vector<8x6104xf32>
    %27 = arith.cmpf oge, %25, %26 : vector<8x6104xf32>
    %28 = vector.broadcast %1 : vector<8x1xf32> to vector<8x6104xf32>
    %29 = arith.mulf %28, %25 : vector<8x6104xf32>
    %30 = arith.select %27, %25, %29 : vector<8x6104xi1>, vector<8x6104xf32>
    %31 = vector.broadcast %2 : vector<8x1xf32> to vector<8x6104xf32>
    %32 = arith.mulf %30, %31 : vector<8x6104xf32>
    %33 = vector.broadcast %3 : vector<8x1xf32> to vector<8x6104xf32>
    %34 = arith.addf %32, %33 : vector<8x6104xf32>
    %c0_28 = arith.constant 0 : index
    %c0_29 = arith.constant 0 : index
    %35 = vector.load %arg4[%c0_28, %c0_29] : memref<1x6104xf32, #tpu.memory_space<vmem>>, vector<1x6104xf32>
    %36 = vector.broadcast %35 : vector<1x6104xf32> to vector<8x6104xf32>
    %37 = arith.mulf %34, %36 : vector<8x6104xf32>
    %c0_30 = arith.constant 0 : index
    %c0_31 = arith.constant 0 : index
    %38 = vector.load %arg8[%c0_30, %c0_31] : memref<8x6400xf32, #tpu.memory_space<vmem>>, vector<8x6104xf32>
    tpu.vector_store %arg8[%c0_30, %c0_31], %37 {strides = array<i32>} : memref<8x6400xf32, #tpu.memory_space<vmem>>, vector<8x6104xf32>,
    %c0_32 = arith.constant 0 : index
    %c0_33 = arith.constant 0 : index
    %39 = vector.load %arg8[%c0_32, %c0_33] : memref<8x6400xf32, #tpu.memory_space<vmem>>, vector<8x6272xf32>
    %c0_34 = arith.constant 0 : index
    %c0_35 = arith.constant 0 : index
    %40 = vector.load %arg10[%c0_34, %c0_35] : memref<56x6272xf32, #tpu.memory_space<vmem>>, vector<8x6272xf32>
    tpu.vector_store %arg10[%c0_34, %c0_35], %39 {strides = array<i32>} : memref<56x6272xf32, #tpu.memory_space<vmem>>, vector<8x6272xf32>,
    %c0_36 = arith.constant 0 : index
    %c1_37 = arith.constant 1 : index
    %41 = vector.load %arg8[%c0_36, %c1_37] : memref<8x6400xf32, #tpu.memory_space<vmem>>, vector<8x6272xf32>
    %c8_38 = arith.constant 8 : index
    %c0_39 = arith.constant 0 : index
    %42 = vector.load %arg10[%c8_38, %c0_39] : memref<56x6272xf32, #tpu.memory_space<vmem>>, vector<8x6272xf32>
    tpu.vector_store %arg10[%c8_38, %c0_39], %41 {strides = array<i32>} : memref<56x6272xf32, #tpu.memory_space<vmem>>, vector<8x6272xf32>,
    %c0_40 = arith.constant 0 : index
    %c2_41 = arith.constant 2 : index
    %43 = vector.load %arg8[%c0_40, %c2_41] : memref<8x6400xf32, #tpu.memory_space<vmem>>, vector<8x6272xf32>
    %c16_42 = arith.constant 16 : index
    %c0_43 = arith.constant 0 : index
    %44 = vector.load %arg10[%c16_42, %c0_43] : memref<56x6272xf32, #tpu.memory_space<vmem>>, vector<8x6272xf32>
    tpu.vector_store %arg10[%c16_42, %c0_43], %43 {strides = array<i32>} : memref<56x6272xf32, #tpu.memory_space<vmem>>, vector<8x6272xf32>,
    %c0_44 = arith.constant 0 : index
    %c3_45 = arith.constant 3 : index
    %45 = vector.load %arg8[%c0_44, %c3_45] : memref<8x6400xf32, #tpu.memory_space<vmem>>, vector<8x6272xf32>
    %c24_46 = arith.constant 24 : index
    %c0_47 = arith.constant 0 : index
    %46 = vector.load %arg10[%c24_46, %c0_47] : memref<56x6272xf32, #tpu.memory_space<vmem>>, vector<8x6272xf32>
    tpu.vector_store %arg10[%c24_46, %c0_47], %45 {strides = array<i32>} : memref<56x6272xf32, #tpu.memory_space<vmem>>, vector<8x6272xf32>,
    %c0_48 = arith.constant 0 : index
    %c4_49 = arith.constant 4 : index
    %47 = vector.load %arg8[%c0_48, %c4_49] : memref<8x6400xf32, #tpu.memory_space<vmem>>, vector<8x6272xf32>
    %c32_50 = arith.constant 32 : index
    %c0_51 = arith.constant 0 : index
    %48 = vector.load %arg10[%c32_50, %c0_51] : memref<56x6272xf32, #tpu.memory_space<vmem>>, vector<8x6272xf32>
    tpu.vector_store %arg10[%c32_50, %c0_51], %47 {strides = array<i32>} : memref<56x6272xf32, #tpu.memory_space<vmem>>, vector<8x6272xf32>,
    %c0_52 = arith.constant 0 : index
    %c5 = arith.constant 5 : index
    %49 = vector.load %arg8[%c0_52, %c5] : memref<8x6400xf32, #tpu.memory_space<vmem>>, vector<8x6272xf32>
    %c40_53 = arith.constant 40 : index
    %c0_54 = arith.constant 0 : index
    %50 = vector.load %arg10[%c40_53, %c0_54] : memref<56x6272xf32, #tpu.memory_space<vmem>>, vector<8x6272xf32>
    tpu.vector_store %arg10[%c40_53, %c0_54], %49 {strides = array<i32>} : memref<56x6272xf32, #tpu.memory_space<vmem>>, vector<8x6272xf32>,
    %c0_55 = arith.constant 0 : index
    %c6 = arith.constant 6 : index
    %51 = vector.load %arg8[%c0_55, %c6] : memref<8x6400xf32, #tpu.memory_space<vmem>>, vector<8x6272xf32>
    %c48_56 = arith.constant 48 : index
    %c0_57 = arith.constant 0 : index
    %52 = vector.load %arg10[%c48_56, %c0_57] : memref<56x6272xf32, #tpu.memory_space<vmem>>, vector<8x6272xf32>
    tpu.vector_store %arg10[%c48_56, %c0_57], %51 {strides = array<i32>} : memref<56x6272xf32, #tpu.memory_space<vmem>>, vector<8x6272xf32>,
    %c0_58 = arith.constant 0 : index
    %c0_59 = arith.constant 0 : index
    %53 = vector.load %arg3[%c0_58, %c0_59] : memref<8x56xf32, #tpu.memory_space<vmem>>, vector<8x56xf32>
    %c0_60 = arith.constant 0 : index
    %c0_61 = arith.constant 0 : index
    %54 = vector.load %arg10[%c0_60, %c0_61] : memref<56x6272xf32, #tpu.memory_space<vmem>>, vector<56x6272xf32>
    %cst_62 = arith.constant dense<0.000000e+00> : vector<8x6272xf32>
    %55 = tpu.matmul %53, %54, %cst_62 {dimension_numbers = #tpu.dot_dimension_numbers<[1], [0], [0], [1], [0, 0, 1, 1], [], []>} : vector<8x56xf32>, vector<56x6272xf32>, vector<8x6272xf32> -> vector<8x6272xf32>
    %c0_63 = arith.constant 0 : index
    %c0_64 = arith.constant 0 : index
    %56 = vector.load %arg5[%c0_63, %c0_64] : memref<8x6272xf32, #tpu.memory_space<vmem>>, vector<8x6272xf32>
    %57 = arith.addf %55, %56 : vector<8x6272xf32>
    %cst_65 = arith.constant 0.000000e+00 : f32
    %58 = vector.broadcast %cst_65 : f32 to vector<8x6272xf32>
    %59 = arith.cmpf oge, %57, %58 : vector<8x6272xf32>
    %60 = vector.broadcast %4 : vector<8x1xf32> to vector<8x6272xf32>
    %61 = arith.mulf %60, %57 : vector<8x6272xf32>
    %62 = arith.select %59, %57, %61 : vector<8x6272xi1>, vector<8x6272xf32>
    %c0_66 = arith.constant 0 : index
    %c0_67 = arith.constant 0 : index
    %63 = vector.load %arg7[%c0_66, %c0_67] : memref<8x6272xf32, #tpu.memory_space<vmem>>, vector<8x6272xf32>
    tpu.vector_store %arg7[%c0_66, %c0_67], %62 {strides = array<i32>} : memref<8x6272xf32, #tpu.memory_space<vmem>>, vector<8x6272xf32>,
    return
  }
  func.func @transform_0(%arg0: i32) -> (i32, i32) {
    %c0_i32 = arith.constant 0 : i32
    %c0_i32_0 = arith.constant 0 : i32
    return %c0_i32, %arg0 : i32, i32
  }
  func.func @transform_1(%arg0: i32) -> (i32, i32) {
    %c0_i32 = arith.constant 0 : i32
    %c0_i32_0 = arith.constant 0 : i32
    %c0_i32_1 = arith.constant 0 : i32
    return %c0_i32, %c0_i32_0 : i32, i32
  }
  func.func @transform_2(%arg0: i32) -> (i32, i32) {
    %c0_i32 = arith.constant 0 : i32
    %c0_i32_0 = arith.constant 0 : i32
    %c0_i32_1 = arith.constant 0 : i32
    return %c0_i32, %c0_i32_0 : i32, i32
  }
  func.func @transform_3(%arg0: i32) -> (i32, i32) {
    %c0_i32 = arith.constant 0 : i32
    %c0_i32_0 = arith.constant 0 : i32
    %c0_i32_1 = arith.constant 0 : i32
    return %c0_i32, %c0_i32_0 : i32, i32
  }
  func.func @transform_4(%arg0: i32) -> (i32, i32) {
    %c0_i32 = arith.constant 0 : i32
    %c0_i32_0 = arith.constant 0 : i32
    %c0_i32_1 = arith.constant 0 : i32
    return %c0_i32, %c0_i32_0 : i32, i32
  }
  func.func @transform_5(%arg0: i32) -> (i32, i32) {
    %c0_i32 = arith.constant 0 : i32
    %c0_i32_0 = arith.constant 0 : i32
    %c0_i32_1 = arith.constant 0 : i32
    return %c0_i32, %c0_i32_0 : i32, i32
  }
  func.func @transform_6(%arg0: i32) -> (i32, i32) {
    %c0_i32 = arith.constant 0 : i32
    %c0_i32_0 = arith.constant 0 : i32
    return %c0_i32, %arg0 : i32, i32
  }
}

</mosaic_0001>

<llo_original>
// kernel: mul.2
$region0: #{mul.2}
  #allocation0 [shape = 's32[1]{0}', space=sflag, size = 0x4, scoped, tag = 'scoped memory for mul.2']
  %s0 = inlined_call_operand.vmem [shape: f32[784], index: 0, kind: input, shape index: {}]
  %s1 = inlined_call_operand.vmem [shape: f32[784], index: 1, kind: input, shape index: {}]
  %s2 = inlined_call_operand.vmem [shape: f32[784], index: 2, kind: output, shape index: {}]
  %v3 = vld [vmem:[%s0] sm:$0x7f]
  %v4 = vld [vmem:[%s1] sm:$0x7f]
  %5 = xla_tuple %v3, %v4
  %6 = xla_tuple %5
  %v7 = vmul.f32 %v3, %v4
  %8 = xla_tuple %v7
  %9 = vst [vmem:[%s2] sm:$0xff] %v7

// kernel: tile.14
$region0: #{tile.14}
  %s0 = inlined_call_operand.vmem [shape: f32[8,8,784], index: 0, kind: input, shape index: {}]
  %s1 = inlined_call_operand.vmem [shape: f32[8,6272], index: 1, kind: output, shape index: {}]
  %s2 = scalar_lea.vmem %s0, 48
  %v3 = vld [vmem:[%s2] ss:$56 sm:$0xf]
  %s4 = scalar_lea.vmem %s0, 48
  %v5 = vld [vmem:[%s4] ss:$56 sm:$0xf0]
  %vm6 = vcmask 1047556
  %v7 = vsel %vm6, %v5, %v3
  %vm8 = vcmask 130048
  %s9 = scalar_lea.vmem %s1, 48
  %10 = vst.msk [vmem:[%s9] sm:$0xff] %vm8, %v7
  %v11 = vld [vmem:[%s0] ss:$8 sm:$0xf]
  %s12 = smov 48
  %v13 = vld [vmem:[%s0] ss:$8 sm:%s12]
  %vm14 = vcmask 1045508
  %v15 = vsel %vm14, %v13, %v11
  %16 = vst [vmem:[%s1] ss:$8 sm:$0xf] %v15
  %17 = vst [vmem:[%s1] ss:$8 sm:$0x30] %v15
  %s18 = scalar_lea.vmem %s0, 56
  %v19 = vld [vmem:[%s18] ss:$8 sm:$0xf]
  %s20 = scalar_lea.vmem %s0, 56
  %s21 = smov 48
  %v22 = vld [vmem:[%s20] ss:$8 sm:%s21]
  %vm23 = vcmask 1045508
  %v24 = vsel %vm23, %v22, %v19
  %s25 = scalar_lea.vmem %s1, 1
  %26 = vst [vmem:[%s25] ss:$8 sm:$0xf] %v24
  %s27 = scalar_lea.vmem %s1, 1
  %28 = vst [vmem:[%s27] ss:$8 sm:$0x30] %v24
  %s29 = scalar_lea.vmem %s0, 112
  %v30 = vld [vmem:[%s29] ss:$8 sm:$0xf]
  %s31 = scalar_lea.vmem %s0, 112
  %s32 = smov 48
  %v33 = vld [vmem:[%s31] ss:$8 sm:%s32]
  %vm34 = vcmask 1045508
  %v35 = vsel %vm34, %v33, %v30
  %s36 = scalar_lea.vmem %s1, 2
  %37 = vst [vmem:[%s36] ss:$8 sm:$0xf] %v35
  %s38 = scalar_lea.vmem %s1, 2
  %39 = vst [vmem:[%s38] ss:$8 sm:$0x30] %v35
  %s40 = scalar_lea.vmem %s0, 168
  %v41 = vld [vmem:[%s40] ss:$8 sm:$0xf]
  %s42 = scalar_lea.vmem %s0, 168
  %s43 = smov 48
  %v44 = vld [vmem:[%s42] ss:$8 sm:%s43]
  %vm45 = vcmask 1045508
  %v46 = vsel %vm45, %v44, %v41
  %s47 = scalar_lea.vmem %s1, 3
  %48 = vst [vmem:[%s47] ss:$8 sm:$0xf] %v46
  %s49 = scalar_lea.vmem %s1, 3
  %50 = vst [vmem:[%s49] ss:$8 sm:$0x30] %v46
  %s51 = scalar_lea.vmem %s0, 224
  %v52 = vld [vmem:[%s51] ss:$8 sm:$0xf]
  %s53 = scalar_lea.vmem %s0, 224
  %s54 = smov 48
  %v55 = vld [vmem:[%s53] ss:$8 sm:%s54]
  %vm56 = vcmask 1045508
  %v57 = vsel %vm56, %v55, %v52
  %s58 = scalar_lea.vmem %s1, 4
  %59 = vst [vmem:[%s58] ss:$8 sm:$0xf] %v57
  %s60 = scalar_lea.vmem %s1, 4
  %61 = vst [vmem:[%s60] ss:$8 sm:$0x30] %v57
  %s62 = scalar_lea.vmem %s0, 280
  %v63 = vld [vmem:[%s62] ss:$8 sm:$0xf]
  %s64 = scalar_lea.vmem %s0, 280
  %s65 = smov 48
  %v66 = vld [vmem:[%s64] ss:$8 sm:%s65]
  %vm67 = vcmask 1045508
  %v68 = vsel %vm67, %v66, %v63
  %s69 = scalar_lea.vmem %s1, 5
  %70 = vst [vmem:[%s69] ss:$8 sm:$0xf] %v68
  %s71 = scalar_lea.vmem %s1, 5
  %72 = vst [vmem:[%s71] ss:$8 sm:$0x30] %v68
  %s73 = scalar_lea.vmem %s0, 336
  %v74 = vld [vmem:[%s73] ss:$8 sm:$0xf]
  %s75 = scalar_lea.vmem %s0, 336
  %s76 = smov 48
  %v77 = vld [vmem:[%s75] ss:$8 sm:%s76]
  %vm78 = vcmask 1045508
  %v79 = vsel %vm78, %v77, %v74
  %s80 = scalar_lea.vmem %s1, 6
  %81 = vst [vmem:[%s80] ss:$8 sm:$0xf] %v79
  %s82 = scalar_lea.vmem %s1, 6
  %83 = vst [vmem:[%s82] ss:$8 sm:$0x30] %v79
  %s84 = scalar_lea.vmem %s0, 392
  %v85 = vld [vmem:[%s84] ss:$8 sm:$0xf]
  %s86 = scalar_lea.vmem %s0, 392
  %s87 = smov 48
  %v88 = vld [vmem:[%s86] ss:$8 sm:%s87]
  %vm89 = vcmask 1045508
  %v90 = vsel %vm89, %v88, %v85
  %s91 = scalar_lea.vmem %s1, 7
  %92 = vst [vmem:[%s91] ss:$8 sm:$0xf] %v90
  %s93 = scalar_lea.vmem %s1, 7
  %94 = vst [vmem:[%s93] ss:$8 sm:$0x30] %v90
  %s95 = scalar_lea.vmem %s0, 15
  %v96 = vld [vmem:[%s95] ss:$56 sm:$0xf]
  %s97 = scalar_lea.vmem %s0, 15
  %v98 = vld [vmem:[%s97] ss:$56 sm:$0xf0]
  %vm99 = vcmask 1047556
  %v100 = vsel %vm99, %v98, %v96
  %s101 = scalar_lea.vmem %s0, 23
  %v102 = vld [vmem:[%s101] ss:$56 sm:$0xf]
  %s103 = scalar_lea.vmem %s0, 23
  %v104 = vld [vmem:[%s103] ss:$56 sm:$0xf0]
  %vm105 = vcmask 1047556
  %v106 = vsel %vm105, %v104, %v102
  %vm107 = vcmask 130048
  %v108 = vsel %vm107, %v106, %v100
  %109 = vrot.lane.b32.xlu0 %v108, 112
  %v110 = vpop.permute.xlu0 %109
  %vm111 = vcmask 916480
  %s112 = scalar_lea.vmem %s1, 352
  %113 = vst.msk [vmem:[%s112] sm:$0xff] %vm111, %v110
  %vm114 = vcmask 1048448
  %s115 = scalar_lea.vmem %s1, 352
  %116 = vst.msk [vmem:[%s115] sm:$0xff] %vm114, %v110
  %s117 = scalar_lea.vmem %s0, 47
  %v118 = vld [vmem:[%s117] ss:$56 sm:$0xf]
  %s119 = scalar_lea.vmem %s0, 47
  %v120 = vld [vmem:[%s119] ss:$56 sm:$0xf0]
  %vm121 = vcmask 1047556
  %v122 = vsel %vm121, %v120, %v118
  %s123 = scalar_lea.vmem %s0, 55
  %v124 = vld [vmem:[%s123] ss:$56 sm:$0xf]
  %s125 = scalar_lea.vmem %s0, 55
  %v126 = vld [vmem:[%s125] ss:$56 sm:$0xf0]
  %vm127 = vcmask 1047556
  %v128 = vsel %vm127, %v126, %v124
  %vm129 = vcmask 130048
  %v130 = vsel %vm129, %v128, %v122
  %131 = vrot.lane.b32.xlu0 %v130, 112
  %v132 = vpop.permute.xlu0 %131
  %vm133 = vcmask 916480
  %s134 = scalar_lea.vmem %s1, 384
  %135 = vst.msk [vmem:[%s134] sm:$0xff] %vm133, %v132
  %vm136 = vcmask 1048448
  %s137 = scalar_lea.vmem %s1, 384
  %138 = vst.msk [vmem:[%s137] sm:$0xff] %vm136, %v132
  %s139 = scalar_lea.vmem %s0, 23
  %v140 = vld [vmem:[%s139] ss:$56 sm:$0xf]
  %s141 = scalar_lea.vmem %s0, 23
  %v142 = vld [vmem:[%s141] ss:$56 sm:$0xf0]
  %vm143 = vcmask 1047556
  %v144 = vsel %vm143, %v142, %v140
  %s145 = scalar_lea.vmem %s0, 31
  %v146 = vld [vmem:[%s145] ss:$56 sm:$0xf]
  %s147 = scalar_lea.vmem %s0, 31
  %v148 = vld [vmem:[%s147] ss:$56 sm:$0xf0]
  %vm149 = vcmask 1047556
  %v150 = vsel %vm149, %v148, %v146
  %vm151 = vcmask 130048
  %v152 = vsel %vm151, %v150, %v144
  %153 = vrot.lane.b32.xlu0 %v152, 112
  %v154 = vpop.permute.xlu0 %153
  %vm155 = vcmask 916480
  %s156 = scalar_lea.vmem %s1, 360
  %157 = vst.msk [vmem:[%s156] sm:$0xff] %vm155, %v154
  %vm158 = vcmask 1048448
  %s159 = scalar_lea.vmem %s1, 360
  %160 = vst.msk [vmem:[%s159] sm:$0xff] %vm158, %v154
  %s161 = scalar_lea.vmem %s0, 31
  %v162 = vld [vmem:[%s161] ss:$56 sm:$0xf]
  %s163 = scalar_lea.vmem %s0, 31
  %v164 = vld [vmem:[%s163] ss:$56 sm:$0xf0]
  %vm165 = vcmask 1047556
  %v166 = vsel %vm165, %v164, %v162
  %s167 = scalar_lea.vmem %s0, 7
  %v168 = vld [vmem:[%s167] ss:$56 sm:$0xf]
  %s169 = scalar_lea.vmem %s0, 7
  %v170 = vld [vmem:[%s169] ss:$56 sm:$0xf0]
  %vm171 = vcmask 1047556
  %v172 = vsel %vm171, %v170, %v168
  %vm173 = vcmask 130048
  %v174 = vsel %vm173, %v172, %v166
  %175 = vrot.lane.b32.xlu0 %v174, 112
  %v176 = vpop.permute.xlu0 %175
  %vm177 = vcmask 916480
  %s178 = scalar_lea.vmem %s1, 368
  %179 = vst.msk [vmem:[%s178] sm:$0xff] %vm177, %v176
  %vm180 = vcmask 1048448
  %s181 = scalar_lea.vmem %s1, 336
  %182 = vst.msk [vmem:[%s181] sm:$0xff] %vm180, %v176
  %s183 = scalar_lea.vmem %s0, 7
  %v184 = vld [vmem:[%s183] ss:$56 sm:$0xf]
  %s185 = scalar_lea.vmem %s0, 7
  %v186 = vld [vmem:[%s185] ss:$56 sm:$0xf0]
  %vm187 = vcmask 1047556
  %v188 = vsel %vm187, %v186, %v184
  %s189 = scalar_lea.vmem %s0, 39
  %v190 = vld [vmem:[%s189] ss:$56 sm:$0xf]
  %s191 = scalar_lea.vmem %s0, 39
  %v192 = vld [vmem:[%s191] ss:$56 sm:$0xf0]
  %vm193 = vcmask 1047556
  %v194 = vsel %vm193, %v192, %v190
  %vm195 = vcmask 130048
  %v196 = vsel %vm195, %v194, %v188
  %197 = vrot.lane.b32.xlu0 %v196, 112
  %v198 = vpop.permute.xlu0 %197
  %vm199 = vcmask 916480
  %s200 = scalar_lea.vmem %s1, 344
  %201 = vst.msk [vmem:[%s200] sm:$0xff] %vm199, %v198
  %vm202 = vcmask 1048448
  %s203 = scalar_lea.vmem %s1, 368
  %204 = vst.msk [vmem:[%s203] sm:$0xff] %vm202, %v198
  %s205 = scalar_lea.vmem %s0, 39
  %v206 = vld [vmem:[%s205] ss:$56 sm:$0xf]
  %s207 = scalar_lea.vmem %s0, 39
  %v208 = vld [vmem:[%s207] ss:$56 sm:$0xf0]
  %vm209 = vcmask 1047556
  %v210 = vsel %vm209, %v208, %v206
  %s211 = scalar_lea.vmem %s0, 15
  %v212 = vld [vmem:[%s211] ss:$56 sm:$0xf]
  %s213 = scalar_lea.vmem %s0, 15
  %v214 = vld [vmem:[%s213] ss:$56 sm:$0xf0]
  %vm215 = vcmask 1047556
  %v216 = vsel %vm215, %v214, %v212
  %vm217 = vcmask 130048
  %v218 = vsel %vm217, %v216, %v210
  %219 = vrot.lane.b32.xlu0 %v218, 112
  %v220 = vpop.permute.xlu0 %219
  %vm221 = vcmask 916480
  %s222 = scalar_lea.vmem %s1, 376
  %223 = vst.msk [vmem:[%s222] sm:$0xff] %vm221, %v220
  %vm224 = vcmask 1048448
  %s225 = scalar_lea.vmem %s1, 344
  %226 = vst.msk [vmem:[%s225] sm:$0xff] %vm224, %v220
  %s227 = scalar_lea.vmem %s0, 47
  %v228 = vld [vmem:[%s227] ss:$56 sm:$0xf]
  %s229 = scalar_lea.vmem %s0, 47
  %v230 = vld [vmem:[%s229] ss:$56 sm:$0xf0]
  %vm231 = vcmask 1047556
  %v232 = vsel %vm231, %v230, %v228
  %233 = vrot.lane.b32.xlu0 %v232, 112
  %v234 = vpop.permute.xlu0 %233
  %vm235 = vcmask 1048448
  %s236 = scalar_lea.vmem %s1, 376
  %237 = vst.msk [vmem:[%s236] sm:$0xff] %vm235, %v234
  %s238 = scalar_lea.vmem %s0, 30
  %v239 = vld [vmem:[%s238] ss:$56 sm:$0xf]
  %s240 = scalar_lea.vmem %s0, 30
  %v241 = vld [vmem:[%s240] ss:$56 sm:$0xf0]
  %vm242 = vcmask 1047556
  %v243 = vsel %vm242, %v241, %v239
  %s244 = scalar_lea.vmem %s0, 54
  %v245 = vld [vmem:[%s244] ss:$56 sm:$0xf]
  %s246 = scalar_lea.vmem %s0, 54
  %v247 = vld [vmem:[%s246] ss:$56 sm:$0xf0]
  %vm248 = vcmask 1047556
  %v249 = vsel %vm248, %v247, %v245
  %vm250 = vcmask 261120
  %v251 = vsel %vm250, %v249, %v243
  %252 = vrot.lane.b32.xlu0 %v251, 96
  %v253 = vpop.permute.xlu0 %252
  %vm254 = vcmask 785408
  %s255 = scalar_lea.vmem %s1, 320
  %256 = vst.msk [vmem:[%s255] sm:$0xff] %vm254, %v253
  %vm257 = vcmask 917248
  %s258 = scalar_lea.vmem %s1, 336
  %259 = vst.msk [vmem:[%s258] sm:$0xff] %vm257, %v253
  %s260 = scalar_lea.vmem %s0, 6
  %v261 = vld [vmem:[%s260] ss:$56 sm:$0xf]
  %s262 = scalar_lea.vmem %s0, 6
  %v263 = vld [vmem:[%s262] ss:$56 sm:$0xf0]
  %vm264 = vcmask 1047556
  %v265 = vsel %vm264, %v263, %v261
  %s266 = scalar_lea.vmem %s0, 6
  %v267 = vld [vmem:[%s266] ss:$56 sm:$0xf]
  %s268 = scalar_lea.vmem %s0, 6
  %v269 = vld [vmem:[%s268] ss:$56 sm:$0xf0]
  %vm270 = vcmask 1047556
  %v271 = vsel %vm270, %v269, %v267
  %vm272 = vcmask 261120
  %v273 = vsel %vm272, %v271, %v265
  %274 = vrot.lane.b32.xlu0 %v273, 96
  %v275 = vpop.permute.xlu0 %274
  %vm276 = vcmask 785408
  %s277 = scalar_lea.vmem %s1, 296
  %278 = vst.msk [vmem:[%s277] sm:$0xff] %vm276, %v275
  %vm279 = vcmask 1048320
  %s280 = scalar_lea.vmem %s1, 288
  %281 = vst.msk [vmem:[%s280] sm:$0xff] %vm279, %v275
  %s282 = scalar_lea.vmem %s0, 38
  %v283 = vld [vmem:[%s282] ss:$56 sm:$0xf]
  %s284 = scalar_lea.vmem %s0, 38
  %v285 = vld [vmem:[%s284] ss:$56 sm:$0xf0]
  %vm286 = vcmask 1047556
  %v287 = vsel %vm286, %v285, %v283
  %s288 = scalar_lea.vmem %s0, 38
  %v289 = vld [vmem:[%s288] ss:$56 sm:$0xf]
  %s290 = scalar_lea.vmem %s0, 38
  %v291 = vld [vmem:[%s290] ss:$56 sm:$0xf0]
  %vm292 = vcmask 1047556
  %v293 = vsel %vm292, %v291, %v289
  %vm294 = vcmask 261120
  %v295 = vsel %vm294, %v293, %v287
  %296 = vrot.lane.b32.xlu0 %v295, 96
  %v297 = vpop.permute.xlu0 %296
  %vm298 = vcmask 785408
  %s299 = scalar_lea.vmem %s1, 328
  %300 = vst.msk [vmem:[%s299] sm:$0xff] %vm298, %v297
  %vm301 = vcmask 1048320
  %s302 = scalar_lea.vmem %s1, 320
  %303 = vst.msk [vmem:[%s302] sm:$0xff] %vm301, %v297
  %s304 = scalar_lea.vmem %s0, 14
  %v305 = vld [vmem:[%s304] ss:$56 sm:$0xf]
  %s306 = scalar_lea.vmem %s0, 14
  %v307 = vld [vmem:[%s306] ss:$56 sm:$0xf0]
  %vm308 = vcmask 1047556
  %v309 = vsel %vm308, %v307, %v305
  %s310 = scalar_lea.vmem %s0, 14
  %v311 = vld [vmem:[%s310] ss:$56 sm:$0xf]
  %s312 = scalar_lea.vmem %s0, 14
  %v313 = vld [vmem:[%s312] ss:$56 sm:$0xf0]
  %vm314 = vcmask 1047556
  %v315 = vsel %vm314, %v313, %v311
  %vm316 = vcmask 261120
  %v317 = vsel %vm316, %v315, %v309
  %318 = vrot.lane.b32.xlu0 %v317, 96
  %v319 = vpop.permute.xlu0 %318
  %vm320 = vcmask 785408
  %s321 = scalar_lea.vmem %s1, 304
  %322 = vst.msk [vmem:[%s321] sm:$0xff] %vm320, %v319
  %vm323 = vcmask 1048320
  %s324 = scalar_lea.vmem %s1, 296
  %325 = vst.msk [vmem:[%s324] sm:$0xff] %vm323, %v319
  %s326 = scalar_lea.vmem %s0, 46
  %v327 = vld [vmem:[%s326] ss:$56 sm:$0xf]
  %s328 = scalar_lea.vmem %s0, 46
  %v329 = vld [vmem:[%s328] ss:$56 sm:$0xf0]
  %vm330 = vcmask 1047556
  %v331 = vsel %vm330, %v329, %v327
  %s332 = scalar_lea.vmem %s0, 46
  %v333 = vld [vmem:[%s332] ss:$56 sm:$0xf]
  %s334 = scalar_lea.vmem %s0, 46
  %v335 = vld [vmem:[%s334] ss:$56 sm:$0xf0]
  %vm336 = vcmask 1047556
  %v337 = vsel %vm336, %v335, %v333
  %vm338 = vcmask 261120
  %v339 = vsel %vm338, %v337, %v331
  %340 = vrot.lane.b32.xlu0 %v339, 96
  %v341 = vpop.permute.xlu0 %340
  %vm342 = vcmask 785408
  %s343 = scalar_lea.vmem %s1, 336
  %344 = vst.msk [vmem:[%s343] sm:$0xff] %vm342, %v341
  %vm345 = vcmask 1048320
  %s346 = scalar_lea.vmem %s1, 328
  %347 = vst.msk [vmem:[%s346] sm:$0xff] %vm345, %v341
  %s348 = scalar_lea.vmem %s0, 22
  %v349 = vld [vmem:[%s348] ss:$56 sm:$0xf]
  %s350 = scalar_lea.vmem %s0, 22
  %v351 = vld [vmem:[%s350] ss:$56 sm:$0xf0]
  %vm352 = vcmask 1047556
  %v353 = vsel %vm352, %v351, %v349
  %s354 = scalar_lea.vmem %s0, 22
  %v355 = vld [vmem:[%s354] ss:$56 sm:$0xf]
  %s356 = scalar_lea.vmem %s0, 22
  %v357 = vld [vmem:[%s356] ss:$56 sm:$0xf0]
  %vm358 = vcmask 1047556
  %v359 = vsel %vm358, %v357, %v355
  %vm360 = vcmask 261120
  %v361 = vsel %vm360, %v359, %v353
  %362 = vrot.lane.b32.xlu0 %v361, 96
  %v363 = vpop.permute.xlu0 %362
  %vm364 = vcmask 785408
  %s365 = scalar_lea.vmem %s1, 312
  %366 = vst.msk [vmem:[%s365] sm:$0xff] %vm364, %v363
  %vm367 = vcmask 1048320
  %s368 = scalar_lea.vmem %s1, 304
  %369 = vst.msk [vmem:[%s368] sm:$0xff] %vm367, %v363
  %s370 = scalar_lea.vmem %s0, 30
  %v371 = vld [vmem:[%s370] ss:$56 sm:$0xf]
  %s372 = scalar_lea.vmem %s0, 30
  %v373 = vld [vmem:[%s372] ss:$56 sm:$0xf0]
  %vm374 = vcmask 1047556
  %v375 = vsel %vm374, %v373, %v371
  %376 = vrot.lane.b32.xlu0 %v375, 96
  %v377 = vpop.permute.xlu0 %376
  %vm378 = vcmask 1048320
  %s379 = scalar_lea.vmem %s1, 312
  %380 = vst.msk [vmem:[%s379] sm:$0xff] %vm378, %v377
  %s381 = scalar_lea.vmem %s0, 13
  %v382 = vld [vmem:[%s381] ss:$56 sm:$0xf]
  %s383 = scalar_lea.vmem %s0, 13
  %v384 = vld [vmem:[%s383] ss:$56 sm:$0xf0]
  %vm385 = vcmask 1047556
  %v386 = vsel %vm385, %v384, %v382
  %s387 = scalar_lea.vmem %s0, 53
  %v388 = vld [vmem:[%s387] ss:$56 sm:$0xf]
  %s389 = scalar_lea.vmem %s0, 53
  %v390 = vld [vmem:[%s389] ss:$56 sm:$0xf0]
  %vm391 = vcmask 1047556
  %v392 = vsel %vm391, %v390, %v388
  %vm393 = vcmask 392192
  %v394 = vsel %vm393, %v392, %v386
  %395 = vrot.lane.b32.xlu0 %v394, 80
  %v396 = vpop.permute.xlu0 %395
  %vm397 = vcmask 654336
  %s398 = scalar_lea.vmem %s1, 256
  %399 = vst.msk [vmem:[%s398] sm:$0xff] %vm397, %v396
  %vm400 = vcmask 786048
  %s401 = scalar_lea.vmem %s1, 288
  %402 = vst.msk [vmem:[%s401] sm:$0xff] %vm400, %v396
  %s403 = scalar_lea.vmem %s0, 45
  %v404 = vld [vmem:[%s403] ss:$56 sm:$0xf]
  %s405 = scalar_lea.vmem %s0, 45
  %v406 = vld [vmem:[%s405] ss:$56 sm:$0xf0]
  %vm407 = vcmask 1047556
  %v408 = vsel %vm407, %v406, %v404
  %s409 = scalar_lea.vmem %s0, 21
  %v410 = vld [vmem:[%s409] ss:$56 sm:$0xf]
  %s411 = scalar_lea.vmem %s0, 21
  %v412 = vld [vmem:[%s411] ss:$56 sm:$0xf0]
  %vm413 = vcmask 1047556
  %v414 = vsel %vm413, %v412, %v410
  %vm415 = vcmask 392192
  %v416 = vsel %vm415, %v414, %v408
  %417 = vrot.lane.b32.xlu0 %v416, 80
  %v418 = vpop.permute.xlu0 %417
  %vm419 = vcmask 654336
  %s420 = scalar_lea.vmem %s1, 288
  %421 = vst.msk [vmem:[%s420] sm:$0xff] %vm419, %v418
  %vm422 = vcmask 1048192
  %s423 = scalar_lea.vmem %s1, 256
  %424 = vst.msk [vmem:[%s423] sm:$0xff] %vm422, %v418
  %s425 = scalar_lea.vmem %s0, 21
  %v426 = vld [vmem:[%s425] ss:$56 sm:$0xf]
  %s427 = scalar_lea.vmem %s0, 21
  %v428 = vld [vmem:[%s427] ss:$56 sm:$0xf0]
  %vm429 = vcmask 1047556
  %v430 = vsel %vm429, %v428, %v426
  %s431 = scalar_lea.vmem %s0, 29
  %v432 = vld [vmem:[%s431] ss:$56 sm:$0xf]
  %s433 = scalar_lea.vmem %s0, 29
  %v434 = vld [vmem:[%s433] ss:$56 sm:$0xf0]
  %vm435 = vcmask 1047556
  %v436 = vsel %vm435, %v434, %v432
  %vm437 = vcmask 392192
  %v438 = vsel %vm437, %v436, %v430
  %439 = vrot.lane.b32.xlu0 %v438, 80
  %v440 = vpop.permute.xlu0 %439
  %vm441 = vcmask 654336
  %s442 = scalar_lea.vmem %s1, 264
  %443 = vst.msk [vmem:[%s442] sm:$0xff] %vm441, %v440
  %vm444 = vcmask 1048192
  %s445 = scalar_lea.vmem %s1, 264
  %446 = vst.msk [vmem:[%s445] sm:$0xff] %vm444, %v440
  %s447 = scalar_lea.vmem %s0, 29
  %v448 = vld [vmem:[%s447] ss:$56 sm:$0xf]
  %s449 = scalar_lea.vmem %s0, 29
  %v450 = vld [vmem:[%s449] ss:$56 sm:$0xf0]
  %vm451 = vcmask 1047556
  %v452 = vsel %vm451, %v450, %v448
  %s453 = scalar_lea.vmem %s0, 5
  %v454 = vld [vmem:[%s453] ss:$56 sm:$0xf]
  %s455 = scalar_lea.vmem %s0, 5
  %v456 = vld [vmem:[%s455] ss:$56 sm:$0xf0]
  %vm457 = vcmask 1047556
  %v458 = vsel %vm457, %v456, %v454
  %vm459 = vcmask 392192
  %v460 = vsel %vm459, %v458, %v452
  %461 = vrot.lane.b32.xlu0 %v460, 80
  %v462 = vpop.permute.xlu0 %461
  %vm463 = vcmask 654336
  %s464 = scalar_lea.vmem %s1, 272
  %465 = vst.msk [vmem:[%s464] sm:$0xff] %vm463, %v462
  %vm466 = vcmask 1048192
  %s467 = scalar_lea.vmem %s1, 240
  %468 = vst.msk [vmem:[%s467] sm:$0xff] %vm466, %v462
  %s469 = scalar_lea.vmem %s0, 5
  %v470 = vld [vmem:[%s469] ss:$56 sm:$0xf]
  %s471 = scalar_lea.vmem %s0, 5
  %v472 = vld [vmem:[%s471] ss:$56 sm:$0xf0]
  %vm473 = vcmask 1047556
  %v474 = vsel %vm473, %v472, %v470
  %s475 = scalar_lea.vmem %s0, 37
  %v476 = vld [vmem:[%s475] ss:$56 sm:$0xf]
  %s477 = scalar_lea.vmem %s0, 37
  %v478 = vld [vmem:[%s477] ss:$56 sm:$0xf0]
  %vm479 = vcmask 1047556
  %v480 = vsel %vm479, %v478, %v476
  %vm481 = vcmask 392192
  %v482 = vsel %vm481, %v480, %v474
  %483 = vrot.lane.b32.xlu0 %v482, 80
  %v484 = vpop.permute.xlu0 %483
  %vm485 = vcmask 654336
  %s486 = scalar_lea.vmem %s1, 248
  %487 = vst.msk [vmem:[%s486] sm:$0xff] %vm485, %v484
  %vm488 = vcmask 1048192
  %s489 = scalar_lea.vmem %s1, 272
  %490 = vst.msk [vmem:[%s489] sm:$0xff] %vm488, %v484
  %s491 = scalar_lea.vmem %s0, 37
  %v492 = vld [vmem:[%s491] ss:$56 sm:$0xf]
  %s493 = scalar_lea.vmem %s0, 37
  %v494 = vld [vmem:[%s493] ss:$56 sm:$0xf0]
  %vm495 = vcmask 1047556
  %v496 = vsel %vm495, %v494, %v492
  %s497 = scalar_lea.vmem %s0, 13
  %v498 = vld [vmem:[%s497] ss:$56 sm:$0xf]
  %s499 = scalar_lea.vmem %s0, 13
  %v500 = vld [vmem:[%s499] ss:$56 sm:$0xf0]
  %vm501 = vcmask 1047556
  %v502 = vsel %vm501, %v500, %v498
  %vm503 = vcmask 392192
  %v504 = vsel %vm503, %v502, %v496
  %505 = vrot.lane.b32.xlu0 %v504, 80
  %v506 = vpop.permute.xlu0 %505
  %vm507 = vcmask 654336
  %s508 = scalar_lea.vmem %s1, 280
  %509 = vst.msk [vmem:[%s508] sm:$0xff] %vm507, %v506
  %vm510 = vcmask 1048192
  %s511 = scalar_lea.vmem %s1, 248
  %512 = vst.msk [vmem:[%s511] sm:$0xff] %vm510, %v506
  %s513 = scalar_lea.vmem %s0, 45
  %v514 = vld [vmem:[%s513] ss:$56 sm:$0xf]
  %s515 = scalar_lea.vmem %s0, 45
  %v516 = vld [vmem:[%s515] ss:$56 sm:$0xf0]
  %vm517 = vcmask 1047556
  %v518 = vsel %vm517, %v516, %v514
  %519 = vrot.lane.b32.xlu0 %v518, 80
  %v520 = vpop.permute.xlu0 %519
  %vm521 = vcmask 1048192
  %s522 = scalar_lea.vmem %s1, 280
  %523 = vst.msk [vmem:[%s522] sm:$0xff] %vm521, %v520
  %s524 = scalar_lea.vmem %s0, 28
  %v525 = vld [vmem:[%s524] ss:$56 sm:$0xf]
  %s526 = scalar_lea.vmem %s0, 28
  %v527 = vld [vmem:[%s526] ss:$56 sm:$0xf0]
  %vm528 = vcmask 1047556
  %v529 = vsel %vm528, %v527, %v525
  %s530 = scalar_lea.vmem %s0, 52
  %v531 = vld [vmem:[%s530] ss:$56 sm:$0xf]
  %s532 = scalar_lea.vmem %s0, 52
  %v533 = vld [vmem:[%s532] ss:$56 sm:$0xf0]
  %vm534 = vcmask 1047556
  %v535 = vsel %vm534, %v533, %v531
  %vm536 = vcmask 523264
  %v537 = vsel %vm536, %v535, %v529
  %538 = vrot.lane.b32.xlu0 %v537, 64
  %v539 = vpop.permute.xlu0 %538
  %vm540 = vcmask 523264
  %s541 = scalar_lea.vmem %s1, 224
  %542 = vst.msk [vmem:[%s541] sm:$0xff] %vm540, %v539
  %vm543 = vcmask 654848
  %s544 = scalar_lea.vmem %s1, 240
  %545 = vst.msk [vmem:[%s544] sm:$0xff] %vm543, %v539
  %s546 = scalar_lea.vmem %s0, 4
  %v547 = vld [vmem:[%s546] ss:$56 sm:$0xf]
  %s548 = scalar_lea.vmem %s0, 4
  %v549 = vld [vmem:[%s548] ss:$56 sm:$0xf0]
  %vm550 = vcmask 1047556
  %v551 = vsel %vm550, %v549, %v547
  %s552 = scalar_lea.vmem %s0, 4
  %v553 = vld [vmem:[%s552] ss:$56 sm:$0xf]
  %s554 = scalar_lea.vmem %s0, 4
  %v555 = vld [vmem:[%s554] ss:$56 sm:$0xf0]
  %vm556 = vcmask 1047556
  %v557 = vsel %vm556, %v555, %v553
  %vm558 = vcmask 523264
  %v559 = vsel %vm558, %v557, %v551
  %560 = vrot.lane.b32.xlu0 %v559, 64
  %v561 = vpop.permute.xlu0 %560
  %vm562 = vcmask 523264
  %s563 = scalar_lea.vmem %s1, 200
  %564 = vst.msk [vmem:[%s563] sm:$0xff] %vm562, %v561
  %vm565 = vcmask 1048064
  %s566 = scalar_lea.vmem %s1, 192
  %567 = vst.msk [vmem:[%s566] sm:$0xff] %vm565, %v561
  %s568 = scalar_lea.vmem %s0, 36
  %v569 = vld [vmem:[%s568] ss:$56 sm:$0xf]
  %s570 = scalar_lea.vmem %s0, 36
  %v571 = vld [vmem:[%s570] ss:$56 sm:$0xf0]
  %vm572 = vcmask 1047556
  %v573 = vsel %vm572, %v571, %v569
  %s574 = scalar_lea.vmem %s0, 36
  %v575 = vld [vmem:[%s574] ss:$56 sm:$0xf]
  %s576 = scalar_lea.vmem %s0, 36
  %v577 = vld [vmem:[%s576] ss:$56 sm:$0xf0]
  %vm578 = vcmask 1047556
  %v579 = vsel %vm578, %v577, %v575
  %vm580 = vcmask 523264
  %v581 = vsel %vm580, %v579, %v573
  %582 = vrot.lane.b32.xlu0 %v581, 64
  %v583 = vpop.permute.xlu0 %582
  %vm584 = vcmask 523264
  %s585 = scalar_lea.vmem %s1, 232
  %586 = vst.msk [vmem:[%s585] sm:$0xff] %vm584, %v583
  %vm587 = vcmask 1048064
  %s588 = scalar_lea.vmem %s1, 224
  %589 = vst.msk [vmem:[%s588] sm:$0xff] %vm587, %v583
  %s590 = scalar_lea.vmem %s0, 12
  %v591 = vld [vmem:[%s590] ss:$56 sm:$0xf]
  %s592 = scalar_lea.vmem %s0, 12
  %v593 = vld [vmem:[%s592] ss:$56 sm:$0xf0]
  %vm594 = vcmask 1047556
  %v595 = vsel %vm594, %v593, %v591
  %s596 = scalar_lea.vmem %s0, 12
  %v597 = vld [vmem:[%s596] ss:$56 sm:$0xf]
  %s598 = scalar_lea.vmem %s0, 12
  %v599 = vld [vmem:[%s598] ss:$56 sm:$0xf0]
  %vm600 = vcmask 1047556
  %v601 = vsel %vm600, %v599, %v597
  %vm602 = vcmask 523264
  %v603 = vsel %vm602, %v601, %v595
  %604 = vrot.lane.b32.xlu0 %v603, 64
  %v605 = vpop.permute.xlu0 %604
  %vm606 = vcmask 523264
  %s607 = scalar_lea.vmem %s1, 208
  %608 = vst.msk [vmem:[%s607] sm:$0xff] %vm606, %v605
  %vm609 = vcmask 1048064
  %s610 = scalar_lea.vmem %s1, 200
  %611 = vst.msk [vmem:[%s610] sm:$0xff] %vm609, %v605
  %s612 = scalar_lea.vmem %s0, 44
  %v613 = vld [vmem:[%s612] ss:$56 sm:$0xf]
  %s614 = scalar_lea.vmem %s0, 44
  %v615 = vld [vmem:[%s614] ss:$56 sm:$0xf0]
  %vm616 = vcmask 1047556
  %v617 = vsel %vm616, %v615, %v613
  %s618 = scalar_lea.vmem %s0, 44
  %v619 = vld [vmem:[%s618] ss:$56 sm:$0xf]
  %s620 = scalar_lea.vmem %s0, 44
  %v621 = vld [vmem:[%s620] ss:$56 sm:$0xf0]
  %vm622 = vcmask 1047556
  %v623 = vsel %vm622, %v621, %v619
  %vm624 = vcmask 523264
  %v625 = vsel %vm624, %v623, %v617
  %626 = vrot.lane.b32.xlu0 %v625, 64
  %v627 = vpop.permute.xlu0 %626
  %vm628 = vcmask 523264
  %s629 = scalar_lea.vmem %s1, 240
  %630 = vst.msk [vmem:[%s629] sm:$0xff] %vm628, %v627
  %vm631 = vcmask 1048064
  %s632 = scalar_lea.vmem %s1, 232
  %633 = vst.msk [vmem:[%s632] sm:$0xff] %vm631, %v627
  %s634 = scalar_lea.vmem %s0, 20
  %v635 = vld [vmem:[%s634] ss:$56 sm:$0xf]
  %s636 = scalar_lea.vmem %s0, 20
  %v637 = vld [vmem:[%s636] ss:$56 sm:$0xf0]
  %vm638 = vcmask 1047556
  %v639 = vsel %vm638, %v637, %v635
  %s640 = scalar_lea.vmem %s0, 20
  %v641 = vld [vmem:[%s640] ss:$56 sm:$0xf]
  %s642 = scalar_lea.vmem %s0, 20
  %v643 = vld [vmem:[%s642] ss:$56 sm:$0xf0]
  %vm644 = vcmask 1047556
  %v645 = vsel %vm644, %v643, %v641
  %vm646 = vcmask 523264
  %v647 = vsel %vm646, %v645, %v639
  %648 = vrot.lane.b32.xlu0 %v647, 64
  %v649 = vpop.permute.xlu0 %648
  %vm650 = vcmask 523264
  %s651 = scalar_lea.vmem %s1, 216
  %652 = vst.msk [vmem:[%s651] sm:$0xff] %vm650, %v649
  %vm653 = vcmask 1048064
  %s654 = scalar_lea.vmem %s1, 208
  %655 = vst.msk [vmem:[%s654] sm:$0xff] %vm653, %v649
  %s656 = scalar_lea.vmem %s0, 28
  %v657 = vld [vmem:[%s656] ss:$56 sm:$0xf]
  %s658 = scalar_lea.vmem %s0, 28
  %v659 = vld [vmem:[%s658] ss:$56 sm:$0xf0]
  %vm660 = vcmask 1047556
  %v661 = vsel %vm660, %v659, %v657
  %662 = vrot.lane.b32.xlu0 %v661, 64
  %v663 = vpop.permute.xlu0 %662
  %vm664 = vcmask 1048064
  %s665 = scalar_lea.vmem %s1, 216
  %666 = vst.msk [vmem:[%s665] sm:$0xff] %vm664, %v663
  %s667 = scalar_lea.vmem %s0, 11
  %v668 = vld [vmem:[%s667] ss:$56 sm:$0xf]
  %s669 = scalar_lea.vmem %s0, 11
  %v670 = vld [vmem:[%s669] ss:$56 sm:$0xf0]
  %vm671 = vcmask 1047556
  %v672 = vsel %vm671, %v670, %v668
  %s673 = scalar_lea.vmem %s0, 51
  %v674 = vld [vmem:[%s673] ss:$56 sm:$0xf]
  %s675 = scalar_lea.vmem %s0, 51
  %v676 = vld [vmem:[%s675] ss:$56 sm:$0xf0]
  %vm677 = vcmask 1047556
  %v678 = vsel %vm677, %v676, %v674
  %vm679 = vcmask 654336
  %v680 = vsel %vm679, %v678, %v672
  %681 = vrot.lane.b32.xlu0 %v680, 48
  %v682 = vpop.permute.xlu0 %681
  %vm683 = vcmask 392192
  %s684 = scalar_lea.vmem %s1, 160
  %685 = vst.msk [vmem:[%s684] sm:$0xff] %vm683, %v682
  %vm686 = vcmask 523648
  %s687 = scalar_lea.vmem %s1, 192
  %688 = vst.msk [vmem:[%s687] sm:$0xff] %vm686, %v682
  %s689 = scalar_lea.vmem %s0, 43
  %v690 = vld [vmem:[%s689] ss:$56 sm:$0xf]
  %s691 = scalar_lea.vmem %s0, 43
  %v692 = vld [vmem:[%s691] ss:$56 sm:$0xf0]
  %vm693 = vcmask 1047556
  %v694 = vsel %vm693, %v692, %v690
  %s695 = scalar_lea.vmem %s0, 19
  %v696 = vld [vmem:[%s695] ss:$56 sm:$0xf]
  %s697 = scalar_lea.vmem %s0, 19
  %v698 = vld [vmem:[%s697] ss:$56 sm:$0xf0]
  %vm699 = vcmask 1047556
  %v700 = vsel %vm699, %v698, %v696
  %vm701 = vcmask 654336
  %v702 = vsel %vm701, %v700, %v694
  %703 = vrot.lane.b32.xlu0 %v702, 48
  %v704 = vpop.permute.xlu0 %703
  %vm705 = vcmask 392192
  %s706 = scalar_lea.vmem %s1, 192
  %707 = vst.msk [vmem:[%s706] sm:$0xff] %vm705, %v704
  %vm708 = vcmask 1047936
  %s709 = scalar_lea.vmem %s1, 160
  %710 = vst.msk [vmem:[%s709] sm:$0xff] %vm708, %v704
  %s711 = scalar_lea.vmem %s0, 19
  %v712 = vld [vmem:[%s711] ss:$56 sm:$0xf]
  %s713 = scalar_lea.vmem %s0, 19
  %v714 = vld [vmem:[%s713] ss:$56 sm:$0xf0]
  %vm715 = vcmask 1047556
  %v716 = vsel %vm715, %v714, %v712
  %s717 = scalar_lea.vmem %s0, 27
  %v718 = vld [vmem:[%s717] ss:$56 sm:$0xf]
  %s719 = scalar_lea.vmem %s0, 27
  %v720 = vld [vmem:[%s719] ss:$56 sm:$0xf0]
  %vm721 = vcmask 1047556
  %v722 = vsel %vm721, %v720, %v718
  %vm723 = vcmask 654336
  %v724 = vsel %vm723, %v722, %v716
  %725 = vrot.lane.b32.xlu0 %v724, 48
  %v726 = vpop.permute.xlu0 %725
  %vm727 = vcmask 392192
  %s728 = scalar_lea.vmem %s1, 168
  %729 = vst.msk [vmem:[%s728] sm:$0xff] %vm727, %v726
  %vm730 = vcmask 1047936
  %s731 = scalar_lea.vmem %s1, 168
  %732 = vst.msk [vmem:[%s731] sm:$0xff] %vm730, %v726
  %s733 = scalar_lea.vmem %s0, 27
  %v734 = vld [vmem:[%s733] ss:$56 sm:$0xf]
  %s735 = scalar_lea.vmem %s0, 27
  %v736 = vld [vmem:[%s735] ss:$56 sm:$0xf0]
  %vm737 = vcmask 1047556
  %v738 = vsel %vm737, %v736, %v734
  %s739 = scalar_lea.vmem %s0, 3
  %v740 = vld [vmem:[%s739] ss:$56 sm:$0xf]
  %s741 = scalar_lea.vmem %s0, 3
  %v742 = vld [vmem:[%s741] ss:$56 sm:$0xf0]
  %vm743 = vcmask 1047556
  %v744 = vsel %vm743, %v742, %v740
  %vm745 = vcmask 654336
  %v746 = vsel %vm745, %v744, %v738
  %747 = vrot.lane.b32.xlu0 %v746, 48
  %v748 = vpop.permute.xlu0 %747
  %vm749 = vcmask 392192
  %s750 = scalar_lea.vmem %s1, 176
  %751 = vst.msk [vmem:[%s750] sm:$0xff] %vm749, %v748
  %vm752 = vcmask 1047936
  %s753 = scalar_lea.vmem %s1, 144
  %754 = vst.msk [vmem:[%s753] sm:$0xff] %vm752, %v748
  %s755 = scalar_lea.vmem %s0, 3
  %v756 = vld [vmem:[%s755] ss:$56 sm:$0xf]
  %s757 = scalar_lea.vmem %s0, 3
  %v758 = vld [vmem:[%s757] ss:$56 sm:$0xf0]
  %vm759 = vcmask 1047556
  %v760 = vsel %vm759, %v758, %v756
  %s761 = scalar_lea.vmem %s0, 35
  %v762 = vld [vmem:[%s761] ss:$56 sm:$0xf]
  %s763 = scalar_lea.vmem %s0, 35
  %v764 = vld [vmem:[%s763] ss:$56 sm:$0xf0]
  %vm765 = vcmask 1047556
  %v766 = vsel %vm765, %v764, %v762
  %vm767 = vcmask 654336
  %v768 = vsel %vm767, %v766, %v760
  %769 = vrot.lane.b32.xlu0 %v768, 48
  %v770 = vpop.permute.xlu0 %769
  %vm771 = vcmask 392192
  %s772 = scalar_lea.vmem %s1, 152
  %773 = vst.msk [vmem:[%s772] sm:$0xff] %vm771, %v770
  %vm774 = vcmask 1047936
  %s775 = scalar_lea.vmem %s1, 176
  %776 = vst.msk [vmem:[%s775] sm:$0xff] %vm774, %v770
  %s777 = scalar_lea.vmem %s0, 35
  %v778 = vld [vmem:[%s777] ss:$56 sm:$0xf]
  %s779 = scalar_lea.vmem %s0, 35
  %v780 = vld [vmem:[%s779] ss:$56 sm:$0xf0]
  %vm781 = vcmask 1047556
  %v782 = vsel %vm781, %v780, %v778
  %s783 = scalar_lea.vmem %s0, 11
  %v784 = vld [vmem:[%s783] ss:$56 sm:$0xf]
  %s785 = scalar_lea.vmem %s0, 11
  %v786 = vld [vmem:[%s785] ss:$56 sm:$0xf0]
  %vm787 = vcmask 1047556
  %v788 = vsel %vm787, %v786, %v784
  %vm789 = vcmask 654336
  %v790 = vsel %vm789, %v788, %v782
  %791 = vrot.lane.b32.xlu0 %v790, 48
  %v792 = vpop.permute.xlu0 %791
  %vm793 = vcmask 392192
  %s794 = scalar_lea.vmem %s1, 184
  %795 = vst.msk [vmem:[%s794] sm:$0xff] %vm793, %v792
  %vm796 = vcmask 1047936
  %s797 = scalar_lea.vmem %s1, 152
  %798 = vst.msk [vmem:[%s797] sm:$0xff] %vm796, %v792
  %s799 = scalar_lea.vmem %s0, 43
  %v800 = vld [vmem:[%s799] ss:$56 sm:$0xf]
  %s801 = scalar_lea.vmem %s0, 43
  %v802 = vld [vmem:[%s801] ss:$56 sm:$0xf0]
  %vm803 = vcmask 1047556
  %v804 = vsel %vm803, %v802, %v800
  %805 = vrot.lane.b32.xlu0 %v804, 48
  %v806 = vpop.permute.xlu0 %805
  %vm807 = vcmask 1047936
  %s808 = scalar_lea.vmem %s1, 184
  %809 = vst.msk [vmem:[%s808] sm:$0xff] %vm807, %v806
  %s810 = scalar_lea.vmem %s0, 26
  %v811 = vld [vmem:[%s810] ss:$56 sm:$0xf]
  %s812 = scalar_lea.vmem %s0, 26
  %v813 = vld [vmem:[%s812] ss:$56 sm:$0xf0]
  %vm814 = vcmask 1047556
  %v815 = vsel %vm814, %v813, %v811
  %s816 = scalar_lea.vmem %s0, 50
  %v817 = vld [vmem:[%s816] ss:$56 sm:$0xf]
  %s818 = scalar_lea.vmem %s0, 50
  %v819 = vld [vmem:[%s818] ss:$56 sm:$0xf0]
  %vm820 = vcmask 1047556
  %v821 = vsel %vm820, %v819, %v817
  %vm822 = vcmask 785408
  %v823 = vsel %vm822, %v821, %v815
  %824 = vrot.lane.b32.xlu0 %v823, 32
  %v825 = vpop.permute.xlu0 %824
  %vm826 = vcmask 261120
  %s827 = scalar_lea.vmem %s1, 128
  %828 = vst.msk [vmem:[%s827] sm:$0xff] %vm826, %v825
  %vm829 = vcmask 392448
  %s830 = scalar_lea.vmem %s1, 144
  %831 = vst.msk [vmem:[%s830] sm:$0xff] %vm829, %v825
  %s832 = scalar_lea.vmem %s0, 2
  %v833 = vld [vmem:[%s832] ss:$56 sm:$0xf]
  %s834 = scalar_lea.vmem %s0, 2
  %v835 = vld [vmem:[%s834] ss:$56 sm:$0xf0]
  %vm836 = vcmask 1047556
  %v837 = vsel %vm836, %v835, %v833
  %s838 = scalar_lea.vmem %s0, 2
  %v839 = vld [vmem:[%s838] ss:$56 sm:$0xf]
  %s840 = scalar_lea.vmem %s0, 2
  %v841 = vld [vmem:[%s840] ss:$56 sm:$0xf0]
  %vm842 = vcmask 1047556
  %v843 = vsel %vm842, %v841, %v839
  %vm844 = vcmask 785408
  %v845 = vsel %vm844, %v843, %v837
  %846 = vrot.lane.b32.xlu0 %v845, 32
  %v847 = vpop.permute.xlu0 %846
  %vm848 = vcmask 261120
  %s849 = scalar_lea.vmem %s1, 104
  %850 = vst.msk [vmem:[%s849] sm:$0xff] %vm848, %v847
  %vm851 = vcmask 1047808
  %s852 = scalar_lea.vmem %s1, 96
  %853 = vst.msk [vmem:[%s852] sm:$0xff] %vm851, %v847
  %s854 = scalar_lea.vmem %s0, 34
  %v855 = vld [vmem:[%s854] ss:$56 sm:$0xf]
  %s856 = scalar_lea.vmem %s0, 34
  %v857 = vld [vmem:[%s856] ss:$56 sm:$0xf0]
  %vm858 = vcmask 1047556
  %v859 = vsel %vm858, %v857, %v855
  %s860 = scalar_lea.vmem %s0, 34
  %v861 = vld [vmem:[%s860] ss:$56 sm:$0xf]
  %s862 = scalar_lea.vmem %s0, 34
  %v863 = vld [vmem:[%s862] ss:$56 sm:$0xf0]
  %vm864 = vcmask 1047556
  %v865 = vsel %vm864, %v863, %v861
  %vm866 = vcmask 785408
  %v867 = vsel %vm866, %v865, %v859
  %868 = vrot.lane.b32.xlu0 %v867, 32
  %v869 = vpop.permute.xlu0 %868
  %vm870 = vcmask 261120
  %s871 = scalar_lea.vmem %s1, 136
  %872 = vst.msk [vmem:[%s871] sm:$0xff] %vm870, %v869
  %vm873 = vcmask 1047808
  %s874 = scalar_lea.vmem %s1, 128
  %875 = vst.msk [vmem:[%s874] sm:$0xff] %vm873, %v869
  %s876 = scalar_lea.vmem %s0, 10
  %v877 = vld [vmem:[%s876] ss:$56 sm:$0xf]
  %s878 = scalar_lea.vmem %s0, 10
  %v879 = vld [vmem:[%s878] ss:$56 sm:$0xf0]
  %vm880 = vcmask 1047556
  %v881 = vsel %vm880, %v879, %v877
  %s882 = scalar_lea.vmem %s0, 10
  %v883 = vld [vmem:[%s882] ss:$56 sm:$0xf]
  %s884 = scalar_lea.vmem %s0, 10
  %v885 = vld [vmem:[%s884] ss:$56 sm:$0xf0]
  %vm886 = vcmask 1047556
  %v887 = vsel %vm886, %v885, %v883
  %vm888 = vcmask 785408
  %v889 = vsel %vm888, %v887, %v881
  %890 = vrot.lane.b32.xlu0 %v889, 32
  %v891 = vpop.permute.xlu0 %890
  %vm892 = vcmask 261120
  %s893 = scalar_lea.vmem %s1, 112
  %894 = vst.msk [vmem:[%s893] sm:$0xff] %vm892, %v891
  %vm895 = vcmask 1047808
  %s896 = scalar_lea.vmem %s1, 104
  %897 = vst.msk [vmem:[%s896] sm:$0xff] %vm895, %v891
  %s898 = scalar_lea.vmem %s0, 42
  %v899 = vld [vmem:[%s898] ss:$56 sm:$0xf]
  %s900 = scalar_lea.vmem %s0, 42
  %v901 = vld [vmem:[%s900] ss:$56 sm:$0xf0]
  %vm902 = vcmask 1047556
  %v903 = vsel %vm902, %v901, %v899
  %s904 = scalar_lea.vmem %s0, 42
  %v905 = vld [vmem:[%s904] ss:$56 sm:$0xf]
  %s906 = scalar_lea.vmem %s0, 42
  %v907 = vld [vmem:[%s906] ss:$56 sm:$0xf0]
  %vm908 = vcmask 1047556
  %v909 = vsel %vm908, %v907, %v905
  %vm910 = vcmask 785408
  %v911 = vsel %vm910, %v909, %v903
  %912 = vrot.lane.b32.xlu0 %v911, 32
  %v913 = vpop.permute.xlu0 %912
  %vm914 = vcmask 261120
  %s915 = scalar_lea.vmem %s1, 144
  %916 = vst.msk [vmem:[%s915] sm:$0xff] %vm914, %v913
  %vm917 = vcmask 1047808
  %s918 = scalar_lea.vmem %s1, 136
  %919 = vst.msk [vmem:[%s918] sm:$0xff] %vm917, %v913
  %s920 = scalar_lea.vmem %s0, 18
  %v921 = vld [vmem:[%s920] ss:$56 sm:$0xf]
  %s922 = scalar_lea.vmem %s0, 18
  %v923 = vld [vmem:[%s922] ss:$56 sm:$0xf0]
  %vm924 = vcmask 1047556
  %v925 = vsel %vm924, %v923, %v921
  %s926 = scalar_lea.vmem %s0, 18
  %v927 = vld [vmem:[%s926] ss:$56 sm:$0xf]
  %s928 = scalar_lea.vmem %s0, 18
  %v929 = vld [vmem:[%s928] ss:$56 sm:$0xf0]
  %vm930 = vcmask 1047556
  %v931 = vsel %vm930, %v929, %v927
  %vm932 = vcmask 785408
  %v933 = vsel %vm932, %v931, %v925
  %934 = vrot.lane.b32.xlu0 %v933, 32
  %v935 = vpop.permute.xlu0 %934
  %vm936 = vcmask 261120
  %s937 = scalar_lea.vmem %s1, 120
  %938 = vst.msk [vmem:[%s937] sm:$0xff] %vm936, %v935
  %vm939 = vcmask 1047808
  %s940 = scalar_lea.vmem %s1, 112
  %941 = vst.msk [vmem:[%s940] sm:$0xff] %vm939, %v935
  %s942 = scalar_lea.vmem %s0, 26
  %v943 = vld [vmem:[%s942] ss:$56 sm:$0xf]
  %s944 = scalar_lea.vmem %s0, 26
  %v945 = vld [vmem:[%s944] ss:$56 sm:$0xf0]
  %vm946 = vcmask 1047556
  %v947 = vsel %vm946, %v945, %v943
  %948 = vrot.lane.b32.xlu0 %v947, 32
  %v949 = vpop.permute.xlu0 %948
  %vm950 = vcmask 1047808
  %s951 = scalar_lea.vmem %s1, 120
  %952 = vst.msk [vmem:[%s951] sm:$0xff] %vm950, %v949
  %s953 = scalar_lea.vmem %s0, 9
  %v954 = vld [vmem:[%s953] ss:$56 sm:$0xf]
  %s955 = scalar_lea.vmem %s0, 9
  %v956 = vld [vmem:[%s955] ss:$56 sm:$0xf0]
  %vm957 = vcmask 1047556
  %v958 = vsel %vm957, %v956, %v954
  %s959 = scalar_lea.vmem %s0, 49
  %v960 = vld [vmem:[%s959] ss:$56 sm:$0xf]
  %s961 = scalar_lea.vmem %s0, 49
  %v962 = vld [vmem:[%s961] ss:$56 sm:$0xf0]
  %vm963 = vcmask 1047556
  %v964 = vsel %vm963, %v962, %v960
  %vm965 = vcmask 916480
  %v966 = vsel %vm965, %v964, %v958
  %967 = vrot.lane.b32.xlu0 %v966, 16
  %v968 = vpop.permute.xlu0 %967
  %vm969 = vcmask 130048
  %s970 = scalar_lea.vmem %s1, 64
  %971 = vst.msk [vmem:[%s970] sm:$0xff] %vm969, %v968
  %vm972 = vcmask 261248
  %s973 = scalar_lea.vmem %s1, 96
  %974 = vst.msk [vmem:[%s973] sm:$0xff] %vm972, %v968
  %s975 = scalar_lea.vmem %s0, 41
  %v976 = vld [vmem:[%s975] ss:$56 sm:$0xf]
  %s977 = scalar_lea.vmem %s0, 41
  %v978 = vld [vmem:[%s977] ss:$56 sm:$0xf0]
  %vm979 = vcmask 1047556
  %v980 = vsel %vm979, %v978, %v976
  %s981 = scalar_lea.vmem %s0, 17
  %v982 = vld [vmem:[%s981] ss:$56 sm:$0xf]
  %s983 = scalar_lea.vmem %s0, 17
  %v984 = vld [vmem:[%s983] ss:$56 sm:$0xf0]
  %vm985 = vcmask 1047556
  %v986 = vsel %vm985, %v984, %v982
  %vm987 = vcmask 916480
  %v988 = vsel %vm987, %v986, %v980
  %989 = vrot.lane.b32.xlu0 %v988, 16
  %v990 = vpop.permute.xlu0 %989
  %vm991 = vcmask 130048
  %s992 = scalar_lea.vmem %s1, 96
  %993 = vst.msk [vmem:[%s992] sm:$0xff] %vm991, %v990
  %vm994 = vcmask 1047680
  %s995 = scalar_lea.vmem %s1, 64
  %996 = vst.msk [vmem:[%s995] sm:$0xff] %vm994, %v990
  %s997 = scalar_lea.vmem %s0, 17
  %v998 = vld [vmem:[%s997] ss:$56 sm:$0xf]
  %s999 = scalar_lea.vmem %s0, 17
  %v1000 = vld [vmem:[%s999] ss:$56 sm:$0xf0]
  %vm1001 = vcmask 1047556
  %v1002 = vsel %vm1001, %v1000, %v998
  %s1003 = scalar_lea.vmem %s0, 25
  %v1004 = vld [vmem:[%s1003] ss:$56 sm:$0xf]
  %s1005 = scalar_lea.vmem %s0, 25
  %v1006 = vld [vmem:[%s1005] ss:$56 sm:$0xf0]
  %vm1007 = vcmask 1047556
  %v1008 = vsel %vm1007, %v1006, %v1004
  %vm1009 = vcmask 916480
  %v1010 = vsel %vm1009, %v1008, %v1002
  %1011 = vrot.lane.b32.xlu0 %v1010, 16
  %v1012 = vpop.permute.xlu0 %1011
  %vm1013 = vcmask 130048
  %s1014 = scalar_lea.vmem %s1, 72
  %1015 = vst.msk [vmem:[%s1014] sm:$0xff] %vm1013, %v1012
  %vm1016 = vcmask 1047680
  %s1017 = scalar_lea.vmem %s1, 72
  %1018 = vst.msk [vmem:[%s1017] sm:$0xff] %vm1016, %v1012
  %s1019 = scalar_lea.vmem %s0, 25
  %v1020 = vld [vmem:[%s1019] ss:$56 sm:$0xf]
  %s1021 = scalar_lea.vmem %s0, 25
  %v1022 = vld [vmem:[%s1021] ss:$56 sm:$0xf0]
  %vm1023 = vcmask 1047556
  %v1024 = vsel %vm1023, %v1022, %v1020
  %s1025 = scalar_lea.vmem %s0, 1
  %v1026 = vld [vmem:[%s1025] ss:$56 sm:$0xf]
  %s1027 = scalar_lea.vmem %s0, 1
  %v1028 = vld [vmem:[%s1027] ss:$56 sm:$0xf0]
  %vm1029 = vcmask 1047556
  %v1030 = vsel %vm1029, %v1028, %v1026
  %vm1031 = vcmask 916480
  %v1032 = vsel %vm1031, %v1030, %v1024
  %1033 = vrot.lane.b32.xlu0 %v1032, 16
  %v1034 = vpop.permute.xlu0 %1033
  %vm1035 = vcmask 130048
  %s1036 = scalar_lea.vmem %s1, 80
  %1037 = vst.msk [vmem:[%s1036] sm:$0xff] %vm1035, %v1034
  %vm1038 = vcmask 1047680
  %s1039 = scalar_lea.vmem %s1, 48
  %1040 = vst.msk [vmem:[%s1039] sm:$0xff] %vm1038, %v1034
  %s1041 = scalar_lea.vmem %s0, 1
  %v1042 = vld [vmem:[%s1041] ss:$56 sm:$0xf]
  %s1043 = scalar_lea.vmem %s0, 1
  %v1044 = vld [vmem:[%s1043] ss:$56 sm:$0xf0]
  %vm1045 = vcmask 1047556
  %v1046 = vsel %vm1045, %v1044, %v1042
  %s1047 = scalar_lea.vmem %s0, 33
  %v1048 = vld [vmem:[%s1047] ss:$56 sm:$0xf]
  %s1049 = scalar_lea.vmem %s0, 33
  %v1050 = vld [vmem:[%s1049] ss:$56 sm:$0xf0]
  %vm1051 = vcmask 1047556
  %v1052 = vsel %vm1051, %v1050, %v1048
  %vm1053 = vcmask 916480
  %v1054 = vsel %vm1053, %v1052, %v1046
  %1055 = vrot.lane.b32.xlu0 %v1054, 16
  %v1056 = vpop.permute.xlu0 %1055
  %vm1057 = vcmask 130048
  %s1058 = scalar_lea.vmem %s1, 56
  %1059 = vst.msk [vmem:[%s1058] sm:$0xff] %vm1057, %v1056
  %vm1060 = vcmask 1047680
  %s1061 = scalar_lea.vmem %s1, 80
  %1062 = vst.msk [vmem:[%s1061] sm:$0xff] %vm1060, %v1056
  %s1063 = scalar_lea.vmem %s0, 33
  %v1064 = vld [vmem:[%s1063] ss:$56 sm:$0xf]
  %s1065 = scalar_lea.vmem %s0, 33
  %v1066 = vld [vmem:[%s1065] ss:$56 sm:$0xf0]
  %vm1067 = vcmask 1047556
  %v1068 = vsel %vm1067, %v1066, %v1064
  %s1069 = scalar_lea.vmem %s0, 9
  %v1070 = vld [vmem:[%s1069] ss:$56 sm:$0xf]
  %s1071 = scalar_lea.vmem %s0, 9
  %v1072 = vld [vmem:[%s1071] ss:$56 sm:$0xf0]
  %vm1073 = vcmask 1047556
  %v1074 = vsel %vm1073, %v1072, %v1070
  %vm1075 = vcmask 916480
  %v1076 = vsel %vm1075, %v1074, %v1068
  %1077 = vrot.lane.b32.xlu0 %v1076, 16
  %v1078 = vpop.permute.xlu0 %1077
  %vm1079 = vcmask 130048
  %s1080 = scalar_lea.vmem %s1, 88
  %1081 = vst.msk [vmem:[%s1080] sm:$0xff] %vm1079, %v1078
  %vm1082 = vcmask 1047680
  %s1083 = scalar_lea.vmem %s1, 56
  %1084 = vst.msk [vmem:[%s1083] sm:$0xff] %vm1082, %v1078
  %s1085 = scalar_lea.vmem %s0, 41
  %v1086 = vld [vmem:[%s1085] ss:$56 sm:$0xf]
  %s1087 = scalar_lea.vmem %s0, 41
  %v1088 = vld [vmem:[%s1087] ss:$56 sm:$0xf0]
  %vm1089 = vcmask 1047556
  %v1090 = vsel %vm1089, %v1088, %v1086
  %1091 = vrot.lane.b32.xlu0 %v1090, 16
  %v1092 = vpop.permute.xlu0 %1091
  %vm1093 = vcmask 1047680
  %s1094 = scalar_lea.vmem %s1, 88
  %1095 = vst.msk [vmem:[%s1094] sm:$0xff] %vm1093, %v1092

// kernel: fac_conv_forward.1
$region0: #{fac_conv_forward.1}
  #allocation0 [shape = 'u32[]', space=smem, size = 0x4, offset = 0x4, fixed_abs, tag = 'smem constant byte address 0x4 - core index']
  #allocation1 [shape = 'u32[72,128]{1,0:T(1,128)}', space=vmem, size = 0x9000, scoped, tag = 'internal scratch']
  #allocation2 [shape = 'f32[8,6400]{1,0:T(8,128)}', space=vmem, size = 0x32000, scoped, tag = 'scratch operand']
  #allocation3 [shape = 'f32[56,6104]{1,0:T(8,128)}', space=vmem, size = 0x150000, scoped, tag = 'scratch operand']
  #allocation4 [shape = 'f32[56,6272]{1,0:T(8,128)}', space=vmem, size = 0x157000, scoped, tag = 'scratch operand']
  %s0 = inlined_call_operand.vmem [shape: f32[8,12544], index: 0, kind: input, shape index: {}]
  %s1 = inlined_call_operand.vmem [shape: f32[8,56], index: 1, kind: input, shape index: {}]
  %s2 = inlined_call_operand.vmem [shape: f32[8,56], index: 2, kind: input, shape index: {}]
  %s3 = inlined_call_operand.vmem [shape: f32[1,6104], index: 3, kind: input, shape index: {}]
  %s4 = inlined_call_operand.vmem [shape: f32[8,6272], index: 4, kind: input, shape index: {}]
  %s5 = inlined_call_operand.vmem [shape: f32[8,8], index: 5, kind: input, shape index: {}]
  %s6 = inlined_call_operand.vmem [shape: f32[8,12544], index: 6, kind: output, shape index: {}]
  %s7 = sld [smem:[#allocation0]]
  $region57: #{fac_conv_forward.1} parent=0
    _
  %s9 = ssub.s32 1, %s7
  %s10 = scalar_select 0, %s9, %s7
  loop: start=0, step=1, limit=4
  $region2: #{fac_conv_forward.1} parent=0 // loop_pre_header
    _
  $region3: #{fac_conv_forward.1} parent=0 // loop_header
    %s12 = sphi 0, %s16
    %p13 = scmp.ge.s32.totalorder %s12, 4
    %s22 = sphi 0, %s24
    %s25 = sphi 0, %s22
    %s26 = sphi 0, %s25
    %s42 = sphi 0, %s26
    %s46 = sphi 0, %s46
    %s48 = sphi 0, %s46
    %s49 = sphi 0, %s48
    %s63 = sphi 0, %s49
    %s67 = sphi 0, %s67
    %s69 = sphi 0, %s67
    %s70 = sphi 0, %s69
    %s84 = sphi 0, %s70
    %s88 = sphi 0, %s88
    %s90 = sphi 0, %s88
    %s91 = sphi 0, %s90
    %s105 = sphi 0, %s91
    %s109 = sphi 0, %s109
    %s111 = sphi 0, %s109
    %s112 = sphi 0, %s111
    %s126 = sphi 0, %s112
    %s130 = sphi 0, %s130
    %s132 = sphi 0, %s130
    %s133 = sphi 0, %s132
    %s147 = sphi 0, %s133
    %s153 = sphi 0, %s155
    %s156 = sphi 0, %s153
    %s157 = sphi 0, %s156
    %s173 = sphi 0, %s157
  $region4: #{fac_conv_forward.1} parent=0 // loop_header_branch
    %15 = sbr.rel (%p13) target = $region8
  $region5: #{fac_conv_forward.1} parent=0 // loop_body
    %s17 = ssub.s32 %s12, 1
    %s18 = ssub.s32 %s12, 2
    %s19 = sadd.s32 %s12, 1
    %s20 = ssub.s32 %s12, %s19
    %p21 = scmp.eq.s32.totalorder %s20, 0
    %s23 = sadd.s32 %s22, 1
    %s24 = scalar_select %p21, %s22, %s23
    %p27 = pneg %p21
    %p28 = scmp.eq.s32.totalorder %s12, 1
    %p29 = por %p27, %p28
    %p30 = scmp.ne.s32.totalorder %s22, %s25
    %p31 = scmp.eq.s32.totalorder %s12, 0
    %p32 = por %p30, %p31
    %p33 = scmp.ne.s32.totalorder %s22, %s25
    %p34 = scmp.eq.s32.totalorder %s17, 1
    %p35 = por %p33, %p34
    %p36 = scmp.ne.s32.totalorder %s25, %s26
    %p37 = scmp.eq.s32.totalorder %s17, 0
    %p38 = por %p36, %p37
    %p39 = scmp.ne.s32.totalorder %s25, %s26
    %p40 = scmp.eq.s32.totalorder %s18, 1
    %p41 = por %p39, %p40
    %p43 = scmp.ne.s32.totalorder %s26, %s42
    %p44 = scmp.eq.s32.totalorder %s18, 0
    %p45 = por %p43, %p44
    %s47 = sadd.s32 %s46, 1
    %p50 = scmp.eq.s32.totalorder %s12, 1
    %p51 = scmp.ne.s32.totalorder %s46, %s48
    %p52 = scmp.eq.s32.totalorder %s12, 0
    %p53 = por %p51, %p52
    %p54 = scmp.ne.s32.totalorder %s46, %s48
    %p55 = scmp.eq.s32.totalorder %s17, 1
    %p56 = por %p54, %p55
    %p57 = scmp.ne.s32.totalorder %s48, %s49
    %p58 = scmp.eq.s32.totalorder %s17, 0
    %p59 = por %p57, %p58
    %p60 = scmp.ne.s32.totalorder %s48, %s49
    %p61 = scmp.eq.s32.totalorder %s18, 1
    %p62 = por %p60, %p61
    %p64 = scmp.ne.s32.totalorder %s49, %s63
    %p65 = scmp.eq.s32.totalorder %s18, 0
    %p66 = por %p64, %p65
    %s68 = sadd.s32 %s67, 1
    %p71 = scmp.eq.s32.totalorder %s12, 1
    %p72 = scmp.ne.s32.totalorder %s67, %s69
    %p73 = scmp.eq.s32.totalorder %s12, 0
    %p74 = por %p72, %p73
    %p75 = scmp.ne.s32.totalorder %s67, %s69
    %p76 = scmp.eq.s32.totalorder %s17, 1
    %p77 = por %p75, %p76
    %p78 = scmp.ne.s32.totalorder %s69, %s70
    %p79 = scmp.eq.s32.totalorder %s17, 0
    %p80 = por %p78, %p79
    %p81 = scmp.ne.s32.totalorder %s69, %s70
    %p82 = scmp.eq.s32.totalorder %s18, 1
    %p83 = por %p81, %p82
    %p85 = scmp.ne.s32.totalorder %s70, %s84
    %p86 = scmp.eq.s32.totalorder %s18, 0
    %p87 = por %p85, %p86
    %s89 = sadd.s32 %s88, 1
    %p92 = scmp.eq.s32.totalorder %s12, 1
    %p93 = scmp.ne.s32.totalorder %s88, %s90
    %p94 = scmp.eq.s32.totalorder %s12, 0
    %p95 = por %p93, %p94
    %p96 = scmp.ne.s32.totalorder %s88, %s90
    %p97 = scmp.eq.s32.totalorder %s17, 1
    %p98 = por %p96, %p97
    %p99 = scmp.ne.s32.totalorder %s90, %s91
    %p100 = scmp.eq.s32.totalorder %s17, 0
    %p101 = por %p99, %p100
    %p102 = scmp.ne.s32.totalorder %s90, %s91
    %p103 = scmp.eq.s32.totalorder %s18, 1
    %p104 = por %p102, %p103
    %p106 = scmp.ne.s32.totalorder %s91, %s105
    %p107 = scmp.eq.s32.totalorder %s18, 0
    %p108 = por %p106, %p107
    %s110 = sadd.s32 %s109, 1
    %p113 = scmp.eq.s32.totalorder %s12, 1
    %p114 = scmp.ne.s32.totalorder %s109, %s111
    %p115 = scmp.eq.s32.totalorder %s12, 0
    %p116 = por %p114, %p115
    %p117 = scmp.ne.s32.totalorder %s109, %s111
    %p118 = scmp.eq.s32.totalorder %s17, 1
    %p119 = por %p117, %p118
    %p120 = scmp.ne.s32.totalorder %s111, %s112
    %p121 = scmp.eq.s32.totalorder %s17, 0
    %p122 = por %p120, %p121
    %p123 = scmp.ne.s32.totalorder %s111, %s112
    %p124 = scmp.eq.s32.totalorder %s18, 1
    %p125 = por %p123, %p124
    %p127 = scmp.ne.s32.totalorder %s112, %s126
    %p128 = scmp.eq.s32.totalorder %s18, 0
    %p129 = por %p127, %p128
    %s131 = sadd.s32 %s130, 1
    %p134 = scmp.eq.s32.totalorder %s12, 1
    %p135 = scmp.ne.s32.totalorder %s130, %s132
    %p136 = scmp.eq.s32.totalorder %s12, 0
    %p137 = por %p135, %p136
    %p138 = scmp.ne.s32.totalorder %s130, %s132
    %p139 = scmp.eq.s32.totalorder %s17, 1
    %p140 = por %p138, %p139
    %p141 = scmp.ne.s32.totalorder %s132, %s133
    %p142 = scmp.eq.s32.totalorder %s17, 0
    %p143 = por %p141, %p142
    %p144 = scmp.ne.s32.totalorder %s132, %s133
    %p145 = scmp.eq.s32.totalorder %s18, 1
    %p146 = por %p144, %p145
    %p148 = scmp.ne.s32.totalorder %s133, %s147
    %p149 = scmp.eq.s32.totalorder %s18, 0
    %p150 = por %p148, %p149
    %s151 = ssub.s32 %s12, %s19
    %p152 = scmp.eq.s32.totalorder %s151, 0
    %s154 = sadd.s32 %s153, 1
    %s155 = scalar_select %p152, %s153, %s154
    %p158 = pneg %p152
    %p159 = scmp.eq.s32.totalorder %s12, 1
    %p160 = por %p158, %p159
    %p161 = scmp.ne.s32.totalorder %s153, %s156
    %p162 = scmp.eq.s32.totalorder %s12, 0
    %p163 = por %p161, %p162
    %p164 = scmp.ne.s32.totalorder %s153, %s156
    %p165 = scmp.eq.s32.totalorder %s17, 1
    %p166 = por %p164, %p165
    %p167 = scmp.ne.s32.totalorder %s156, %s157
    %p168 = scmp.eq.s32.totalorder %s17, 0
    %p169 = por %p167, %p168
    %p170 = scmp.ne.s32.totalorder %s156, %s157
    %p171 = scmp.eq.s32.totalorder %s18, 1
    %p172 = por %p170, %p171
    %p174 = scmp.ne.s32.totalorder %s157, %s173
    %p175 = scmp.eq.s32.totalorder %s18, 0
    %p176 = por %p174, %p175
    %p177 = scmp.le.s32.totalorder 1, %s12
    %p178 = scmp.lt.s32.totalorder %s12, 3
    %p179 = pnand %p177, %p178
    %p180 = pneg %p179
    // Predicated region
    $region9: #{fac_conv_forward.1} parent=5 // pred_check
      _
    $region10: #{fac_conv_forward.1} parent=5 // pred_check_branch
      %182 = sbr.rel (%p179) target = $region12
    $region11: #{fac_conv_forward.1} parent=5 // pred_region
      %s183 = ssub.s32 %s12, 1
      // Predicated region
      $region13: #{fac_conv_forward.1} parent=11 // pred_check
        %p184 = pneg %p59
      $region14: #{fac_conv_forward.1} parent=11 // pred_check_branch
        %186 = sbr.rel (%p184) target = $region16
      $region15: #{fac_conv_forward.1} parent=11 // pred_region
        _
      $region16: #{fac_conv_forward.1} parent=11 // pred_fallthru
        _
      // Predicated region
      $region17: #{fac_conv_forward.1} parent=11 // pred_check
        %p187 = pneg %p80
      $region18: #{fac_conv_forward.1} parent=11 // pred_check_branch
        %189 = sbr.rel (%p187) target = $region20
      $region19: #{fac_conv_forward.1} parent=11 // pred_region
        _
      $region20: #{fac_conv_forward.1} parent=11 // pred_fallthru
        _
      // Predicated region
      $region21: #{fac_conv_forward.1} parent=11 // pred_check
        %p190 = pneg %p101
      $region22: #{fac_conv_forward.1} parent=11 // pred_check_branch
        %192 = sbr.rel (%p190) target = $region24
      $region23: #{fac_conv_forward.1} parent=11 // pred_region
        _
      $region24: #{fac_conv_forward.1} parent=11 // pred_fallthru
        _
      // Predicated region
      $region25: #{fac_conv_forward.1} parent=11 // pred_check
        %p193 = pneg %p122
      $region26: #{fac_conv_forward.1} parent=11 // pred_check_branch
        %195 = sbr.rel (%p193) target = $region28
      $region27: #{fac_conv_forward.1} parent=11 // pred_region
        _
      $region28: #{fac_conv_forward.1} parent=11 // pred_fallthru
        _
      // Predicated region
      $region29: #{fac_conv_forward.1} parent=11 // pred_check
        %p196 = pneg %p143
      $region30: #{fac_conv_forward.1} parent=11 // pred_check_branch
        %198 = sbr.rel (%p196) target = $region32
      $region31: #{fac_conv_forward.1} parent=11 // pred_region
        _
      $region32: #{fac_conv_forward.1} parent=11 // pred_fallthru
        _
    $region12: #{fac_conv_forward.1} parent=5 // pred_fallthru
      _
    %p199 = scmp.lt.s32.totalorder %s12, 2
    // Predicated region
    $region33: #{fac_conv_forward.1} parent=5 // pred_check
      %p200 = pneg %p199
    $region34: #{fac_conv_forward.1} parent=5 // pred_check_branch
      %202 = sbr.rel (%p200) target = $region36
    $region35: #{fac_conv_forward.1} parent=5 // pred_region
      // Predicated region
      $region37: #{fac_conv_forward.1} parent=35 // pred_check
        %p203 = pneg %p32
      $region38: #{fac_conv_forward.1} parent=35 // pred_check_branch
        %205 = sbr.rel (%p203) target = $region40
      $region39: #{fac_conv_forward.1} parent=35 // pred_region
        %s206 = smul.u32 49, %s12
        %p207 = scmp.lt.s32.totalorder %s206, 97
        %s208 = scalar_select %p207, %s206, 97
        %s209 = smul.addr %s208, 8
        %s210 = scalar_lea.vmem %s0, %s209
        %s211 = smul.u32 49, %s12
      $region40: #{fac_conv_forward.1} parent=35 // pred_fallthru
        _
    $region36: #{fac_conv_forward.1} parent=5 // pred_fallthru
      _
    %p212 = scmp.le.s32.totalorder 1, %s12
    %p213 = scmp.lt.s32.totalorder %s12, 3
    %p214 = pnand %p212, %p213
    %p215 = pneg %p214
    // Predicated region
    $region41: #{fac_conv_forward.1} parent=5 // pred_check
      _
    $region42: #{fac_conv_forward.1} parent=5 // pred_check_branch
      %217 = sbr.rel (%p214) target = $region44
    $region43: #{fac_conv_forward.1} parent=5 // pred_region
      %s218 = ssub.s32 %s12, 1
      %s219 = smul.u32 49, %s17
      %p220 = scmp.lt.s32.totalorder %s219, 97
      %s221 = scalar_select %p220, %s219, 97
      %s222 = smul.addr %s221, 8
      %s223 = scalar_lea.vmem %s0, %s222
      %p224 = pneg %p38
      %p225 = pneg %p35
      %p226 = pneg %p59
      %p227 = pneg %p56
      %p228 = pneg %p80
      %p229 = pneg %p77
      %p230 = pneg %p101
      %p231 = pneg %p98
      %p232 = pneg %p122
      %p233 = pneg %p119
      %p234 = pneg %p143
      %p235 = pneg %p140
      %p236 = pneg %p169
      %p237 = pneg %p166
      %s238 = smul.u32 49, %s17
      %p239 = scmp.lt.s32.totalorder %s238, 97
      %s240 = scalar_select %p239, %s238, 97
      %s241 = smul.addr %s240, 8
      %s242 = scalar_lea.vmem %s6, %s241
      %s243 = smul.u32 49, %s17
      %p244 = scmp.lt.s32.totalorder %s243, 97
      %s245 = scalar_select %p244, %s243, 97
      %s246 = smul.addr %s245, 8
      %s247 = scalar_lea.vmem %s0, %s246
      %s248 = smul.u32 49, %s17
      %s249 = smul.u32 49, %s17
      %p250 = scmp.lt.s32.totalorder %s249, 97
      %s251 = scalar_select %p250, %s249, 97
      %s252 = smul.addr %s251, 8
      %s253 = scalar_lea.vmem %s6, %s252
      %s254 = smul.u32 49, %s17
      %v255 = vld [vmem:[%s5] sm:$0xff]
      %vm256 = vcmask 1048256
      %257 = vst.msk [vmem:[#allocation2 + $0x178] sm:$0xff] %vm256, 0.0
      %258 = vst [vmem:[#allocation2 + $0x180] sm:$0xff] 0.0
      %259 = vst [vmem:[#allocation2 + $0x188] sm:$0xff] 0.0
      %v260 = vld [vmem:[%s247] sm:$0xff]
      %v261 = vld [vmem:[%s247 + $0x8] sm:$0xff]
      %v262 = vld [vmem:[%s247 + $0x10] sm:$0xff]
      %v263 = vld [vmem:[%s247 + $0x18] sm:$0xff]
      %v264 = vld [vmem:[%s247 + $0x20] sm:$0xff]
      %v265 = vld [vmem:[%s247 + $0x28] sm:$0xff]
      %v266 = vld [vmem:[%s247 + $0x30] sm:$0xff]
      %v267 = vld [vmem:[%s247 + $0x38] sm:$0xff]
      %v268 = vld [vmem:[%s247 + $0x40] sm:$0xff]
      %v269 = vld [vmem:[%s247 + $0x48] sm:$0xff]
      %v270 = vld [vmem:[%s247 + $0x50] sm:$0xff]
      %v271 = vld [vmem:[%s247 + $0x58] sm:$0xff]
      %v272 = vld [vmem:[%s247 + $0x60] sm:$0xff]
      %v273 = vld [vmem:[%s247 + $0x68] sm:$0xff]
      %v274 = vld [vmem:[%s247 + $0x70] sm:$0xff]
      %v275 = vld [vmem:[%s247 + $0x78] sm:$0xff]
      %v276 = vld [vmem:[%s247 + $0x80] sm:$0xff]
      %v277 = vld [vmem:[%s247 + $0x88] sm:$0xff]
      %v278 = vld [vmem:[%s247 + $0x90] sm:$0xff]
      %v279 = vld [vmem:[%s247 + $0x98] sm:$0xff]
      %v280 = vld [vmem:[%s247 + $0xa0] sm:$0xff]
      %v281 = vld [vmem:[%s247 + $0xa8] sm:$0xff]
      %v282 = vld [vmem:[%s247 + $0xb0] sm:$0xff]
      %v283 = vld [vmem:[%s247 + $0xb8] sm:$0xff]
      %v284 = vld [vmem:[%s247 + $0xc0] sm:$0xff]
      %v285 = vld [vmem:[%s247 + $0xc8] sm:$0xff]
      %v286 = vld [vmem:[%s247 + $0xd0] sm:$0xff]
      %v287 = vld [vmem:[%s247 + $0xd8] sm:$0xff]
      %v288 = vld [vmem:[%s247 + $0xe0] sm:$0xff]
      %v289 = vld [vmem:[%s247 + $0xe8] sm:$0xff]
      %v290 = vld [vmem:[%s247 + $0xf0] sm:$0xff]
      %v291 = vld [vmem:[%s247 + $0xf8] sm:$0xff]
      %v292 = vld [vmem:[%s247 + $0x100] sm:$0xff]
      %v293 = vld [vmem:[%s247 + $0x108] sm:$0xff]
      %v294 = vld [vmem:[%s247 + $0x110] sm:$0xff]
      %v295 = vld [vmem:[%s247 + $0x118] sm:$0xff]
      %v296 = vld [vmem:[%s247 + $0x120] sm:$0xff]
      %v297 = vld [vmem:[%s247 + $0x128] sm:$0xff]
      %v298 = vld [vmem:[%s247 + $0x130] sm:$0xff]
      %v299 = vld [vmem:[%s247 + $0x138] sm:$0xff]
      %v300 = vld [vmem:[%s247 + $0x140] sm:$0xff]
      %v301 = vld [vmem:[%s247 + $0x148] sm:$0xff]
      %v302 = vld [vmem:[%s247 + $0x150] sm:$0xff]
      %v303 = vld [vmem:[%s247 + $0x158] sm:$0xff]
      %v304 = vld [vmem:[%s247 + $0x160] sm:$0xff]
      %v305 = vld [vmem:[%s247 + $0x168] sm:$0xff]
      %v306 = vld [vmem:[%s247 + $0x170] sm:$0xff]
      %v307 = vld [vmem:[%s247 + $0x178] sm:$0xff]
      %308 = vst [vmem:[#allocation3] sm:$0xff] %v260
      %309 = vst [vmem:[#allocation3 + $0x8] sm:$0xff] %v261
      %310 = vst [vmem:[#allocation3 + $0x10] sm:$0xff] %v262
      %311 = vst [vmem:[#allocation3 + $0x18] sm:$0xff] %v263
      %312 = vst [vmem:[#allocation3 + $0x20] sm:$0xff] %v264
      %313 = vst [vmem:[#allocation3 + $0x28] sm:$0xff] %v265
      %314 = vst [vmem:[#allocation3 + $0x30] sm:$0xff] %v266
      %315 = vst [vmem:[#allocation3 + $0x38] sm:$0xff] %v267
      %316 = vst [vmem:[#allocation3 + $0x40] sm:$0xff] %v268
      %317 = vst [vmem:[#allocation3 + $0x48] sm:$0xff] %v269
      %318 = vst [vmem:[#allocation3 + $0x50] sm:$0xff] %v270
      %319 = vst [vmem:[#allocation3 + $0x58] sm:$0xff] %v271
      %320 = vst [vmem:[#allocation3 + $0x60] sm:$0xff] %v272
      %321 = vst [vmem:[#allocation3 + $0x68] sm:$0xff] %v273
      %322 = vst [vmem:[#allocation3 + $0x70] sm:$0xff] %v274
      %323 = vst [vmem:[#allocation3 + $0x78] sm:$0xff] %v275
      %324 = vst [vmem:[#allocation3 + $0x80] sm:$0xff] %v276
      %325 = vst [vmem:[#allocation3 + $0x88] sm:$0xff] %v277
      %326 = vst [vmem:[#allocation3 + $0x90] sm:$0xff] %v278
      %327 = vst [vmem:[#allocation3 + $0x98] sm:$0xff] %v279
      %328 = vst [vmem:[#allocation3 + $0xa0] sm:$0xff] %v280
      %329 = vst [vmem:[#allocation3 + $0xa8] sm:$0xff] %v281
      %330 = vst [vmem:[#allocation3 + $0xb0] sm:$0xff] %v282
      %331 = vst [vmem:[#allocation3 + $0xb8] sm:$0xff] %v283
      %332 = vst [vmem:[#allocation3 + $0xc0] sm:$0xff] %v284
      %333 = vst [vmem:[#allocation3 + $0xc8] sm:$0xff] %v285
      %334 = vst [vmem:[#allocation3 + $0xd0] sm:$0xff] %v286
      %335 = vst [vmem:[#allocation3 + $0xd8] sm:$0xff] %v287
      %336 = vst [vmem:[#allocation3 + $0xe0] sm:$0xff] %v288
      %337 = vst [vmem:[#allocation3 + $0xe8] sm:$0xff] %v289
      %338 = vst [vmem:[#allocation3 + $0xf0] sm:$0xff] %v290
      %339 = vst [vmem:[#allocation3 + $0xf8] sm:$0xff] %v291
      %340 = vst [vmem:[#allocation3 + $0x100] sm:$0xff] %v292
      %341 = vst [vmem:[#allocation3 + $0x108] sm:$0xff] %v293
      %342 = vst [vmem:[#allocation3 + $0x110] sm:$0xff] %v294
      %343 = vst [vmem:[#allocation3 + $0x118] sm:$0xff] %v295
      %344 = vst [vmem:[#allocation3 + $0x120] sm:$0xff] %v296
      %345 = vst [vmem:[#allocation3 + $0x128] sm:$0xff] %v297
      %346 = vst [vmem:[#allocation3 + $0x130] sm:$0xff] %v298
      %347 = vst [vmem:[#allocation3 + $0x138] sm:$0xff] %v299
      %348 = vst [vmem:[#allocation3 + $0x140] sm:$0xff] %v300
      %349 = vst [vmem:[#allocation3 + $0x148] sm:$0xff] %v301
      %350 = vst [vmem:[#allocation3 + $0x150] sm:$0xff] %v302
      %351 = vst [vmem:[#allocation3 + $0x158] sm:$0xff] %v303
      %352 = vst [vmem:[#allocation3 + $0x160] sm:$0xff] %v304
      %353 = vst [vmem:[#allocation3 + $0x168] sm:$0xff] %v305
      %354 = vst [vmem:[#allocation3 + $0x170] sm:$0xff] %v306
      %vm355 = vcmask 719872
      %356 = vst.msk [vmem:[#allocation3 + $0x178] sm:$0xff] %vm355, %v307
      %v357 = vld [vmem:[%s247] sm:$0xff]
      %v358 = vld [vmem:[%s247 + $0x8] sm:$0xff]
      %v359 = vld [vmem:[%s247 + $0x10] sm:$0xff]
      %v360 = vld [vmem:[%s247 + $0x18] sm:$0xff]
      %v361 = vld [vmem:[%s247 + $0x20] sm:$0xff]
      %v362 = vld [vmem:[%s247 + $0x28] sm:$0xff]
      %v363 = vld [vmem:[%s247 + $0x30] sm:$0xff]
      %v364 = vld [vmem:[%s247 + $0x38] sm:$0xff]
      %v365 = vld [vmem:[%s247 + $0x40] sm:$0xff]
      %v366 = vld [vmem:[%s247 + $0x48] sm:$0xff]
      %v367 = vld [vmem:[%s247 + $0x50] sm:$0xff]
      %v368 = vld [vmem:[%s247 + $0x58] sm:$0xff]
      %v369 = vld [vmem:[%s247 + $0x60] sm:$0xff]
      %v370 = vld [vmem:[%s247 + $0x68] sm:$0xff]
      %v371 = vld [vmem:[%s247 + $0x70] sm:$0xff]
      %v372 = vld [vmem:[%s247 + $0x78] sm:$0xff]
      %v373 = vld [vmem:[%s247 + $0x80] sm:$0xff]
      %v374 = vld [vmem:[%s247 + $0x88] sm:$0xff]
      %v375 = vld [vmem:[%s247 + $0x90] sm:$0xff]
      %v376 = vld [vmem:[%s247 + $0x98] sm:$0xff]
      %v377 = vld [vmem:[%s247 + $0xa0] sm:$0xff]
      %v378 = vld [vmem:[%s247 + $0xa8] sm:$0xff]
      %v379 = vld [vmem:[%s247 + $0xb0] sm:$0xff]
      %v380 = vld [vmem:[%s247 + $0xb8] sm:$0xff]
      %v381 = vld [vmem:[%s247 + $0xc0] sm:$0xff]
      %v382 = vld [vmem:[%s247 + $0xc8] sm:$0xff]
      %v383 = vld [vmem:[%s247 + $0xd0] sm:$0xff]
      %v384 = vld [vmem:[%s247 + $0xd8] sm:$0xff]
      %v385 = vld [vmem:[%s247 + $0xe0] sm:$0xff]
      %v386 = vld [vmem:[%s247 + $0xe8] sm:$0xff]
      %v387 = vld [vmem:[%s247 + $0xf0] sm:$0xff]
      %v388 = vld [vmem:[%s247 + $0xf8] sm:$0xff]
      %v389 = vld [vmem:[%s247 + $0x100] sm:$0xff]
      %v390 = vld [vmem:[%s247 + $0x108] sm:$0xff]
      %v391 = vld [vmem:[%s247 + $0x110] sm:$0xff]
      %v392 = vld [vmem:[%s247 + $0x118] sm:$0xff]
      %v393 = vld [vmem:[%s247 + $0x120] sm:$0xff]
      %v394 = vld [vmem:[%s247 + $0x128] sm:$0xff]
      %v395 = vld [vmem:[%s247 + $0x130] sm:$0xff]
      %v396 = vld [vmem:[%s247 + $0x138] sm:$0xff]
      %v397 = vld [vmem:[%s247 + $0x140] sm:$0xff]
      %v398 = vld [vmem:[%s247 + $0x148] sm:$0xff]
      %v399 = vld [vmem:[%s247 + $0x150] sm:$0xff]
      %v400 = vld [vmem:[%s247 + $0x158] sm:$0xff]
      %v401 = vld [vmem:[%s247 + $0x160] sm:$0xff]
      %v402 = vld [vmem:[%s247 + $0x168] sm:$0xff]
      %v403 = vld [vmem:[%s247 + $0x170] sm:$0xff]
      %v404 = vld [vmem:[%s247 + $0x178] sm:$0xff]
      %453 = vrot.lane.b32.xlu0 %v357, 100
      %v454 = vpop.permute.xlu0 %453
      %455 = vrot.lane.b32.xlu0 %v358, 100
      %v456 = vpop.permute.xlu0 %455
      %457 = vrot.lane.b32.xlu0 %v359, 100
      %v458 = vpop.permute.xlu0 %457
      %459 = vrot.lane.b32.xlu0 %v360, 100
      %v460 = vpop.permute.xlu0 %459
      %461 = vrot.lane.b32.xlu0 %v361, 100
      %v462 = vpop.permute.xlu0 %461
      %463 = vrot.lane.b32.xlu0 %v362, 100
      %v464 = vpop.permute.xlu0 %463
      %465 = vrot.lane.b32.xlu0 %v363, 100
      %v466 = vpop.permute.xlu0 %465
      %467 = vrot.lane.b32.xlu0 %v364, 100
      %v468 = vpop.permute.xlu0 %467
      %469 = vrot.lane.b32.xlu0 %v365, 100
      %v470 = vpop.permute.xlu0 %469
      %471 = vrot.lane.b32.xlu0 %v366, 100
      %v472 = vpop.permute.xlu0 %471
      %473 = vrot.lane.b32.xlu0 %v367, 100
      %v474 = vpop.permute.xlu0 %473
      %475 = vrot.lane.b32.xlu0 %v368, 100
      %v476 = vpop.permute.xlu0 %475
      %477 = vrot.lane.b32.xlu0 %v369, 100
      %v478 = vpop.permute.xlu0 %477
      %479 = vrot.lane.b32.xlu0 %v370, 100
      %v480 = vpop.permute.xlu0 %479
      %481 = vrot.lane.b32.xlu0 %v371, 100
      %v482 = vpop.permute.xlu0 %481
      %483 = vrot.lane.b32.xlu0 %v372, 100
      %v484 = vpop.permute.xlu0 %483
      %485 = vrot.lane.b32.xlu0 %v373, 100
      %v486 = vpop.permute.xlu0 %485
      %487 = vrot.lane.b32.xlu0 %v374, 100
      %v488 = vpop.permute.xlu0 %487
      %489 = vrot.lane.b32.xlu0 %v375, 100
      %v490 = vpop.permute.xlu0 %489
      %491 = vrot.lane.b32.xlu0 %v376, 100
      %v492 = vpop.permute.xlu0 %491
      %493 = vrot.lane.b32.xlu0 %v377, 100
      %v494 = vpop.permute.xlu0 %493
      %495 = vrot.lane.b32.xlu0 %v378, 100
      %v496 = vpop.permute.xlu0 %495
      %497 = vrot.lane.b32.xlu0 %v379, 100
      %v498 = vpop.permute.xlu0 %497
      %499 = vrot.lane.b32.xlu0 %v380, 100
      %v500 = vpop.permute.xlu0 %499
      %501 = vrot.lane.b32.xlu0 %v381, 100
      %v502 = vpop.permute.xlu0 %501
      %503 = vrot.lane.b32.xlu0 %v382, 100
      %v504 = vpop.permute.xlu0 %503
      %505 = vrot.lane.b32.xlu0 %v383, 100
      %v506 = vpop.permute.xlu0 %505
      %507 = vrot.lane.b32.xlu0 %v384, 100
      %v508 = vpop.permute.xlu0 %507
      %509 = vrot.lane.b32.xlu0 %v385, 100
      %v510 = vpop.permute.xlu0 %509
      %511 = vrot.lane.b32.xlu0 %v386, 100
      %v512 = vpop.permute.xlu0 %511
      %513 = vrot.lane.b32.xlu0 %v387, 100
      %v514 = vpop.permute.xlu0 %513
      %515 = vrot.lane.b32.xlu0 %v388, 100
      %v516 = vpop.permute.xlu0 %515
      %517 = vrot.lane.b32.xlu0 %v389, 100
      %v518 = vpop.permute.xlu0 %517
      %519 = vrot.lane.b32.xlu0 %v390, 100
      %v520 = vpop.permute.xlu0 %519
      %521 = vrot.lane.b32.xlu0 %v391, 100
      %v522 = vpop.permute.xlu0 %521
      %523 = vrot.lane.b32.xlu0 %v392, 100
      %v524 = vpop.permute.xlu0 %523
      %525 = vrot.lane.b32.xlu0 %v393, 100
      %v526 = vpop.permute.xlu0 %525
      %527 = vrot.lane.b32.xlu0 %v394, 100
      %v528 = vpop.permute.xlu0 %527
      %529 = vrot.lane.b32.xlu0 %v395, 100
      %v530 = vpop.permute.xlu0 %529
      %531 = vrot.lane.b32.xlu0 %v396, 100
      %v532 = vpop.permute.xlu0 %531
      %533 = vrot.lane.b32.xlu0 %v397, 100
      %v534 = vpop.permute.xlu0 %533
      %535 = vrot.lane.b32.xlu0 %v398, 100
      %v536 = vpop.permute.xlu0 %535
      %537 = vrot.lane.b32.xlu0 %v399, 100
      %v538 = vpop.permute.xlu0 %537
      %539 = vrot.lane.b32.xlu0 %v400, 100
      %v540 = vpop.permute.xlu0 %539
      %541 = vrot.lane.b32.xlu0 %v401, 100
      %v542 = vpop.permute.xlu0 %541
      %543 = vrot.lane.b32.xlu0 %v402, 100
      %v544 = vpop.permute.xlu0 %543
      %545 = vrot.lane.b32.xlu0 %v403, 100
      %v546 = vpop.permute.xlu0 %545
      %547 = vrot.lane.b32.xlu0 %v404, 100
      %v548 = vpop.permute.xlu0 %547
      %vm549 = vcmask 818176
      %v550 = vsel %vm549, %v454, %v456
      %v551 = vsel %vm549, %v456, %v458
      %v552 = vsel %vm549, %v458, %v460
      %v553 = vsel %vm549, %v460, %v462
      %v554 = vsel %vm549, %v462, %v464
      %v555 = vsel %vm549, %v464, %v466
      %v556 = vsel %vm549, %v466, %v468
      %v557 = vsel %vm549, %v468, %v470
      %v558 = vsel %vm549, %v470, %v472
      %v559 = vsel %vm549, %v472, %v474
      %v560 = vsel %vm549, %v474, %v476
      %v561 = vsel %vm549, %v476, %v478
      %v562 = vsel %vm549, %v478, %v480
      %v563 = vsel %vm549, %v480, %v482
      %v564 = vsel %vm549, %v482, %v484
      %v565 = vsel %vm549, %v484, %v486
      %v566 = vsel %vm549, %v486, %v488
      %v567 = vsel %vm549, %v488, %v490
      %v568 = vsel %vm549, %v490, %v492
      %v569 = vsel %vm549, %v492, %v494
      %v570 = vsel %vm549, %v494, %v496
      %v571 = vsel %vm549, %v496, %v498
      %v572 = vsel %vm549, %v498, %v500
      %v573 = vsel %vm549, %v500, %v502
      %v574 = vsel %vm549, %v502, %v504
      %v575 = vsel %vm549, %v504, %v506
      %v576 = vsel %vm549, %v506, %v508
      %v577 = vsel %vm549, %v508, %v510
      %v578 = vsel %vm549, %v510, %v512
      %v579 = vsel %vm549, %v512, %v514
      %v580 = vsel %vm549, %v514, %v516
      %v581 = vsel %vm549, %v516, %v518
      %v582 = vsel %vm549, %v518, %v520
      %v583 = vsel %vm549, %v520, %v522
      %v584 = vsel %vm549, %v522, %v524
      %v585 = vsel %vm549, %v524, %v526
      %v586 = vsel %vm549, %v526, %v528
      %v587 = vsel %vm549, %v528, %v530
      %v588 = vsel %vm549, %v530, %v532
      %v589 = vsel %vm549, %v532, %v534
      %v590 = vsel %vm549, %v534, %v536
      %v591 = vsel %vm549, %v536, %v538
      %v592 = vsel %vm549, %v538, %v540
      %v593 = vsel %vm549, %v540, %v542
      %v594 = vsel %vm549, %v542, %v544
      %v595 = vsel %vm549, %v544, %v546
      %v596 = vsel %vm549, %v546, %v548
      %645 = vst [vmem:[#allocation3 + $0x180] sm:$0xff] %v550
      %646 = vst [vmem:[#allocation3 + $0x188] sm:$0xff] %v551
      %647 = vst [vmem:[#allocation3 + $0x190] sm:$0xff] %v552
      %648 = vst [vmem:[#allocation3 + $0x198] sm:$0xff] %v553
      %649 = vst [vmem:[#allocation3 + $0x1a0] sm:$0xff] %v554
      %650 = vst [vmem:[#allocation3 + $0x1a8] sm:$0xff] %v555
      %651 = vst [vmem:[#allocation3 + $0x1b0] sm:$0xff] %v556
      %652 = vst [vmem:[#allocation3 + $0x1b8] sm:$0xff] %v557
      %653 = vst [vmem:[#allocation3 + $0x1c0] sm:$0xff] %v558
      %654 = vst [vmem:[#allocation3 + $0x1c8] sm:$0xff] %v559
      %655 = vst [vmem:[#allocation3 + $0x1d0] sm:$0xff] %v560
      %656 = vst [vmem:[#allocation3 + $0x1d8] sm:$0xff] %v561
      %657 = vst [vmem:[#allocation3 + $0x1e0] sm:$0xff] %v562
      %658 = vst [vmem:[#allocation3 + $0x1e8] sm:$0xff] %v563
      %659 = vst [vmem:[#allocation3 + $0x1f0] sm:$0xff] %v564
      %660 = vst [vmem:[#allocation3 + $0x1f8] sm:$0xff] %v565
      %661 = vst [vmem:[#allocation3 + $0x200] sm:$0xff] %v566
      %662 = vst [vmem:[#allocation3 + $0x208] sm:$0xff] %v567
      %663 = vst [vmem:[#allocation3 + $0x210] sm:$0xff] %v568
      %664 = vst [vmem:[#allocation3 + $0x218] sm:$0xff] %v569
      %665 = vst [vmem:[#allocation3 + $0x220] sm:$0xff] %v570
      %666 = vst [vmem:[#allocation3 + $0x228] sm:$0xff] %v571
      %667 = vst [vmem:[#allocation3 + $0x230] sm:$0xff] %v572
      %668 = vst [vmem:[#allocation3 + $0x238] sm:$0xff] %v573
      %669 = vst [vmem:[#allocation3 + $0x240] sm:$0xff] %v574
      %670 = vst [vmem:[#allocation3 + $0x248] sm:$0xff] %v575
      %671 = vst [vmem:[#allocation3 + $0x250] sm:$0xff] %v576
      %672 = vst [vmem:[#allocation3 + $0x258] sm:$0xff] %v577
      %673 = vst [vmem:[#allocation3 + $0x260] sm:$0xff] %v578
      %674 = vst [vmem:[#allocation3 + $0x268] sm:$0xff] %v579
      %675 = vst [vmem:[#allocation3 + $0x270] sm:$0xff] %v580
      %676 = vst [vmem:[#allocation3 + $0x278] sm:$0xff] %v581
      %677 = vst [vmem:[#allocation3 + $0x280] sm:$0xff] %v582
      %678 = vst [vmem:[#allocation3 + $0x288] sm:$0xff] %v583
      %679 = vst [vmem:[#allocation3 + $0x290] sm:$0xff] %v584
      %680 = vst [vmem:[#allocation3 + $0x298] sm:$0xff] %v585
      %681 = vst [vmem:[#allocation3 + $0x2a0] sm:$0xff] %v586
      %682 = vst [vmem:[#allocation3 + $0x2a8] sm:$0xff] %v587
      %683 = vst [vmem:[#allocation3 + $0x2b0] sm:$0xff] %v588
      %684 = vst [vmem:[#allocation3 + $0x2b8] sm:$0xff] %v589
      %685 = vst [vmem:[#allocation3 + $0x2c0] sm:$0xff] %v590
      %686 = vst [vmem:[#allocation3 + $0x2c8] sm:$0xff] %v591
      %687 = vst [vmem:[#allocation3 + $0x2d0] sm:$0xff] %v592
      %688 = vst [vmem:[#allocation3 + $0x2d8] sm:$0xff] %v593
      %689 = vst [vmem:[#allocation3 + $0x2e0] sm:$0xff] %v594
      %690 = vst [vmem:[#allocation3 + $0x2e8] sm:$0xff] %v595
      %691 = vst [vmem:[#allocation3 + $0x2f0] sm:$0xff] %v596
      %692 = vst.msk [vmem:[#allocation3 + $0x2f8] sm:$0xff] %vm355, %v548
      %v693 = vld [vmem:[%s247] sm:$0xff]
      %v694 = vld [vmem:[%s247 + $0x8] sm:$0xff]
      %v695 = vld [vmem:[%s247 + $0x10] sm:$0xff]
      %v696 = vld [vmem:[%s247 + $0x18] sm:$0xff]
      %v697 = vld [vmem:[%s247 + $0x20] sm:$0xff]
      %v698 = vld [vmem:[%s247 + $0x28] sm:$0xff]
      %v699 = vld [vmem:[%s247 + $0x30] sm:$0xff]
      %v700 = vld [vmem:[%s247 + $0x38] sm:$0xff]
      %v701 = vld [vmem:[%s247 + $0x40] sm:$0xff]
      %v702 = vld [vmem:[%s247 + $0x48] sm:$0xff]
      %v703 = vld [vmem:[%s247 + $0x50] sm:$0xff]
      %v704 = vld [vmem:[%s247 + $0x58] sm:$0xff]
      %v705 = vld [vmem:[%s247 + $0x60] sm:$0xff]
      %v706 = vld [vmem:[%s247 + $0x68] sm:$0xff]
      %v707 = vld [vmem:[%s247 + $0x70] sm:$0xff]
      %v708 = vld [vmem:[%s247 + $0x78] sm:$0xff]
      %v709 = vld [vmem:[%s247 + $0x80] sm:$0xff]
      %v710 = vld [vmem:[%s247 + $0x88] sm:$0xff]
      %v711 = vld [vmem:[%s247 + $0x90] sm:$0xff]
      %v712 = vld [vmem:[%s247 + $0x98] sm:$0xff]
      %v713 = vld [vmem:[%s247 + $0xa0] sm:$0xff]
      %v714 = vld [vmem:[%s247 + $0xa8] sm:$0xff]
      %v715 = vld [vmem:[%s247 + $0xb0] sm:$0xff]
      %v716 = vld [vmem:[%s247 + $0xb8] sm:$0xff]
      %v717 = vld [vmem:[%s247 + $0xc0] sm:$0xff]
      %v718 = vld [vmem:[%s247 + $0xc8] sm:$0xff]
      %v719 = vld [vmem:[%s247 + $0xd0] sm:$0xff]
      %v720 = vld [vmem:[%s247 + $0xd8] sm:$0xff]
      %v721 = vld [vmem:[%s247 + $0xe0] sm:$0xff]
      %v722 = vld [vmem:[%s247 + $0xe8] sm:$0xff]
      %v723 = vld [vmem:[%s247 + $0xf0] sm:$0xff]
      %v724 = vld [vmem:[%s247 + $0xf8] sm:$0xff]
      %v725 = vld [vmem:[%s247 + $0x100] sm:$0xff]
      %v726 = vld [vmem:[%s247 + $0x108] sm:$0xff]
      %v727 = vld [vmem:[%s247 + $0x110] sm:$0xff]
      %v728 = vld [vmem:[%s247 + $0x118] sm:$0xff]
      %v729 = vld [vmem:[%s247 + $0x120] sm:$0xff]
      %v730 = vld [vmem:[%s247 + $0x128] sm:$0xff]
      %v731 = vld [vmem:[%s247 + $0x130] sm:$0xff]
      %v732 = vld [vmem:[%s247 + $0x138] sm:$0xff]
      %v733 = vld [vmem:[%s247 + $0x140] sm:$0xff]
      %v734 = vld [vmem:[%s247 + $0x148] sm:$0xff]
      %v735 = vld [vmem:[%s247 + $0x150] sm:$0xff]
      %v736 = vld [vmem:[%s247 + $0x158] sm:$0xff]
      %v737 = vld [vmem:[%s247 + $0x160] sm:$0xff]
      %v738 = vld [vmem:[%s247 + $0x168] sm:$0xff]
      %v739 = vld [vmem:[%s247 + $0x170] sm:$0xff]
      %v740 = vld [vmem:[%s247 + $0x178] sm:$0xff]
      %v741 = vld [vmem:[%s247 + $0x180] sm:$0xff]
      %791 = vrot.lane.b32.xlu0 %v693, 72
      %v792 = vpop.permute.xlu0 %791
      %793 = vrot.lane.b32.xlu0 %v694, 72
      %v794 = vpop.permute.xlu0 %793
      %795 = vrot.lane.b32.xlu0 %v695, 72
      %v796 = vpop.permute.xlu0 %795
      %797 = vrot.lane.b32.xlu0 %v696, 72
      %v798 = vpop.permute.xlu0 %797
      %799 = vrot.lane.b32.xlu0 %v697, 72
      %v800 = vpop.permute.xlu0 %799
      %801 = vrot.lane.b32.xlu0 %v698, 72
      %v802 = vpop.permute.xlu0 %801
      %803 = vrot.lane.b32.xlu0 %v699, 72
      %v804 = vpop.permute.xlu0 %803
      %805 = vrot.lane.b32.xlu0 %v700, 72
      %v806 = vpop.permute.xlu0 %805
      %807 = vrot.lane.b32.xlu0 %v701, 72
      %v808 = vpop.permute.xlu0 %807
      %809 = vrot.lane.b32.xlu0 %v702, 72
      %v810 = vpop.permute.xlu0 %809
      %811 = vrot.lane.b32.xlu0 %v703, 72
      %v812 = vpop.permute.xlu0 %811
      %813 = vrot.lane.b32.xlu0 %v704, 72
      %v814 = vpop.permute.xlu0 %813
      %815 = vrot.lane.b32.xlu0 %v705, 72
      %v816 = vpop.permute.xlu0 %815
      %817 = vrot.lane.b32.xlu0 %v706, 72
      %v818 = vpop.permute.xlu0 %817
      %819 = vrot.lane.b32.xlu0 %v707, 72
      %v820 = vpop.permute.xlu0 %819
      %821 = vrot.lane.b32.xlu0 %v708, 72
      %v822 = vpop.permute.xlu0 %821
      %823 = vrot.lane.b32.xlu0 %v709, 72
      %v824 = vpop.permute.xlu0 %823
      %825 = vrot.lane.b32.xlu0 %v710, 72
      %v826 = vpop.permute.xlu0 %825
      %827 = vrot.lane.b32.xlu0 %v711, 72
      %v828 = vpop.permute.xlu0 %827
      %829 = vrot.lane.b32.xlu0 %v712, 72
      %v830 = vpop.permute.xlu0 %829
      %831 = vrot.lane.b32.xlu0 %v713, 72
      %v832 = vpop.permute.xlu0 %831
      %833 = vrot.lane.b32.xlu0 %v714, 72
      %v834 = vpop.permute.xlu0 %833
      %835 = vrot.lane.b32.xlu0 %v715, 72
      %v836 = vpop.permute.xlu0 %835
      %837 = vrot.lane.b32.xlu0 %v716, 72
      %v838 = vpop.permute.xlu0 %837
      %839 = vrot.lane.b32.xlu0 %v717, 72
      %v840 = vpop.permute.xlu0 %839
      %841 = vrot.lane.b32.xlu0 %v718, 72
      %v842 = vpop.permute.xlu0 %841
      %843 = vrot.lane.b32.xlu0 %v719, 72
      %v844 = vpop.permute.xlu0 %843
      %845 = vrot.lane.b32.xlu0 %v720, 72
      %v846 = vpop.permute.xlu0 %845
      %847 = vrot.lane.b32.xlu0 %v721, 72
      %v848 = vpop.permute.xlu0 %847
      %849 = vrot.lane.b32.xlu0 %v722, 72
      %v850 = vpop.permute.xlu0 %849
      %851 = vrot.lane.b32.xlu0 %v723, 72
      %v852 = vpop.permute.xlu0 %851
      %853 = vrot.lane.b32.xlu0 %v724, 72
      %v854 = vpop.permute.xlu0 %853
      %855 = vrot.lane.b32.xlu0 %v725, 72
      %v856 = vpop.permute.xlu0 %855
      %857 = vrot.lane.b32.xlu0 %v726, 72
      %v858 = vpop.permute.xlu0 %857
      %859 = vrot.lane.b32.xlu0 %v727, 72
      %v860 = vpop.permute.xlu0 %859
      %861 = vrot.lane.b32.xlu0 %v728, 72
      %v862 = vpop.permute.xlu0 %861
      %863 = vrot.lane.b32.xlu0 %v729, 72
      %v864 = vpop.permute.xlu0 %863
      %865 = vrot.lane.b32.xlu0 %v730, 72
      %v866 = vpop.permute.xlu0 %865
      %867 = vrot.lane.b32.xlu0 %v731, 72
      %v868 = vpop.permute.xlu0 %867
      %869 = vrot.lane.b32.xlu0 %v732, 72
      %v870 = vpop.permute.xlu0 %869
      %871 = vrot.lane.b32.xlu0 %v733, 72
      %v872 = vpop.permute.xlu0 %871
      %873 = vrot.lane.b32.xlu0 %v734, 72
      %v874 = vpop.permute.xlu0 %873
      %875 = vrot.lane.b32.xlu0 %v735, 72
      %v876 = vpop.permute.xlu0 %875
      %877 = vrot.lane.b32.xlu0 %v736, 72
      %v878 = vpop.permute.xlu0 %877
      %879 = vrot.lane.b32.xlu0 %v737, 72
      %v880 = vpop.permute.xlu0 %879
      %881 = vrot.lane.b32.xlu0 %v738, 72
      %v882 = vpop.permute.xlu0 %881
      %883 = vrot.lane.b32.xlu0 %v739, 72
      %v884 = vpop.permute.xlu0 %883
      %885 = vrot.lane.b32.xlu0 %v740, 72
      %v886 = vpop.permute.xlu0 %885
      %887 = vrot.lane.b32.xlu0 %v741, 72
      %v888 = vpop.permute.xlu0 %887
      %vm889 = vcmask 588800
      %v890 = vsel %vm889, %v792, %v794
      %v891 = vsel %vm889, %v794, %v796
      %v892 = vsel %vm889, %v796, %v798
      %v893 = vsel %vm889, %v798, %v800
      %v894 = vsel %vm889, %v800, %v802
      %v895 = vsel %vm889, %v802, %v804
      %v896 = vsel %vm889, %v804, %v806
      %v897 = vsel %vm889, %v806, %v808
      %v898 = vsel %vm889, %v808, %v810
      %v899 = vsel %vm889, %v810, %v812
      %v900 = vsel %vm889, %v812, %v814
      %v901 = vsel %vm889, %v814, %v816
      %v902 = vsel %vm889, %v816, %v818
      %v903 = vsel %vm889, %v818, %v820
      %v904 = vsel %vm889, %v820, %v822
      %v905 = vsel %vm889, %v822, %v824
      %v906 = vsel %vm889, %v824, %v826
      %v907 = vsel %vm889, %v826, %v828
      %v908 = vsel %vm889, %v828, %v830
      %v909 = vsel %vm889, %v830, %v832
      %v910 = vsel %vm889, %v832, %v834
      %v911 = vsel %vm889, %v834, %v836
      %v912 = vsel %vm889, %v836, %v838
      %v913 = vsel %vm889, %v838, %v840
      %v914 = vsel %vm889, %v840, %v842
      %v915 = vsel %vm889, %v842, %v844
      %v916 = vsel %vm889, %v844, %v846
      %v917 = vsel %vm889, %v846, %v848
      %v918 = vsel %vm889, %v848, %v850
      %v919 = vsel %vm889, %v850, %v852
      %v920 = vsel %vm889, %v852, %v854
      %v921 = vsel %vm889, %v854, %v856
      %v922 = vsel %vm889, %v856, %v858
      %v923 = vsel %vm889, %v858, %v860
      %v924 = vsel %vm889, %v860, %v862
      %v925 = vsel %vm889, %v862, %v864
      %v926 = vsel %vm889, %v864, %v866
      %v927 = vsel %vm889, %v866, %v868
      %v928 = vsel %vm889, %v868, %v870
      %v929 = vsel %vm889, %v870, %v872
      %v930 = vsel %vm889, %v872, %v874
      %v931 = vsel %vm889, %v874, %v876
      %v932 = vsel %vm889, %v876, %v878
      %v933 = vsel %vm889, %v878, %v880
      %v934 = vsel %vm889, %v880, %v882
      %v935 = vsel %vm889, %v882, %v884
      %v936 = vsel %vm889, %v884, %v886
      %v937 = vsel %vm889, %v886, %v888
      %986 = vst [vmem:[#allocation3 + $0x300] sm:$0xff] %v890
      %987 = vst [vmem:[#allocation3 + $0x308] sm:$0xff] %v891
      %988 = vst [vmem:[#allocation3 + $0x310] sm:$0xff] %v892
      %989 = vst [vmem:[#allocation3 + $0x318] sm:$0xff] %v893
      %990 = vst [vmem:[#allocation3 + $0x320] sm:$0xff] %v894
      %991 = vst [vmem:[#allocation3 + $0x328] sm:$0xff] %v895
      %992 = vst [vmem:[#allocation3 + $0x330] sm:$0xff] %v896
      %993 = vst [vmem:[#allocation3 + $0x338] sm:$0xff] %v897
      %994 = vst [vmem:[#allocation3 + $0x340] sm:$0xff] %v898
      %995 = vst [vmem:[#allocation3 + $0x348] sm:$0xff] %v899
      %996 = vst [vmem:[#allocation3 + $0x350] sm:$0xff] %v900
      %997 = vst [vmem:[#allocation3 + $0x358] sm:$0xff] %v901
      %998 = vst [vmem:[#allocation3 + $0x360] sm:$0xff] %v902
      %999 = vst [vmem:[#allocation3 + $0x368] sm:$0xff] %v903
      %1000 = vst [vmem:[#allocation3 + $0x370] sm:$0xff] %v904
      %1001 = vst [vmem:[#allocation3 + $0x378] sm:$0xff] %v905
      %1002 = vst [vmem:[#allocation3 + $0x380] sm:$0xff] %v906
      %1003 = vst [vmem:[#allocation3 + $0x388] sm:$0xff] %v907
      %1004 = vst [vmem:[#allocation3 + $0x390] sm:$0xff] %v908
      %1005 = vst [vmem:[#allocation3 + $0x398] sm:$0xff] %v909
      %1006 = vst [vmem:[#allocation3 + $0x3a0] sm:$0xff] %v910
      %1007 = vst [vmem:[#allocation3 + $0x3a8] sm:$0xff] %v911
      %1008 = vst [vmem:[#allocation3 + $0x3b0] sm:$0xff] %v912
      %1009 = vst [vmem:[#allocation3 + $0x3b8] sm:$0xff] %v913
      %1010 = vst [vmem:[#allocation3 + $0x3c0] sm:$0xff] %v914
      %1011 = vst [vmem:[#allocation3 + $0x3c8] sm:$0xff] %v915
      %1012 = vst [vmem:[#allocation3 + $0x3d0] sm:$0xff] %v916
      %1013 = vst [vmem:[#allocation3 + $0x3d8] sm:$0xff] %v917
      %1014 = vst [vmem:[#allocation3 + $0x3e0] sm:$0xff] %v918
      %1015 = vst [vmem:[#allocation3 + $0x3e8] sm:$0xff] %v919
      %1016 = vst [vmem:[#allocation3 + $0x3f0] sm:$0xff] %v920
      %1017 = vst [vmem:[#allocation3 + $0x3f8] sm:$0xff] %v921
      %1018 = vst [vmem:[#allocation3 + $0x400] sm:$0xff] %v922
      %1019 = vst [vmem:[#allocation3 + $0x408] sm:$0xff] %v923
      %1020 = vst [vmem:[#allocation3 + $0x410] sm:$0xff] %v924
      %1021 = vst [vmem:[#allocation3 + $0x418] sm:$0xff] %v925
      %1022 = vst [vmem:[#allocation3 + $0x420] sm:$0xff] %v926
      %1023 = vst [vmem:[#allocation3 + $0x428] sm:$0xff] %v927
      %1024 = vst [vmem:[#allocation3 + $0x430] sm:$0xff] %v928
      %1025 = vst [vmem:[#allocation3 + $0x438] sm:$0xff] %v929
      %1026 = vst [vmem:[#allocation3 + $0x440] sm:$0xff] %v930
      %1027 = vst [vmem:[#allocation3 + $0x448] sm:$0xff] %v931
      %1028 = vst [vmem:[#allocation3 + $0x450] sm:$0xff] %v932
      %1029 = vst [vmem:[#allocation3 + $0x458] sm:$0xff] %v933
      %1030 = vst [vmem:[#allocation3 + $0x460] sm:$0xff] %v934
      %1031 = vst [vmem:[#allocation3 + $0x468] sm:$0xff] %v935
      %1032 = vst [vmem:[#allocation3 + $0x470] sm:$0xff] %v936
      %1033 = vst.msk [vmem:[#allocation3 + $0x478] sm:$0xff] %vm355, %v937
      %v1034 = vld [vmem:[%s247] sm:$0xff]
      %v1035 = vld [vmem:[%s247 + $0x8] sm:$0xff]
      %v1036 = vld [vmem:[%s247 + $0x10] sm:$0xff]
      %v1037 = vld [vmem:[%s247 + $0x18] sm:$0xff]
      %v1038 = vld [vmem:[%s247 + $0x20] sm:$0xff]
      %v1039 = vld [vmem:[%s247 + $0x28] sm:$0xff]
      %v1040 = vld [vmem:[%s247 + $0x30] sm:$0xff]
      %v1041 = vld [vmem:[%s247 + $0x38] sm:$0xff]
      %v1042 = vld [vmem:[%s247 + $0x40] sm:$0xff]
      %v1043 = vld [vmem:[%s247 + $0x48] sm:$0xff]
      %v1044 = vld [vmem:[%s247 + $0x50] sm:$0xff]
      %v1045 = vld [vmem:[%s247 + $0x58] sm:$0xff]
      %v1046 = vld [vmem:[%s247 + $0x60] sm:$0xff]
      %v1047 = vld [vmem:[%s247 + $0x68] sm:$0xff]
      %v1048 = vld [vmem:[%s247 + $0x70] sm:$0xff]
      %v1049 = vld [vmem:[%s247 + $0x78] sm:$0xff]
      %v1050 = vld [vmem:[%s247 + $0x80] sm:$0xff]
      %v1051 = vld [vmem:[%s247 + $0x88] sm:$0xff]
      %v1052 = vld [vmem:[%s247 + $0x90] sm:$0xff]
      %v1053 = vld [vmem:[%s247 + $0x98] sm:$0xff]
      %v1054 = vld [vmem:[%s247 + $0xa0] sm:$0xff]
      %v1055 = vld [vmem:[%s247 + $0xa8] sm:$0xff]
      %v1056 = vld [vmem:[%s247 + $0xb0] sm:$0xff]
      %v1057 = vld [vmem:[%s247 + $0xb8] sm:$0xff]
      %v1058 = vld [vmem:[%s247 + $0xc0] sm:$0xff]
      %v1059 = vld [vmem:[%s247 + $0xc8] sm:$0xff]
      %v1060 = vld [vmem:[%s247 + $0xd0] sm:$0xff]
      %v1061 = vld [vmem:[%s247 + $0xd8] sm:$0xff]
      %v1062 = vld [vmem:[%s247 + $0xe0] sm:$0xff]
      %v1063 = vld [vmem:[%s247 + $0xe8] sm:$0xff]
      %v1064 = vld [vmem:[%s247 + $0xf0] sm:$0xff]
      %v1065 = vld [vmem:[%s247 + $0xf8] sm:$0xff]
      %v1066 = vld [vmem:[%s247 + $0x100] sm:$0xff]
      %v1067 = vld [vmem:[%s247 + $0x108] sm:$0xff]
      %v1068 = vld [vmem:[%s247 + $0x110] sm:$0xff]
      %v1069 = vld [vmem:[%s247 + $0x118] sm:$0xff]
      %v1070 = vld [vmem:[%s247 + $0x120] sm:$0xff]
      %v1071 = vld [vmem:[%s247 + $0x128] sm:$0xff]
      %v1072 = vld [vmem:[%s247 + $0x130] sm:$0xff]
      %v1073 = vld [vmem:[%s247 + $0x138] sm:$0xff]
      %v1074 = vld [vmem:[%s247 + $0x140] sm:$0xff]
      %v1075 = vld [vmem:[%s247 + $0x148] sm:$0xff]
      %v1076 = vld [vmem:[%s247 + $0x150] sm:$0xff]
      %v1077 = vld [vmem:[%s247 + $0x158] sm:$0xff]
      %v1078 = vld [vmem:[%s247 + $0x160] sm:$0xff]
      %v1079 = vld [vmem:[%s247 + $0x168] sm:$0xff]
      %v1080 = vld [vmem:[%s247 + $0x170] sm:$0xff]
      %v1081 = vld [vmem:[%s247 + $0x178] sm:$0xff]
      %v1082 = vld [vmem:[%s247 + $0x180] sm:$0xff]
      %1132 = vrot.lane.b32.xlu0 %v1034, 44
      %v1133 = vpop.permute.xlu0 %1132
      %1134 = vrot.lane.b32.xlu0 %v1035, 44
      %v1135 = vpop.permute.xlu0 %1134
      %1136 = vrot.lane.b32.xlu0 %v1036, 44
      %v1137 = vpop.permute.xlu0 %1136
      %1138 = vrot.lane.b32.xlu0 %v1037, 44
      %v1139 = vpop.permute.xlu0 %1138
      %1140 = vrot.lane.b32.xlu0 %v1038, 44
      %v1141 = vpop.permute.xlu0 %1140
      %1142 = vrot.lane.b32.xlu0 %v1039, 44
      %v1143 = vpop.permute.xlu0 %1142
      %1144 = vrot.lane.b32.xlu0 %v1040, 44
      %v1145 = vpop.permute.xlu0 %1144
      %1146 = vrot.lane.b32.xlu0 %v1041, 44
      %v1147 = vpop.permute.xlu0 %1146
      %1148 = vrot.lane.b32.xlu0 %v1042, 44
      %v1149 = vpop.permute.xlu0 %1148
      %1150 = vrot.lane.b32.xlu0 %v1043, 44
      %v1151 = vpop.permute.xlu0 %1150
      %1152 = vrot.lane.b32.xlu0 %v1044, 44
      %v1153 = vpop.permute.xlu0 %1152
      %1154 = vrot.lane.b32.xlu0 %v1045, 44
      %v1155 = vpop.permute.xlu0 %1154
      %1156 = vrot.lane.b32.xlu0 %v1046, 44
      %v1157 = vpop.permute.xlu0 %1156
      %1158 = vrot.lane.b32.xlu0 %v1047, 44
      %v1159 = vpop.permute.xlu0 %1158
      %1160 = vrot.lane.b32.xlu0 %v1048, 44
      %v1161 = vpop.permute.xlu0 %1160
      %1162 = vrot.lane.b32.xlu0 %v1049, 44
      %v1163 = vpop.permute.xlu0 %1162
      %1164 = vrot.lane.b32.xlu0 %v1050, 44
      %v1165 = vpop.permute.xlu0 %1164
      %1166 = vrot.lane.b32.xlu0 %v1051, 44
      %v1167 = vpop.permute.xlu0 %1166
      %1168 = vrot.lane.b32.xlu0 %v1052, 44
      %v1169 = vpop.permute.xlu0 %1168
      %1170 = vrot.lane.b32.xlu0 %v1053, 44
      %v1171 = vpop.permute.xlu0 %1170
      %1172 = vrot.lane.b32.xlu0 %v1054, 44
      %v1173 = vpop.permute.xlu0 %1172
      %1174 = vrot.lane.b32.xlu0 %v1055, 44
      %v1175 = vpop.permute.xlu0 %1174
      %1176 = vrot.lane.b32.xlu0 %v1056, 44
      %v1177 = vpop.permute.xlu0 %1176
      %1178 = vrot.lane.b32.xlu0 %v1057, 44
      %v1179 = vpop.permute.xlu0 %1178
      %1180 = vrot.lane.b32.xlu0 %v1058, 44
      %v1181 = vpop.permute.xlu0 %1180
      %1182 = vrot.lane.b32.xlu0 %v1059, 44
      %v1183 = vpop.permute.xlu0 %1182
      %1184 = vrot.lane.b32.xlu0 %v1060, 44
      %v1185 = vpop.permute.xlu0 %1184
      %1186 = vrot.lane.b32.xlu0 %v1061, 44
      %v1187 = vpop.permute.xlu0 %1186
      %1188 = vrot.lane.b32.xlu0 %v1062, 44
      %v1189 = vpop.permute.xlu0 %1188
      %1190 = vrot.lane.b32.xlu0 %v1063, 44
      %v1191 = vpop.permute.xlu0 %1190
      %1192 = vrot.lane.b32.xlu0 %v1064, 44
      %v1193 = vpop.permute.xlu0 %1192
      %1194 = vrot.lane.b32.xlu0 %v1065, 44
      %v1195 = vpop.permute.xlu0 %1194
      %1196 = vrot.lane.b32.xlu0 %v1066, 44
      %v1197 = vpop.permute.xlu0 %1196
      %1198 = vrot.lane.b32.xlu0 %v1067, 44
      %v1199 = vpop.permute.xlu0 %1198
      %1200 = vrot.lane.b32.xlu0 %v1068, 44
      %v1201 = vpop.permute.xlu0 %1200
      %1202 = vrot.lane.b32.xlu0 %v1069, 44
      %v1203 = vpop.permute.xlu0 %1202
      %1204 = vrot.lane.b32.xlu0 %v1070, 44
      %v1205 = vpop.permute.xlu0 %1204
      %1206 = vrot.lane.b32.xlu0 %v1071, 44
      %v1207 = vpop.permute.xlu0 %1206
      %1208 = vrot.lane.b32.xlu0 %v1072, 44
      %v1209 = vpop.permute.xlu0 %1208
      %1210 = vrot.lane.b32.xlu0 %v1073, 44
      %v1211 = vpop.permute.xlu0 %1210
      %1212 = vrot.lane.b32.xlu0 %v1074, 44
      %v1213 = vpop.permute.xlu0 %1212
      %1214 = vrot.lane.b32.xlu0 %v1075, 44
      %v1215 = vpop.permute.xlu0 %1214
      %1216 = vrot.lane.b32.xlu0 %v1076, 44
      %v1217 = vpop.permute.xlu0 %1216
      %1218 = vrot.lane.b32.xlu0 %v1077, 44
      %v1219 = vpop.permute.xlu0 %1218
      %1220 = vrot.lane.b32.xlu0 %v1078, 44
      %v1221 = vpop.permute.xlu0 %1220
      %1222 = vrot.lane.b32.xlu0 %v1079, 44
      %v1223 = vpop.permute.xlu0 %1222
      %1224 = vrot.lane.b32.xlu0 %v1080, 44
      %v1225 = vpop.permute.xlu0 %1224
      %1226 = vrot.lane.b32.xlu0 %v1081, 44
      %v1227 = vpop.permute.xlu0 %1226
      %1228 = vrot.lane.b32.xlu0 %v1082, 44
      %v1229 = vpop.permute.xlu0 %1228
      %vm1230 = vcmask 359424
      %v1231 = vsel %vm1230, %v1133, %v1135
      %v1232 = vsel %vm1230, %v1135, %v1137
      %v1233 = vsel %vm1230, %v1137, %v1139
      %v1234 = vsel %vm1230, %v1139, %v1141
      %v1235 = vsel %vm1230, %v1141, %v1143
      %v1236 = vsel %vm1230, %v1143, %v1145
      %v1237 = vsel %vm1230, %v1145, %v1147
      %v1238 = vsel %vm1230, %v1147, %v1149
      %v1239 = vsel %vm1230, %v1149, %v1151
      %v1240 = vsel %vm1230, %v1151, %v1153
      %v1241 = vsel %vm1230, %v1153, %v1155
      %v1242 = vsel %vm1230, %v1155, %v1157
      %v1243 = vsel %vm1230, %v1157, %v1159
      %v1244 = vsel %vm1230, %v1159, %v1161
      %v1245 = vsel %vm1230, %v1161, %v1163
      %v1246 = vsel %vm1230, %v1163, %v1165
      %v1247 = vsel %vm1230, %v1165, %v1167
      %v1248 = vsel %vm1230, %v1167, %v1169
      %v1249 = vsel %vm1230, %v1169, %v1171
      %v1250 = vsel %vm1230, %v1171, %v1173
      %v1251 = vsel %vm1230, %v1173, %v1175
      %v1252 = vsel %vm1230, %v1175, %v1177
      %v1253 = vsel %vm1230, %v1177, %v1179
      %v1254 = vsel %vm1230, %v1179, %v1181
      %v1255 = vsel %vm1230, %v1181, %v1183
      %v1256 = vsel %vm1230, %v1183, %v1185
      %v1257 = vsel %vm1230, %v1185, %v1187
      %v1258 = vsel %vm1230, %v1187, %v1189
      %v1259 = vsel %vm1230, %v1189, %v1191
      %v1260 = vsel %vm1230, %v1191, %v1193
      %v1261 = vsel %vm1230, %v1193, %v1195
      %v1262 = vsel %vm1230, %v1195, %v1197
      %v1263 = vsel %vm1230, %v1197, %v1199
      %v1264 = vsel %vm1230, %v1199, %v1201
      %v1265 = vsel %vm1230, %v1201, %v1203
      %v1266 = vsel %vm1230, %v1203, %v1205
      %v1267 = vsel %vm1230, %v1205, %v1207
      %v1268 = vsel %vm1230, %v1207, %v1209
      %v1269 = vsel %vm1230, %v1209, %v1211
      %v1270 = vsel %vm1230, %v1211, %v1213
      %v1271 = vsel %vm1230, %v1213, %v1215
      %v1272 = vsel %vm1230, %v1215, %v1217
      %v1273 = vsel %vm1230, %v1217, %v1219
      %v1274 = vsel %vm1230, %v1219, %v1221
      %v1275 = vsel %vm1230, %v1221, %v1223
      %v1276 = vsel %vm1230, %v1223, %v1225
      %v1277 = vsel %vm1230, %v1225, %v1227
      %v1278 = vsel %vm1230, %v1227, %v1229
      %1327 = vst [vmem:[#allocation3 + $0x480] sm:$0xff] %v1231
      %1328 = vst [vmem:[#allocation3 + $0x488] sm:$0xff] %v1232
      %1329 = vst [vmem:[#allocation3 + $0x490] sm:$0xff] %v1233
      %1330 = vst [vmem:[#allocation3 + $0x498] sm:$0xff] %v1234
      %1331 = vst [vmem:[#allocation3 + $0x4a0] sm:$0xff] %v1235
      %1332 = vst [vmem:[#allocation3 + $0x4a8] sm:$0xff] %v1236
      %1333 = vst [vmem:[#allocation3 + $0x4b0] sm:$0xff] %v1237
      %1334 = vst [vmem:[#allocation3 + $0x4b8] sm:$0xff] %v1238
      %1335 = vst [vmem:[#allocation3 + $0x4c0] sm:$0xff] %v1239
      %1336 = vst [vmem:[#allocation3 + $0x4c8] sm:$0xff] %v1240
      %1337 = vst [vmem:[#allocation3 + $0x4d0] sm:$0xff] %v1241
      %1338 = vst [vmem:[#allocation3 + $0x4d8] sm:$0xff] %v1242
      %1339 = vst [vmem:[#allocation3 + $0x4e0] sm:$0xff] %v1243
      %1340 = vst [vmem:[#allocation3 + $0x4e8] sm:$0xff] %v1244
      %1341 = vst [vmem:[#allocation3 + $0x4f0] sm:$0xff] %v1245
      %1342 = vst [vmem:[#allocation3 + $0x4f8] sm:$0xff] %v1246
      %1343 = vst [vmem:[#allocation3 + $0x500] sm:$0xff] %v1247
      %1344 = vst [vmem:[#allocation3 + $0x508] sm:$0xff] %v1248
      %1345 = vst [vmem:[#allocation3 + $0x510] sm:$0xff] %v1249
      %1346 = vst [vmem:[#allocation3 + $0x518] sm:$0xff] %v1250
      %1347 = vst [vmem:[#allocation3 + $0x520] sm:$0xff] %v1251
      %1348 = vst [vmem:[#allocation3 + $0x528] sm:$0xff] %v1252
      %1349 = vst [vmem:[#allocation3 + $0x530] sm:$0xff] %v1253
      %1350 = vst [vmem:[#allocation3 + $0x538] sm:$0xff] %v1254
      %1351 = vst [vmem:[#allocation3 + $0x540] sm:$0xff] %v1255
      %1352 = vst [vmem:[#allocation3 + $0x548] sm:$0xff] %v1256
      %1353 = vst [vmem:[#allocation3 + $0x550] sm:$0xff] %v1257
      %1354 = vst [vmem:[#allocation3 + $0x558] sm:$0xff] %v1258
      %1355 = vst [vmem:[#allocation3 + $0x560] sm:$0xff] %v1259
      %1356 = vst [vmem:[#allocation3 + $0x568] sm:$0xff] %v1260
      %1357 = vst [vmem:[#allocation3 + $0x570] sm:$0xff] %v1261
      %1358 = vst [vmem:[#allocation3 + $0x578] sm:$0xff] %v1262
      %1359 = vst [vmem:[#allocation3 + $0x580] sm:$0xff] %v1263
      %1360 = vst [vmem:[#allocation3 + $0x588] sm:$0xff] %v1264
      %1361 = vst [vmem:[#allocation3 + $0x590] sm:$0xff] %v1265
      %1362 = vst [vmem:[#allocation3 + $0x598] sm:$0xff] %v1266
      %1363 = vst [vmem:[#allocation3 + $0x5a0] sm:$0xff] %v1267
      %1364 = vst [vmem:[#allocation3 + $0x5a8] sm:$0xff] %v1268
      %1365 = vst [vmem:[#allocation3 + $0x5b0] sm:$0xff] %v1269
      %1366 = vst [vmem:[#allocation3 + $0x5b8] sm:$0xff] %v1270
      %1367 = vst [vmem:[#allocation3 + $0x5c0] sm:$0xff] %v1271
      %1368 = vst [vmem:[#allocation3 + $0x5c8] sm:$0xff] %v1272
      %1369 = vst [vmem:[#allocation3 + $0x5d0] sm:$0xff] %v1273
      %1370 = vst [vmem:[#allocation3 + $0x5d8] sm:$0xff] %v1274
      %1371 = vst [vmem:[#allocation3 + $0x5e0] sm:$0xff] %v1275
      %1372 = vst [vmem:[#allocation3 + $0x5e8] sm:$0xff] %v1276
      %1373 = vst [vmem:[#allocation3 + $0x5f0] sm:$0xff] %v1277
      %1374 = vst.msk [vmem:[#allocation3 + $0x5f8] sm:$0xff] %vm355, %v1278
      %v1375 = vld [vmem:[%s247] sm:$0xff]
      %v1376 = vld [vmem:[%s247 + $0x8] sm:$0xff]
      %v1377 = vld [vmem:[%s247 + $0x10] sm:$0xff]
      %v1378 = vld [vmem:[%s247 + $0x18] sm:$0xff]
      %v1379 = vld [vmem:[%s247 + $0x20] sm:$0xff]
      %v1380 = vld [vmem:[%s247 + $0x28] sm:$0xff]
      %v1381 = vld [vmem:[%s247 + $0x30] sm:$0xff]
      %v1382 = vld [vmem:[%s247 + $0x38] sm:$0xff]
      %v1383 = vld [vmem:[%s247 + $0x40] sm:$0xff]
      %v1384 = vld [vmem:[%s247 + $0x48] sm:$0xff]
      %v1385 = vld [vmem:[%s247 + $0x50] sm:$0xff]
      %v1386 = vld [vmem:[%s247 + $0x58] sm:$0xff]
      %v1387 = vld [vmem:[%s247 + $0x60] sm:$0xff]
      %v1388 = vld [vmem:[%s247 + $0x68] sm:$0xff]
      %v1389 = vld [vmem:[%s247 + $0x70] sm:$0xff]
      %v1390 = vld [vmem:[%s247 + $0x78] sm:$0xff]
      %v1391 = vld [vmem:[%s247 + $0x80] sm:$0xff]
      %v1392 = vld [vmem:[%s247 + $0x88] sm:$0xff]
      %v1393 = vld [vmem:[%s247 + $0x90] sm:$0xff]
      %v1394 = vld [vmem:[%s247 + $0x98] sm:$0xff]
      %v1395 = vld [vmem:[%s247 + $0xa0] sm:$0xff]
      %v1396 = vld [vmem:[%s247 + $0xa8] sm:$0xff]
      %v1397 = vld [vmem:[%s247 + $0xb0] sm:$0xff]
      %v1398 = vld [vmem:[%s247 + $0xb8] sm:$0xff]
      %v1399 = vld [vmem:[%s247 + $0xc0] sm:$0xff]
      %v1400 = vld [vmem:[%s247 + $0xc8] sm:$0xff]
      %v1401 = vld [vmem:[%s247 + $0xd0] sm:$0xff]
      %v1402 = vld [vmem:[%s247 + $0xd8] sm:$0xff]
      %v1403 = vld [vmem:[%s247 + $0xe0] sm:$0xff]
      %v1404 = vld [vmem:[%s247 + $0xe8] sm:$0xff]
      %v1405 = vld [vmem:[%s247 + $0xf0] sm:$0xff]
      %v1406 = vld [vmem:[%s247 + $0xf8] sm:$0xff]
      %v1407 = vld [vmem:[%s247 + $0x100] sm:$0xff]
      %v1408 = vld [vmem:[%s247 + $0x108] sm:$0xff]
      %v1409 = vld [vmem:[%s247 + $0x110] sm:$0xff]
      %v1410 = vld [vmem:[%s247 + $0x118] sm:$0xff]
      %v1411 = vld [vmem:[%s247 + $0x120] sm:$0xff]
      %v1412 = vld [vmem:[%s247 + $0x128] sm:$0xff]
      %v1413 = vld [vmem:[%s247 + $0x130] sm:$0xff]
      %v1414 = vld [vmem:[%s247 + $0x138] sm:$0xff]
      %v1415 = vld [vmem:[%s247 + $0x140] sm:$0xff]
      %v1416 = vld [vmem:[%s247 + $0x148] sm:$0xff]
      %v1417 = vld [vmem:[%s247 + $0x150] sm:$0xff]
      %v1418 = vld [vmem:[%s247 + $0x158] sm:$0xff]
      %v1419 = vld [vmem:[%s247 + $0x160] sm:$0xff]
      %v1420 = vld [vmem:[%s247 + $0x168] sm:$0xff]
      %v1421 = vld [vmem:[%s247 + $0x170] sm:$0xff]
      %v1422 = vld [vmem:[%s247 + $0x178] sm:$0xff]
      %v1423 = vld [vmem:[%s247 + $0x180] sm:$0xff]
      %1473 = vrot.lane.b32.xlu0 %v1375, 16
      %v1474 = vpop.permute.xlu0 %1473
      %1475 = vrot.lane.b32.xlu0 %v1376, 16
      %v1476 = vpop.permute.xlu0 %1475
      %1477 = vrot.lane.b32.xlu0 %v1377, 16
      %v1478 = vpop.permute.xlu0 %1477
      %1479 = vrot.lane.b32.xlu0 %v1378, 16
      %v1480 = vpop.permute.xlu0 %1479
      %1481 = vrot.lane.b32.xlu0 %v1379, 16
      %v1482 = vpop.permute.xlu0 %1481
      %1483 = vrot.lane.b32.xlu0 %v1380, 16
      %v1484 = vpop.permute.xlu0 %1483
      %1485 = vrot.lane.b32.xlu0 %v1381, 16
      %v1486 = vpop.permute.xlu0 %1485
      %1487 = vrot.lane.b32.xlu0 %v1382, 16
      %v1488 = vpop.permute.xlu0 %1487
      %1489 = vrot.lane.b32.xlu0 %v1383, 16
      %v1490 = vpop.permute.xlu0 %1489
      %1491 = vrot.lane.b32.xlu0 %v1384, 16
      %v1492 = vpop.permute.xlu0 %1491
      %1493 = vrot.lane.b32.xlu0 %v1385, 16
      %v1494 = vpop.permute.xlu0 %1493
      %1495 = vrot.lane.b32.xlu0 %v1386, 16
      %v1496 = vpop.permute.xlu0 %1495
      %1497 = vrot.lane.b32.xlu0 %v1387, 16
      %v1498 = vpop.permute.xlu0 %1497
      %1499 = vrot.lane.b32.xlu0 %v1388, 16
      %v1500 = vpop.permute.xlu0 %1499
      %1501 = vrot.lane.b32.xlu0 %v1389, 16
      %v1502 = vpop.permute.xlu0 %1501
      %1503 = vrot.lane.b32.xlu0 %v1390, 16
      %v1504 = vpop.permute.xlu0 %1503
      %1505 = vrot.lane.b32.xlu0 %v1391, 16
      %v1506 = vpop.permute.xlu0 %1505
      %1507 = vrot.lane.b32.xlu0 %v1392, 16
      %v1508 = vpop.permute.xlu0 %1507
      %1509 = vrot.lane.b32.xlu0 %v1393, 16
      %v1510 = vpop.permute.xlu0 %1509
      %1511 = vrot.lane.b32.xlu0 %v1394, 16
      %v1512 = vpop.permute.xlu0 %1511
      %1513 = vrot.lane.b32.xlu0 %v1395, 16
      %v1514 = vpop.permute.xlu0 %1513
      %1515 = vrot.lane.b32.xlu0 %v1396, 16
      %v1516 = vpop.permute.xlu0 %1515
      %1517 = vrot.lane.b32.xlu0 %v1397, 16
      %v1518 = vpop.permute.xlu0 %1517
      %1519 = vrot.lane.b32.xlu0 %v1398, 16
      %v1520 = vpop.permute.xlu0 %1519
      %1521 = vrot.lane.b32.xlu0 %v1399, 16
      %v1522 = vpop.permute.xlu0 %1521
      %1523 = vrot.lane.b32.xlu0 %v1400, 16
      %v1524 = vpop.permute.xlu0 %1523
      %1525 = vrot.lane.b32.xlu0 %v1401, 16
      %v1526 = vpop.permute.xlu0 %1525
      %1527 = vrot.lane.b32.xlu0 %v1402, 16
      %v1528 = vpop.permute.xlu0 %1527
      %1529 = vrot.lane.b32.xlu0 %v1403, 16
      %v1530 = vpop.permute.xlu0 %1529
      %1531 = vrot.lane.b32.xlu0 %v1404, 16
      %v1532 = vpop.permute.xlu0 %1531
      %1533 = vrot.lane.b32.xlu0 %v1405, 16
      %v1534 = vpop.permute.xlu0 %1533
      %1535 = vrot.lane.b32.xlu0 %v1406, 16
      %v1536 = vpop.permute.xlu0 %1535
      %1537 = vrot.lane.b32.xlu0 %v1407, 16
      %v1538 = vpop.permute.xlu0 %1537
      %1539 = vrot.lane.b32.xlu0 %v1408, 16
      %v1540 = vpop.permute.xlu0 %1539
      %1541 = vrot.lane.b32.xlu0 %v1409, 16
      %v1542 = vpop.permute.xlu0 %1541
      %1543 = vrot.lane.b32.xlu0 %v1410, 16
      %v1544 = vpop.permute.xlu0 %1543
      %1545 = vrot.lane.b32.xlu0 %v1411, 16
      %v1546 = vpop.permute.xlu0 %1545
      %1547 = vrot.lane.b32.xlu0 %v1412, 16
      %v1548 = vpop.permute.xlu0 %1547
      %1549 = vrot.lane.b32.xlu0 %v1413, 16
      %v1550 = vpop.permute.xlu0 %1549
      %1551 = vrot.lane.b32.xlu0 %v1414, 16
      %v1552 = vpop.permute.xlu0 %1551
      %1553 = vrot.lane.b32.xlu0 %v1415, 16
      %v1554 = vpop.permute.xlu0 %1553
      %1555 = vrot.lane.b32.xlu0 %v1416, 16
      %v1556 = vpop.permute.xlu0 %1555
      %1557 = vrot.lane.b32.xlu0 %v1417, 16
      %v1558 = vpop.permute.xlu0 %1557
      %1559 = vrot.lane.b32.xlu0 %v1418, 16
      %v1560 = vpop.permute.xlu0 %1559
      %1561 = vrot.lane.b32.xlu0 %v1419, 16
      %v1562 = vpop.permute.xlu0 %1561
      %1563 = vrot.lane.b32.xlu0 %v1420, 16
      %v1564 = vpop.permute.xlu0 %1563
      %1565 = vrot.lane.b32.xlu0 %v1421, 16
      %v1566 = vpop.permute.xlu0 %1565
      %1567 = vrot.lane.b32.xlu0 %v1422, 16
      %v1568 = vpop.permute.xlu0 %1567
      %1569 = vrot.lane.b32.xlu0 %v1423, 16
      %v1570 = vpop.permute.xlu0 %1569
      %vm1571 = vcmask 130048
      %v1572 = vsel %vm1571, %v1474, %v1476
      %v1573 = vsel %vm1571, %v1476, %v1478
      %v1574 = vsel %vm1571, %v1478, %v1480
      %v1575 = vsel %vm1571, %v1480, %v1482
      %v1576 = vsel %vm1571, %v1482, %v1484
      %v1577 = vsel %vm1571, %v1484, %v1486
      %v1578 = vsel %vm1571, %v1486, %v1488
      %v1579 = vsel %vm1571, %v1488, %v1490
      %v1580 = vsel %vm1571, %v1490, %v1492
      %v1581 = vsel %vm1571, %v1492, %v1494
      %v1582 = vsel %vm1571, %v1494, %v1496
      %v1583 = vsel %vm1571, %v1496, %v1498
      %v1584 = vsel %vm1571, %v1498, %v1500
      %v1585 = vsel %vm1571, %v1500, %v1502
      %v1586 = vsel %vm1571, %v1502, %v1504
      %v1587 = vsel %vm1571, %v1504, %v1506
      %v1588 = vsel %vm1571, %v1506, %v1508
      %v1589 = vsel %vm1571, %v1508, %v1510
      %v1590 = vsel %vm1571, %v1510, %v1512
      %v1591 = vsel %vm1571, %v1512, %v1514
      %v1592 = vsel %vm1571, %v1514, %v1516
      %v1593 = vsel %vm1571, %v1516, %v1518
      %v1594 = vsel %vm1571, %v1518, %v1520
      %v1595 = vsel %vm1571, %v1520, %v1522
      %v1596 = vsel %vm1571, %v1522, %v1524
      %v1597 = vsel %vm1571, %v1524, %v1526
      %v1598 = vsel %vm1571, %v1526, %v1528
      %v1599 = vsel %vm1571, %v1528, %v1530
      %v1600 = vsel %vm1571, %v1530, %v1532
      %v1601 = vsel %vm1571, %v1532, %v1534
      %v1602 = vsel %vm1571, %v1534, %v1536
      %v1603 = vsel %vm1571, %v1536, %v1538
      %v1604 = vsel %vm1571, %v1538, %v1540
      %v1605 = vsel %vm1571, %v1540, %v1542
      %v1606 = vsel %vm1571, %v1542, %v1544
      %v1607 = vsel %vm1571, %v1544, %v1546
      %v1608 = vsel %vm1571, %v1546, %v1548
      %v1609 = vsel %vm1571, %v1548, %v1550
      %v1610 = vsel %vm1571, %v1550, %v1552
      %v1611 = vsel %vm1571, %v1552, %v1554
      %v1612 = vsel %vm1571, %v1554, %v1556
      %v1613 = vsel %vm1571, %v1556, %v1558
      %v1614 = vsel %vm1571, %v1558, %v1560
      %v1615 = vsel %vm1571, %v1560, %v1562
      %v1616 = vsel %vm1571, %v1562, %v1564
      %v1617 = vsel %vm1571, %v1564, %v1566
      %v1618 = vsel %vm1571, %v1566, %v1568
      %v1619 = vsel %vm1571, %v1568, %v1570
      %1668 = vst [vmem:[#allocation3 + $0x600] sm:$0xff] %v1572
      %1669 = vst [vmem:[#allocation3 + $0x608] sm:$0xff] %v1573
      %1670 = vst [vmem:[#allocation3 + $0x610] sm:$0xff] %v1574
      %1671 = vst [vmem:[#allocation3 + $0x618] sm:$0xff] %v1575
      %1672 = vst [vmem:[#allocation3 + $0x620] sm:$0xff] %v1576
      %1673 = vst [vmem:[#allocation3 + $0x628] sm:$0xff] %v1577
      %1674 = vst [vmem:[#allocation3 + $0x630] sm:$0xff] %v1578
      %1675 = vst [vmem:[#allocation3 + $0x638] sm:$0xff] %v1579
      %1676 = vst [vmem:[#allocation3 + $0x640] sm:$0xff] %v1580
      %1677 = vst [vmem:[#allocation3 + $0x648] sm:$0xff] %v1581
      %1678 = vst [vmem:[#allocation3 + $0x650] sm:$0xff] %v1582
      %1679 = vst [vmem:[#allocation3 + $0x658] sm:$0xff] %v1583
      %1680 = vst [vmem:[#allocation3 + $0x660] sm:$0xff] %v1584
      %1681 = vst [vmem:[#allocation3 + $0x668] sm:$0xff] %v1585
      %1682 = vst [vmem:[#allocation3 + $0x670] sm:$0xff] %v1586
      %1683 = vst [vmem:[#allocation3 + $0x678] sm:$0xff] %v1587
      %1684 = vst [vmem:[#allocation3 + $0x680] sm:$0xff] %v1588
      %1685 = vst [vmem:[#allocation3 + $0x688] sm:$0xff] %v1589
      %1686 = vst [vmem:[#allocation3 + $0x690] sm:$0xff] %v1590
      %1687 = vst [vmem:[#allocation3 + $0x698] sm:$0xff] %v1591
      %1688 = vst [vmem:[#allocation3 + $0x6a0] sm:$0xff] %v1592
      %1689 = vst [vmem:[#allocation3 + $0x6a8] sm:$0xff] %v1593
      %1690 = vst [vmem:[#allocation3 + $0x6b0] sm:$0xff] %v1594
      %1691 = vst [vmem:[#allocation3 + $0x6b8] sm:$0xff] %v1595
      %1692 = vst [vmem:[#allocation3 + $0x6c0] sm:$0xff] %v1596
      %1693 = vst [vmem:[#allocation3 + $0x6c8] sm:$0xff] %v1597
      %1694 = vst [vmem:[#allocation3 + $0x6d0] sm:$0xff] %v1598
      %1695 = vst [vmem:[#allocation3 + $0x6d8] sm:$0xff] %v1599
      %1696 = vst [vmem:[#allocation3 + $0x6e0] sm:$0xff] %v1600
      %1697 = vst [vmem:[#allocation3 + $0x6e8] sm:$0xff] %v1601
      %1698 = vst [vmem:[#allocation3 + $0x6f0] sm:$0xff] %v1602
      %1699 = vst [vmem:[#allocation3 + $0x6f8] sm:$0xff] %v1603
      %1700 = vst [vmem:[#allocation3 + $0x700] sm:$0xff] %v1604
      %1701 = vst [vmem:[#allocation3 + $0x708] sm:$0xff] %v1605
      %1702 = vst [vmem:[#allocation3 + $0x710] sm:$0xff] %v1606
      %1703 = vst [vmem:[#allocation3 + $0x718] sm:$0xff] %v1607
      %1704 = vst [vmem:[#allocation3 + $0x720] sm:$0xff] %v1608
      %1705 = vst [vmem:[#allocation3 + $0x728] sm:$0xff] %v1609
      %1706 = vst [vmem:[#allocation3 + $0x730] sm:$0xff] %v1610
      %1707 = vst [vmem:[#allocation3 + $0x738] sm:$0xff] %v1611
      %1708 = vst [vmem:[#allocation3 + $0x740] sm:$0xff] %v1612
      %1709 = vst [vmem:[#allocation3 + $0x748] sm:$0xff] %v1613
      %1710 = vst [vmem:[#allocation3 + $0x750] sm:$0xff] %v1614
      %1711 = vst [vmem:[#allocation3 + $0x758] sm:$0xff] %v1615
      %1712 = vst [vmem:[#allocation3 + $0x760] sm:$0xff] %v1616
      %1713 = vst [vmem:[#allocation3 + $0x768] sm:$0xff] %v1617
      %1714 = vst [vmem:[#allocation3 + $0x770] sm:$0xff] %v1618
      %1715 = vst.msk [vmem:[#allocation3 + $0x778] sm:$0xff] %vm355, %v1619
      %v1716 = vld [vmem:[%s247 + $0x8] sm:$0xff]
      %v1717 = vld [vmem:[%s247 + $0x10] sm:$0xff]
      %v1718 = vld [vmem:[%s247 + $0x18] sm:$0xff]
      %v1719 = vld [vmem:[%s247 + $0x20] sm:$0xff]
      %v1720 = vld [vmem:[%s247 + $0x28] sm:$0xff]
      %v1721 = vld [vmem:[%s247 + $0x30] sm:$0xff]
      %v1722 = vld [vmem:[%s247 + $0x38] sm:$0xff]
      %v1723 = vld [vmem:[%s247 + $0x40] sm:$0xff]
      %v1724 = vld [vmem:[%s247 + $0x48] sm:$0xff]
      %v1725 = vld [vmem:[%s247 + $0x50] sm:$0xff]
      %v1726 = vld [vmem:[%s247 + $0x58] sm:$0xff]
      %v1727 = vld [vmem:[%s247 + $0x60] sm:$0xff]
      %v1728 = vld [vmem:[%s247 + $0x68] sm:$0xff]
      %v1729 = vld [vmem:[%s247 + $0x70] sm:$0xff]
      %v1730 = vld [vmem:[%s247 + $0x78] sm:$0xff]
      %v1731 = vld [vmem:[%s247 + $0x80] sm:$0xff]
      %v1732 = vld [vmem:[%s247 + $0x88] sm:$0xff]
      %v1733 = vld [vmem:[%s247 + $0x90] sm:$0xff]
      %v1734 = vld [vmem:[%s247 + $0x98] sm:$0xff]
      %v1735 = vld [vmem:[%s247 + $0xa0] sm:$0xff]
      %v1736 = vld [vmem:[%s247 + $0xa8] sm:$0xff]
      %v1737 = vld [vmem:[%s247 + $0xb0] sm:$0xff]
      %v1738 = vld [vmem:[%s247 + $0xb8] sm:$0xff]
      %v1739 = vld [vmem:[%s247 + $0xc0] sm:$0xff]
      %v1740 = vld [vmem:[%s247 + $0xc8] sm:$0xff]
      %v1741 = vld [vmem:[%s247 + $0xd0] sm:$0xff]
      %v1742 = vld [vmem:[%s247 + $0xd8] sm:$0xff]
      %v1743 = vld [vmem:[%s247 + $0xe0] sm:$0xff]
      %v1744 = vld [vmem:[%s247 + $0xe8] sm:$0xff]
      %v1745 = vld [vmem:[%s247 + $0xf0] sm:$0xff]
      %v1746 = vld [vmem:[%s247 + $0xf8] sm:$0xff]
      %v1747 = vld [vmem:[%s247 + $0x100] sm:$0xff]
      %v1748 = vld [vmem:[%s247 + $0x108] sm:$0xff]
      %v1749 = vld [vmem:[%s247 + $0x110] sm:$0xff]
      %v1750 = vld [vmem:[%s247 + $0x118] sm:$0xff]
      %v1751 = vld [vmem:[%s247 + $0x120] sm:$0xff]
      %v1752 = vld [vmem:[%s247 + $0x128] sm:$0xff]
      %v1753 = vld [vmem:[%s247 + $0x130] sm:$0xff]
      %v1754 = vld [vmem:[%s247 + $0x138] sm:$0xff]
      %v1755 = vld [vmem:[%s247 + $0x140] sm:$0xff]
      %v1756 = vld [vmem:[%s247 + $0x148] sm:$0xff]
      %v1757 = vld [vmem:[%s247 + $0x150] sm:$0xff]
      %v1758 = vld [vmem:[%s247 + $0x158] sm:$0xff]
      %v1759 = vld [vmem:[%s247 + $0x160] sm:$0xff]
      %v1760 = vld [vmem:[%s247 + $0x168] sm:$0xff]
      %v1761 = vld [vmem:[%s247 + $0x170] sm:$0xff]
      %v1762 = vld [vmem:[%s247 + $0x178] sm:$0xff]
      %v1763 = vld [vmem:[%s247 + $0x180] sm:$0xff]
      %1812 = vrot.lane.b32.xlu0 %v1716, 116
      %v1813 = vpop.permute.xlu0 %1812
      %1814 = vrot.lane.b32.xlu0 %v1717, 116
      %v1815 = vpop.permute.xlu0 %1814
      %1816 = vrot.lane.b32.xlu0 %v1718, 116
      %v1817 = vpop.permute.xlu0 %1816
      %1818 = vrot.lane.b32.xlu0 %v1719, 116
      %v1819 = vpop.permute.xlu0 %1818
      %1820 = vrot.lane.b32.xlu0 %v1720, 116
      %v1821 = vpop.permute.xlu0 %1820
      %1822 = vrot.lane.b32.xlu0 %v1721, 116
      %v1823 = vpop.permute.xlu0 %1822
      %1824 = vrot.lane.b32.xlu0 %v1722, 116
      %v1825 = vpop.permute.xlu0 %1824
      %1826 = vrot.lane.b32.xlu0 %v1723, 116
      %v1827 = vpop.permute.xlu0 %1826
      %1828 = vrot.lane.b32.xlu0 %v1724, 116
      %v1829 = vpop.permute.xlu0 %1828
      %1830 = vrot.lane.b32.xlu0 %v1725, 116
      %v1831 = vpop.permute.xlu0 %1830
      %1832 = vrot.lane.b32.xlu0 %v1726, 116
      %v1833 = vpop.permute.xlu0 %1832
      %1834 = vrot.lane.b32.xlu0 %v1727, 116
      %v1835 = vpop.permute.xlu0 %1834
      %1836 = vrot.lane.b32.xlu0 %v1728, 116
      %v1837 = vpop.permute.xlu0 %1836
      %1838 = vrot.lane.b32.xlu0 %v1729, 116
      %v1839 = vpop.permute.xlu0 %1838
      %1840 = vrot.lane.b32.xlu0 %v1730, 116
      %v1841 = vpop.permute.xlu0 %1840
      %1842 = vrot.lane.b32.xlu0 %v1731, 116
      %v1843 = vpop.permute.xlu0 %1842
      %1844 = vrot.lane.b32.xlu0 %v1732, 116
      %v1845 = vpop.permute.xlu0 %1844
      %1846 = vrot.lane.b32.xlu0 %v1733, 116
      %v1847 = vpop.permute.xlu0 %1846
      %1848 = vrot.lane.b32.xlu0 %v1734, 116
      %v1849 = vpop.permute.xlu0 %1848
      %1850 = vrot.lane.b32.xlu0 %v1735, 116
      %v1851 = vpop.permute.xlu0 %1850
      %1852 = vrot.lane.b32.xlu0 %v1736, 116
      %v1853 = vpop.permute.xlu0 %1852
      %1854 = vrot.lane.b32.xlu0 %v1737, 116
      %v1855 = vpop.permute.xlu0 %1854
      %1856 = vrot.lane.b32.xlu0 %v1738, 116
      %v1857 = vpop.permute.xlu0 %1856
      %1858 = vrot.lane.b32.xlu0 %v1739, 116
      %v1859 = vpop.permute.xlu0 %1858
      %1860 = vrot.lane.b32.xlu0 %v1740, 116
      %v1861 = vpop.permute.xlu0 %1860
      %1862 = vrot.lane.b32.xlu0 %v1741, 116
      %v1863 = vpop.permute.xlu0 %1862
      %1864 = vrot.lane.b32.xlu0 %v1742, 116
      %v1865 = vpop.permute.xlu0 %1864
      %1866 = vrot.lane.b32.xlu0 %v1743, 116
      %v1867 = vpop.permute.xlu0 %1866
      %1868 = vrot.lane.b32.xlu0 %v1744, 116
      %v1869 = vpop.permute.xlu0 %1868
      %1870 = vrot.lane.b32.xlu0 %v1745, 116
      %v1871 = vpop.permute.xlu0 %1870
      %1872 = vrot.lane.b32.xlu0 %v1746, 116
      %v1873 = vpop.permute.xlu0 %1872
      %1874 = vrot.lane.b32.xlu0 %v1747, 116
      %v1875 = vpop.permute.xlu0 %1874
      %1876 = vrot.lane.b32.xlu0 %v1748, 116
      %v1877 = vpop.permute.xlu0 %1876
      %1878 = vrot.lane.b32.xlu0 %v1749, 116
      %v1879 = vpop.permute.xlu0 %1878
      %1880 = vrot.lane.b32.xlu0 %v1750, 116
      %v1881 = vpop.permute.xlu0 %1880
      %1882 = vrot.lane.b32.xlu0 %v1751, 116
      %v1883 = vpop.permute.xlu0 %1882
      %1884 = vrot.lane.b32.xlu0 %v1752, 116
      %v1885 = vpop.permute.xlu0 %1884
      %1886 = vrot.lane.b32.xlu0 %v1753, 116
      %v1887 = vpop.permute.xlu0 %1886
      %1888 = vrot.lane.b32.xlu0 %v1754, 116
      %v1889 = vpop.permute.xlu0 %1888
      %1890 = vrot.lane.b32.xlu0 %v1755, 116
      %v1891 = vpop.permute.xlu0 %1890
      %1892 = vrot.lane.b32.xlu0 %v1756, 116
      %v1893 = vpop.permute.xlu0 %1892
      %1894 = vrot.lane.b32.xlu0 %v1757, 116
      %v1895 = vpop.permute.xlu0 %1894
      %1896 = vrot.lane.b32.xlu0 %v1758, 116
      %v1897 = vpop.permute.xlu0 %1896
      %1898 = vrot.lane.b32.xlu0 %v1759, 116
      %v1899 = vpop.permute.xlu0 %1898
      %1900 = vrot.lane.b32.xlu0 %v1760, 116
      %v1901 = vpop.permute.xlu0 %1900
      %1902 = vrot.lane.b32.xlu0 %v1761, 116
      %v1903 = vpop.permute.xlu0 %1902
      %1904 = vrot.lane.b32.xlu0 %v1762, 116
      %v1905 = vpop.permute.xlu0 %1904
      %1906 = vrot.lane.b32.xlu0 %v1763, 116
      %v1907 = vpop.permute.xlu0 %1906
      %vm1908 = vcmask 949248
      %v1909 = vsel %vm1908, %v1813, %v1815
      %v1910 = vsel %vm1908, %v1815, %v1817
      %v1911 = vsel %vm1908, %v1817, %v1819
      %v1912 = vsel %vm1908, %v1819, %v1821
      %v1913 = vsel %vm1908, %v1821, %v1823
      %v1914 = vsel %vm1908, %v1823, %v1825
      %v1915 = vsel %vm1908, %v1825, %v1827
      %v1916 = vsel %vm1908, %v1827, %v1829
      %v1917 = vsel %vm1908, %v1829, %v1831
      %v1918 = vsel %vm1908, %v1831, %v1833
      %v1919 = vsel %vm1908, %v1833, %v1835
      %v1920 = vsel %vm1908, %v1835, %v1837
      %v1921 = vsel %vm1908, %v1837, %v1839
      %v1922 = vsel %vm1908, %v1839, %v1841
      %v1923 = vsel %vm1908, %v1841, %v1843
      %v1924 = vsel %vm1908, %v1843, %v1845
      %v1925 = vsel %vm1908, %v1845, %v1847
      %v1926 = vsel %vm1908, %v1847, %v1849
      %v1927 = vsel %vm1908, %v1849, %v1851
      %v1928 = vsel %vm1908, %v1851, %v1853
      %v1929 = vsel %vm1908, %v1853, %v1855
      %v1930 = vsel %vm1908, %v1855, %v1857
      %v1931 = vsel %vm1908, %v1857, %v1859
      %v1932 = vsel %vm1908, %v1859, %v1861
      %v1933 = vsel %vm1908, %v1861, %v1863
      %v1934 = vsel %vm1908, %v1863, %v1865
      %v1935 = vsel %vm1908, %v1865, %v1867
      %v1936 = vsel %vm1908, %v1867, %v1869
      %v1937 = vsel %vm1908, %v1869, %v1871
      %v1938 = vsel %vm1908, %v1871, %v1873
      %v1939 = vsel %vm1908, %v1873, %v1875
      %v1940 = vsel %vm1908, %v1875, %v1877
      %v1941 = vsel %vm1908, %v1877, %v1879
      %v1942 = vsel %vm1908, %v1879, %v1881
      %v1943 = vsel %vm1908, %v1881, %v1883
      %v1944 = vsel %vm1908, %v1883, %v1885
      %v1945 = vsel %vm1908, %v1885, %v1887
      %v1946 = vsel %vm1908, %v1887, %v1889
      %v1947 = vsel %vm1908, %v1889, %v1891
      %v1948 = vsel %vm1908, %v1891, %v1893
      %v1949 = vsel %vm1908, %v1893, %v1895
      %v1950 = vsel %vm1908, %v1895, %v1897
      %v1951 = vsel %vm1908, %v1897, %v1899
      %v1952 = vsel %vm1908, %v1899, %v1901
      %v1953 = vsel %vm1908, %v1901, %v1903
      %v1954 = vsel %vm1908, %v1903, %v1905
      %v1955 = vsel %vm1908, %v1905, %v1907
      %2004 = vst [vmem:[#allocation3 + $0x780] sm:$0xff] %v1909
      %2005 = vst [vmem:[#allocation3 + $0x788] sm:$0xff] %v1910
      %2006 = vst [vmem:[#allocation3 + $0x790] sm:$0xff] %v1911
      %2007 = vst [vmem:[#allocation3 + $0x798] sm:$0xff] %v1912
      %2008 = vst [vmem:[#allocation3 + $0x7a0] sm:$0xff] %v1913
      %2009 = vst [vmem:[#allocation3 + $0x7a8] sm:$0xff] %v1914
      %2010 = vst [vmem:[#allocation3 + $0x7b0] sm:$0xff] %v1915
      %2011 = vst [vmem:[#allocation3 + $0x7b8] sm:$0xff] %v1916
      %2012 = vst [vmem:[#allocation3 + $0x7c0] sm:$0xff] %v1917
      %2013 = vst [vmem:[#allocation3 + $0x7c8] sm:$0xff] %v1918
      %2014 = vst [vmem:[#allocation3 + $0x7d0] sm:$0xff] %v1919
      %2015 = vst [vmem:[#allocation3 + $0x7d8] sm:$0xff] %v1920
      %2016 = vst [vmem:[#allocation3 + $0x7e0] sm:$0xff] %v1921
      %2017 = vst [vmem:[#allocation3 + $0x7e8] sm:$0xff] %v1922
      %2018 = vst [vmem:[#allocation3 + $0x7f0] sm:$0xff] %v1923
      %2019 = vst [vmem:[#allocation3 + $0x7f8] sm:$0xff] %v1924
      %2020 = vst [vmem:[#allocation3 + $0x800] sm:$0xff] %v1925
      %2021 = vst [vmem:[#allocation3 + $0x808] sm:$0xff] %v1926
      %2022 = vst [vmem:[#allocation3 + $0x810] sm:$0xff] %v1927
      %2023 = vst [vmem:[#allocation3 + $0x818] sm:$0xff] %v1928
      %2024 = vst [vmem:[#allocation3 + $0x820] sm:$0xff] %v1929
      %2025 = vst [vmem:[#allocation3 + $0x828] sm:$0xff] %v1930
      %2026 = vst [vmem:[#allocation3 + $0x830] sm:$0xff] %v1931
      %2027 = vst [vmem:[#allocation3 + $0x838] sm:$0xff] %v1932
      %2028 = vst [vmem:[#allocation3 + $0x840] sm:$0xff] %v1933
      %2029 = vst [vmem:[#allocation3 + $0x848] sm:$0xff] %v1934
      %2030 = vst [vmem:[#allocation3 + $0x850] sm:$0xff] %v1935
      %2031 = vst [vmem:[#allocation3 + $0x858] sm:$0xff] %v1936
      %2032 = vst [vmem:[#allocation3 + $0x860] sm:$0xff] %v1937
      %2033 = vst [vmem:[#allocation3 + $0x868] sm:$0xff] %v1938
      %2034 = vst [vmem:[#allocation3 + $0x870] sm:$0xff] %v1939
      %2035 = vst [vmem:[#allocation3 + $0x878] sm:$0xff] %v1940
      %2036 = vst [vmem:[#allocation3 + $0x880] sm:$0xff] %v1941
      %2037 = vst [vmem:[#allocation3 + $0x888] sm:$0xff] %v1942
      %2038 = vst [vmem:[#allocation3 + $0x890] sm:$0xff] %v1943
      %2039 = vst [vmem:[#allocation3 + $0x898] sm:$0xff] %v1944
      %2040 = vst [vmem:[#allocation3 + $0x8a0] sm:$0xff] %v1945
      %2041 = vst [vmem:[#allocation3 + $0x8a8] sm:$0xff] %v1946
      %2042 = vst [vmem:[#allocation3 + $0x8b0] sm:$0xff] %v1947
      %2043 = vst [vmem:[#allocation3 + $0x8b8] sm:$0xff] %v1948
      %2044 = vst [vmem:[#allocation3 + $0x8c0] sm:$0xff] %v1949
      %2045 = vst [vmem:[#allocation3 + $0x8c8] sm:$0xff] %v1950
      %2046 = vst [vmem:[#allocation3 + $0x8d0] sm:$0xff] %v1951
      %2047 = vst [vmem:[#allocation3 + $0x8d8] sm:$0xff] %v1952
      %2048 = vst [vmem:[#allocation3 + $0x8e0] sm:$0xff] %v1953
      %2049 = vst [vmem:[#allocation3 + $0x8e8] sm:$0xff] %v1954
      %2050 = vst [vmem:[#allocation3 + $0x8f0] sm:$0xff] %v1955
      %2051 = vst.msk [vmem:[#allocation3 + $0x8f8] sm:$0xff] %vm355, %v1907
      %v2052 = vld [vmem:[%s247 + $0x8] sm:$0xff]
      %v2053 = vld [vmem:[%s247 + $0x10] sm:$0xff]
      %v2054 = vld [vmem:[%s247 + $0x18] sm:$0xff]
      %v2055 = vld [vmem:[%s247 + $0x20] sm:$0xff]
      %v2056 = vld [vmem:[%s247 + $0x28] sm:$0xff]
      %v2057 = vld [vmem:[%s247 + $0x30] sm:$0xff]
      %v2058 = vld [vmem:[%s247 + $0x38] sm:$0xff]
      %v2059 = vld [vmem:[%s247 + $0x40] sm:$0xff]
      %v2060 = vld [vmem:[%s247 + $0x48] sm:$0xff]
      %v2061 = vld [vmem:[%s247 + $0x50] sm:$0xff]
      %v2062 = vld [vmem:[%s247 + $0x58] sm:$0xff]
      %v2063 = vld [vmem:[%s247 + $0x60] sm:$0xff]
      %v2064 = vld [vmem:[%s247 + $0x68] sm:$0xff]
      %v2065 = vld [vmem:[%s247 + $0x70] sm:$0xff]
      %v2066 = vld [vmem:[%s247 + $0x78] sm:$0xff]
      %v2067 = vld [vmem:[%s247 + $0x80] sm:$0xff]
      %v2068 = vld [vmem:[%s247 + $0x88] sm:$0xff]
      %v2069 = vld [vmem:[%s247 + $0x90] sm:$0xff]
      %v2070 = vld [vmem:[%s247 + $0x98] sm:$0xff]
      %v2071 = vld [vmem:[%s247 + $0xa0] sm:$0xff]
      %v2072 = vld [vmem:[%s247 + $0xa8] sm:$0xff]
      %v2073 = vld [vmem:[%s247 + $0xb0] sm:$0xff]
      %v2074 = vld [vmem:[%s247 + $0xb8] sm:$0xff]
      %v2075 = vld [vmem:[%s247 + $0xc0] sm:$0xff]
      %v2076 = vld [vmem:[%s247 + $0xc8] sm:$0xff]
      %v2077 = vld [vmem:[%s247 + $0xd0] sm:$0xff]
      %v2078 = vld [vmem:[%s247 + $0xd8] sm:$0xff]
      %v2079 = vld [vmem:[%s247 + $0xe0] sm:$0xff]
      %v2080 = vld [vmem:[%s247 + $0xe8] sm:$0xff]
      %v2081 = vld [vmem:[%s247 + $0xf0] sm:$0xff]
      %v2082 = vld [vmem:[%s247 + $0xf8] sm:$0xff]
      %v2083 = vld [vmem:[%s247 + $0x100] sm:$0xff]
      %v2084 = vld [vmem:[%s247 + $0x108] sm:$0xff]
      %v2085 = vld [vmem:[%s247 + $0x110] sm:$0xff]
      %v2086 = vld [vmem:[%s247 + $0x118] sm:$0xff]
      %v2087 = vld [vmem:[%s247 + $0x120] sm:$0xff]
      %v2088 = vld [vmem:[%s247 + $0x128] sm:$0xff]
      %v2089 = vld [vmem:[%s247 + $0x130] sm:$0xff]
      %v2090 = vld [vmem:[%s247 + $0x138] sm:$0xff]
      %v2091 = vld [vmem:[%s247 + $0x140] sm:$0xff]
      %v2092 = vld [vmem:[%s247 + $0x148] sm:$0xff]
      %v2093 = vld [vmem:[%s247 + $0x150] sm:$0xff]
      %v2094 = vld [vmem:[%s247 + $0x158] sm:$0xff]
      %v2095 = vld [vmem:[%s247 + $0x160] sm:$0xff]
      %v2096 = vld [vmem:[%s247 + $0x168] sm:$0xff]
      %v2097 = vld [vmem:[%s247 + $0x170] sm:$0xff]
      %v2098 = vld [vmem:[%s247 + $0x178] sm:$0xff]
      %v2099 = vld [vmem:[%s247 + $0x180] sm:$0xff]
      %2148 = vrot.lane.b32.xlu0 %v2052, 88
      %v2149 = vpop.permute.xlu0 %2148
      %2150 = vrot.lane.b32.xlu0 %v2053, 88
      %v2151 = vpop.permute.xlu0 %2150
      %2152 = vrot.lane.b32.xlu0 %v2054, 88
      %v2153 = vpop.permute.xlu0 %2152
      %2154 = vrot.lane.b32.xlu0 %v2055, 88
      %v2155 = vpop.permute.xlu0 %2154
      %2156 = vrot.lane.b32.xlu0 %v2056, 88
      %v2157 = vpop.permute.xlu0 %2156
      %2158 = vrot.lane.b32.xlu0 %v2057, 88
      %v2159 = vpop.permute.xlu0 %2158
      %2160 = vrot.lane.b32.xlu0 %v2058, 88
      %v2161 = vpop.permute.xlu0 %2160
      %2162 = vrot.lane.b32.xlu0 %v2059, 88
      %v2163 = vpop.permute.xlu0 %2162
      %2164 = vrot.lane.b32.xlu0 %v2060, 88
      %v2165 = vpop.permute.xlu0 %2164
      %2166 = vrot.lane.b32.xlu0 %v2061, 88
      %v2167 = vpop.permute.xlu0 %2166
      %2168 = vrot.lane.b32.xlu0 %v2062, 88
      %v2169 = vpop.permute.xlu0 %2168
      %2170 = vrot.lane.b32.xlu0 %v2063, 88
      %v2171 = vpop.permute.xlu0 %2170
      %2172 = vrot.lane.b32.xlu0 %v2064, 88
      %v2173 = vpop.permute.xlu0 %2172
      %2174 = vrot.lane.b32.xlu0 %v2065, 88
      %v2175 = vpop.permute.xlu0 %2174
      %2176 = vrot.lane.b32.xlu0 %v2066, 88
      %v2177 = vpop.permute.xlu0 %2176
      %2178 = vrot.lane.b32.xlu0 %v2067, 88
      %v2179 = vpop.permute.xlu0 %2178
      %2180 = vrot.lane.b32.xlu0 %v2068, 88
      %v2181 = vpop.permute.xlu0 %2180
      %2182 = vrot.lane.b32.xlu0 %v2069, 88
      %v2183 = vpop.permute.xlu0 %2182
      %2184 = vrot.lane.b32.xlu0 %v2070, 88
      %v2185 = vpop.permute.xlu0 %2184
      %2186 = vrot.lane.b32.xlu0 %v2071, 88
      %v2187 = vpop.permute.xlu0 %2186
      %2188 = vrot.lane.b32.xlu0 %v2072, 88
      %v2189 = vpop.permute.xlu0 %2188
      %2190 = vrot.lane.b32.xlu0 %v2073, 88
      %v2191 = vpop.permute.xlu0 %2190
      %2192 = vrot.lane.b32.xlu0 %v2074, 88
      %v2193 = vpop.permute.xlu0 %2192
      %2194 = vrot.lane.b32.xlu0 %v2075, 88
      %v2195 = vpop.permute.xlu0 %2194
      %2196 = vrot.lane.b32.xlu0 %v2076, 88
      %v2197 = vpop.permute.xlu0 %2196
      %2198 = vrot.lane.b32.xlu0 %v2077, 88
      %v2199 = vpop.permute.xlu0 %2198
      %2200 = vrot.lane.b32.xlu0 %v2078, 88
      %v2201 = vpop.permute.xlu0 %2200
      %2202 = vrot.lane.b32.xlu0 %v2079, 88
      %v2203 = vpop.permute.xlu0 %2202
      %2204 = vrot.lane.b32.xlu0 %v2080, 88
      %v2205 = vpop.permute.xlu0 %2204
      %2206 = vrot.lane.b32.xlu0 %v2081, 88
      %v2207 = vpop.permute.xlu0 %2206
      %2208 = vrot.lane.b32.xlu0 %v2082, 88
      %v2209 = vpop.permute.xlu0 %2208
      %2210 = vrot.lane.b32.xlu0 %v2083, 88
      %v2211 = vpop.permute.xlu0 %2210
      %2212 = vrot.lane.b32.xlu0 %v2084, 88
      %v2213 = vpop.permute.xlu0 %2212
      %2214 = vrot.lane.b32.xlu0 %v2085, 88
      %v2215 = vpop.permute.xlu0 %2214
      %2216 = vrot.lane.b32.xlu0 %v2086, 88
      %v2217 = vpop.permute.xlu0 %2216
      %2218 = vrot.lane.b32.xlu0 %v2087, 88
      %v2219 = vpop.permute.xlu0 %2218
      %2220 = vrot.lane.b32.xlu0 %v2088, 88
      %v2221 = vpop.permute.xlu0 %2220
      %2222 = vrot.lane.b32.xlu0 %v2089, 88
      %v2223 = vpop.permute.xlu0 %2222
      %2224 = vrot.lane.b32.xlu0 %v2090, 88
      %v2225 = vpop.permute.xlu0 %2224
      %2226 = vrot.lane.b32.xlu0 %v2091, 88
      %v2227 = vpop.permute.xlu0 %2226
      %2228 = vrot.lane.b32.xlu0 %v2092, 88
      %v2229 = vpop.permute.xlu0 %2228
      %2230 = vrot.lane.b32.xlu0 %v2093, 88
      %v2231 = vpop.permute.xlu0 %2230
      %2232 = vrot.lane.b32.xlu0 %v2094, 88
      %v2233 = vpop.permute.xlu0 %2232
      %2234 = vrot.lane.b32.xlu0 %v2095, 88
      %v2235 = vpop.permute.xlu0 %2234
      %2236 = vrot.lane.b32.xlu0 %v2096, 88
      %v2237 = vpop.permute.xlu0 %2236
      %2238 = vrot.lane.b32.xlu0 %v2097, 88
      %v2239 = vpop.permute.xlu0 %2238
      %2240 = vrot.lane.b32.xlu0 %v2098, 88
      %v2241 = vpop.permute.xlu0 %2240
      %2242 = vrot.lane.b32.xlu0 %v2099, 88
      %v2243 = vpop.permute.xlu0 %2242
      %v2244 = vsel %vm355, %v2149, %v2151
      %v2245 = vsel %vm355, %v2151, %v2153
      %v2246 = vsel %vm355, %v2153, %v2155
      %v2247 = vsel %vm355, %v2155, %v2157
      %v2248 = vsel %vm355, %v2157, %v2159
      %v2249 = vsel %vm355, %v2159, %v2161
      %v2250 = vsel %vm355, %v2161, %v2163
      %v2251 = vsel %vm355, %v2163, %v2165
      %v2252 = vsel %vm355, %v2165, %v2167
      %v2253 = vsel %vm355, %v2167, %v2169
      %v2254 = vsel %vm355, %v2169, %v2171
      %v2255 = vsel %vm355, %v2171, %v2173
      %v2256 = vsel %vm355, %v2173, %v2175
      %v2257 = vsel %vm355, %v2175, %v2177
      %v2258 = vsel %vm355, %v2177, %v2179
      %v2259 = vsel %vm355, %v2179, %v2181
      %v2260 = vsel %vm355, %v2181, %v2183
      %v2261 = vsel %vm355, %v2183, %v2185
      %v2262 = vsel %vm355, %v2185, %v2187
      %v2263 = vsel %vm355, %v2187, %v2189
      %v2264 = vsel %vm355, %v2189, %v2191
      %v2265 = vsel %vm355, %v2191, %v2193
      %v2266 = vsel %vm355, %v2193, %v2195
      %v2267 = vsel %vm355, %v2195, %v2197
      %v2268 = vsel %vm355, %v2197, %v2199
      %v2269 = vsel %vm355, %v2199, %v2201
      %v2270 = vsel %vm355, %v2201, %v2203
      %v2271 = vsel %vm355, %v2203, %v2205
      %v2272 = vsel %vm355, %v2205, %v2207
      %v2273 = vsel %vm355, %v2207, %v2209
      %v2274 = vsel %vm355, %v2209, %v2211
      %v2275 = vsel %vm355, %v2211, %v2213
      %v2276 = vsel %vm355, %v2213, %v2215
      %v2277 = vsel %vm355, %v2215, %v2217
      %v2278 = vsel %vm355, %v2217, %v2219
      %v2279 = vsel %vm355, %v2219, %v2221
      %v2280 = vsel %vm355, %v2221, %v2223
      %v2281 = vsel %vm355, %v2223, %v2225
      %v2282 = vsel %vm355, %v2225, %v2227
      %v2283 = vsel %vm355, %v2227, %v2229
      %v2284 = vsel %vm355, %v2229, %v2231
      %v2285 = vsel %vm355, %v2231, %v2233
      %v2286 = vsel %vm355, %v2233, %v2235
      %v2287 = vsel %vm355, %v2235, %v2237
      %v2288 = vsel %vm355, %v2237, %v2239
      %v2289 = vsel %vm355, %v2239, %v2241
      %v2290 = vsel %vm355, %v2241, %v2243
      %2339 = vst [vmem:[#allocation3 + $0x900] sm:$0xff] %v2244
      %2340 = vst [vmem:[#allocation3 + $0x908] sm:$0xff] %v2245
      %2341 = vst [vmem:[#allocation3 + $0x910] sm:$0xff] %v2246
      %2342 = vst [vmem:[#allocation3 + $0x918] sm:$0xff] %v2247
      %2343 = vst [vmem:[#allocation3 + $0x920] sm:$0xff] %v2248
      %2344 = vst [vmem:[#allocation3 + $0x928] sm:$0xff] %v2249
      %2345 = vst [vmem:[#allocation3 + $0x930] sm:$0xff] %v2250
      %2346 = vst [vmem:[#allocation3 + $0x938] sm:$0xff] %v2251
      %2347 = vst [vmem:[#allocation3 + $0x940] sm:$0xff] %v2252
      %2348 = vst [vmem:[#allocation3 + $0x948] sm:$0xff] %v2253
      %2349 = vst [vmem:[#allocation3 + $0x950] sm:$0xff] %v2254
      %2350 = vst [vmem:[#allocation3 + $0x958] sm:$0xff] %v2255
      %2351 = vst [vmem:[#allocation3 + $0x960] sm:$0xff] %v2256
      %2352 = vst [vmem:[#allocation3 + $0x968] sm:$0xff] %v2257
      %2353 = vst [vmem:[#allocation3 + $0x970] sm:$0xff] %v2258
      %2354 = vst [vmem:[#allocation3 + $0x978] sm:$0xff] %v2259
      %2355 = vst [vmem:[#allocation3 + $0x980] sm:$0xff] %v2260
      %2356 = vst [vmem:[#allocation3 + $0x988] sm:$0xff] %v2261
      %2357 = vst [vmem:[#allocation3 + $0x990] sm:$0xff] %v2262
      %2358 = vst [vmem:[#allocation3 + $0x998] sm:$0xff] %v2263
      %2359 = vst [vmem:[#allocation3 + $0x9a0] sm:$0xff] %v2264
      %2360 = vst [vmem:[#allocation3 + $0x9a8] sm:$0xff] %v2265
      %2361 = vst [vmem:[#allocation3 + $0x9b0] sm:$0xff] %v2266
      %2362 = vst [vmem:[#allocation3 + $0x9b8] sm:$0xff] %v2267
      %2363 = vst [vmem:[#allocation3 + $0x9c0] sm:$0xff] %v2268
      %2364 = vst [vmem:[#allocation3 + $0x9c8] sm:$0xff] %v2269
      %2365 = vst [vmem:[#allocation3 + $0x9d0] sm:$0xff] %v2270
      %2366 = vst [vmem:[#allocation3 + $0x9d8] sm:$0xff] %v2271
      %2367 = vst [vmem:[#allocation3 + $0x9e0] sm:$0xff] %v2272
      %2368 = vst [vmem:[#allocation3 + $0x9e8] sm:$0xff] %v2273
      %2369 = vst [vmem:[#allocation3 + $0x9f0] sm:$0xff] %v2274
      %2370 = vst [vmem:[#allocation3 + $0x9f8] sm:$0xff] %v2275
      %2371 = vst [vmem:[#allocation3 + $0xa00] sm:$0xff] %v2276
      %2372 = vst [vmem:[#allocation3 + $0xa08] sm:$0xff] %v2277
      %2373 = vst [vmem:[#allocation3 + $0xa10] sm:$0xff] %v2278
      %2374 = vst [vmem:[#allocation3 + $0xa18] sm:$0xff] %v2279
      %2375 = vst [vmem:[#allocation3 + $0xa20] sm:$0xff] %v2280
      %2376 = vst [vmem:[#allocation3 + $0xa28] sm:$0xff] %v2281
      %2377 = vst [vmem:[#allocation3 + $0xa30] sm:$0xff] %v2282
      %2378 = vst [vmem:[#allocation3 + $0xa38] sm:$0xff] %v2283
      %2379 = vst [vmem:[#allocation3 + $0xa40] sm:$0xff] %v2284
      %2380 = vst [vmem:[#allocation3 + $0xa48] sm:$0xff] %v2285
      %2381 = vst [vmem:[#allocation3 + $0xa50] sm:$0xff] %v2286
      %2382 = vst [vmem:[#allocation3 + $0xa58] sm:$0xff] %v2287
      %2383 = vst [vmem:[#allocation3 + $0xa60] sm:$0xff] %v2288
      %2384 = vst [vmem:[#allocation3 + $0xa68] sm:$0xff] %v2289
      %2385 = vst [vmem:[#allocation3 + $0xa70] sm:$0xff] %v2290
      %2386 = vst.msk [vmem:[#allocation3 + $0xa78] sm:$0xff] %vm355, %v2243
      %v2387 = vld [vmem:[%s1] sm:$0xff]
      %v2388 = vld [vmem:[#allocation3] sm:$0xff]
      %v2389 = vld [vmem:[#allocation3 + $0x8] sm:$0xff]
      %v2390 = vld [vmem:[#allocation3 + $0x10] sm:$0xff]
      %v2391 = vld [vmem:[#allocation3 + $0x18] sm:$0xff]
      %v2392 = vld [vmem:[#allocation3 + $0x20] sm:$0xff]
      %v2393 = vld [vmem:[#allocation3 + $0x28] sm:$0xff]
      %v2394 = vld [vmem:[#allocation3 + $0x30] sm:$0xff]
      %v2395 = vld [vmem:[#allocation3 + $0x38] sm:$0xff]
      %v2396 = vld [vmem:[#allocation3 + $0x40] sm:$0xff]
      %v2397 = vld [vmem:[#allocation3 + $0x48] sm:$0xff]
      %v2398 = vld [vmem:[#allocation3 + $0x50] sm:$0xff]
      %v2399 = vld [vmem:[#allocation3 + $0x58] sm:$0xff]
      %v2400 = vld [vmem:[#allocation3 + $0x60] sm:$0xff]
      %v2401 = vld [vmem:[#allocation3 + $0x68] sm:$0xff]
      %v2402 = vld [vmem:[#allocation3 + $0x70] sm:$0xff]
      %v2403 = vld [vmem:[#allocation3 + $0x78] sm:$0xff]
      %v2404 = vld [vmem:[#allocation3 + $0x80] sm:$0xff]
      %v2405 = vld [vmem:[#allocation3 + $0x88] sm:$0xff]
      %v2406 = vld [vmem:[#allocation3 + $0x90] sm:$0xff]
      %v2407 = vld [vmem:[#allocation3 + $0x98] sm:$0xff]
      %v2408 = vld [vmem:[#allocation3 + $0xa0] sm:$0xff]
      %v2409 = vld [vmem:[#allocation3 + $0xa8] sm:$0xff]
      %v2410 = vld [vmem:[#allocation3 + $0xb0] sm:$0xff]
      %v2411 = vld [vmem:[#allocation3 + $0xb8] sm:$0xff]
      %v2412 = vld [vmem:[#allocation3 + $0xc0] sm:$0xff]
      %v2413 = vld [vmem:[#allocation3 + $0xc8] sm:$0xff]
      %v2414 = vld [vmem:[#allocation3 + $0xd0] sm:$0xff]
      %v2415 = vld [vmem:[#allocation3 + $0xd8] sm:$0xff]
      %v2416 = vld [vmem:[#allocation3 + $0xe0] sm:$0xff]
      %v2417 = vld [vmem:[#allocation3 + $0xe8] sm:$0xff]
      %v2418 = vld [vmem:[#allocation3 + $0xf0] sm:$0xff]
      %v2419 = vld [vmem:[#allocation3 + $0xf8] sm:$0xff]
      %v2420 = vld [vmem:[#allocation3 + $0x100] sm:$0xff]
      %v2421 = vld [vmem:[#allocation3 + $0x108] sm:$0xff]
      %v2422 = vld [vmem:[#allocation3 + $0x110] sm:$0xff]
      %v2423 = vld [vmem:[#allocation3 + $0x118] sm:$0xff]
      %v2424 = vld [vmem:[#allocation3 + $0x120] sm:$0xff]
      %v2425 = vld [vmem:[#allocation3 + $0x128] sm:$0xff]
      %v2426 = vld [vmem:[#allocation3 + $0x130] sm:$0xff]
      %v2427 = vld [vmem:[#allocation3 + $0x138] sm:$0xff]
      %v2428 = vld [vmem:[#allocation3 + $0x140] sm:$0xff]
      %v2429 = vld [vmem:[#allocation3 + $0x148] sm:$0xff]
      %v2430 = vld [vmem:[#allocation3 + $0x150] sm:$0xff]
      %v2431 = vld [vmem:[#allocation3 + $0x158] sm:$0xff]
      %v2432 = vld [vmem:[#allocation3 + $0x160] sm:$0xff]
      %v2433 = vld [vmem:[#allocation3 + $0x168] sm:$0xff]
      %v2434 = vld [vmem:[#allocation3 + $0x170] sm:$0xff]
      %v2435 = vld [vmem:[#allocation3 + $0x178] sm:$0xff]
      %v2436 = vld [vmem:[#allocation3 + $0x180] sm:$0xff]
      %v2437 = vld [vmem:[#allocation3 + $0x188] sm:$0xff]
      %v2438 = vld [vmem:[#allocation3 + $0x190] sm:$0xff]
      %v2439 = vld [vmem:[#allocation3 + $0x198] sm:$0xff]
      %v2440 = vld [vmem:[#allocation3 + $0x1a0] sm:$0xff]
      %v2441 = vld [vmem:[#allocation3 + $0x1a8] sm:$0xff]
      %v2442 = vld [vmem:[#allocation3 + $0x1b0] sm:$0xff]
      %v2443 = vld [vmem:[#allocation3 + $0x1b8] sm:$0xff]
      %v2444 = vld [vmem:[#allocation3 + $0x1c0] sm:$0xff]
      %v2445 = vld [vmem:[#allocation3 + $0x1c8] sm:$0xff]
      %v2446 = vld [vmem:[#allocation3 + $0x1d0] sm:$0xff]
      %v2447 = vld [vmem:[#allocation3 + $0x1d8] sm:$0xff]
      %v2448 = vld [vmem:[#allocation3 + $0x1e0] sm:$0xff]
      %v2449 = vld [vmem:[#allocation3 + $0x1e8] sm:$0xff]
      %v2450 = vld [vmem:[#allocation3 + $0x1f0] sm:$0xff]
      %v2451 = vld [vmem:[#allocation3 + $0x1f8] sm:$0xff]
      %v2452 = vld [vmem:[#allocation3 + $0x200] sm:$0xff]
      %v2453 = vld [vmem:[#allocation3 + $0x208] sm:$0xff]
      %v2454 = vld [vmem:[#allocation3 + $0x210] sm:$0xff]
      %v2455 = vld [vmem:[#allocation3 + $0x218] sm:$0xff]
      %v2456 = vld [vmem:[#allocation3 + $0x220] sm:$0xff]
      %v2457 = vld [vmem:[#allocation3 + $0x228] sm:$0xff]
      %v2458 = vld [vmem:[#allocation3 + $0x230] sm:$0xff]
      %v2459 = vld [vmem:[#allocation3 + $0x238] sm:$0xff]
      %v2460 = vld [vmem:[#allocation3 + $0x240] sm:$0xff]
      %v2461 = vld [vmem:[#allocation3 + $0x248] sm:$0xff]
      %v2462 = vld [vmem:[#allocation3 + $0x250] sm:$0xff]
      %v2463 = vld [vmem:[#allocation3 + $0x258] sm:$0xff]
      %v2464 = vld [vmem:[#allocation3 + $0x260] sm:$0xff]
      %v2465 = vld [vmem:[#allocation3 + $0x268] sm:$0xff]
      %v2466 = vld [vmem:[#allocation3 + $0x270] sm:$0xff]
      %v2467 = vld [vmem:[#allocation3 + $0x278] sm:$0xff]
      %v2468 = vld [vmem:[#allocation3 + $0x280] sm:$0xff]
      %v2469 = vld [vmem:[#allocation3 + $0x288] sm:$0xff]
      %v2470 = vld [vmem:[#allocation3 + $0x290] sm:$0xff]
      %v2471 = vld [vmem:[#allocation3 + $0x298] sm:$0xff]
      %v2472 = vld [vmem:[#allocation3 + $0x2a0] sm:$0xff]
      %v2473 = vld [vmem:[#allocation3 + $0x2a8] sm:$0xff]
      %v2474 = vld [vmem:[#allocation3 + $0x2b0] sm:$0xff]
      %v2475 = vld [vmem:[#allocation3 + $0x2b8] sm:$0xff]
      %v2476 = vld [vmem:[#allocation3 + $0x2c0] sm:$0xff]
      %v2477 = vld [vmem:[#allocation3 + $0x2c8] sm:$0xff]
      %v2478 = vld [vmem:[#allocation3 + $0x2d0] sm:$0xff]
      %v2479 = vld [vmem:[#allocation3 + $0x2d8] sm:$0xff]
      %v2480 = vld [vmem:[#allocation3 + $0x2e0] sm:$0xff]
      %v2481 = vld [vmem:[#allocation3 + $0x2e8] sm:$0xff]
      %v2482 = vld [vmem:[#allocation3 + $0x2f0] sm:$0xff]
      %v2483 = vld [vmem:[#allocation3 + $0x2f8] sm:$0xff]
      %v2484 = vld [vmem:[#allocation3 + $0x300] sm:$0xff]
      %v2485 = vld [vmem:[#allocation3 + $0x308] sm:$0xff]
      %v2486 = vld [vmem:[#allocation3 + $0x310] sm:$0xff]
      %v2487 = vld [vmem:[#allocation3 + $0x318] sm:$0xff]
      %v2488 = vld [vmem:[#allocation3 + $0x320] sm:$0xff]
      %v2489 = vld [vmem:[#allocation3 + $0x328] sm:$0xff]
      %v2490 = vld [vmem:[#allocation3 + $0x330] sm:$0xff]
      %v2491 = vld [vmem:[#allocation3 + $0x338] sm:$0xff]
      %v2492 = vld [vmem:[#allocation3 + $0x340] sm:$0xff]
      %v2493 = vld [vmem:[#allocation3 + $0x348] sm:$0xff]
      %v2494 = vld [vmem:[#allocation3 + $0x350] sm:$0xff]
      %v2495 = vld [vmem:[#allocation3 + $0x358] sm:$0xff]
      %v2496 = vld [vmem:[#allocation3 + $0x360] sm:$0xff]
      %v2497 = vld [vmem:[#allocation3 + $0x368] sm:$0xff]
      %v2498 = vld [vmem:[#allocation3 + $0x370] sm:$0xff]
      %v2499 = vld [vmem:[#allocation3 + $0x378] sm:$0xff]
      %v2500 = vld [vmem:[#allocation3 + $0x380] sm:$0xff]
      %v2501 = vld [vmem:[#allocation3 + $0x388] sm:$0xff]
      %v2502 = vld [vmem:[#allocation3 + $0x390] sm:$0xff]
      %v2503 = vld [vmem:[#allocation3 + $0x398] sm:$0xff]
      %v2504 = vld [vmem:[#allocation3 + $0x3a0] sm:$0xff]
      %v2505 = vld [vmem:[#allocation3 + $0x3a8] sm:$0xff]
      %v2506 = vld [vmem:[#allocation3 + $0x3b0] sm:$0xff]
      %v2507 = vld [vmem:[#allocation3 + $0x3b8] sm:$0xff]
      %v2508 = vld [vmem:[#allocation3 + $0x3c0] sm:$0xff]
      %v2509 = vld [vmem:[#allocation3 + $0x3c8] sm:$0xff]
      %v2510 = vld [vmem:[#allocation3 + $0x3d0] sm:$0xff]
      %v2511 = vld [vmem:[#allocation3 + $0x3d8] sm:$0xff]
      %v2512 = vld [vmem:[#allocation3 + $0x3e0] sm:$0xff]
      %v2513 = vld [vmem:[#allocation3 + $0x3e8] sm:$0xff]
      %v2514 = vld [vmem:[#allocation3 + $0x3f0] sm:$0xff]
      %v2515 = vld [vmem:[#allocation3 + $0x3f8] sm:$0xff]
      %v2516 = vld [vmem:[#allocation3 + $0x400] sm:$0xff]
      %v2517 = vld [vmem:[#allocation3 + $0x408] sm:$0xff]
      %v2518 = vld [vmem:[#allocation3 + $0x410] sm:$0xff]
      %v2519 = vld [vmem:[#allocation3 + $0x418] sm:$0xff]
      %v2520 = vld [vmem:[#allocation3 + $0x420] sm:$0xff]
      %v2521 = vld [vmem:[#allocation3 + $0x428] sm:$0xff]
      %v2522 = vld [vmem:[#allocation3 + $0x430] sm:$0xff]
      %v2523 = vld [vmem:[#allocation3 + $0x438] sm:$0xff]
      %v2524 = vld [vmem:[#allocation3 + $0x440] sm:$0xff]
      %v2525 = vld [vmem:[#allocation3 + $0x448] sm:$0xff]
      %v2526 = vld [vmem:[#allocation3 + $0x450] sm:$0xff]
      %v2527 = vld [vmem:[#allocation3 + $0x458] sm:$0xff]
      %v2528 = vld [vmem:[#allocation3 + $0x460] sm:$0xff]
      %v2529 = vld [vmem:[#allocation3 + $0x468] sm:$0xff]
      %v2530 = vld [vmem:[#allocation3 + $0x470] sm:$0xff]
      %v2531 = vld [vmem:[#allocation3 + $0x478] sm:$0xff]
      %v2532 = vld [vmem:[#allocation3 + $0x480] sm:$0xff]
      %v2533 = vld [vmem:[#allocation3 + $0x488] sm:$0xff]
      %v2534 = vld [vmem:[#allocation3 + $0x490] sm:$0xff]
      %v2535 = vld [vmem:[#allocation3 + $0x498] sm:$0xff]
      %v2536 = vld [vmem:[#allocation3 + $0x4a0] sm:$0xff]
      %v2537 = vld [vmem:[#allocation3 + $0x4a8] sm:$0xff]
      %v2538 = vld [vmem:[#allocation3 + $0x4b0] sm:$0xff]
      %v2539 = vld [vmem:[#allocation3 + $0x4b8] sm:$0xff]
      %v2540 = vld [vmem:[#allocation3 + $0x4c0] sm:$0xff]
      %v2541 = vld [vmem:[#allocation3 + $0x4c8] sm:$0xff]
      %v2542 = vld [vmem:[#allocation3 + $0x4d0] sm:$0xff]
      %v2543 = vld [vmem:[#allocation3 + $0x4d8] sm:$0xff]
      %v2544 = vld [vmem:[#allocation3 + $0x4e0] sm:$0xff]
      %v2545 = vld [vmem:[#allocation3 + $0x4e8] sm:$0xff]
      %v2546 = vld [vmem:[#allocation3 + $0x4f0] sm:$0xff]
      %v2547 = vld [vmem:[#allocation3 + $0x4f8] sm:$0xff]
      %v2548 = vld [vmem:[#allocation3 + $0x500] sm:$0xff]
      %v2549 = vld [vmem:[#allocation3 + $0x508] sm:$0xff]
      %v2550 = vld [vmem:[#allocation3 + $0x510] sm:$0xff]
      %v2551 = vld [vmem:[#allocation3 + $0x518] sm:$0xff]
      %v2552 = vld [vmem:[#allocation3 + $0x520] sm:$0xff]
      %v2553 = vld [vmem:[#allocation3 + $0x528] sm:$0xff]
      %v2554 = vld [vmem:[#allocation3 + $0x530] sm:$0xff]
      %v2555 = vld [vmem:[#allocation3 + $0x538] sm:$0xff]
      %v2556 = vld [vmem:[#allocation3 + $0x540] sm:$0xff]
      %v2557 = vld [vmem:[#allocation3 + $0x548] sm:$0xff]
      %v2558 = vld [vmem:[#allocation3 + $0x550] sm:$0xff]
      %v2559 = vld [vmem:[#allocation3 + $0x558] sm:$0xff]
      %v2560 = vld [vmem:[#allocation3 + $0x560] sm:$0xff]
      %v2561 = vld [vmem:[#allocation3 + $0x568] sm:$0xff]
      %v2562 = vld [vmem:[#allocation3 + $0x570] sm:$0xff]
      %v2563 = vld [vmem:[#allocation3 + $0x578] sm:$0xff]
      %v2564 = vld [vmem:[#allocation3 + $0x580] sm:$0xff]
      %v2565 = vld [vmem:[#allocation3 + $0x588] sm:$0xff]
      %v2566 = vld [vmem:[#allocation3 + $0x590] sm:$0xff]
      %v2567 = vld [vmem:[#allocation3 + $0x598] sm:$0xff]
      %v2568 = vld [vmem:[#allocation3 + $0x5a0] sm:$0xff]
      %v2569 = vld [vmem:[#allocation3 + $0x5a8] sm:$0xff]
      %v2570 = vld [vmem:[#allocation3 + $0x5b0] sm:$0xff]
      %v2571 = vld [vmem:[#allocation3 + $0x5b8] sm:$0xff]
      %v2572 = vld [vmem:[#allocation3 + $0x5c0] sm:$0xff]
      %v2573 = vld [vmem:[#allocation3 + $0x5c8] sm:$0xff]
      %v2574 = vld [vmem:[#allocation3 + $0x5d0] sm:$0xff]
      %v2575 = vld [vmem:[#allocation3 + $0x5d8] sm:$0xff]
      %v2576 = vld [vmem:[#allocation3 + $0x5e0] sm:$0xff]
      %v2577 = vld [vmem:[#allocation3 + $0x5e8] sm:$0xff]
      %v2578 = vld [vmem:[#allocation3 + $0x5f0] sm:$0xff]
      %v2579 = vld [vmem:[#allocation3 + $0x5f8] sm:$0xff]
      %v2580 = vld [vmem:[#allocation3 + $0x600] sm:$0xff]
      %v2581 = vld [vmem:[#allocation3 + $0x608] sm:$0xff]
      %v2582 = vld [vmem:[#allocation3 + $0x610] sm:$0xff]
      %v2583 = vld [vmem:[#allocation3 + $0x618] sm:$0xff]
      %v2584 = vld [vmem:[#allocation3 + $0x620] sm:$0xff]
      %v2585 = vld [vmem:[#allocation3 + $0x628] sm:$0xff]
      %v2586 = vld [vmem:[#allocation3 + $0x630] sm:$0xff]
      %v2587 = vld [vmem:[#allocation3 + $0x638] sm:$0xff]
      %v2588 = vld [vmem:[#allocation3 + $0x640] sm:$0xff]
      %v2589 = vld [vmem:[#allocation3 + $0x648] sm:$0xff]
      %v2590 = vld [vmem:[#allocation3 + $0x650] sm:$0xff]
      %v2591 = vld [vmem:[#allocation3 + $0x658] sm:$0xff]
      %v2592 = vld [vmem:[#allocation3 + $0x660] sm:$0xff]
      %v2593 = vld [vmem:[#allocation3 + $0x668] sm:$0xff]
      %v2594 = vld [vmem:[#allocation3 + $0x670] sm:$0xff]
      %v2595 = vld [vmem:[#allocation3 + $0x678] sm:$0xff]
      %v2596 = vld [vmem:[#allocation3 + $0x680] sm:$0xff]
      %v2597 = vld [vmem:[#allocation3 + $0x688] sm:$0xff]
      %v2598 = vld [vmem:[#allocation3 + $0x690] sm:$0xff]
      %v2599 = vld [vmem:[#allocation3 + $0x698] sm:$0xff]
      %v2600 = vld [vmem:[#allocation3 + $0x6a0] sm:$0xff]
      %v2601 = vld [vmem:[#allocation3 + $0x6a8] sm:$0xff]
      %v2602 = vld [vmem:[#allocation3 + $0x6b0] sm:$0xff]
      %v2603 = vld [vmem:[#allocation3 + $0x6b8] sm:$0xff]
      %v2604 = vld [vmem:[#allocation3 + $0x6c0] sm:$0xff]
      %v2605 = vld [vmem:[#allocation3 + $0x6c8] sm:$0xff]
      %v2606 = vld [vmem:[#allocation3 + $0x6d0] sm:$0xff]
      %v2607 = vld [vmem:[#allocation3 + $0x6d8] sm:$0xff]
      %v2608 = vld [vmem:[#allocation3 + $0x6e0] sm:$0xff]
      %v2609 = vld [vmem:[#allocation3 + $0x6e8] sm:$0xff]
      %v2610 = vld [vmem:[#allocation3 + $0x6f0] sm:$0xff]
      %v2611 = vld [vmem:[#allocation3 + $0x6f8] sm:$0xff]
      %v2612 = vld [vmem:[#allocation3 + $0x700] sm:$0xff]
      %v2613 = vld [vmem:[#allocation3 + $0x708] sm:$0xff]
      %v2614 = vld [vmem:[#allocation3 + $0x710] sm:$0xff]
      %v2615 = vld [vmem:[#allocation3 + $0x718] sm:$0xff]
      %v2616 = vld [vmem:[#allocation3 + $0x720] sm:$0xff]
      %v2617 = vld [vmem:[#allocation3 + $0x728] sm:$0xff]
      %v2618 = vld [vmem:[#allocation3 + $0x730] sm:$0xff]
      %v2619 = vld [vmem:[#allocation3 + $0x738] sm:$0xff]
      %v2620 = vld [vmem:[#allocation3 + $0x740] sm:$0xff]
      %v2621 = vld [vmem:[#allocation3 + $0x748] sm:$0xff]
      %v2622 = vld [vmem:[#allocation3 + $0x750] sm:$0xff]
      %v2623 = vld [vmem:[#allocation3 + $0x758] sm:$0xff]
      %v2624 = vld [vmem:[#allocation3 + $0x760] sm:$0xff]
      %v2625 = vld [vmem:[#allocation3 + $0x768] sm:$0xff]
      %v2626 = vld [vmem:[#allocation3 + $0x770] sm:$0xff]
      %v2627 = vld [vmem:[#allocation3 + $0x778] sm:$0xff]
      %v2628 = vld [vmem:[#allocation3 + $0x780] sm:$0xff]
      %v2629 = vld [vmem:[#allocation3 + $0x788] sm:$0xff]
      %v2630 = vld [vmem:[#allocation3 + $0x790] sm:$0xff]
      %v2631 = vld [vmem:[#allocation3 + $0x798] sm:$0xff]
      %v2632 = vld [vmem:[#allocation3 + $0x7a0] sm:$0xff]
      %v2633 = vld [vmem:[#allocation3 + $0x7a8] sm:$0xff]
      %v2634 = vld [vmem:[#allocation3 + $0x7b0] sm:$0xff]
      %v2635 = vld [vmem:[#allocation3 + $0x7b8] sm:$0xff]
      %v2636 = vld [vmem:[#allocation3 + $0x7c0] sm:$0xff]
      %v2637 = vld [vmem:[#allocation3 + $0x7c8] sm:$0xff]
      %v2638 = vld [vmem:[#allocation3 + $0x7d0] sm:$0xff]
      %v2639 = vld [vmem:[#allocation3 + $0x7d8] sm:$0xff]
      %v2640 = vld [vmem:[#allocation3 + $0x7e0] sm:$0xff]
      %v2641 = vld [vmem:[#allocation3 + $0x7e8] sm:$0xff]
      %v2642 = vld [vmem:[#allocation3 + $0x7f0] sm:$0xff]
      %v2643 = vld [vmem:[#allocation3 + $0x7f8] sm:$0xff]
      %v2644 = vld [vmem:[#allocation3 + $0x800] sm:$0xff]
      %v2645 = vld [vmem:[#allocation3 + $0x808] sm:$0xff]
      %v2646 = vld [vmem:[#allocation3 + $0x810] sm:$0xff]
      %v2647 = vld [vmem:[#allocation3 + $0x818] sm:$0xff]
      %v2648 = vld [vmem:[#allocation3 + $0x820] sm:$0xff]
      %v2649 = vld [vmem:[#allocation3 + $0x828] sm:$0xff]
      %v2650 = vld [vmem:[#allocation3 + $0x830] sm:$0xff]
      %v2651 = vld [vmem:[#allocation3 + $0x838] sm:$0xff]
      %v2652 = vld [vmem:[#allocation3 + $0x840] sm:$0xff]
      %v2653 = vld [vmem:[#allocation3 + $0x848] sm:$0xff]
      %v2654 = vld [vmem:[#allocation3 + $0x850] sm:$0xff]
      %v2655 = vld [vmem:[#allocation3 + $0x858] sm:$0xff]
      %v2656 = vld [vmem:[#allocation3 + $0x860] sm:$0xff]
      %v2657 = vld [vmem:[#allocation3 + $0x868] sm:$0xff]
      %v2658 = vld [vmem:[#allocation3 + $0x870] sm:$0xff]
      %v2659 = vld [vmem:[#allocation3 + $0x878] sm:$0xff]
      %v2660 = vld [vmem:[#allocation3 + $0x880] sm:$0xff]
      %v2661 = vld [vmem:[#allocation3 + $0x888] sm:$0xff]
      %v2662 = vld [vmem:[#allocation3 + $0x890] sm:$0xff]
      %v2663 = vld [vmem:[#allocation3 + $0x898] sm:$0xff]
      %v2664 = vld [vmem:[#allocation3 + $0x8a0] sm:$0xff]
      %v2665 = vld [vmem:[#allocation3 + $0x8a8] sm:$0xff]
      %v2666 = vld [vmem:[#allocation3 + $0x8b0] sm:$0xff]
      %v2667 = vld [vmem:[#allocation3 + $0x8b8] sm:$0xff]
      %v2668 = vld [vmem:[#allocation3 + $0x8c0] sm:$0xff]
      %v2669 = vld [vmem:[#allocation3 + $0x8c8] sm:$0xff]
      %v2670 = vld [vmem:[#allocation3 + $0x8d0] sm:$0xff]
      %v2671 = vld [vmem:[#allocation3 + $0x8d8] sm:$0xff]
      %v2672 = vld [vmem:[#allocation3 + $0x8e0] sm:$0xff]
      %v2673 = vld [vmem:[#allocation3 + $0x8e8] sm:$0xff]
      %v2674 = vld [vmem:[#allocation3 + $0x8f0] sm:$0xff]
      %v2675 = vld [vmem:[#allocation3 + $0x8f8] sm:$0xff]
      %v2676 = vld [vmem:[#allocation3 + $0x900] sm:$0xff]
      %v2677 = vld [vmem:[#allocation3 + $0x908] sm:$0xff]
      %v2678 = vld [vmem:[#allocation3 + $0x910] sm:$0xff]
      %v2679 = vld [vmem:[#allocation3 + $0x918] sm:$0xff]
      %v2680 = vld [vmem:[#allocation3 + $0x920] sm:$0xff]
      %v2681 = vld [vmem:[#allocation3 + $0x928] sm:$0xff]
      %v2682 = vld [vmem:[#allocation3 + $0x930] sm:$0xff]
      %v2683 = vld [vmem:[#allocation3 + $0x938] sm:$0xff]
      %v2684 = vld [vmem:[#allocation3 + $0x940] sm:$0xff]
      %v2685 = vld [vmem:[#allocation3 + $0x948] sm:$0xff]
      %v2686 = vld [vmem:[#allocation3 + $0x950] sm:$0xff]
      %v2687 = vld [vmem:[#allocation3 + $0x958] sm:$0xff]
      %v2688 = vld [vmem:[#allocation3 + $0x960] sm:$0xff]
      %v2689 = vld [vmem:[#allocation3 + $0x968] sm:$0xff]
      %v2690 = vld [vmem:[#allocation3 + $0x970] sm:$0xff]
      %v2691 = vld [vmem:[#allocation3 + $0x978] sm:$0xff]
      %v2692 = vld [vmem:[#allocation3 + $0x980] sm:$0xff]
      %v2693 = vld [vmem:[#allocation3 + $0x988] sm:$0xff]
      %v2694 = vld [vmem:[#allocation3 + $0x990] sm:$0xff]
      %v2695 = vld [vmem:[#allocation3 + $0x998] sm:$0xff]
      %v2696 = vld [vmem:[#allocation3 + $0x9a0] sm:$0xff]
      %v2697 = vld [vmem:[#allocation3 + $0x9a8] sm:$0xff]
      %v2698 = vld [vmem:[#allocation3 + $0x9b0] sm:$0xff]
      %v2699 = vld [vmem:[#allocation3 + $0x9b8] sm:$0xff]
      %v2700 = vld [vmem:[#allocation3 + $0x9c0] sm:$0xff]
      %v2701 = vld [vmem:[#allocation3 + $0x9c8] sm:$0xff]
      %v2702 = vld [vmem:[#allocation3 + $0x9d0] sm:$0xff]
      %v2703 = vld [vmem:[#allocation3 + $0x9d8] sm:$0xff]
      %v2704 = vld [vmem:[#allocation3 + $0x9e0] sm:$0xff]
      %v2705 = vld [vmem:[#allocation3 + $0x9e8] sm:$0xff]
      %v2706 = vld [vmem:[#allocation3 + $0x9f0] sm:$0xff]
      %v2707 = vld [vmem:[#allocation3 + $0x9f8] sm:$0xff]
      %v2708 = vld [vmem:[#allocation3 + $0xa00] sm:$0xff]
      %v2709 = vld [vmem:[#allocation3 + $0xa08] sm:$0xff]
      %v2710 = vld [vmem:[#allocation3 + $0xa10] sm:$0xff]
      %v2711 = vld [vmem:[#allocation3 + $0xa18] sm:$0xff]
      %v2712 = vld [vmem:[#allocation3 + $0xa20] sm:$0xff]
      %v2713 = vld [vmem:[#allocation3 + $0xa28] sm:$0xff]
      %v2714 = vld [vmem:[#allocation3 + $0xa30] sm:$0xff]
      %v2715 = vld [vmem:[#allocation3 + $0xa38] sm:$0xff]
      %v2716 = vld [vmem:[#allocation3 + $0xa40] sm:$0xff]
      %v2717 = vld [vmem:[#allocation3 + $0xa48] sm:$0xff]
      %v2718 = vld [vmem:[#allocation3 + $0xa50] sm:$0xff]
      %v2719 = vld [vmem:[#allocation3 + $0xa58] sm:$0xff]
      %v2720 = vld [vmem:[#allocation3 + $0xa60] sm:$0xff]
      %v2721 = vld [vmem:[#allocation3 + $0xa68] sm:$0xff]
      %v2722 = vld [vmem:[#allocation3 + $0xa70] sm:$0xff]
      %v2723 = vld [vmem:[#allocation3 + $0xa78] sm:$0xff]
      %2725 = vset.pattern.permute.xlu0 0
      %2726 = vperm.xlu0 %2725, %v255
      %v2727 = vpop.permute.xlu0 %2726
      %vm2729 = vcmask 457728
      %v2731 = vsel %vm2729, %v2387, 0
      %2733 = vmatpush.msra.mxu0 0.0
      %2734 = vmatpush.msra.mxu0 0.0
      %2735 = vmatpush.msra.mxu0 0.0
      %2736 = vmatpush.msra.mxu0 0.0
      %2737 = vmatpush.msra.mxu0 0.0
      %2738 = vmatpush.msra.mxu0 0.0
      %2739 = vmatpush.msra.mxu0 0.0
      %2740 = vmatpush.msra.mxu0 0.0
      %2741 = vmatpush.msra.mxu0 0.0
      %2742 = vmatpush.msra.mxu0 %v2676
      %2743 = vmatpush.msra.mxu0 %v2628
      %2744 = vmatpush.msra.mxu0 %v2580
      %2745 = vmatpush.msra.mxu0 %v2532
      %2746 = vmatpush.msra.mxu0 %v2484
      %2747 = vmatpush.msra.mxu0 %v2436
      %2748 = vmatpush.msra.mxu0 %v2388
      %2749 = vmatmul.f32.gmra.mxu0 %v2731
      %v2750 = vpop.f32.mrf.mxu0
      %v2751 = vadd.f32 %v2727, %v2750
      %2752 = vdwg.mxu0
      %2753 = vmatpush.msra.mxu0 0.0
      %2754 = vmatpush.msra.mxu0 0.0
      %2755 = vmatpush.msra.mxu0 0.0
      %2756 = vmatpush.msra.mxu0 0.0
      %2757 = vmatpush.msra.mxu0 0.0
      %2758 = vmatpush.msra.mxu0 0.0
      %2759 = vmatpush.msra.mxu0 0.0
      %2760 = vmatpush.msra.mxu0 0.0
      %2761 = vmatpush.msra.mxu0 0.0
      %2762 = vmatpush.msra.mxu0 %v2677
      %2763 = vmatpush.msra.mxu0 %v2629
      %2764 = vmatpush.msra.mxu0 %v2581
      %2765 = vmatpush.msra.mxu0 %v2533
      %2766 = vmatpush.msra.mxu0 %v2485
      %2767 = vmatpush.msra.mxu0 %v2437
      %2768 = vmatpush.msra.mxu0 %v2389
      %2769 = vmatmul.f32.gmra.mxu0 %v2731
      %v2770 = vpop.f32.mrf.mxu0
      %v2771 = vadd.f32 %v2727, %v2770
      %2772 = vdwg.mxu0
      %2773 = vmatpush.msra.mxu0 0.0
      %2774 = vmatpush.msra.mxu0 0.0
      %2775 = vmatpush.msra.mxu0 0.0
      %2776 = vmatpush.msra.mxu0 0.0
      %2777 = vmatpush.msra.mxu0 0.0
      %2778 = vmatpush.msra.mxu0 0.0
      %2779 = vmatpush.msra.mxu0 0.0
      %2780 = vmatpush.msra.mxu0 0.0
      %2781 = vmatpush.msra.mxu0 0.0
      %2782 = vmatpush.msra.mxu0 %v2678
      %2783 = vmatpush.msra.mxu0 %v2630
      %2784 = vmatpush.msra.mxu0 %v2582
      %2785 = vmatpush.msra.mxu0 %v2534
      %2786 = vmatpush.msra.mxu0 %v2486
      %2787 = vmatpush.msra.mxu0 %v2438
      %2788 = vmatpush.msra.mxu0 %v2390
      %2789 = vmatmul.f32.gmra.mxu0 %v2731
      %v2790 = vpop.f32.mrf.mxu0
      %v2791 = vadd.f32 %v2727, %v2790
      %2792 = vdwg.mxu0
      %2793 = vmatpush.msra.mxu0 0.0
      %2794 = vmatpush.msra.mxu0 0.0
      %2795 = vmatpush.msra.mxu0 0.0
      %2796 = vmatpush.msra.mxu0 0.0
      %2797 = vmatpush.msra.mxu0 0.0
      %2798 = vmatpush.msra.mxu0 0.0
      %2799 = vmatpush.msra.mxu0 0.0
      %2800 = vmatpush.msra.mxu0 0.0
      %2801 = vmatpush.msra.mxu0 0.0
      %2802 = vmatpush.msra.mxu0 %v2679
      %2803 = vmatpush.msra.mxu0 %v2631
      %2804 = vmatpush.msra.mxu0 %v2583
      %2805 = vmatpush.msra.mxu0 %v2535
      %2806 = vmatpush.msra.mxu0 %v2487
      %2807 = vmatpush.msra.mxu0 %v2439
      %2808 = vmatpush.msra.mxu0 %v2391
      %2809 = vmatmul.f32.gmra.mxu0 %v2731
      %v2810 = vpop.f32.mrf.mxu0
      %v2811 = vadd.f32 %v2727, %v2810
      %2812 = vdwg.mxu0
      %2813 = vmatpush.msra.mxu0 0.0
      %2814 = vmatpush.msra.mxu0 0.0
      %2815 = vmatpush.msra.mxu0 0.0
      %2816 = vmatpush.msra.mxu0 0.0
      %2817 = vmatpush.msra.mxu0 0.0
      %2818 = vmatpush.msra.mxu0 0.0
      %2819 = vmatpush.msra.mxu0 0.0
      %2820 = vmatpush.msra.mxu0 0.0
      %2821 = vmatpush.msra.mxu0 0.0
      %2822 = vmatpush.msra.mxu0 %v2680
      %2823 = vmatpush.msra.mxu0 %v2632
      %2824 = vmatpush.msra.mxu0 %v2584
      %2825 = vmatpush.msra.mxu0 %v2536
      %2826 = vmatpush.msra.mxu0 %v2488
      %2827 = vmatpush.msra.mxu0 %v2440
      %2828 = vmatpush.msra.mxu0 %v2392
      %2829 = vmatmul.f32.gmra.mxu0 %v2731
      %v2830 = vpop.f32.mrf.mxu0
      %v2831 = vadd.f32 %v2727, %v2830
      %2832 = vdwg.mxu0
      %2833 = vmatpush.msra.mxu0 0.0
      %2834 = vmatpush.msra.mxu0 0.0
      %2835 = vmatpush.msra.mxu0 0.0
      %2836 = vmatpush.msra.mxu0 0.0
      %2837 = vmatpush.msra.mxu0 0.0
      %2838 = vmatpush.msra.mxu0 0.0
      %2839 = vmatpush.msra.mxu0 0.0
      %2840 = vmatpush.msra.mxu0 0.0
      %2841 = vmatpush.msra.mxu0 0.0
      %2842 = vmatpush.msra.mxu0 %v2681
      %2843 = vmatpush.msra.mxu0 %v2633
      %2844 = vmatpush.msra.mxu0 %v2585
      %2845 = vmatpush.msra.mxu0 %v2537
      %2846 = vmatpush.msra.mxu0 %v2489
      %2847 = vmatpush.msra.mxu0 %v2441
      %2848 = vmatpush.msra.mxu0 %v2393
      %2849 = vmatmul.f32.gmra.mxu0 %v2731
      %v2850 = vpop.f32.mrf.mxu0
      %v2851 = vadd.f32 %v2727, %v2850
      %2852 = vdwg.mxu0
      %2853 = vmatpush.msra.mxu0 0.0
      %2854 = vmatpush.msra.mxu0 0.0
      %2855 = vmatpush.msra.mxu0 0.0
      %2856 = vmatpush.msra.mxu0 0.0
      %2857 = vmatpush.msra.mxu0 0.0
      %2858 = vmatpush.msra.mxu0 0.0
      %2859 = vmatpush.msra.mxu0 0.0
      %2860 = vmatpush.msra.mxu0 0.0
      %2861 = vmatpush.msra.mxu0 0.0
      %2862 = vmatpush.msra.mxu0 %v2682
      %2863 = vmatpush.msra.mxu0 %v2634
      %2864 = vmatpush.msra.mxu0 %v2586
      %2865 = vmatpush.msra.mxu0 %v2538
      %2866 = vmatpush.msra.mxu0 %v2490
      %2867 = vmatpush.msra.mxu0 %v2442
      %2868 = vmatpush.msra.mxu0 %v2394
      %2869 = vmatmul.f32.gmra.mxu0 %v2731
      %v2870 = vpop.f32.mrf.mxu0
      %v2871 = vadd.f32 %v2727, %v2870
      %2872 = vdwg.mxu0
      %2873 = vmatpush.msra.mxu0 0.0
      %2874 = vmatpush.msra.mxu0 0.0
      %2875 = vmatpush.msra.mxu0 0.0
      %2876 = vmatpush.msra.mxu0 0.0
      %2877 = vmatpush.msra.mxu0 0.0
      %2878 = vmatpush.msra.mxu0 0.0
      %2879 = vmatpush.msra.mxu0 0.0
      %2880 = vmatpush.msra.mxu0 0.0
      %2881 = vmatpush.msra.mxu0 0.0
      %2882 = vmatpush.msra.mxu0 %v2683
      %2883 = vmatpush.msra.mxu0 %v2635
      %2884 = vmatpush.msra.mxu0 %v2587
      %2885 = vmatpush.msra.mxu0 %v2539
      %2886 = vmatpush.msra.mxu0 %v2491
      %2887 = vmatpush.msra.mxu0 %v2443
      %2888 = vmatpush.msra.mxu0 %v2395
      %2889 = vmatmul.f32.gmra.mxu0 %v2731
      %v2890 = vpop.f32.mrf.mxu0
      %v2891 = vadd.f32 %v2727, %v2890
      %2892 = vdwg.mxu0
      %2893 = vmatpush.msra.mxu0 0.0
      %2894 = vmatpush.msra.mxu0 0.0
      %2895 = vmatpush.msra.mxu0 0.0
      %2896 = vmatpush.msra.mxu0 0.0
      %2897 = vmatpush.msra.mxu0 0.0
      %2898 = vmatpush.msra.mxu0 0.0
      %2899 = vmatpush.msra.mxu0 0.0
      %2900 = vmatpush.msra.mxu0 0.0
      %2901 = vmatpush.msra.mxu0 0.0
      %2902 = vmatpush.msra.mxu0 %v2684
      %2903 = vmatpush.msra.mxu0 %v2636
      %2904 = vmatpush.msra.mxu0 %v2588
      %2905 = vmatpush.msra.mxu0 %v2540
      %2906 = vmatpush.msra.mxu0 %v2492
      %2907 = vmatpush.msra.mxu0 %v2444
      %2908 = vmatpush.msra.mxu0 %v2396
      %2909 = vmatmul.f32.gmra.mxu0 %v2731
      %v2910 = vpop.f32.mrf.mxu0
      %v2911 = vadd.f32 %v2727, %v2910
      %2912 = vdwg.mxu0
      %2913 = vmatpush.msra.mxu0 0.0
      %2914 = vmatpush.msra.mxu0 0.0
      %2915 = vmatpush.msra.mxu0 0.0
      %2916 = vmatpush.msra.mxu0 0.0
      %2917 = vmatpush.msra.mxu0 0.0
      %2918 = vmatpush.msra.mxu0 0.0
      %2919 = vmatpush.msra.mxu0 0.0
      %2920 = vmatpush.msra.mxu0 0.0
      %2921 = vmatpush.msra.mxu0 0.0
      %2922 = vmatpush.msra.mxu0 %v2685
      %2923 = vmatpush.msra.mxu0 %v2637
      %2924 = vmatpush.msra.mxu0 %v2589
      %2925 = vmatpush.msra.mxu0 %v2541
      %2926 = vmatpush.msra.mxu0 %v2493
      %2927 = vmatpush.msra.mxu0 %v2445
      %2928 = vmatpush.msra.mxu0 %v2397
      %2929 = vmatmul.f32.gmra.mxu0 %v2731
      %v2930 = vpop.f32.mrf.mxu0
      %v2931 = vadd.f32 %v2727, %v2930
      %2932 = vdwg.mxu0
      %2933 = vmatpush.msra.mxu0 0.0
      %2934 = vmatpush.msra.mxu0 0.0
      %2935 = vmatpush.msra.mxu0 0.0
      %2936 = vmatpush.msra.mxu0 0.0
      %2937 = vmatpush.msra.mxu0 0.0
      %2938 = vmatpush.msra.mxu0 0.0
      %2939 = vmatpush.msra.mxu0 0.0
      %2940 = vmatpush.msra.mxu0 0.0
      %2941 = vmatpush.msra.mxu0 0.0
      %2942 = vmatpush.msra.mxu0 %v2686
      %2943 = vmatpush.msra.mxu0 %v2638
      %2944 = vmatpush.msra.mxu0 %v2590
      %2945 = vmatpush.msra.mxu0 %v2542
      %2946 = vmatpush.msra.mxu0 %v2494
      %2947 = vmatpush.msra.mxu0 %v2446
      %2948 = vmatpush.msra.mxu0 %v2398
      %2949 = vmatmul.f32.gmra.mxu0 %v2731
      %v2950 = vpop.f32.mrf.mxu0
      %v2951 = vadd.f32 %v2727, %v2950
      %2952 = vdwg.mxu0
      %2953 = vmatpush.msra.mxu0 0.0
      %2954 = vmatpush.msra.mxu0 0.0
      %2955 = vmatpush.msra.mxu0 0.0
      %2956 = vmatpush.msra.mxu0 0.0
      %2957 = vmatpush.msra.mxu0 0.0
      %2958 = vmatpush.msra.mxu0 0.0
      %2959 = vmatpush.msra.mxu0 0.0
      %2960 = vmatpush.msra.mxu0 0.0
      %2961 = vmatpush.msra.mxu0 0.0
      %2962 = vmatpush.msra.mxu0 %v2687
      %2963 = vmatpush.msra.mxu0 %v2639
      %2964 = vmatpush.msra.mxu0 %v2591
      %2965 = vmatpush.msra.mxu0 %v2543
      %2966 = vmatpush.msra.mxu0 %v2495
      %2967 = vmatpush.msra.mxu0 %v2447
      %2968 = vmatpush.msra.mxu0 %v2399
      %2969 = vmatmul.f32.gmra.mxu0 %v2731
      %v2970 = vpop.f32.mrf.mxu0
      %v2971 = vadd.f32 %v2727, %v2970
      %2972 = vdwg.mxu0
      %2973 = vmatpush.msra.mxu0 0.0
      %2974 = vmatpush.msra.mxu0 0.0
      %2975 = vmatpush.msra.mxu0 0.0
      %2976 = vmatpush.msra.mxu0 0.0
      %2977 = vmatpush.msra.mxu0 0.0
      %2978 = vmatpush.msra.mxu0 0.0
      %2979 = vmatpush.msra.mxu0 0.0
      %2980 = vmatpush.msra.mxu0 0.0
      %2981 = vmatpush.msra.mxu0 0.0
      %2982 = vmatpush.msra.mxu0 %v2688
      %2983 = vmatpush.msra.mxu0 %v2640
      %2984 = vmatpush.msra.mxu0 %v2592
      %2985 = vmatpush.msra.mxu0 %v2544
      %2986 = vmatpush.msra.mxu0 %v2496
      %2987 = vmatpush.msra.mxu0 %v2448
      %2988 = vmatpush.msra.mxu0 %v2400
      %2989 = vmatmul.f32.gmra.mxu0 %v2731
      %v2990 = vpop.f32.mrf.mxu0
      %v2991 = vadd.f32 %v2727, %v2990
      %2992 = vdwg.mxu0
      %2993 = vmatpush.msra.mxu0 0.0
      %2994 = vmatpush.msra.mxu0 0.0
      %2995 = vmatpush.msra.mxu0 0.0
      %2996 = vmatpush.msra.mxu0 0.0
      %2997 = vmatpush.msra.mxu0 0.0
      %2998 = vmatpush.msra.mxu0 0.0
      %2999 = vmatpush.msra.mxu0 0.0
      %3000 = vmatpush.msra.mxu0 0.0
      %3001 = vmatpush.msra.mxu0 0.0
      %3002 = vmatpush.msra.mxu0 %v2689
      %3003 = vmatpush.msra.mxu0 %v2641
      %3004 = vmatpush.msra.mxu0 %v2593
      %3005 = vmatpush.msra.mxu0 %v2545
      %3006 = vmatpush.msra.mxu0 %v2497
      %3007 = vmatpush.msra.mxu0 %v2449
      %3008 = vmatpush.msra.mxu0 %v2401
      %3009 = vmatmul.f32.gmra.mxu0 %v2731
      %v3010 = vpop.f32.mrf.mxu0
      %v3011 = vadd.f32 %v2727, %v3010
      %3012 = vdwg.mxu0
      %3013 = vmatpush.msra.mxu0 0.0
      %3014 = vmatpush.msra.mxu0 0.0
      %3015 = vmatpush.msra.mxu0 0.0
      %3016 = vmatpush.msra.mxu0 0.0
      %3017 = vmatpush.msra.mxu0 0.0
      %3018 = vmatpush.msra.mxu0 0.0
      %3019 = vmatpush.msra.mxu0 0.0
      %3020 = vmatpush.msra.mxu0 0.0
      %3021 = vmatpush.msra.mxu0 0.0
      %3022 = vmatpush.msra.mxu0 %v2690
      %3023 = vmatpush.msra.mxu0 %v2642
      %3024 = vmatpush.msra.mxu0 %v2594
      %3025 = vmatpush.msra.mxu0 %v2546
      %3026 = vmatpush.msra.mxu0 %v2498
      %3027 = vmatpush.msra.mxu0 %v2450
      %3028 = vmatpush.msra.mxu0 %v2402
      %3029 = vmatmul.f32.gmra.mxu0 %v2731
      %v3030 = vpop.f32.mrf.mxu0
      %v3031 = vadd.f32 %v2727, %v3030
      %3032 = vdwg.mxu0
      %3033 = vmatpush.msra.mxu0 0.0
      %3034 = vmatpush.msra.mxu0 0.0
      %3035 = vmatpush.msra.mxu0 0.0
      %3036 = vmatpush.msra.mxu0 0.0
      %3037 = vmatpush.msra.mxu0 0.0
      %3038 = vmatpush.msra.mxu0 0.0
      %3039 = vmatpush.msra.mxu0 0.0
      %3040 = vmatpush.msra.mxu0 0.0
      %3041 = vmatpush.msra.mxu0 0.0
      %3042 = vmatpush.msra.mxu0 %v2691
      %3043 = vmatpush.msra.mxu0 %v2643
      %3044 = vmatpush.msra.mxu0 %v2595
      %3045 = vmatpush.msra.mxu0 %v2547
      %3046 = vmatpush.msra.mxu0 %v2499
      %3047 = vmatpush.msra.mxu0 %v2451
      %3048 = vmatpush.msra.mxu0 %v2403
      %3049 = vmatmul.f32.gmra.mxu0 %v2731
      %v3050 = vpop.f32.mrf.mxu0
      %v3051 = vadd.f32 %v2727, %v3050
      %3052 = vdwg.mxu0
      %3053 = vmatpush.msra.mxu0 0.0
      %3054 = vmatpush.msra.mxu0 0.0
      %3055 = vmatpush.msra.mxu0 0.0
      %3056 = vmatpush.msra.mxu0 0.0
      %3057 = vmatpush.msra.mxu0 0.0
      %3058 = vmatpush.msra.mxu0 0.0
      %3059 = vmatpush.msra.mxu0 0.0
      %3060 = vmatpush.msra.mxu0 0.0
      %3061 = vmatpush.msra.mxu0 0.0
      %3062 = vmatpush.msra.mxu0 %v2692
      %3063 = vmatpush.msra.mxu0 %v2644
      %3064 = vmatpush.msra.mxu0 %v2596
      %3065 = vmatpush.msra.mxu0 %v2548
      %3066 = vmatpush.msra.mxu0 %v2500
      %3067 = vmatpush.msra.mxu0 %v2452
      %3068 = vmatpush.msra.mxu0 %v2404
      %3069 = vmatmul.f32.gmra.mxu0 %v2731
      %v3070 = vpop.f32.mrf.mxu0
      %v3071 = vadd.f32 %v2727, %v3070
      %3072 = vdwg.mxu0
      %3073 = vmatpush.msra.mxu0 0.0
      %3074 = vmatpush.msra.mxu0 0.0
      %3075 = vmatpush.msra.mxu0 0.0
      %3076 = vmatpush.msra.mxu0 0.0
      %3077 = vmatpush.msra.mxu0 0.0
      %3078 = vmatpush.msra.mxu0 0.0
      %3079 = vmatpush.msra.mxu0 0.0
      %3080 = vmatpush.msra.mxu0 0.0
      %3081 = vmatpush.msra.mxu0 0.0
      %3082 = vmatpush.msra.mxu0 %v2693
      %3083 = vmatpush.msra.mxu0 %v2645
      %3084 = vmatpush.msra.mxu0 %v2597
      %3085 = vmatpush.msra.mxu0 %v2549
      %3086 = vmatpush.msra.mxu0 %v2501
      %3087 = vmatpush.msra.mxu0 %v2453
      %3088 = vmatpush.msra.mxu0 %v2405
      %3089 = vmatmul.f32.gmra.mxu0 %v2731
      %v3090 = vpop.f32.mrf.mxu0
      %v3091 = vadd.f32 %v2727, %v3090
      %3092 = vdwg.mxu0
      %3093 = vmatpush.msra.mxu0 0.0
      %3094 = vmatpush.msra.mxu0 0.0
      %3095 = vmatpush.msra.mxu0 0.0
      %3096 = vmatpush.msra.mxu0 0.0
      %3097 = vmatpush.msra.mxu0 0.0
      %3098 = vmatpush.msra.mxu0 0.0
      %3099 = vmatpush.msra.mxu0 0.0
      %3100 = vmatpush.msra.mxu0 0.0
      %3101 = vmatpush.msra.mxu0 0.0
      %3102 = vmatpush.msra.mxu0 %v2694
      %3103 = vmatpush.msra.mxu0 %v2646
      %3104 = vmatpush.msra.mxu0 %v2598
      %3105 = vmatpush.msra.mxu0 %v2550
      %3106 = vmatpush.msra.mxu0 %v2502
      %3107 = vmatpush.msra.mxu0 %v2454
      %3108 = vmatpush.msra.mxu0 %v2406
      %3109 = vmatmul.f32.gmra.mxu0 %v2731
      %v3110 = vpop.f32.mrf.mxu0
      %v3111 = vadd.f32 %v2727, %v3110
      %3112 = vdwg.mxu0
      %3113 = vmatpush.msra.mxu0 0.0
      %3114 = vmatpush.msra.mxu0 0.0
      %3115 = vmatpush.msra.mxu0 0.0
      %3116 = vmatpush.msra.mxu0 0.0
      %3117 = vmatpush.msra.mxu0 0.0
      %3118 = vmatpush.msra.mxu0 0.0
      %3119 = vmatpush.msra.mxu0 0.0
      %3120 = vmatpush.msra.mxu0 0.0
      %3121 = vmatpush.msra.mxu0 0.0
      %3122 = vmatpush.msra.mxu0 %v2695
      %3123 = vmatpush.msra.mxu0 %v2647
      %3124 = vmatpush.msra.mxu0 %v2599
      %3125 = vmatpush.msra.mxu0 %v2551
      %3126 = vmatpush.msra.mxu0 %v2503
      %3127 = vmatpush.msra.mxu0 %v2455
      %3128 = vmatpush.msra.mxu0 %v2407
      %3129 = vmatmul.f32.gmra.mxu0 %v2731
      %v3130 = vpop.f32.mrf.mxu0
      %v3131 = vadd.f32 %v2727, %v3130
      %3132 = vdwg.mxu0
      %3133 = vmatpush.msra.mxu0 0.0
      %3134 = vmatpush.msra.mxu0 0.0
      %3135 = vmatpush.msra.mxu0 0.0
      %3136 = vmatpush.msra.mxu0 0.0
      %3137 = vmatpush.msra.mxu0 0.0
      %3138 = vmatpush.msra.mxu0 0.0
      %3139 = vmatpush.msra.mxu0 0.0
      %3140 = vmatpush.msra.mxu0 0.0
      %3141 = vmatpush.msra.mxu0 0.0
      %3142 = vmatpush.msra.mxu0 %v2696
      %3143 = vmatpush.msra.mxu0 %v2648
      %3144 = vmatpush.msra.mxu0 %v2600
      %3145 = vmatpush.msra.mxu0 %v2552
      %3146 = vmatpush.msra.mxu0 %v2504
      %3147 = vmatpush.msra.mxu0 %v2456
      %3148 = vmatpush.msra.mxu0 %v2408
      %3149 = vmatmul.f32.gmra.mxu0 %v2731
      %v3150 = vpop.f32.mrf.mxu0
      %v3151 = vadd.f32 %v2727, %v3150
      %3152 = vdwg.mxu0
      %3153 = vmatpush.msra.mxu0 0.0
      %3154 = vmatpush.msra.mxu0 0.0
      %3155 = vmatpush.msra.mxu0 0.0
      %3156 = vmatpush.msra.mxu0 0.0
      %3157 = vmatpush.msra.mxu0 0.0
      %3158 = vmatpush.msra.mxu0 0.0
      %3159 = vmatpush.msra.mxu0 0.0
      %3160 = vmatpush.msra.mxu0 0.0
      %3161 = vmatpush.msra.mxu0 0.0
      %3162 = vmatpush.msra.mxu0 %v2697
      %3163 = vmatpush.msra.mxu0 %v2649
      %3164 = vmatpush.msra.mxu0 %v2601
      %3165 = vmatpush.msra.mxu0 %v2553
      %3166 = vmatpush.msra.mxu0 %v2505
      %3167 = vmatpush.msra.mxu0 %v2457
      %3168 = vmatpush.msra.mxu0 %v2409
      %3169 = vmatmul.f32.gmra.mxu0 %v2731
      %v3170 = vpop.f32.mrf.mxu0
      %v3171 = vadd.f32 %v2727, %v3170
      %3172 = vdwg.mxu0
      %3173 = vmatpush.msra.mxu0 0.0
      %3174 = vmatpush.msra.mxu0 0.0
      %3175 = vmatpush.msra.mxu0 0.0
      %3176 = vmatpush.msra.mxu0 0.0
      %3177 = vmatpush.msra.mxu0 0.0
      %3178 = vmatpush.msra.mxu0 0.0
      %3179 = vmatpush.msra.mxu0 0.0
      %3180 = vmatpush.msra.mxu0 0.0
      %3181 = vmatpush.msra.mxu0 0.0
      %3182 = vmatpush.msra.mxu0 %v2698
      %3183 = vmatpush.msra.mxu0 %v2650
      %3184 = vmatpush.msra.mxu0 %v2602
      %3185 = vmatpush.msra.mxu0 %v2554
      %3186 = vmatpush.msra.mxu0 %v2506
      %3187 = vmatpush.msra.mxu0 %v2458
      %3188 = vmatpush.msra.mxu0 %v2410
      %3189 = vmatmul.f32.gmra.mxu0 %v2731
      %v3190 = vpop.f32.mrf.mxu0
      %v3191 = vadd.f32 %v2727, %v3190
      %3192 = vdwg.mxu0
      %3193 = vmatpush.msra.mxu0 0.0
      %3194 = vmatpush.msra.mxu0 0.0
      %3195 = vmatpush.msra.mxu0 0.0
      %3196 = vmatpush.msra.mxu0 0.0
      %3197 = vmatpush.msra.mxu0 0.0
      %3198 = vmatpush.msra.mxu0 0.0
      %3199 = vmatpush.msra.mxu0 0.0
      %3200 = vmatpush.msra.mxu0 0.0
      %3201 = vmatpush.msra.mxu0 0.0
      %3202 = vmatpush.msra.mxu0 %v2699
      %3203 = vmatpush.msra.mxu0 %v2651
      %3204 = vmatpush.msra.mxu0 %v2603
      %3205 = vmatpush.msra.mxu0 %v2555
      %3206 = vmatpush.msra.mxu0 %v2507
      %3207 = vmatpush.msra.mxu0 %v2459
      %3208 = vmatpush.msra.mxu0 %v2411
      %3209 = vmatmul.f32.gmra.mxu0 %v2731
      %v3210 = vpop.f32.mrf.mxu0
      %v3211 = vadd.f32 %v2727, %v3210
      %3212 = vdwg.mxu0
      %3213 = vmatpush.msra.mxu0 0.0
      %3214 = vmatpush.msra.mxu0 0.0
      %3215 = vmatpush.msra.mxu0 0.0
      %3216 = vmatpush.msra.mxu0 0.0
      %3217 = vmatpush.msra.mxu0 0.0
      %3218 = vmatpush.msra.mxu0 0.0
      %3219 = vmatpush.msra.mxu0 0.0
      %3220 = vmatpush.msra.mxu0 0.0
      %3221 = vmatpush.msra.mxu0 0.0
      %3222 = vmatpush.msra.mxu0 %v2700
      %3223 = vmatpush.msra.mxu0 %v2652
      %3224 = vmatpush.msra.mxu0 %v2604
      %3225 = vmatpush.msra.mxu0 %v2556
      %3226 = vmatpush.msra.mxu0 %v2508
      %3227 = vmatpush.msra.mxu0 %v2460
      %3228 = vmatpush.msra.mxu0 %v2412
      %3229 = vmatmul.f32.gmra.mxu0 %v2731
      %v3230 = vpop.f32.mrf.mxu0
      %v3231 = vadd.f32 %v2727, %v3230
      %3232 = vdwg.mxu0
      %3233 = vmatpush.msra.mxu0 0.0
      %3234 = vmatpush.msra.mxu0 0.0
      %3235 = vmatpush.msra.mxu0 0.0
      %3236 = vmatpush.msra.mxu0 0.0
      %3237 = vmatpush.msra.mxu0 0.0
      %3238 = vmatpush.msra.mxu0 0.0
      %3239 = vmatpush.msra.mxu0 0.0
      %3240 = vmatpush.msra.mxu0 0.0
      %3241 = vmatpush.msra.mxu0 0.0
      %3242 = vmatpush.msra.mxu0 %v2701
      %3243 = vmatpush.msra.mxu0 %v2653
      %3244 = vmatpush.msra.mxu0 %v2605
      %3245 = vmatpush.msra.mxu0 %v2557
      %3246 = vmatpush.msra.mxu0 %v2509
      %3247 = vmatpush.msra.mxu0 %v2461
      %3248 = vmatpush.msra.mxu0 %v2413
      %3249 = vmatmul.f32.gmra.mxu0 %v2731
      %v3250 = vpop.f32.mrf.mxu0
      %v3251 = vadd.f32 %v2727, %v3250
      %3252 = vdwg.mxu0
      %3253 = vmatpush.msra.mxu0 0.0
      %3254 = vmatpush.msra.mxu0 0.0
      %3255 = vmatpush.msra.mxu0 0.0
      %3256 = vmatpush.msra.mxu0 0.0
      %3257 = vmatpush.msra.mxu0 0.0
      %3258 = vmatpush.msra.mxu0 0.0
      %3259 = vmatpush.msra.mxu0 0.0
      %3260 = vmatpush.msra.mxu0 0.0
      %3261 = vmatpush.msra.mxu0 0.0
      %3262 = vmatpush.msra.mxu0 %v2702
      %3263 = vmatpush.msra.mxu0 %v2654
      %3264 = vmatpush.msra.mxu0 %v2606
      %3265 = vmatpush.msra.mxu0 %v2558
      %3266 = vmatpush.msra.mxu0 %v2510
      %3267 = vmatpush.msra.mxu0 %v2462
      %3268 = vmatpush.msra.mxu0 %v2414
      %3269 = vmatmul.f32.gmra.mxu0 %v2731
      %v3270 = vpop.f32.mrf.mxu0
      %v3271 = vadd.f32 %v2727, %v3270
      %3272 = vdwg.mxu0
      %3273 = vmatpush.msra.mxu0 0.0
      %3274 = vmatpush.msra.mxu0 0.0
      %3275 = vmatpush.msra.mxu0 0.0
      %3276 = vmatpush.msra.mxu0 0.0
      %3277 = vmatpush.msra.mxu0 0.0
      %3278 = vmatpush.msra.mxu0 0.0
      %3279 = vmatpush.msra.mxu0 0.0
      %3280 = vmatpush.msra.mxu0 0.0
      %3281 = vmatpush.msra.mxu0 0.0
      %3282 = vmatpush.msra.mxu0 %v2703
      %3283 = vmatpush.msra.mxu0 %v2655
      %3284 = vmatpush.msra.mxu0 %v2607
      %3285 = vmatpush.msra.mxu0 %v2559
      %3286 = vmatpush.msra.mxu0 %v2511
      %3287 = vmatpush.msra.mxu0 %v2463
      %3288 = vmatpush.msra.mxu0 %v2415
      %3289 = vmatmul.f32.gmra.mxu0 %v2731
      %v3290 = vpop.f32.mrf.mxu0
      %v3291 = vadd.f32 %v2727, %v3290
      %3292 = vdwg.mxu0
      %3293 = vmatpush.msra.mxu0 0.0
      %3294 = vmatpush.msra.mxu0 0.0
      %3295 = vmatpush.msra.mxu0 0.0
      %3296 = vmatpush.msra.mxu0 0.0
      %3297 = vmatpush.msra.mxu0 0.0
      %3298 = vmatpush.msra.mxu0 0.0
      %3299 = vmatpush.msra.mxu0 0.0
      %3300 = vmatpush.msra.mxu0 0.0
      %3301 = vmatpush.msra.mxu0 0.0
      %3302 = vmatpush.msra.mxu0 %v2704
      %3303 = vmatpush.msra.mxu0 %v2656
      %3304 = vmatpush.msra.mxu0 %v2608
      %3305 = vmatpush.msra.mxu0 %v2560
      %3306 = vmatpush.msra.mxu0 %v2512
      %3307 = vmatpush.msra.mxu0 %v2464
      %3308 = vmatpush.msra.mxu0 %v2416
      %3309 = vmatmul.f32.gmra.mxu0 %v2731
      %v3310 = vpop.f32.mrf.mxu0
      %v3311 = vadd.f32 %v2727, %v3310
      %3312 = vdwg.mxu0
      %3313 = vmatpush.msra.mxu0 0.0
      %3314 = vmatpush.msra.mxu0 0.0
      %3315 = vmatpush.msra.mxu0 0.0
      %3316 = vmatpush.msra.mxu0 0.0
      %3317 = vmatpush.msra.mxu0 0.0
      %3318 = vmatpush.msra.mxu0 0.0
      %3319 = vmatpush.msra.mxu0 0.0
      %3320 = vmatpush.msra.mxu0 0.0
      %3321 = vmatpush.msra.mxu0 0.0
      %3322 = vmatpush.msra.mxu0 %v2705
      %3323 = vmatpush.msra.mxu0 %v2657
      %3324 = vmatpush.msra.mxu0 %v2609
      %3325 = vmatpush.msra.mxu0 %v2561
      %3326 = vmatpush.msra.mxu0 %v2513
      %3327 = vmatpush.msra.mxu0 %v2465
      %3328 = vmatpush.msra.mxu0 %v2417
      %3329 = vmatmul.f32.gmra.mxu0 %v2731
      %v3330 = vpop.f32.mrf.mxu0
      %v3331 = vadd.f32 %v2727, %v3330
      %3332 = vdwg.mxu0
      %3333 = vmatpush.msra.mxu0 0.0
      %3334 = vmatpush.msra.mxu0 0.0
      %3335 = vmatpush.msra.mxu0 0.0
      %3336 = vmatpush.msra.mxu0 0.0
      %3337 = vmatpush.msra.mxu0 0.0
      %3338 = vmatpush.msra.mxu0 0.0
      %3339 = vmatpush.msra.mxu0 0.0
      %3340 = vmatpush.msra.mxu0 0.0
      %3341 = vmatpush.msra.mxu0 0.0
      %3342 = vmatpush.msra.mxu0 %v2706
      %3343 = vmatpush.msra.mxu0 %v2658
      %3344 = vmatpush.msra.mxu0 %v2610
      %3345 = vmatpush.msra.mxu0 %v2562
      %3346 = vmatpush.msra.mxu0 %v2514
      %3347 = vmatpush.msra.mxu0 %v2466
      %3348 = vmatpush.msra.mxu0 %v2418
      %3349 = vmatmul.f32.gmra.mxu0 %v2731
      %v3350 = vpop.f32.mrf.mxu0
      %v3351 = vadd.f32 %v2727, %v3350
      %3352 = vdwg.mxu0
      %3353 = vmatpush.msra.mxu0 0.0
      %3354 = vmatpush.msra.mxu0 0.0
      %3355 = vmatpush.msra.mxu0 0.0
      %3356 = vmatpush.msra.mxu0 0.0
      %3357 = vmatpush.msra.mxu0 0.0
      %3358 = vmatpush.msra.mxu0 0.0
      %3359 = vmatpush.msra.mxu0 0.0
      %3360 = vmatpush.msra.mxu0 0.0
      %3361 = vmatpush.msra.mxu0 0.0
      %3362 = vmatpush.msra.mxu0 %v2707
      %3363 = vmatpush.msra.mxu0 %v2659
      %3364 = vmatpush.msra.mxu0 %v2611
      %3365 = vmatpush.msra.mxu0 %v2563
      %3366 = vmatpush.msra.mxu0 %v2515
      %3367 = vmatpush.msra.mxu0 %v2467
      %3368 = vmatpush.msra.mxu0 %v2419
      %3369 = vmatmul.f32.gmra.mxu0 %v2731
      %v3370 = vpop.f32.mrf.mxu0
      %v3371 = vadd.f32 %v2727, %v3370
      %3372 = vdwg.mxu0
      %3373 = vmatpush.msra.mxu0 0.0
      %3374 = vmatpush.msra.mxu0 0.0
      %3375 = vmatpush.msra.mxu0 0.0
      %3376 = vmatpush.msra.mxu0 0.0
      %3377 = vmatpush.msra.mxu0 0.0
      %3378 = vmatpush.msra.mxu0 0.0
      %3379 = vmatpush.msra.mxu0 0.0
      %3380 = vmatpush.msra.mxu0 0.0
      %3381 = vmatpush.msra.mxu0 0.0
      %3382 = vmatpush.msra.mxu0 %v2708
      %3383 = vmatpush.msra.mxu0 %v2660
      %3384 = vmatpush.msra.mxu0 %v2612
      %3385 = vmatpush.msra.mxu0 %v2564
      %3386 = vmatpush.msra.mxu0 %v2516
      %3387 = vmatpush.msra.mxu0 %v2468
      %3388 = vmatpush.msra.mxu0 %v2420
      %3389 = vmatmul.f32.gmra.mxu0 %v2731
      %v3390 = vpop.f32.mrf.mxu0
      %v3391 = vadd.f32 %v2727, %v3390
      %3392 = vdwg.mxu0
      %3393 = vmatpush.msra.mxu0 0.0
      %3394 = vmatpush.msra.mxu0 0.0
      %3395 = vmatpush.msra.mxu0 0.0
      %3396 = vmatpush.msra.mxu0 0.0
      %3397 = vmatpush.msra.mxu0 0.0
      %3398 = vmatpush.msra.mxu0 0.0
      %3399 = vmatpush.msra.mxu0 0.0
      %3400 = vmatpush.msra.mxu0 0.0
      %3401 = vmatpush.msra.mxu0 0.0
      %3402 = vmatpush.msra.mxu0 %v2709
      %3403 = vmatpush.msra.mxu0 %v2661
      %3404 = vmatpush.msra.mxu0 %v2613
      %3405 = vmatpush.msra.mxu0 %v2565
      %3406 = vmatpush.msra.mxu0 %v2517
      %3407 = vmatpush.msra.mxu0 %v2469
      %3408 = vmatpush.msra.mxu0 %v2421
      %3409 = vmatmul.f32.gmra.mxu0 %v2731
      %v3410 = vpop.f32.mrf.mxu0
      %v3411 = vadd.f32 %v2727, %v3410
      %3412 = vdwg.mxu0
      %3413 = vmatpush.msra.mxu0 0.0
      %3414 = vmatpush.msra.mxu0 0.0
      %3415 = vmatpush.msra.mxu0 0.0
      %3416 = vmatpush.msra.mxu0 0.0
      %3417 = vmatpush.msra.mxu0 0.0
      %3418 = vmatpush.msra.mxu0 0.0
      %3419 = vmatpush.msra.mxu0 0.0
      %3420 = vmatpush.msra.mxu0 0.0
      %3421 = vmatpush.msra.mxu0 0.0
      %3422 = vmatpush.msra.mxu0 %v2710
      %3423 = vmatpush.msra.mxu0 %v2662
      %3424 = vmatpush.msra.mxu0 %v2614
      %3425 = vmatpush.msra.mxu0 %v2566
      %3426 = vmatpush.msra.mxu0 %v2518
      %3427 = vmatpush.msra.mxu0 %v2470
      %3428 = vmatpush.msra.mxu0 %v2422
      %3429 = vmatmul.f32.gmra.mxu0 %v2731
      %v3430 = vpop.f32.mrf.mxu0
      %v3431 = vadd.f32 %v2727, %v3430
      %3432 = vdwg.mxu0
      %3433 = vmatpush.msra.mxu0 0.0
      %3434 = vmatpush.msra.mxu0 0.0
      %3435 = vmatpush.msra.mxu0 0.0
      %3436 = vmatpush.msra.mxu0 0.0
      %3437 = vmatpush.msra.mxu0 0.0
      %3438 = vmatpush.msra.mxu0 0.0
      %3439 = vmatpush.msra.mxu0 0.0
      %3440 = vmatpush.msra.mxu0 0.0
      %3441 = vmatpush.msra.mxu0 0.0
      %3442 = vmatpush.msra.mxu0 %v2711
      %3443 = vmatpush.msra.mxu0 %v2663
      %3444 = vmatpush.msra.mxu0 %v2615
      %3445 = vmatpush.msra.mxu0 %v2567
      %3446 = vmatpush.msra.mxu0 %v2519
      %3447 = vmatpush.msra.mxu0 %v2471
      %3448 = vmatpush.msra.mxu0 %v2423
      %3449 = vmatmul.f32.gmra.mxu0 %v2731
      %v3450 = vpop.f32.mrf.mxu0
      %v3451 = vadd.f32 %v2727, %v3450
      %3452 = vdwg.mxu0
      %3453 = vmatpush.msra.mxu0 0.0
      %3454 = vmatpush.msra.mxu0 0.0
      %3455 = vmatpush.msra.mxu0 0.0
      %3456 = vmatpush.msra.mxu0 0.0
      %3457 = vmatpush.msra.mxu0 0.0
      %3458 = vmatpush.msra.mxu0 0.0
      %3459 = vmatpush.msra.mxu0 0.0
      %3460 = vmatpush.msra.mxu0 0.0
      %3461 = vmatpush.msra.mxu0 0.0
      %3462 = vmatpush.msra.mxu0 %v2712
      %3463 = vmatpush.msra.mxu0 %v2664
      %3464 = vmatpush.msra.mxu0 %v2616
      %3465 = vmatpush.msra.mxu0 %v2568
      %3466 = vmatpush.msra.mxu0 %v2520
      %3467 = vmatpush.msra.mxu0 %v2472
      %3468 = vmatpush.msra.mxu0 %v2424
      %3469 = vmatmul.f32.gmra.mxu0 %v2731
      %v3470 = vpop.f32.mrf.mxu0
      %v3471 = vadd.f32 %v2727, %v3470
      %3472 = vdwg.mxu0
      %3473 = vmatpush.msra.mxu0 0.0
      %3474 = vmatpush.msra.mxu0 0.0
      %3475 = vmatpush.msra.mxu0 0.0
      %3476 = vmatpush.msra.mxu0 0.0
      %3477 = vmatpush.msra.mxu0 0.0
      %3478 = vmatpush.msra.mxu0 0.0
      %3479 = vmatpush.msra.mxu0 0.0
      %3480 = vmatpush.msra.mxu0 0.0
      %3481 = vmatpush.msra.mxu0 0.0
      %3482 = vmatpush.msra.mxu0 %v2713
      %3483 = vmatpush.msra.mxu0 %v2665
      %3484 = vmatpush.msra.mxu0 %v2617
      %3485 = vmatpush.msra.mxu0 %v2569
      %3486 = vmatpush.msra.mxu0 %v2521
      %3487 = vmatpush.msra.mxu0 %v2473
      %3488 = vmatpush.msra.mxu0 %v2425
      %3489 = vmatmul.f32.gmra.mxu0 %v2731
      %v3490 = vpop.f32.mrf.mxu0
      %v3491 = vadd.f32 %v2727, %v3490
      %3492 = vdwg.mxu0
      %3493 = vmatpush.msra.mxu0 0.0
      %3494 = vmatpush.msra.mxu0 0.0
      %3495 = vmatpush.msra.mxu0 0.0
      %3496 = vmatpush.msra.mxu0 0.0
      %3497 = vmatpush.msra.mxu0 0.0
      %3498 = vmatpush.msra.mxu0 0.0
      %3499 = vmatpush.msra.mxu0 0.0
      %3500 = vmatpush.msra.mxu0 0.0
      %3501 = vmatpush.msra.mxu0 0.0
      %3502 = vmatpush.msra.mxu0 %v2714
      %3503 = vmatpush.msra.mxu0 %v2666
      %3504 = vmatpush.msra.mxu0 %v2618
      %3505 = vmatpush.msra.mxu0 %v2570
      %3506 = vmatpush.msra.mxu0 %v2522
      %3507 = vmatpush.msra.mxu0 %v2474
      %3508 = vmatpush.msra.mxu0 %v2426
      %3509 = vmatmul.f32.gmra.mxu0 %v2731
      %v3510 = vpop.f32.mrf.mxu0
      %v3511 = vadd.f32 %v2727, %v3510
      %3512 = vdwg.mxu0
      %3513 = vmatpush.msra.mxu0 0.0
      %3514 = vmatpush.msra.mxu0 0.0
      %3515 = vmatpush.msra.mxu0 0.0
      %3516 = vmatpush.msra.mxu0 0.0
      %3517 = vmatpush.msra.mxu0 0.0
      %3518 = vmatpush.msra.mxu0 0.0
      %3519 = vmatpush.msra.mxu0 0.0
      %3520 = vmatpush.msra.mxu0 0.0
      %3521 = vmatpush.msra.mxu0 0.0
      %3522 = vmatpush.msra.mxu0 %v2715
      %3523 = vmatpush.msra.mxu0 %v2667
      %3524 = vmatpush.msra.mxu0 %v2619
      %3525 = vmatpush.msra.mxu0 %v2571
      %3526 = vmatpush.msra.mxu0 %v2523
      %3527 = vmatpush.msra.mxu0 %v2475
      %3528 = vmatpush.msra.mxu0 %v2427
      %3529 = vmatmul.f32.gmra.mxu0 %v2731
      %v3530 = vpop.f32.mrf.mxu0
      %v3531 = vadd.f32 %v2727, %v3530
      %3532 = vdwg.mxu0
      %3533 = vmatpush.msra.mxu0 0.0
      %3534 = vmatpush.msra.mxu0 0.0
      %3535 = vmatpush.msra.mxu0 0.0
      %3536 = vmatpush.msra.mxu0 0.0
      %3537 = vmatpush.msra.mxu0 0.0
      %3538 = vmatpush.msra.mxu0 0.0
      %3539 = vmatpush.msra.mxu0 0.0
      %3540 = vmatpush.msra.mxu0 0.0
      %3541 = vmatpush.msra.mxu0 0.0
      %3542 = vmatpush.msra.mxu0 %v2716
      %3543 = vmatpush.msra.mxu0 %v2668
      %3544 = vmatpush.msra.mxu0 %v2620
      %3545 = vmatpush.msra.mxu0 %v2572
      %3546 = vmatpush.msra.mxu0 %v2524
      %3547 = vmatpush.msra.mxu0 %v2476
      %3548 = vmatpush.msra.mxu0 %v2428
      %3549 = vmatmul.f32.gmra.mxu0 %v2731
      %v3550 = vpop.f32.mrf.mxu0
      %v3551 = vadd.f32 %v2727, %v3550
      %3552 = vdwg.mxu0
      %3553 = vmatpush.msra.mxu0 0.0
      %3554 = vmatpush.msra.mxu0 0.0
      %3555 = vmatpush.msra.mxu0 0.0
      %3556 = vmatpush.msra.mxu0 0.0
      %3557 = vmatpush.msra.mxu0 0.0
      %3558 = vmatpush.msra.mxu0 0.0
      %3559 = vmatpush.msra.mxu0 0.0
      %3560 = vmatpush.msra.mxu0 0.0
      %3561 = vmatpush.msra.mxu0 0.0
      %3562 = vmatpush.msra.mxu0 %v2717
      %3563 = vmatpush.msra.mxu0 %v2669
      %3564 = vmatpush.msra.mxu0 %v2621
      %3565 = vmatpush.msra.mxu0 %v2573
      %3566 = vmatpush.msra.mxu0 %v2525
      %3567 = vmatpush.msra.mxu0 %v2477
      %3568 = vmatpush.msra.mxu0 %v2429
      %3569 = vmatmul.f32.gmra.mxu0 %v2731
      %v3570 = vpop.f32.mrf.mxu0
      %v3571 = vadd.f32 %v2727, %v3570
      %3572 = vdwg.mxu0
      %3573 = vmatpush.msra.mxu0 0.0
      %3574 = vmatpush.msra.mxu0 0.0
      %3575 = vmatpush.msra.mxu0 0.0
      %3576 = vmatpush.msra.mxu0 0.0
      %3577 = vmatpush.msra.mxu0 0.0
      %3578 = vmatpush.msra.mxu0 0.0
      %3579 = vmatpush.msra.mxu0 0.0
      %3580 = vmatpush.msra.mxu0 0.0
      %3581 = vmatpush.msra.mxu0 0.0
      %3582 = vmatpush.msra.mxu0 %v2718
      %3583 = vmatpush.msra.mxu0 %v2670
      %3584 = vmatpush.msra.mxu0 %v2622
      %3585 = vmatpush.msra.mxu0 %v2574
      %3586 = vmatpush.msra.mxu0 %v2526
      %3587 = vmatpush.msra.mxu0 %v2478
      %3588 = vmatpush.msra.mxu0 %v2430
      %3589 = vmatmul.f32.gmra.mxu0 %v2731
      %v3590 = vpop.f32.mrf.mxu0
      %v3591 = vadd.f32 %v2727, %v3590
      %3592 = vdwg.mxu0
      %3593 = vmatpush.msra.mxu0 0.0
      %3594 = vmatpush.msra.mxu0 0.0
      %3595 = vmatpush.msra.mxu0 0.0
      %3596 = vmatpush.msra.mxu0 0.0
      %3597 = vmatpush.msra.mxu0 0.0
      %3598 = vmatpush.msra.mxu0 0.0
      %3599 = vmatpush.msra.mxu0 0.0
      %3600 = vmatpush.msra.mxu0 0.0
      %3601 = vmatpush.msra.mxu0 0.0
      %3602 = vmatpush.msra.mxu0 %v2719
      %3603 = vmatpush.msra.mxu0 %v2671
      %3604 = vmatpush.msra.mxu0 %v2623
      %3605 = vmatpush.msra.mxu0 %v2575
      %3606 = vmatpush.msra.mxu0 %v2527
      %3607 = vmatpush.msra.mxu0 %v2479
      %3608 = vmatpush.msra.mxu0 %v2431
      %3609 = vmatmul.f32.gmra.mxu0 %v2731
      %v3610 = vpop.f32.mrf.mxu0
      %v3611 = vadd.f32 %v2727, %v3610
      %3612 = vdwg.mxu0
      %3613 = vmatpush.msra.mxu0 0.0
      %3614 = vmatpush.msra.mxu0 0.0
      %3615 = vmatpush.msra.mxu0 0.0
      %3616 = vmatpush.msra.mxu0 0.0
      %3617 = vmatpush.msra.mxu0 0.0
      %3618 = vmatpush.msra.mxu0 0.0
      %3619 = vmatpush.msra.mxu0 0.0
      %3620 = vmatpush.msra.mxu0 0.0
      %3621 = vmatpush.msra.mxu0 0.0
      %3622 = vmatpush.msra.mxu0 %v2720
      %3623 = vmatpush.msra.mxu0 %v2672
      %3624 = vmatpush.msra.mxu0 %v2624
      %3625 = vmatpush.msra.mxu0 %v2576
      %3626 = vmatpush.msra.mxu0 %v2528
      %3627 = vmatpush.msra.mxu0 %v2480
      %3628 = vmatpush.msra.mxu0 %v2432
      %3629 = vmatmul.f32.gmra.mxu0 %v2731
      %v3630 = vpop.f32.mrf.mxu0
      %v3631 = vadd.f32 %v2727, %v3630
      %3632 = vdwg.mxu0
      %3633 = vmatpush.msra.mxu0 0.0
      %3634 = vmatpush.msra.mxu0 0.0
      %3635 = vmatpush.msra.mxu0 0.0
      %3636 = vmatpush.msra.mxu0 0.0
      %3637 = vmatpush.msra.mxu0 0.0
      %3638 = vmatpush.msra.mxu0 0.0
      %3639 = vmatpush.msra.mxu0 0.0
      %3640 = vmatpush.msra.mxu0 0.0
      %3641 = vmatpush.msra.mxu0 0.0
      %3642 = vmatpush.msra.mxu0 %v2721
      %3643 = vmatpush.msra.mxu0 %v2673
      %3644 = vmatpush.msra.mxu0 %v2625
      %3645 = vmatpush.msra.mxu0 %v2577
      %3646 = vmatpush.msra.mxu0 %v2529
      %3647 = vmatpush.msra.mxu0 %v2481
      %3648 = vmatpush.msra.mxu0 %v2433
      %3649 = vmatmul.f32.gmra.mxu0 %v2731
      %v3650 = vpop.f32.mrf.mxu0
      %v3651 = vadd.f32 %v2727, %v3650
      %3652 = vdwg.mxu0
      %3653 = vmatpush.msra.mxu0 0.0
      %3654 = vmatpush.msra.mxu0 0.0
      %3655 = vmatpush.msra.mxu0 0.0
      %3656 = vmatpush.msra.mxu0 0.0
      %3657 = vmatpush.msra.mxu0 0.0
      %3658 = vmatpush.msra.mxu0 0.0
      %3659 = vmatpush.msra.mxu0 0.0
      %3660 = vmatpush.msra.mxu0 0.0
      %3661 = vmatpush.msra.mxu0 0.0
      %3662 = vmatpush.msra.mxu0 %v2722
      %3663 = vmatpush.msra.mxu0 %v2674
      %3664 = vmatpush.msra.mxu0 %v2626
      %3665 = vmatpush.msra.mxu0 %v2578
      %3666 = vmatpush.msra.mxu0 %v2530
      %3667 = vmatpush.msra.mxu0 %v2482
      %3668 = vmatpush.msra.mxu0 %v2434
      %3669 = vmatmul.f32.gmra.mxu0 %v2731
      %v3670 = vpop.f32.mrf.mxu0
      %v3671 = vadd.f32 %v2727, %v3670
      %3672 = vdwg.mxu0
      %3673 = vmatpush.msra.mxu0 0.0
      %3674 = vmatpush.msra.mxu0 0.0
      %3675 = vmatpush.msra.mxu0 0.0
      %3676 = vmatpush.msra.mxu0 0.0
      %3677 = vmatpush.msra.mxu0 0.0
      %3678 = vmatpush.msra.mxu0 0.0
      %3679 = vmatpush.msra.mxu0 0.0
      %3680 = vmatpush.msra.mxu0 0.0
      %3681 = vmatpush.msra.mxu0 0.0
      %3682 = vmatpush.msra.mxu0 %v2723
      %3683 = vmatpush.msra.mxu0 %v2675
      %3684 = vmatpush.msra.mxu0 %v2627
      %3685 = vmatpush.msra.mxu0 %v2579
      %3686 = vmatpush.msra.mxu0 %v2531
      %3687 = vmatpush.msra.mxu0 %v2483
      %3688 = vmatpush.msra.mxu0 %v2435
      %3689 = vmatmul.f32.gmra.mxu0 %v2731
      %v3690 = vpop.f32.mrf.mxu0
      %v3691 = vadd.f32 %v2727, %v3690
      %3692 = vdwg.mxu0
      %vm3693 = vcmp.ge.f32.partialorder %v2751, 0.0
      %vm3694 = vcmp.ge.f32.partialorder %v2771, 0.0
      %vm3695 = vcmp.ge.f32.partialorder %v2791, 0.0
      %vm3696 = vcmp.ge.f32.partialorder %v2811, 0.0
      %vm3697 = vcmp.ge.f32.partialorder %v2831, 0.0
      %vm3698 = vcmp.ge.f32.partialorder %v2851, 0.0
      %vm3699 = vcmp.ge.f32.partialorder %v2871, 0.0
      %vm3700 = vcmp.ge.f32.partialorder %v2891, 0.0
      %vm3701 = vcmp.ge.f32.partialorder %v2911, 0.0
      %vm3702 = vcmp.ge.f32.partialorder %v2931, 0.0
      %vm3703 = vcmp.ge.f32.partialorder %v2951, 0.0
      %vm3704 = vcmp.ge.f32.partialorder %v2971, 0.0
      %vm3705 = vcmp.ge.f32.partialorder %v2991, 0.0
      %vm3706 = vcmp.ge.f32.partialorder %v3011, 0.0
      %vm3707 = vcmp.ge.f32.partialorder %v3031, 0.0
      %vm3708 = vcmp.ge.f32.partialorder %v3051, 0.0
      %vm3709 = vcmp.ge.f32.partialorder %v3071, 0.0
      %vm3710 = vcmp.ge.f32.partialorder %v3091, 0.0
      %vm3711 = vcmp.ge.f32.partialorder %v3111, 0.0
      %vm3712 = vcmp.ge.f32.partialorder %v3131, 0.0
      %vm3713 = vcmp.ge.f32.partialorder %v3151, 0.0
      %vm3714 = vcmp.ge.f32.partialorder %v3171, 0.0
      %vm3715 = vcmp.ge.f32.partialorder %v3191, 0.0
      %vm3716 = vcmp.ge.f32.partialorder %v3211, 0.0
      %vm3717 = vcmp.ge.f32.partialorder %v3231, 0.0
      %vm3718 = vcmp.ge.f32.partialorder %v3251, 0.0
      %vm3719 = vcmp.ge.f32.partialorder %v3271, 0.0
      %vm3720 = vcmp.ge.f32.partialorder %v3291, 0.0
      %vm3721 = vcmp.ge.f32.partialorder %v3311, 0.0
      %vm3722 = vcmp.ge.f32.partialorder %v3331, 0.0
      %vm3723 = vcmp.ge.f32.partialorder %v3351, 0.0
      %vm3724 = vcmp.ge.f32.partialorder %v3371, 0.0
      %vm3725 = vcmp.ge.f32.partialorder %v3391, 0.0
      %vm3726 = vcmp.ge.f32.partialorder %v3411, 0.0
      %vm3727 = vcmp.ge.f32.partialorder %v3431, 0.0
      %vm3728 = vcmp.ge.f32.partialorder %v3451, 0.0
      %vm3729 = vcmp.ge.f32.partialorder %v3471, 0.0
      %vm3730 = vcmp.ge.f32.partialorder %v3491, 0.0
      %vm3731 = vcmp.ge.f32.partialorder %v3511, 0.0
      %vm3732 = vcmp.ge.f32.partialorder %v3531, 0.0
      %vm3733 = vcmp.ge.f32.partialorder %v3551, 0.0
      %vm3734 = vcmp.ge.f32.partialorder %v3571, 0.0
      %vm3735 = vcmp.ge.f32.partialorder %v3591, 0.0
      %vm3736 = vcmp.ge.f32.partialorder %v3611, 0.0
      %vm3737 = vcmp.ge.f32.partialorder %v3631, 0.0
      %vm3738 = vcmp.ge.f32.partialorder %v3651, 0.0
      %vm3739 = vcmp.ge.f32.partialorder %v3671, 0.0
      %vm3740 = vcmp.ge.f32.partialorder %v3691, 0.0
      %3741 = vset.pattern.permute.xlu0 1
      %3742 = vperm.xlu0 %3741, %v255
      %v3743 = vpop.permute.xlu0 %3742
      %v3745 = vmul.f32 %v3743, %v2751
      %v3746 = vmul.f32 %v3743, %v2771
      %v3747 = vmul.f32 %v3743, %v2791
      %v3748 = vmul.f32 %v3743, %v2811
      %v3749 = vmul.f32 %v3743, %v2831
      %v3750 = vmul.f32 %v3743, %v2851
      %v3751 = vmul.f32 %v3743, %v2871
      %v3752 = vmul.f32 %v3743, %v2891
      %v3753 = vmul.f32 %v3743, %v2911
      %v3754 = vmul.f32 %v3743, %v2931
      %v3755 = vmul.f32 %v3743, %v2951
      %v3756 = vmul.f32 %v3743, %v2971
      %v3757 = vmul.f32 %v3743, %v2991
      %v3758 = vmul.f32 %v3743, %v3011
      %v3759 = vmul.f32 %v3743, %v3031
      %v3760 = vmul.f32 %v3743, %v3051
      %v3761 = vmul.f32 %v3743, %v3071
      %v3762 = vmul.f32 %v3743, %v3091
      %v3763 = vmul.f32 %v3743, %v3111
      %v3764 = vmul.f32 %v3743, %v3131
      %v3765 = vmul.f32 %v3743, %v3151
      %v3766 = vmul.f32 %v3743, %v3171
      %v3767 = vmul.f32 %v3743, %v3191
      %v3768 = vmul.f32 %v3743, %v3211
      %v3769 = vmul.f32 %v3743, %v3231
      %v3770 = vmul.f32 %v3743, %v3251
      %v3771 = vmul.f32 %v3743, %v3271
      %v3772 = vmul.f32 %v3743, %v3291
      %v3773 = vmul.f32 %v3743, %v3311
      %v3774 = vmul.f32 %v3743, %v3331
      %v3775 = vmul.f32 %v3743, %v3351
      %v3776 = vmul.f32 %v3743, %v3371
      %v3777 = vmul.f32 %v3743, %v3391
      %v3778 = vmul.f32 %v3743, %v3411
      %v3779 = vmul.f32 %v3743, %v3431
      %v3780 = vmul.f32 %v3743, %v3451
      %v3781 = vmul.f32 %v3743, %v3471
      %v3782 = vmul.f32 %v3743, %v3491
      %v3783 = vmul.f32 %v3743, %v3511
      %v3784 = vmul.f32 %v3743, %v3531
      %v3785 = vmul.f32 %v3743, %v3551
      %v3786 = vmul.f32 %v3743, %v3571
      %v3787 = vmul.f32 %v3743, %v3591
      %v3788 = vmul.f32 %v3743, %v3611
      %v3789 = vmul.f32 %v3743, %v3631
      %v3790 = vmul.f32 %v3743, %v3651
      %v3791 = vmul.f32 %v3743, %v3671
      %v3792 = vmul.f32 %v3743, %v3691
      %v3793 = vsel %vm3693, %v2751, %v3745
      %v3794 = vsel %vm3694, %v2771, %v3746
      %v3795 = vsel %vm3695, %v2791, %v3747
      %v3796 = vsel %vm3696, %v2811, %v3748
      %v3797 = vsel %vm3697, %v2831, %v3749
      %v3798 = vsel %vm3698, %v2851, %v3750
      %v3799 = vsel %vm3699, %v2871, %v3751
      %v3800 = vsel %vm3700, %v2891, %v3752
      %v3801 = vsel %vm3701, %v2911, %v3753
      %v3802 = vsel %vm3702, %v2931, %v3754
      %v3803 = vsel %vm3703, %v2951, %v3755
      %v3804 = vsel %vm3704, %v2971, %v3756
      %v3805 = vsel %vm3705, %v2991, %v3757
      %v3806 = vsel %vm3706, %v3011, %v3758
      %v3807 = vsel %vm3707, %v3031, %v3759
      %v3808 = vsel %vm3708, %v3051, %v3760
      %v3809 = vsel %vm3709, %v3071, %v3761
      %v3810 = vsel %vm3710, %v3091, %v3762
      %v3811 = vsel %vm3711, %v3111, %v3763
      %v3812 = vsel %vm3712, %v3131, %v3764
      %v3813 = vsel %vm3713, %v3151, %v3765
      %v3814 = vsel %vm3714, %v3171, %v3766
      %v3815 = vsel %vm3715, %v3191, %v3767
      %v3816 = vsel %vm3716, %v3211, %v3768
      %v3817 = vsel %vm3717, %v3231, %v3769
      %v3818 = vsel %vm3718, %v3251, %v3770
      %v3819 = vsel %vm3719, %v3271, %v3771
      %v3820 = vsel %vm3720, %v3291, %v3772
      %v3821 = vsel %vm3721, %v3311, %v3773
      %v3822 = vsel %vm3722, %v3331, %v3774
      %v3823 = vsel %vm3723, %v3351, %v3775
      %v3824 = vsel %vm3724, %v3371, %v3776
      %v3825 = vsel %vm3725, %v3391, %v3777
      %v3826 = vsel %vm3726, %v3411, %v3778
      %v3827 = vsel %vm3727, %v3431, %v3779
      %v3828 = vsel %vm3728, %v3451, %v3780
      %v3829 = vsel %vm3729, %v3471, %v3781
      %v3830 = vsel %vm3730, %v3491, %v3782
      %v3831 = vsel %vm3731, %v3511, %v3783
      %v3832 = vsel %vm3732, %v3531, %v3784
      %v3833 = vsel %vm3733, %v3551, %v3785
      %v3834 = vsel %vm3734, %v3571, %v3786
      %v3835 = vsel %vm3735, %v3591, %v3787
      %v3836 = vsel %vm3736, %v3611, %v3788
      %v3837 = vsel %vm3737, %v3631, %v3789
      %v3838 = vsel %vm3738, %v3651, %v3790
      %v3839 = vsel %vm3739, %v3671, %v3791
      %v3840 = vsel %vm3740, %v3691, %v3792
      %3841 = vset.pattern.permute.xlu0 2
      %3842 = vperm.xlu0 %3841, %v255
      %v3843 = vpop.permute.xlu0 %3842
      %v3845 = vmul.f32 %v3793, %v3843
      %v3846 = vmul.f32 %v3794, %v3843
      %v3847 = vmul.f32 %v3795, %v3843
      %v3848 = vmul.f32 %v3796, %v3843
      %v3849 = vmul.f32 %v3797, %v3843
      %v3850 = vmul.f32 %v3798, %v3843
      %v3851 = vmul.f32 %v3799, %v3843
      %v3852 = vmul.f32 %v3800, %v3843
      %v3853 = vmul.f32 %v3801, %v3843
      %v3854 = vmul.f32 %v3802, %v3843
      %v3855 = vmul.f32 %v3803, %v3843
      %v3856 = vmul.f32 %v3804, %v3843
      %v3857 = vmul.f32 %v3805, %v3843
      %v3858 = vmul.f32 %v3806, %v3843
      %v3859 = vmul.f32 %v3807, %v3843
      %v3860 = vmul.f32 %v3808, %v3843
      %v3861 = vmul.f32 %v3809, %v3843
      %v3862 = vmul.f32 %v3810, %v3843
      %v3863 = vmul.f32 %v3811, %v3843
      %v3864 = vmul.f32 %v3812, %v3843
      %v3865 = vmul.f32 %v3813, %v3843
      %v3866 = vmul.f32 %v3814, %v3843
      %v3867 = vmul.f32 %v3815, %v3843
      %v3868 = vmul.f32 %v3816, %v3843
      %v3869 = vmul.f32 %v3817, %v3843
      %v3870 = vmul.f32 %v3818, %v3843
      %v3871 = vmul.f32 %v3819, %v3843
      %v3872 = vmul.f32 %v3820, %v3843
      %v3873 = vmul.f32 %v3821, %v3843
      %v3874 = vmul.f32 %v3822, %v3843
      %v3875 = vmul.f32 %v3823, %v3843
      %v3876 = vmul.f32 %v3824, %v3843
      %v3877 = vmul.f32 %v3825, %v3843
      %v3878 = vmul.f32 %v3826, %v3843
      %v3879 = vmul.f32 %v3827, %v3843
      %v3880 = vmul.f32 %v3828, %v3843
      %v3881 = vmul.f32 %v3829, %v3843
      %v3882 = vmul.f32 %v3830, %v3843
      %v3883 = vmul.f32 %v3831, %v3843
      %v3884 = vmul.f32 %v3832, %v3843
      %v3885 = vmul.f32 %v3833, %v3843
      %v3886 = vmul.f32 %v3834, %v3843
      %v3887 = vmul.f32 %v3835, %v3843
      %v3888 = vmul.f32 %v3836, %v3843
      %v3889 = vmul.f32 %v3837, %v3843
      %v3890 = vmul.f32 %v3838, %v3843
      %v3891 = vmul.f32 %v3839, %v3843
      %v3892 = vmul.f32 %v3840, %v3843
      %3893 = vset.pattern.permute.xlu0 3
      %3894 = vperm.xlu0 %3893, %v255
      %v3895 = vpop.permute.xlu0 %3894
      %v3897 = vadd.f32 %v3845, %v3895
      %v3898 = vadd.f32 %v3846, %v3895
      %v3899 = vadd.f32 %v3847, %v3895
      %v3900 = vadd.f32 %v3848, %v3895
      %v3901 = vadd.f32 %v3849, %v3895
      %v3902 = vadd.f32 %v3850, %v3895
      %v3903 = vadd.f32 %v3851, %v3895
      %v3904 = vadd.f32 %v3852, %v3895
      %v3905 = vadd.f32 %v3853, %v3895
      %v3906 = vadd.f32 %v3854, %v3895
      %v3907 = vadd.f32 %v3855, %v3895
      %v3908 = vadd.f32 %v3856, %v3895
      %v3909 = vadd.f32 %v3857, %v3895
      %v3910 = vadd.f32 %v3858, %v3895
      %v3911 = vadd.f32 %v3859, %v3895
      %v3912 = vadd.f32 %v3860, %v3895
      %v3913 = vadd.f32 %v3861, %v3895
      %v3914 = vadd.f32 %v3862, %v3895
      %v3915 = vadd.f32 %v3863, %v3895
      %v3916 = vadd.f32 %v3864, %v3895
      %v3917 = vadd.f32 %v3865, %v3895
      %v3918 = vadd.f32 %v3866, %v3895
      %v3919 = vadd.f32 %v3867, %v3895
      %v3920 = vadd.f32 %v3868, %v3895
      %v3921 = vadd.f32 %v3869, %v3895
      %v3922 = vadd.f32 %v3870, %v3895
      %v3923 = vadd.f32 %v3871, %v3895
      %v3924 = vadd.f32 %v3872, %v3895
      %v3925 = vadd.f32 %v3873, %v3895
      %v3926 = vadd.f32 %v3874, %v3895
      %v3927 = vadd.f32 %v3875, %v3895
      %v3928 = vadd.f32 %v3876, %v3895
      %v3929 = vadd.f32 %v3877, %v3895
      %v3930 = vadd.f32 %v3878, %v3895
      %v3931 = vadd.f32 %v3879, %v3895
      %v3932 = vadd.f32 %v3880, %v3895
      %v3933 = vadd.f32 %v3881, %v3895
      %v3934 = vadd.f32 %v3882, %v3895
      %v3935 = vadd.f32 %v3883, %v3895
      %v3936 = vadd.f32 %v3884, %v3895
      %v3937 = vadd.f32 %v3885, %v3895
      %v3938 = vadd.f32 %v3886, %v3895
      %v3939 = vadd.f32 %v3887, %v3895
      %v3940 = vadd.f32 %v3888, %v3895
      %v3941 = vadd.f32 %v3889, %v3895
      %v3942 = vadd.f32 %v3890, %v3895
      %v3943 = vadd.f32 %v3891, %v3895
      %v3944 = vadd.f32 %v3892, %v3895
      %v3945 = vld [vmem:[%s3] sm:$0xff]
      %v3946 = vld [vmem:[%s3 + $0x8] sm:$0xff]
      %v3947 = vld [vmem:[%s3 + $0x10] sm:$0xff]
      %v3948 = vld [vmem:[%s3 + $0x18] sm:$0xff]
      %v3949 = vld [vmem:[%s3 + $0x20] sm:$0xff]
      %v3950 = vld [vmem:[%s3 + $0x28] sm:$0xff]
      %v3957 = vperm.slane %v3945, 0
      %v3958 = vperm.slane %v3945, 1
      %v3959 = vperm.slane %v3945, 2
      %v3960 = vperm.slane %v3945, 3
      %v3961 = vperm.slane %v3945, 4
      %v3962 = vperm.slane %v3945, 5
      %v3963 = vperm.slane %v3945, 6
      %v3964 = vperm.slane %v3945, 7
      %v3965 = vperm.slane %v3946, 0
      %v3966 = vperm.slane %v3946, 1
      %v3967 = vperm.slane %v3946, 2
      %v3968 = vperm.slane %v3946, 3
      %v3969 = vperm.slane %v3946, 4
      %v3970 = vperm.slane %v3946, 5
      %v3971 = vperm.slane %v3946, 6
      %v3972 = vperm.slane %v3946, 7
      %v3973 = vperm.slane %v3947, 0
      %v3974 = vperm.slane %v3947, 1
      %v3975 = vperm.slane %v3947, 2
      %v3976 = vperm.slane %v3947, 3
      %v3977 = vperm.slane %v3947, 4
      %v3978 = vperm.slane %v3947, 5
      %v3979 = vperm.slane %v3947, 6
      %v3980 = vperm.slane %v3947, 7
      %v3981 = vperm.slane %v3948, 0
      %v3982 = vperm.slane %v3948, 1
      %v3983 = vperm.slane %v3948, 2
      %v3984 = vperm.slane %v3948, 3
      %v3985 = vperm.slane %v3948, 4
      %v3986 = vperm.slane %v3948, 5
      %v3987 = vperm.slane %v3948, 6
      %v3988 = vperm.slane %v3948, 7
      %v3989 = vperm.slane %v3949, 0
      %v3990 = vperm.slane %v3949, 1
      %v3991 = vperm.slane %v3949, 2
      %v3992 = vperm.slane %v3949, 3
      %v3993 = vperm.slane %v3949, 4
      %v3994 = vperm.slane %v3949, 5
      %v3995 = vperm.slane %v3949, 6
      %v3996 = vperm.slane %v3949, 7
      %v3997 = vperm.slane %v3950, 0
      %v3998 = vperm.slane %v3950, 1
      %v3999 = vperm.slane %v3950, 2
      %v4000 = vperm.slane %v3950, 3
      %v4001 = vperm.slane %v3950, 4
      %v4002 = vperm.slane %v3950, 5
      %v4003 = vperm.slane %v3950, 6
      %v4004 = vperm.slane %v3950, 7
      %v4053 = vmul.f32 %v3897, %v3957
      %v4054 = vmul.f32 %v3898, %v3958
      %v4055 = vmul.f32 %v3899, %v3959
      %v4056 = vmul.f32 %v3900, %v3960
      %v4057 = vmul.f32 %v3901, %v3961
      %v4058 = vmul.f32 %v3902, %v3962
      %v4059 = vmul.f32 %v3903, %v3963
      %v4060 = vmul.f32 %v3904, %v3964
      %v4061 = vmul.f32 %v3905, %v3965
      %v4062 = vmul.f32 %v3906, %v3966
      %v4063 = vmul.f32 %v3907, %v3967
      %v4064 = vmul.f32 %v3908, %v3968
      %v4065 = vmul.f32 %v3909, %v3969
      %v4066 = vmul.f32 %v3910, %v3970
      %v4067 = vmul.f32 %v3911, %v3971
      %v4068 = vmul.f32 %v3912, %v3972
      %v4069 = vmul.f32 %v3913, %v3973
      %v4070 = vmul.f32 %v3914, %v3974
      %v4071 = vmul.f32 %v3915, %v3975
      %v4072 = vmul.f32 %v3916, %v3976
      %v4073 = vmul.f32 %v3917, %v3977
      %v4074 = vmul.f32 %v3918, %v3978
      %v4075 = vmul.f32 %v3919, %v3979
      %v4076 = vmul.f32 %v3920, %v3980
      %v4077 = vmul.f32 %v3921, %v3981
      %v4078 = vmul.f32 %v3922, %v3982
      %v4079 = vmul.f32 %v3923, %v3983
      %v4080 = vmul.f32 %v3924, %v3984
      %v4081 = vmul.f32 %v3925, %v3985
      %v4082 = vmul.f32 %v3926, %v3986
      %v4083 = vmul.f32 %v3927, %v3987
      %v4084 = vmul.f32 %v3928, %v3988
      %v4085 = vmul.f32 %v3929, %v3989
      %v4086 = vmul.f32 %v3930, %v3990
      %v4087 = vmul.f32 %v3931, %v3991
      %v4088 = vmul.f32 %v3932, %v3992
      %v4089 = vmul.f32 %v3933, %v3993
      %v4090 = vmul.f32 %v3934, %v3994
      %v4091 = vmul.f32 %v3935, %v3995
      %v4092 = vmul.f32 %v3936, %v3996
      %v4093 = vmul.f32 %v3937, %v3997
      %v4094 = vmul.f32 %v3938, %v3998
      %v4095 = vmul.f32 %v3939, %v3999
      %v4096 = vmul.f32 %v3940, %v4000
      %v4097 = vmul.f32 %v3941, %v4001
      %v4098 = vmul.f32 %v3942, %v4002
      %v4099 = vmul.f32 %v3943, %v4003
      %v4100 = vmul.f32 %v3944, %v4004
      %4101 = vst [vmem:[#allocation2] sm:$0xff] %v4053
      %4102 = vst [vmem:[#allocation2 + $0x8] sm:$0xff] %v4054
      %4103 = vst [vmem:[#allocation2 + $0x10] sm:$0xff] %v4055
      %4104 = vst [vmem:[#allocation2 + $0x18] sm:$0xff] %v4056
      %4105 = vst [vmem:[#allocation2 + $0x20] sm:$0xff] %v4057
      %4106 = vst [vmem:[#allocation2 + $0x28] sm:$0xff] %v4058
      %4107 = vst [vmem:[#allocation2 + $0x30] sm:$0xff] %v4059
      %4108 = vst [vmem:[#allocation2 + $0x38] sm:$0xff] %v4060
      %4109 = vst [vmem:[#allocation2 + $0x40] sm:$0xff] %v4061
      %4110 = vst [vmem:[#allocation2 + $0x48] sm:$0xff] %v4062
      %4111 = vst [vmem:[#allocation2 + $0x50] sm:$0xff] %v4063
      %4112 = vst [vmem:[#allocation2 + $0x58] sm:$0xff] %v4064
      %4113 = vst [vmem:[#allocation2 + $0x60] sm:$0xff] %v4065
      %4114 = vst [vmem:[#allocation2 + $0x68] sm:$0xff] %v4066
      %4115 = vst [vmem:[#allocation2 + $0x70] sm:$0xff] %v4067
      %4116 = vst [vmem:[#allocation2 + $0x78] sm:$0xff] %v4068
      %4117 = vst [vmem:[#allocation2 + $0x80] sm:$0xff] %v4069
      %4118 = vst [vmem:[#allocation2 + $0x88] sm:$0xff] %v4070
      %4119 = vst [vmem:[#allocation2 + $0x90] sm:$0xff] %v4071
      %4120 = vst [vmem:[#allocation2 + $0x98] sm:$0xff] %v4072
      %4121 = vst [vmem:[#allocation2 + $0xa0] sm:$0xff] %v4073
      %4122 = vst [vmem:[#allocation2 + $0xa8] sm:$0xff] %v4074
      %4123 = vst [vmem:[#allocation2 + $0xb0] sm:$0xff] %v4075
      %4124 = vst [vmem:[#allocation2 + $0xb8] sm:$0xff] %v4076
      %4125 = vst [vmem:[#allocation2 + $0xc0] sm:$0xff] %v4077
      %4126 = vst [vmem:[#allocation2 + $0xc8] sm:$0xff] %v4078
      %4127 = vst [vmem:[#allocation2 + $0xd0] sm:$0xff] %v4079
      %4128 = vst [vmem:[#allocation2 + $0xd8] sm:$0xff] %v4080
      %4129 = vst [vmem:[#allocation2 + $0xe0] sm:$0xff] %v4081
      %4130 = vst [vmem:[#allocation2 + $0xe8] sm:$0xff] %v4082
      %4131 = vst [vmem:[#allocation2 + $0xf0] sm:$0xff] %v4083
      %4132 = vst [vmem:[#allocation2 + $0xf8] sm:$0xff] %v4084
      %4133 = vst [vmem:[#allocation2 + $0x100] sm:$0xff] %v4085
      %4134 = vst [vmem:[#allocation2 + $0x108] sm:$0xff] %v4086
      %4135 = vst [vmem:[#allocation2 + $0x110] sm:$0xff] %v4087
      %4136 = vst [vmem:[#allocation2 + $0x118] sm:$0xff] %v4088
      %4137 = vst [vmem:[#allocation2 + $0x120] sm:$0xff] %v4089
      %4138 = vst [vmem:[#allocation2 + $0x128] sm:$0xff] %v4090
      %4139 = vst [vmem:[#allocation2 + $0x130] sm:$0xff] %v4091
      %4140 = vst [vmem:[#allocation2 + $0x138] sm:$0xff] %v4092
      %4141 = vst [vmem:[#allocation2 + $0x140] sm:$0xff] %v4093
      %4142 = vst [vmem:[#allocation2 + $0x148] sm:$0xff] %v4094
      %4143 = vst [vmem:[#allocation2 + $0x150] sm:$0xff] %v4095
      %4144 = vst [vmem:[#allocation2 + $0x158] sm:$0xff] %v4096
      %4145 = vst [vmem:[#allocation2 + $0x160] sm:$0xff] %v4097
      %4146 = vst [vmem:[#allocation2 + $0x168] sm:$0xff] %v4098
      %4147 = vst [vmem:[#allocation2 + $0x170] sm:$0xff] %v4099
      %4148 = vst.msk [vmem:[#allocation2 + $0x178] sm:$0xff] %vm355, %v4100
      %v4149 = vld [vmem:[#allocation2] sm:$0xff]
      %v4150 = vld [vmem:[#allocation2 + $0x8] sm:$0xff]
      %v4151 = vld [vmem:[#allocation2 + $0x10] sm:$0xff]
      %v4152 = vld [vmem:[#allocation2 + $0x18] sm:$0xff]
      %v4153 = vld [vmem:[#allocation2 + $0x20] sm:$0xff]
      %v4154 = vld [vmem:[#allocation2 + $0x28] sm:$0xff]
      %v4155 = vld [vmem:[#allocation2 + $0x30] sm:$0xff]
      %v4156 = vld [vmem:[#allocation2 + $0x38] sm:$0xff]
      %v4157 = vld [vmem:[#allocation2 + $0x40] sm:$0xff]
      %v4158 = vld [vmem:[#allocation2 + $0x48] sm:$0xff]
      %v4159 = vld [vmem:[#allocation2 + $0x50] sm:$0xff]
      %v4160 = vld [vmem:[#allocation2 + $0x58] sm:$0xff]
      %v4161 = vld [vmem:[#allocation2 + $0x60] sm:$0xff]
      %v4162 = vld [vmem:[#allocation2 + $0x68] sm:$0xff]
      %v4163 = vld [vmem:[#allocation2 + $0x70] sm:$0xff]
      %v4164 = vld [vmem:[#allocation2 + $0x78] sm:$0xff]
      %v4165 = vld [vmem:[#allocation2 + $0x80] sm:$0xff]
      %v4166 = vld [vmem:[#allocation2 + $0x88] sm:$0xff]
      %v4167 = vld [vmem:[#allocation2 + $0x90] sm:$0xff]
      %v4168 = vld [vmem:[#allocation2 + $0x98] sm:$0xff]
      %v4169 = vld [vmem:[#allocation2 + $0xa0] sm:$0xff]
      %v4170 = vld [vmem:[#allocation2 + $0xa8] sm:$0xff]
      %v4171 = vld [vmem:[#allocation2 + $0xb0] sm:$0xff]
      %v4172 = vld [vmem:[#allocation2 + $0xb8] sm:$0xff]
      %v4173 = vld [vmem:[#allocation2 + $0xc0] sm:$0xff]
      %v4174 = vld [vmem:[#allocation2 + $0xc8] sm:$0xff]
      %v4175 = vld [vmem:[#allocation2 + $0xd0] sm:$0xff]
      %v4176 = vld [vmem:[#allocation2 + $0xd8] sm:$0xff]
      %v4177 = vld [vmem:[#allocation2 + $0xe0] sm:$0xff]
      %v4178 = vld [vmem:[#allocation2 + $0xe8] sm:$0xff]
      %v4179 = vld [vmem:[#allocation2 + $0xf0] sm:$0xff]
      %v4180 = vld [vmem:[#allocation2 + $0xf8] sm:$0xff]
      %v4181 = vld [vmem:[#allocation2 + $0x100] sm:$0xff]
      %v4182 = vld [vmem:[#allocation2 + $0x108] sm:$0xff]
      %v4183 = vld [vmem:[#allocation2 + $0x110] sm:$0xff]
      %v4184 = vld [vmem:[#allocation2 + $0x118] sm:$0xff]
      %v4185 = vld [vmem:[#allocation2 + $0x120] sm:$0xff]
      %v4186 = vld [vmem:[#allocation2 + $0x128] sm:$0xff]
      %v4187 = vld [vmem:[#allocation2 + $0x130] sm:$0xff]
      %v4188 = vld [vmem:[#allocation2 + $0x138] sm:$0xff]
      %v4189 = vld [vmem:[#allocation2 + $0x140] sm:$0xff]
      %v4190 = vld [vmem:[#allocation2 + $0x148] sm:$0xff]
      %v4191 = vld [vmem:[#allocation2 + $0x150] sm:$0xff]
      %v4192 = vld [vmem:[#allocation2 + $0x158] sm:$0xff]
      %v4193 = vld [vmem:[#allocation2 + $0x160] sm:$0xff]
      %v4194 = vld [vmem:[#allocation2 + $0x168] sm:$0xff]
      %v4195 = vld [vmem:[#allocation2 + $0x170] sm:$0xff]
      %v4196 = vld [vmem:[#allocation2 + $0x178] sm:$0xff]
      %v4197 = vld [vmem:[#allocation2 + $0x180] sm:$0xff]
      %4198 = vst [vmem:[#allocation4] sm:$0xff] %v4149
      %4199 = vst [vmem:[#allocation4 + $0x8] sm:$0xff] %v4150
      %4200 = vst [vmem:[#allocation4 + $0x10] sm:$0xff] %v4151
      %4201 = vst [vmem:[#allocation4 + $0x18] sm:$0xff] %v4152
      %4202 = vst [vmem:[#allocation4 + $0x20] sm:$0xff] %v4153
      %4203 = vst [vmem:[#allocation4 + $0x28] sm:$0xff] %v4154
      %4204 = vst [vmem:[#allocation4 + $0x30] sm:$0xff] %v4155
      %4205 = vst [vmem:[#allocation4 + $0x38] sm:$0xff] %v4156
      %4206 = vst [vmem:[#allocation4 + $0x40] sm:$0xff] %v4157
      %4207 = vst [vmem:[#allocation4 + $0x48] sm:$0xff] %v4158
      %4208 = vst [vmem:[#allocation4 + $0x50] sm:$0xff] %v4159
      %4209 = vst [vmem:[#allocation4 + $0x58] sm:$0xff] %v4160
      %4210 = vst [vmem:[#allocation4 + $0x60] sm:$0xff] %v4161
      %4211 = vst [vmem:[#allocation4 + $0x68] sm:$0xff] %v4162
      %4212 = vst [vmem:[#allocation4 + $0x70] sm:$0xff] %v4163
      %4213 = vst [vmem:[#allocation4 + $0x78] sm:$0xff] %v4164
      %4214 = vst [vmem:[#allocation4 + $0x80] sm:$0xff] %v4165
      %4215 = vst [vmem:[#allocation4 + $0x88] sm:$0xff] %v4166
      %4216 = vst [vmem:[#allocation4 + $0x90] sm:$0xff] %v4167
      %4217 = vst [vmem:[#allocation4 + $0x98] sm:$0xff] %v4168
      %4218 = vst [vmem:[#allocation4 + $0xa0] sm:$0xff] %v4169
      %4219 = vst [vmem:[#allocation4 + $0xa8] sm:$0xff] %v4170
      %4220 = vst [vmem:[#allocation4 + $0xb0] sm:$0xff] %v4171
      %4221 = vst [vmem:[#allocation4 + $0xb8] sm:$0xff] %v4172
      %4222 = vst [vmem:[#allocation4 + $0xc0] sm:$0xff] %v4173
      %4223 = vst [vmem:[#allocation4 + $0xc8] sm:$0xff] %v4174
      %4224 = vst [vmem:[#allocation4 + $0xd0] sm:$0xff] %v4175
      %4225 = vst [vmem:[#allocation4 + $0xd8] sm:$0xff] %v4176
      %4226 = vst [vmem:[#allocation4 + $0xe0] sm:$0xff] %v4177
      %4227 = vst [vmem:[#allocation4 + $0xe8] sm:$0xff] %v4178
      %4228 = vst [vmem:[#allocation4 + $0xf0] sm:$0xff] %v4179
      %4229 = vst [vmem:[#allocation4 + $0xf8] sm:$0xff] %v4180
      %4230 = vst [vmem:[#allocation4 + $0x100] sm:$0xff] %v4181
      %4231 = vst [vmem:[#allocation4 + $0x108] sm:$0xff] %v4182
      %4232 = vst [vmem:[#allocation4 + $0x110] sm:$0xff] %v4183
      %4233 = vst [vmem:[#allocation4 + $0x118] sm:$0xff] %v4184
      %4234 = vst [vmem:[#allocation4 + $0x120] sm:$0xff] %v4185
      %4235 = vst [vmem:[#allocation4 + $0x128] sm:$0xff] %v4186
      %4236 = vst [vmem:[#allocation4 + $0x130] sm:$0xff] %v4187
      %4237 = vst [vmem:[#allocation4 + $0x138] sm:$0xff] %v4188
      %4238 = vst [vmem:[#allocation4 + $0x140] sm:$0xff] %v4189
      %4239 = vst [vmem:[#allocation4 + $0x148] sm:$0xff] %v4190
      %4240 = vst [vmem:[#allocation4 + $0x150] sm:$0xff] %v4191
      %4241 = vst [vmem:[#allocation4 + $0x158] sm:$0xff] %v4192
      %4242 = vst [vmem:[#allocation4 + $0x160] sm:$0xff] %v4193
      %4243 = vst [vmem:[#allocation4 + $0x168] sm:$0xff] %v4194
      %4244 = vst [vmem:[#allocation4 + $0x170] sm:$0xff] %v4195
      %4245 = vst [vmem:[#allocation4 + $0x178] sm:$0xff] %v4196
      %4246 = vst [vmem:[#allocation4 + $0x180] sm:$0xff] %v4197
      %v4247 = vld [vmem:[#allocation2] sm:$0xff]
      %v4248 = vld [vmem:[#allocation2 + $0x8] sm:$0xff]
      %v4249 = vld [vmem:[#allocation2 + $0x10] sm:$0xff]
      %v4250 = vld [vmem:[#allocation2 + $0x18] sm:$0xff]
      %v4251 = vld [vmem:[#allocation2 + $0x20] sm:$0xff]
      %v4252 = vld [vmem:[#allocation2 + $0x28] sm:$0xff]
      %v4253 = vld [vmem:[#allocation2 + $0x30] sm:$0xff]
      %v4254 = vld [vmem:[#allocation2 + $0x38] sm:$0xff]
      %v4255 = vld [vmem:[#allocation2 + $0x40] sm:$0xff]
      %v4256 = vld [vmem:[#allocation2 + $0x48] sm:$0xff]
      %v4257 = vld [vmem:[#allocation2 + $0x50] sm:$0xff]
      %v4258 = vld [vmem:[#allocation2 + $0x58] sm:$0xff]
      %v4259 = vld [vmem:[#allocation2 + $0x60] sm:$0xff]
      %v4260 = vld [vmem:[#allocation2 + $0x68] sm:$0xff]
      %v4261 = vld [vmem:[#allocation2 + $0x70] sm:$0xff]
      %v4262 = vld [vmem:[#allocation2 + $0x78] sm:$0xff]
      %v4263 = vld [vmem:[#allocation2 + $0x80] sm:$0xff]
      %v4264 = vld [vmem:[#allocation2 + $0x88] sm:$0xff]
      %v4265 = vld [vmem:[#allocation2 + $0x90] sm:$0xff]
      %v4266 = vld [vmem:[#allocation2 + $0x98] sm:$0xff]
      %v4267 = vld [vmem:[#allocation2 + $0xa0] sm:$0xff]
      %v4268 = vld [vmem:[#allocation2 + $0xa8] sm:$0xff]
      %v4269 = vld [vmem:[#allocation2 + $0xb0] sm:$0xff]
      %v4270 = vld [vmem:[#allocation2 + $0xb8] sm:$0xff]
      %v4271 = vld [vmem:[#allocation2 + $0xc0] sm:$0xff]
      %v4272 = vld [vmem:[#allocation2 + $0xc8] sm:$0xff]
      %v4273 = vld [vmem:[#allocation2 + $0xd0] sm:$0xff]
      %v4274 = vld [vmem:[#allocation2 + $0xd8] sm:$0xff]
      %v4275 = vld [vmem:[#allocation2 + $0xe0] sm:$0xff]
      %v4276 = vld [vmem:[#allocation2 + $0xe8] sm:$0xff]
      %v4277 = vld [vmem:[#allocation2 + $0xf0] sm:$0xff]
      %v4278 = vld [vmem:[#allocation2 + $0xf8] sm:$0xff]
      %v4279 = vld [vmem:[#allocation2 + $0x100] sm:$0xff]
      %v4280 = vld [vmem:[#allocation2 + $0x108] sm:$0xff]
      %v4281 = vld [vmem:[#allocation2 + $0x110] sm:$0xff]
      %v4282 = vld [vmem:[#allocation2 + $0x118] sm:$0xff]
      %v4283 = vld [vmem:[#allocation2 + $0x120] sm:$0xff]
      %v4284 = vld [vmem:[#allocation2 + $0x128] sm:$0xff]
      %v4285 = vld [vmem:[#allocation2 + $0x130] sm:$0xff]
      %v4286 = vld [vmem:[#allocation2 + $0x138] sm:$0xff]
      %v4287 = vld [vmem:[#allocation2 + $0x140] sm:$0xff]
      %v4288 = vld [vmem:[#allocation2 + $0x148] sm:$0xff]
      %v4289 = vld [vmem:[#allocation2 + $0x150] sm:$0xff]
      %v4290 = vld [vmem:[#allocation2 + $0x158] sm:$0xff]
      %v4291 = vld [vmem:[#allocation2 + $0x160] sm:$0xff]
      %v4292 = vld [vmem:[#allocation2 + $0x168] sm:$0xff]
      %v4293 = vld [vmem:[#allocation2 + $0x170] sm:$0xff]
      %v4294 = vld [vmem:[#allocation2 + $0x178] sm:$0xff]
      %v4295 = vld [vmem:[#allocation2 + $0x180] sm:$0xff]
      %v4296 = vld [vmem:[#allocation2 + $0x188] sm:$0xff]
      %4347 = vrot.lane.b32.xlu0 %v4247, 127
      %v4348 = vpop.permute.xlu0 %4347
      %4349 = vrot.lane.b32.xlu0 %v4248, 127
      %v4350 = vpop.permute.xlu0 %4349
      %4351 = vrot.lane.b32.xlu0 %v4249, 127
      %v4352 = vpop.permute.xlu0 %4351
      %4353 = vrot.lane.b32.xlu0 %v4250, 127
      %v4354 = vpop.permute.xlu0 %4353
      %4355 = vrot.lane.b32.xlu0 %v4251, 127
      %v4356 = vpop.permute.xlu0 %4355
      %4357 = vrot.lane.b32.xlu0 %v4252, 127
      %v4358 = vpop.permute.xlu0 %4357
      %4359 = vrot.lane.b32.xlu0 %v4253, 127
      %v4360 = vpop.permute.xlu0 %4359
      %4361 = vrot.lane.b32.xlu0 %v4254, 127
      %v4362 = vpop.permute.xlu0 %4361
      %4363 = vrot.lane.b32.xlu0 %v4255, 127
      %v4364 = vpop.permute.xlu0 %4363
      %4365 = vrot.lane.b32.xlu0 %v4256, 127
      %v4366 = vpop.permute.xlu0 %4365
      %4367 = vrot.lane.b32.xlu0 %v4257, 127
      %v4368 = vpop.permute.xlu0 %4367
      %4369 = vrot.lane.b32.xlu0 %v4258, 127
      %v4370 = vpop.permute.xlu0 %4369
      %4371 = vrot.lane.b32.xlu0 %v4259, 127
      %v4372 = vpop.permute.xlu0 %4371
      %4373 = vrot.lane.b32.xlu0 %v4260, 127
      %v4374 = vpop.permute.xlu0 %4373
      %4375 = vrot.lane.b32.xlu0 %v4261, 127
      %v4376 = vpop.permute.xlu0 %4375
      %4377 = vrot.lane.b32.xlu0 %v4262, 127
      %v4378 = vpop.permute.xlu0 %4377
      %4379 = vrot.lane.b32.xlu0 %v4263, 127
      %v4380 = vpop.permute.xlu0 %4379
      %4381 = vrot.lane.b32.xlu0 %v4264, 127
      %v4382 = vpop.permute.xlu0 %4381
      %4383 = vrot.lane.b32.xlu0 %v4265, 127
      %v4384 = vpop.permute.xlu0 %4383
      %4385 = vrot.lane.b32.xlu0 %v4266, 127
      %v4386 = vpop.permute.xlu0 %4385
      %4387 = vrot.lane.b32.xlu0 %v4267, 127
      %v4388 = vpop.permute.xlu0 %4387
      %4389 = vrot.lane.b32.xlu0 %v4268, 127
      %v4390 = vpop.permute.xlu0 %4389
      %4391 = vrot.lane.b32.xlu0 %v4269, 127
      %v4392 = vpop.permute.xlu0 %4391
      %4393 = vrot.lane.b32.xlu0 %v4270, 127
      %v4394 = vpop.permute.xlu0 %4393
      %4395 = vrot.lane.b32.xlu0 %v4271, 127
      %v4396 = vpop.permute.xlu0 %4395
      %4397 = vrot.lane.b32.xlu0 %v4272, 127
      %v4398 = vpop.permute.xlu0 %4397
      %4399 = vrot.lane.b32.xlu0 %v4273, 127
      %v4400 = vpop.permute.xlu0 %4399
      %4401 = vrot.lane.b32.xlu0 %v4274, 127
      %v4402 = vpop.permute.xlu0 %4401
      %4403 = vrot.lane.b32.xlu0 %v4275, 127
      %v4404 = vpop.permute.xlu0 %4403
      %4405 = vrot.lane.b32.xlu0 %v4276, 127
      %v4406 = vpop.permute.xlu0 %4405
      %4407 = vrot.lane.b32.xlu0 %v4277, 127
      %v4408 = vpop.permute.xlu0 %4407
      %4409 = vrot.lane.b32.xlu0 %v4278, 127
      %v4410 = vpop.permute.xlu0 %4409
      %4411 = vrot.lane.b32.xlu0 %v4279, 127
      %v4412 = vpop.permute.xlu0 %4411
      %4413 = vrot.lane.b32.xlu0 %v4280, 127
      %v4414 = vpop.permute.xlu0 %4413
      %4415 = vrot.lane.b32.xlu0 %v4281, 127
      %v4416 = vpop.permute.xlu0 %4415
      %4417 = vrot.lane.b32.xlu0 %v4282, 127
      %v4418 = vpop.permute.xlu0 %4417
      %4419 = vrot.lane.b32.xlu0 %v4283, 127
      %v4420 = vpop.permute.xlu0 %4419
      %4421 = vrot.lane.b32.xlu0 %v4284, 127
      %v4422 = vpop.permute.xlu0 %4421
      %4423 = vrot.lane.b32.xlu0 %v4285, 127
      %v4424 = vpop.permute.xlu0 %4423
      %4425 = vrot.lane.b32.xlu0 %v4286, 127
      %v4426 = vpop.permute.xlu0 %4425
      %4427 = vrot.lane.b32.xlu0 %v4287, 127
      %v4428 = vpop.permute.xlu0 %4427
      %4429 = vrot.lane.b32.xlu0 %v4288, 127
      %v4430 = vpop.permute.xlu0 %4429
      %4431 = vrot.lane.b32.xlu0 %v4289, 127
      %v4432 = vpop.permute.xlu0 %4431
      %4433 = vrot.lane.b32.xlu0 %v4290, 127
      %v4434 = vpop.permute.xlu0 %4433
      %4435 = vrot.lane.b32.xlu0 %v4291, 127
      %v4436 = vpop.permute.xlu0 %4435
      %4437 = vrot.lane.b32.xlu0 %v4292, 127
      %v4438 = vpop.permute.xlu0 %4437
      %4439 = vrot.lane.b32.xlu0 %v4293, 127
      %v4440 = vpop.permute.xlu0 %4439
      %4441 = vrot.lane.b32.xlu0 %v4294, 127
      %v4442 = vpop.permute.xlu0 %4441
      %4443 = vrot.lane.b32.xlu0 %v4295, 127
      %v4444 = vpop.permute.xlu0 %4443
      %4445 = vrot.lane.b32.xlu0 %v4296, 127
      %v4446 = vpop.permute.xlu0 %4445
      %vm4447 = vcmask 1039360
      %v4448 = vsel %vm4447, %v4348, %v4350
      %v4449 = vsel %vm4447, %v4350, %v4352
      %v4450 = vsel %vm4447, %v4352, %v4354
      %v4451 = vsel %vm4447, %v4354, %v4356
      %v4452 = vsel %vm4447, %v4356, %v4358
      %v4453 = vsel %vm4447, %v4358, %v4360
      %v4454 = vsel %vm4447, %v4360, %v4362
      %v4455 = vsel %vm4447, %v4362, %v4364
      %v4456 = vsel %vm4447, %v4364, %v4366
      %v4457 = vsel %vm4447, %v4366, %v4368
      %v4458 = vsel %vm4447, %v4368, %v4370
      %v4459 = vsel %vm4447, %v4370, %v4372
      %v4460 = vsel %vm4447, %v4372, %v4374
      %v4461 = vsel %vm4447, %v4374, %v4376
      %v4462 = vsel %vm4447, %v4376, %v4378
      %v4463 = vsel %vm4447, %v4378, %v4380
      %v4464 = vsel %vm4447, %v4380, %v4382
      %v4465 = vsel %vm4447, %v4382, %v4384
      %v4466 = vsel %vm4447, %v4384, %v4386
      %v4467 = vsel %vm4447, %v4386, %v4388
      %v4468 = vsel %vm4447, %v4388, %v4390
      %v4469 = vsel %vm4447, %v4390, %v4392
      %v4470 = vsel %vm4447, %v4392, %v4394
      %v4471 = vsel %vm4447, %v4394, %v4396
      %v4472 = vsel %vm4447, %v4396, %v4398
      %v4473 = vsel %vm4447, %v4398, %v4400
      %v4474 = vsel %vm4447, %v4400, %v4402
      %v4475 = vsel %vm4447, %v4402, %v4404
      %v4476 = vsel %vm4447, %v4404, %v4406
      %v4477 = vsel %vm4447, %v4406, %v4408
      %v4478 = vsel %vm4447, %v4408, %v4410
      %v4479 = vsel %vm4447, %v4410, %v4412
      %v4480 = vsel %vm4447, %v4412, %v4414
      %v4481 = vsel %vm4447, %v4414, %v4416
      %v4482 = vsel %vm4447, %v4416, %v4418
      %v4483 = vsel %vm4447, %v4418, %v4420
      %v4484 = vsel %vm4447, %v4420, %v4422
      %v4485 = vsel %vm4447, %v4422, %v4424
      %v4486 = vsel %vm4447, %v4424, %v4426
      %v4487 = vsel %vm4447, %v4426, %v4428
      %v4488 = vsel %vm4447, %v4428, %v4430
      %v4489 = vsel %vm4447, %v4430, %v4432
      %v4490 = vsel %vm4447, %v4432, %v4434
      %v4491 = vsel %vm4447, %v4434, %v4436
      %v4492 = vsel %vm4447, %v4436, %v4438
      %v4493 = vsel %vm4447, %v4438, %v4440
      %v4494 = vsel %vm4447, %v4440, %v4442
      %v4495 = vsel %vm4447, %v4442, %v4444
      %v4496 = vsel %vm4447, %v4444, %v4446
      %4546 = vst [vmem:[#allocation4 + $0x188] sm:$0xff] %v4448
      %4547 = vst [vmem:[#allocation4 + $0x190] sm:$0xff] %v4449
      %4548 = vst [vmem:[#allocation4 + $0x198] sm:$0xff] %v4450
      %4549 = vst [vmem:[#allocation4 + $0x1a0] sm:$0xff] %v4451
      %4550 = vst [vmem:[#allocation4 + $0x1a8] sm:$0xff] %v4452
      %4551 = vst [vmem:[#allocation4 + $0x1b0] sm:$0xff] %v4453
      %4552 = vst [vmem:[#allocation4 + $0x1b8] sm:$0xff] %v4454
      %4553 = vst [vmem:[#allocation4 + $0x1c0] sm:$0xff] %v4455
      %4554 = vst [vmem:[#allocation4 + $0x1c8] sm:$0xff] %v4456
      %4555 = vst [vmem:[#allocation4 + $0x1d0] sm:$0xff] %v4457
      %4556 = vst [vmem:[#allocation4 + $0x1d8] sm:$0xff] %v4458
      %4557 = vst [vmem:[#allocation4 + $0x1e0] sm:$0xff] %v4459
      %4558 = vst [vmem:[#allocation4 + $0x1e8] sm:$0xff] %v4460
      %4559 = vst [vmem:[#allocation4 + $0x1f0] sm:$0xff] %v4461
      %4560 = vst [vmem:[#allocation4 + $0x1f8] sm:$0xff] %v4462
      %4561 = vst [vmem:[#allocation4 + $0x200] sm:$0xff] %v4463
      %4562 = vst [vmem:[#allocation4 + $0x208] sm:$0xff] %v4464
      %4563 = vst [vmem:[#allocation4 + $0x210] sm:$0xff] %v4465
      %4564 = vst [vmem:[#allocation4 + $0x218] sm:$0xff] %v4466
      %4565 = vst [vmem:[#allocation4 + $0x220] sm:$0xff] %v4467
      %4566 = vst [vmem:[#allocation4 + $0x228] sm:$0xff] %v4468
      %4567 = vst [vmem:[#allocation4 + $0x230] sm:$0xff] %v4469
      %4568 = vst [vmem:[#allocation4 + $0x238] sm:$0xff] %v4470
      %4569 = vst [vmem:[#allocation4 + $0x240] sm:$0xff] %v4471
      %4570 = vst [vmem:[#allocation4 + $0x248] sm:$0xff] %v4472
      %4571 = vst [vmem:[#allocation4 + $0x250] sm:$0xff] %v4473
      %4572 = vst [vmem:[#allocation4 + $0x258] sm:$0xff] %v4474
      %4573 = vst [vmem:[#allocation4 + $0x260] sm:$0xff] %v4475
      %4574 = vst [vmem:[#allocation4 + $0x268] sm:$0xff] %v4476
      %4575 = vst [vmem:[#allocation4 + $0x270] sm:$0xff] %v4477
      %4576 = vst [vmem:[#allocation4 + $0x278] sm:$0xff] %v4478
      %4577 = vst [vmem:[#allocation4 + $0x280] sm:$0xff] %v4479
      %4578 = vst [vmem:[#allocation4 + $0x288] sm:$0xff] %v4480
      %4579 = vst [vmem:[#allocation4 + $0x290] sm:$0xff] %v4481
      %4580 = vst [vmem:[#allocation4 + $0x298] sm:$0xff] %v4482
      %4581 = vst [vmem:[#allocation4 + $0x2a0] sm:$0xff] %v4483
      %4582 = vst [vmem:[#allocation4 + $0x2a8] sm:$0xff] %v4484
      %4583 = vst [vmem:[#allocation4 + $0x2b0] sm:$0xff] %v4485
      %4584 = vst [vmem:[#allocation4 + $0x2b8] sm:$0xff] %v4486
      %4585 = vst [vmem:[#allocation4 + $0x2c0] sm:$0xff] %v4487
      %4586 = vst [vmem:[#allocation4 + $0x2c8] sm:$0xff] %v4488
      %4587 = vst [vmem:[#allocation4 + $0x2d0] sm:$0xff] %v4489
      %4588 = vst [vmem:[#allocation4 + $0x2d8] sm:$0xff] %v4490
      %4589 = vst [vmem:[#allocation4 + $0x2e0] sm:$0xff] %v4491
      %4590 = vst [vmem:[#allocation4 + $0x2e8] sm:$0xff] %v4492
      %4591 = vst [vmem:[#allocation4 + $0x2f0] sm:$0xff] %v4493
      %4592 = vst [vmem:[#allocation4 + $0x2f8] sm:$0xff] %v4494
      %4593 = vst [vmem:[#allocation4 + $0x300] sm:$0xff] %v4495
      %4594 = vst [vmem:[#allocation4 + $0x308] sm:$0xff] %v4496
      %v4595 = vld [vmem:[#allocation2] sm:$0xff]
      %v4596 = vld [vmem:[#allocation2 + $0x8] sm:$0xff]
      %v4597 = vld [vmem:[#allocation2 + $0x10] sm:$0xff]
      %v4598 = vld [vmem:[#allocation2 + $0x18] sm:$0xff]
      %v4599 = vld [vmem:[#allocation2 + $0x20] sm:$0xff]
      %v4600 = vld [vmem:[#allocation2 + $0x28] sm:$0xff]
      %v4601 = vld [vmem:[#allocation2 + $0x30] sm:$0xff]
      %v4602 = vld [vmem:[#allocation2 + $0x38] sm:$0xff]
      %v4603 = vld [vmem:[#allocation2 + $0x40] sm:$0xff]
      %v4604 = vld [vmem:[#allocation2 + $0x48] sm:$0xff]
      %v4605 = vld [vmem:[#allocation2 + $0x50] sm:$0xff]
      %v4606 = vld [vmem:[#allocation2 + $0x58] sm:$0xff]
      %v4607 = vld [vmem:[#allocation2 + $0x60] sm:$0xff]
      %v4608 = vld [vmem:[#allocation2 + $0x68] sm:$0xff]
      %v4609 = vld [vmem:[#allocation2 + $0x70] sm:$0xff]
      %v4610 = vld [vmem:[#allocation2 + $0x78] sm:$0xff]
      %v4611 = vld [vmem:[#allocation2 + $0x80] sm:$0xff]
      %v4612 = vld [vmem:[#allocation2 + $0x88] sm:$0xff]
      %v4613 = vld [vmem:[#allocation2 + $0x90] sm:$0xff]
      %v4614 = vld [vmem:[#allocation2 + $0x98] sm:$0xff]
      %v4615 = vld [vmem:[#allocation2 + $0xa0] sm:$0xff]
      %v4616 = vld [vmem:[#allocation2 + $0xa8] sm:$0xff]
      %v4617 = vld [vmem:[#allocation2 + $0xb0] sm:$0xff]
      %v4618 = vld [vmem:[#allocation2 + $0xb8] sm:$0xff]
      %v4619 = vld [vmem:[#allocation2 + $0xc0] sm:$0xff]
      %v4620 = vld [vmem:[#allocation2 + $0xc8] sm:$0xff]
      %v4621 = vld [vmem:[#allocation2 + $0xd0] sm:$0xff]
      %v4622 = vld [vmem:[#allocation2 + $0xd8] sm:$0xff]
      %v4623 = vld [vmem:[#allocation2 + $0xe0] sm:$0xff]
      %v4624 = vld [vmem:[#allocation2 + $0xe8] sm:$0xff]
      %v4625 = vld [vmem:[#allocation2 + $0xf0] sm:$0xff]
      %v4626 = vld [vmem:[#allocation2 + $0xf8] sm:$0xff]
      %v4627 = vld [vmem:[#allocation2 + $0x100] sm:$0xff]
      %v4628 = vld [vmem:[#allocation2 + $0x108] sm:$0xff]
      %v4629 = vld [vmem:[#allocation2 + $0x110] sm:$0xff]
      %v4630 = vld [vmem:[#allocation2 + $0x118] sm:$0xff]
      %v4631 = vld [vmem:[#allocation2 + $0x120] sm:$0xff]
      %v4632 = vld [vmem:[#allocation2 + $0x128] sm:$0xff]
      %v4633 = vld [vmem:[#allocation2 + $0x130] sm:$0xff]
      %v4634 = vld [vmem:[#allocation2 + $0x138] sm:$0xff]
      %v4635 = vld [vmem:[#allocation2 + $0x140] sm:$0xff]
      %v4636 = vld [vmem:[#allocation2 + $0x148] sm:$0xff]
      %v4637 = vld [vmem:[#allocation2 + $0x150] sm:$0xff]
      %v4638 = vld [vmem:[#allocation2 + $0x158] sm:$0xff]
      %v4639 = vld [vmem:[#allocation2 + $0x160] sm:$0xff]
      %v4640 = vld [vmem:[#allocation2 + $0x168] sm:$0xff]
      %v4641 = vld [vmem:[#allocation2 + $0x170] sm:$0xff]
      %v4642 = vld [vmem:[#allocation2 + $0x178] sm:$0xff]
      %v4643 = vld [vmem:[#allocation2 + $0x180] sm:$0xff]
      %v4644 = vld [vmem:[#allocation2 + $0x188] sm:$0xff]
      %4695 = vrot.lane.b32.xlu0 %v4595, 126
      %v4696 = vpop.permute.xlu0 %4695
      %4697 = vrot.lane.b32.xlu0 %v4596, 126
      %v4698 = vpop.permute.xlu0 %4697
      %4699 = vrot.lane.b32.xlu0 %v4597, 126
      %v4700 = vpop.permute.xlu0 %4699
      %4701 = vrot.lane.b32.xlu0 %v4598, 126
      %v4702 = vpop.permute.xlu0 %4701
      %4703 = vrot.lane.b32.xlu0 %v4599, 126
      %v4704 = vpop.permute.xlu0 %4703
      %4705 = vrot.lane.b32.xlu0 %v4600, 126
      %v4706 = vpop.permute.xlu0 %4705
      %4707 = vrot.lane.b32.xlu0 %v4601, 126
      %v4708 = vpop.permute.xlu0 %4707
      %4709 = vrot.lane.b32.xlu0 %v4602, 126
      %v4710 = vpop.permute.xlu0 %4709
      %4711 = vrot.lane.b32.xlu0 %v4603, 126
      %v4712 = vpop.permute.xlu0 %4711
      %4713 = vrot.lane.b32.xlu0 %v4604, 126
      %v4714 = vpop.permute.xlu0 %4713
      %4715 = vrot.lane.b32.xlu0 %v4605, 126
      %v4716 = vpop.permute.xlu0 %4715
      %4717 = vrot.lane.b32.xlu0 %v4606, 126
      %v4718 = vpop.permute.xlu0 %4717
      %4719 = vrot.lane.b32.xlu0 %v4607, 126
      %v4720 = vpop.permute.xlu0 %4719
      %4721 = vrot.lane.b32.xlu0 %v4608, 126
      %v4722 = vpop.permute.xlu0 %4721
      %4723 = vrot.lane.b32.xlu0 %v4609, 126
      %v4724 = vpop.permute.xlu0 %4723
      %4725 = vrot.lane.b32.xlu0 %v4610, 126
      %v4726 = vpop.permute.xlu0 %4725
      %4727 = vrot.lane.b32.xlu0 %v4611, 126
      %v4728 = vpop.permute.xlu0 %4727
      %4729 = vrot.lane.b32.xlu0 %v4612, 126
      %v4730 = vpop.permute.xlu0 %4729
      %4731 = vrot.lane.b32.xlu0 %v4613, 126
      %v4732 = vpop.permute.xlu0 %4731
      %4733 = vrot.lane.b32.xlu0 %v4614, 126
      %v4734 = vpop.permute.xlu0 %4733
      %4735 = vrot.lane.b32.xlu0 %v4615, 126
      %v4736 = vpop.permute.xlu0 %4735
      %4737 = vrot.lane.b32.xlu0 %v4616, 126
      %v4738 = vpop.permute.xlu0 %4737
      %4739 = vrot.lane.b32.xlu0 %v4617, 126
      %v4740 = vpop.permute.xlu0 %4739
      %4741 = vrot.lane.b32.xlu0 %v4618, 126
      %v4742 = vpop.permute.xlu0 %4741
      %4743 = vrot.lane.b32.xlu0 %v4619, 126
      %v4744 = vpop.permute.xlu0 %4743
      %4745 = vrot.lane.b32.xlu0 %v4620, 126
      %v4746 = vpop.permute.xlu0 %4745
      %4747 = vrot.lane.b32.xlu0 %v4621, 126
      %v4748 = vpop.permute.xlu0 %4747
      %4749 = vrot.lane.b32.xlu0 %v4622, 126
      %v4750 = vpop.permute.xlu0 %4749
      %4751 = vrot.lane.b32.xlu0 %v4623, 126
      %v4752 = vpop.permute.xlu0 %4751
      %4753 = vrot.lane.b32.xlu0 %v4624, 126
      %v4754 = vpop.permute.xlu0 %4753
      %4755 = vrot.lane.b32.xlu0 %v4625, 126
      %v4756 = vpop.permute.xlu0 %4755
      %4757 = vrot.lane.b32.xlu0 %v4626, 126
      %v4758 = vpop.permute.xlu0 %4757
      %4759 = vrot.lane.b32.xlu0 %v4627, 126
      %v4760 = vpop.permute.xlu0 %4759
      %4761 = vrot.lane.b32.xlu0 %v4628, 126
      %v4762 = vpop.permute.xlu0 %4761
      %4763 = vrot.lane.b32.xlu0 %v4629, 126
      %v4764 = vpop.permute.xlu0 %4763
      %4765 = vrot.lane.b32.xlu0 %v4630, 126
      %v4766 = vpop.permute.xlu0 %4765
      %4767 = vrot.lane.b32.xlu0 %v4631, 126
      %v4768 = vpop.permute.xlu0 %4767
      %4769 = vrot.lane.b32.xlu0 %v4632, 126
      %v4770 = vpop.permute.xlu0 %4769
      %4771 = vrot.lane.b32.xlu0 %v4633, 126
      %v4772 = vpop.permute.xlu0 %4771
      %4773 = vrot.lane.b32.xlu0 %v4634, 126
      %v4774 = vpop.permute.xlu0 %4773
      %4775 = vrot.lane.b32.xlu0 %v4635, 126
      %v4776 = vpop.permute.xlu0 %4775
      %4777 = vrot.lane.b32.xlu0 %v4636, 126
      %v4778 = vpop.permute.xlu0 %4777
      %4779 = vrot.lane.b32.xlu0 %v4637, 126
      %v4780 = vpop.permute.xlu0 %4779
      %4781 = vrot.lane.b32.xlu0 %v4638, 126
      %v4782 = vpop.permute.xlu0 %4781
      %4783 = vrot.lane.b32.xlu0 %v4639, 126
      %v4784 = vpop.permute.xlu0 %4783
      %4785 = vrot.lane.b32.xlu0 %v4640, 126
      %v4786 = vpop.permute.xlu0 %4785
      %4787 = vrot.lane.b32.xlu0 %v4641, 126
      %v4788 = vpop.permute.xlu0 %4787
      %4789 = vrot.lane.b32.xlu0 %v4642, 126
      %v4790 = vpop.permute.xlu0 %4789
      %4791 = vrot.lane.b32.xlu0 %v4643, 126
      %v4792 = vpop.permute.xlu0 %4791
      %4793 = vrot.lane.b32.xlu0 %v4644, 126
      %v4794 = vpop.permute.xlu0 %4793
      %vm4795 = vcmask 1031168
      %v4796 = vsel %vm4795, %v4696, %v4698
      %v4797 = vsel %vm4795, %v4698, %v4700
      %v4798 = vsel %vm4795, %v4700, %v4702
      %v4799 = vsel %vm4795, %v4702, %v4704
      %v4800 = vsel %vm4795, %v4704, %v4706
      %v4801 = vsel %vm4795, %v4706, %v4708
      %v4802 = vsel %vm4795, %v4708, %v4710
      %v4803 = vsel %vm4795, %v4710, %v4712
      %v4804 = vsel %vm4795, %v4712, %v4714
      %v4805 = vsel %vm4795, %v4714, %v4716
      %v4806 = vsel %vm4795, %v4716, %v4718
      %v4807 = vsel %vm4795, %v4718, %v4720
      %v4808 = vsel %vm4795, %v4720, %v4722
      %v4809 = vsel %vm4795, %v4722, %v4724
      %v4810 = vsel %vm4795, %v4724, %v4726
      %v4811 = vsel %vm4795, %v4726, %v4728
      %v4812 = vsel %vm4795, %v4728, %v4730
      %v4813 = vsel %vm4795, %v4730, %v4732
      %v4814 = vsel %vm4795, %v4732, %v4734
      %v4815 = vsel %vm4795, %v4734, %v4736
      %v4816 = vsel %vm4795, %v4736, %v4738
      %v4817 = vsel %vm4795, %v4738, %v4740
      %v4818 = vsel %vm4795, %v4740, %v4742
      %v4819 = vsel %vm4795, %v4742, %v4744
      %v4820 = vsel %vm4795, %v4744, %v4746
      %v4821 = vsel %vm4795, %v4746, %v4748
      %v4822 = vsel %vm4795, %v4748, %v4750
      %v4823 = vsel %vm4795, %v4750, %v4752
      %v4824 = vsel %vm4795, %v4752, %v4754
      %v4825 = vsel %vm4795, %v4754, %v4756
      %v4826 = vsel %vm4795, %v4756, %v4758
      %v4827 = vsel %vm4795, %v4758, %v4760
      %v4828 = vsel %vm4795, %v4760, %v4762
      %v4829 = vsel %vm4795, %v4762, %v4764
      %v4830 = vsel %vm4795, %v4764, %v4766
      %v4831 = vsel %vm4795, %v4766, %v4768
      %v4832 = vsel %vm4795, %v4768, %v4770
      %v4833 = vsel %vm4795, %v4770, %v4772
      %v4834 = vsel %vm4795, %v4772, %v4774
      %v4835 = vsel %vm4795, %v4774, %v4776
      %v4836 = vsel %vm4795, %v4776, %v4778
      %v4837 = vsel %vm4795, %v4778, %v4780
      %v4838 = vsel %vm4795, %v4780, %v4782
      %v4839 = vsel %vm4795, %v4782, %v4784
      %v4840 = vsel %vm4795, %v4784, %v4786
      %v4841 = vsel %vm4795, %v4786, %v4788
      %v4842 = vsel %vm4795, %v4788, %v4790
      %v4843 = vsel %vm4795, %v4790, %v4792
      %v4844 = vsel %vm4795, %v4792, %v4794
      %4894 = vst [vmem:[#allocation4 + $0x310] sm:$0xff] %v4796
      %4895 = vst [vmem:[#allocation4 + $0x318] sm:$0xff] %v4797
      %4896 = vst [vmem:[#allocation4 + $0x320] sm:$0xff] %v4798
      %4897 = vst [vmem:[#allocation4 + $0x328] sm:$0xff] %v4799
      %4898 = vst [vmem:[#allocation4 + $0x330] sm:$0xff] %v4800
      %4899 = vst [vmem:[#allocation4 + $0x338] sm:$0xff] %v4801
      %4900 = vst [vmem:[#allocation4 + $0x340] sm:$0xff] %v4802
      %4901 = vst [vmem:[#allocation4 + $0x348] sm:$0xff] %v4803
      %4902 = vst [vmem:[#allocation4 + $0x350] sm:$0xff] %v4804
      %4903 = vst [vmem:[#allocation4 + $0x358] sm:$0xff] %v4805
      %4904 = vst [vmem:[#allocation4 + $0x360] sm:$0xff] %v4806
      %4905 = vst [vmem:[#allocation4 + $0x368] sm:$0xff] %v4807
      %4906 = vst [vmem:[#allocation4 + $0x370] sm:$0xff] %v4808
      %4907 = vst [vmem:[#allocation4 + $0x378] sm:$0xff] %v4809
      %4908 = vst [vmem:[#allocation4 + $0x380] sm:$0xff] %v4810
      %4909 = vst [vmem:[#allocation4 + $0x388] sm:$0xff] %v4811
      %4910 = vst [vmem:[#allocation4 + $0x390] sm:$0xff] %v4812
      %4911 = vst [vmem:[#allocation4 + $0x398] sm:$0xff] %v4813
      %4912 = vst [vmem:[#allocation4 + $0x3a0] sm:$0xff] %v4814
      %4913 = vst [vmem:[#allocation4 + $0x3a8] sm:$0xff] %v4815
      %4914 = vst [vmem:[#allocation4 + $0x3b0] sm:$0xff] %v4816
      %4915 = vst [vmem:[#allocation4 + $0x3b8] sm:$0xff] %v4817
      %4916 = vst [vmem:[#allocation4 + $0x3c0] sm:$0xff] %v4818
      %4917 = vst [vmem:[#allocation4 + $0x3c8] sm:$0xff] %v4819
      %4918 = vst [vmem:[#allocation4 + $0x3d0] sm:$0xff] %v4820
      %4919 = vst [vmem:[#allocation4 + $0x3d8] sm:$0xff] %v4821
      %4920 = vst [vmem:[#allocation4 + $0x3e0] sm:$0xff] %v4822
      %4921 = vst [vmem:[#allocation4 + $0x3e8] sm:$0xff] %v4823
      %4922 = vst [vmem:[#allocation4 + $0x3f0] sm:$0xff] %v4824
      %4923 = vst [vmem:[#allocation4 + $0x3f8] sm:$0xff] %v4825
      %4924 = vst [vmem:[#allocation4 + $0x400] sm:$0xff] %v4826
      %4925 = vst [vmem:[#allocation4 + $0x408] sm:$0xff] %v4827
      %4926 = vst [vmem:[#allocation4 + $0x410] sm:$0xff] %v4828
      %4927 = vst [vmem:[#allocation4 + $0x418] sm:$0xff] %v4829
      %4928 = vst [vmem:[#allocation4 + $0x420] sm:$0xff] %v4830
      %4929 = vst [vmem:[#allocation4 + $0x428] sm:$0xff] %v4831
      %4930 = vst [vmem:[#allocation4 + $0x430] sm:$0xff] %v4832
      %4931 = vst [vmem:[#allocation4 + $0x438] sm:$0xff] %v4833
      %4932 = vst [vmem:[#allocation4 + $0x440] sm:$0xff] %v4834
      %4933 = vst [vmem:[#allocation4 + $0x448] sm:$0xff] %v4835
      %4934 = vst [vmem:[#allocation4 + $0x450] sm:$0xff] %v4836
      %4935 = vst [vmem:[#allocation4 + $0x458] sm:$0xff] %v4837
      %4936 = vst [vmem:[#allocation4 + $0x460] sm:$0xff] %v4838
      %4937 = vst [vmem:[#allocation4 + $0x468] sm:$0xff] %v4839
      %4938 = vst [vmem:[#allocation4 + $0x470] sm:$0xff] %v4840
      %4939 = vst [vmem:[#allocation4 + $0x478] sm:$0xff] %v4841
      %4940 = vst [vmem:[#allocation4 + $0x480] sm:$0xff] %v4842
      %4941 = vst [vmem:[#allocation4 + $0x488] sm:$0xff] %v4843
      %4942 = vst [vmem:[#allocation4 + $0x490] sm:$0xff] %v4844
      %v4943 = vld [vmem:[#allocation2] sm:$0xff]
      %v4944 = vld [vmem:[#allocation2 + $0x8] sm:$0xff]
      %v4945 = vld [vmem:[#allocation2 + $0x10] sm:$0xff]
      %v4946 = vld [vmem:[#allocation2 + $0x18] sm:$0xff]
      %v4947 = vld [vmem:[#allocation2 + $0x20] sm:$0xff]
      %v4948 = vld [vmem:[#allocation2 + $0x28] sm:$0xff]
      %v4949 = vld [vmem:[#allocation2 + $0x30] sm:$0xff]
      %v4950 = vld [vmem:[#allocation2 + $0x38] sm:$0xff]
      %v4951 = vld [vmem:[#allocation2 + $0x40] sm:$0xff]
      %v4952 = vld [vmem:[#allocation2 + $0x48] sm:$0xff]
      %v4953 = vld [vmem:[#allocation2 + $0x50] sm:$0xff]
      %v4954 = vld [vmem:[#allocation2 + $0x58] sm:$0xff]
      %v4955 = vld [vmem:[#allocation2 + $0x60] sm:$0xff]
      %v4956 = vld [vmem:[#allocation2 + $0x68] sm:$0xff]
      %v4957 = vld [vmem:[#allocation2 + $0x70] sm:$0xff]
      %v4958 = vld [vmem:[#allocation2 + $0x78] sm:$0xff]
      %v4959 = vld [vmem:[#allocation2 + $0x80] sm:$0xff]
      %v4960 = vld [vmem:[#allocation2 + $0x88] sm:$0xff]
      %v4961 = vld [vmem:[#allocation2 + $0x90] sm:$0xff]
      %v4962 = vld [vmem:[#allocation2 + $0x98] sm:$0xff]
      %v4963 = vld [vmem:[#allocation2 + $0xa0] sm:$0xff]
      %v4964 = vld [vmem:[#allocation2 + $0xa8] sm:$0xff]
      %v4965 = vld [vmem:[#allocation2 + $0xb0] sm:$0xff]
      %v4966 = vld [vmem:[#allocation2 + $0xb8] sm:$0xff]
      %v4967 = vld [vmem:[#allocation2 + $0xc0] sm:$0xff]
      %v4968 = vld [vmem:[#allocation2 + $0xc8] sm:$0xff]
      %v4969 = vld [vmem:[#allocation2 + $0xd0] sm:$0xff]
      %v4970 = vld [vmem:[#allocation2 + $0xd8] sm:$0xff]
      %v4971 = vld [vmem:[#allocation2 + $0xe0] sm:$0xff]
      %v4972 = vld [vmem:[#allocation2 + $0xe8] sm:$0xff]
      %v4973 = vld [vmem:[#allocation2 + $0xf0] sm:$0xff]
      %v4974 = vld [vmem:[#allocation2 + $0xf8] sm:$0xff]
      %v4975 = vld [vmem:[#allocation2 + $0x100] sm:$0xff]
      %v4976 = vld [vmem:[#allocation2 + $0x108] sm:$0xff]
      %v4977 = vld [vmem:[#allocation2 + $0x110] sm:$0xff]
      %v4978 = vld [vmem:[#allocation2 + $0x118] sm:$0xff]
      %v4979 = vld [vmem:[#allocation2 + $0x120] sm:$0xff]
      %v4980 = vld [vmem:[#allocation2 + $0x128] sm:$0xff]
      %v4981 = vld [vmem:[#allocation2 + $0x130] sm:$0xff]
      %v4982 = vld [vmem:[#allocation2 + $0x138] sm:$0xff]
      %v4983 = vld [vmem:[#allocation2 + $0x140] sm:$0xff]
      %v4984 = vld [vmem:[#allocation2 + $0x148] sm:$0xff]
      %v4985 = vld [vmem:[#allocation2 + $0x150] sm:$0xff]
      %v4986 = vld [vmem:[#allocation2 + $0x158] sm:$0xff]
      %v4987 = vld [vmem:[#allocation2 + $0x160] sm:$0xff]
      %v4988 = vld [vmem:[#allocation2 + $0x168] sm:$0xff]
      %v4989 = vld [vmem:[#allocation2 + $0x170] sm:$0xff]
      %v4990 = vld [vmem:[#allocation2 + $0x178] sm:$0xff]
      %v4991 = vld [vmem:[#allocation2 + $0x180] sm:$0xff]
      %v4992 = vld [vmem:[#allocation2 + $0x188] sm:$0xff]
      %5043 = vrot.lane.b32.xlu0 %v4943, 125
      %v5044 = vpop.permute.xlu0 %5043
      %5045 = vrot.lane.b32.xlu0 %v4944, 125
      %v5046 = vpop.permute.xlu0 %5045
      %5047 = vrot.lane.b32.xlu0 %v4945, 125
      %v5048 = vpop.permute.xlu0 %5047
      %5049 = vrot.lane.b32.xlu0 %v4946, 125
      %v5050 = vpop.permute.xlu0 %5049
      %5051 = vrot.lane.b32.xlu0 %v4947, 125
      %v5052 = vpop.permute.xlu0 %5051
      %5053 = vrot.lane.b32.xlu0 %v4948, 125
      %v5054 = vpop.permute.xlu0 %5053
      %5055 = vrot.lane.b32.xlu0 %v4949, 125
      %v5056 = vpop.permute.xlu0 %5055
      %5057 = vrot.lane.b32.xlu0 %v4950, 125
      %v5058 = vpop.permute.xlu0 %5057
      %5059 = vrot.lane.b32.xlu0 %v4951, 125
      %v5060 = vpop.permute.xlu0 %5059
      %5061 = vrot.lane.b32.xlu0 %v4952, 125
      %v5062 = vpop.permute.xlu0 %5061
      %5063 = vrot.lane.b32.xlu0 %v4953, 125
      %v5064 = vpop.permute.xlu0 %5063
      %5065 = vrot.lane.b32.xlu0 %v4954, 125
      %v5066 = vpop.permute.xlu0 %5065
      %5067 = vrot.lane.b32.xlu0 %v4955, 125
      %v5068 = vpop.permute.xlu0 %5067
      %5069 = vrot.lane.b32.xlu0 %v4956, 125
      %v5070 = vpop.permute.xlu0 %5069
      %5071 = vrot.lane.b32.xlu0 %v4957, 125
      %v5072 = vpop.permute.xlu0 %5071
      %5073 = vrot.lane.b32.xlu0 %v4958, 125
      %v5074 = vpop.permute.xlu0 %5073
      %5075 = vrot.lane.b32.xlu0 %v4959, 125
      %v5076 = vpop.permute.xlu0 %5075
      %5077 = vrot.lane.b32.xlu0 %v4960, 125
      %v5078 = vpop.permute.xlu0 %5077
      %5079 = vrot.lane.b32.xlu0 %v4961, 125
      %v5080 = vpop.permute.xlu0 %5079
      %5081 = vrot.lane.b32.xlu0 %v4962, 125
      %v5082 = vpop.permute.xlu0 %5081
      %5083 = vrot.lane.b32.xlu0 %v4963, 125
      %v5084 = vpop.permute.xlu0 %5083
      %5085 = vrot.lane.b32.xlu0 %v4964, 125
      %v5086 = vpop.permute.xlu0 %5085
      %5087 = vrot.lane.b32.xlu0 %v4965, 125
      %v5088 = vpop.permute.xlu0 %5087
      %5089 = vrot.lane.b32.xlu0 %v4966, 125
      %v5090 = vpop.permute.xlu0 %5089
      %5091 = vrot.lane.b32.xlu0 %v4967, 125
      %v5092 = vpop.permute.xlu0 %5091
      %5093 = vrot.lane.b32.xlu0 %v4968, 125
      %v5094 = vpop.permute.xlu0 %5093
      %5095 = vrot.lane.b32.xlu0 %v4969, 125
      %v5096 = vpop.permute.xlu0 %5095
      %5097 = vrot.lane.b32.xlu0 %v4970, 125
      %v5098 = vpop.permute.xlu0 %5097
      %5099 = vrot.lane.b32.xlu0 %v4971, 125
      %v5100 = vpop.permute.xlu0 %5099
      %5101 = vrot.lane.b32.xlu0 %v4972, 125
      %v5102 = vpop.permute.xlu0 %5101
      %5103 = vrot.lane.b32.xlu0 %v4973, 125
      %v5104 = vpop.permute.xlu0 %5103
      %5105 = vrot.lane.b32.xlu0 %v4974, 125
      %v5106 = vpop.permute.xlu0 %5105
      %5107 = vrot.lane.b32.xlu0 %v4975, 125
      %v5108 = vpop.permute.xlu0 %5107
      %5109 = vrot.lane.b32.xlu0 %v4976, 125
      %v5110 = vpop.permute.xlu0 %5109
      %5111 = vrot.lane.b32.xlu0 %v4977, 125
      %v5112 = vpop.permute.xlu0 %5111
      %5113 = vrot.lane.b32.xlu0 %v4978, 125
      %v5114 = vpop.permute.xlu0 %5113
      %5115 = vrot.lane.b32.xlu0 %v4979, 125
      %v5116 = vpop.permute.xlu0 %5115
      %5117 = vrot.lane.b32.xlu0 %v4980, 125
      %v5118 = vpop.permute.xlu0 %5117
      %5119 = vrot.lane.b32.xlu0 %v4981, 125
      %v5120 = vpop.permute.xlu0 %5119
      %5121 = vrot.lane.b32.xlu0 %v4982, 125
      %v5122 = vpop.permute.xlu0 %5121
      %5123 = vrot.lane.b32.xlu0 %v4983, 125
      %v5124 = vpop.permute.xlu0 %5123
      %5125 = vrot.lane.b32.xlu0 %v4984, 125
      %v5126 = vpop.permute.xlu0 %5125
      %5127 = vrot.lane.b32.xlu0 %v4985, 125
      %v5128 = vpop.permute.xlu0 %5127
      %5129 = vrot.lane.b32.xlu0 %v4986, 125
      %v5130 = vpop.permute.xlu0 %5129
      %5131 = vrot.lane.b32.xlu0 %v4987, 125
      %v5132 = vpop.permute.xlu0 %5131
      %5133 = vrot.lane.b32.xlu0 %v4988, 125
      %v5134 = vpop.permute.xlu0 %5133
      %5135 = vrot.lane.b32.xlu0 %v4989, 125
      %v5136 = vpop.permute.xlu0 %5135
      %5137 = vrot.lane.b32.xlu0 %v4990, 125
      %v5138 = vpop.permute.xlu0 %5137
      %5139 = vrot.lane.b32.xlu0 %v4991, 125
      %v5140 = vpop.permute.xlu0 %5139
      %5141 = vrot.lane.b32.xlu0 %v4992, 125
      %v5142 = vpop.permute.xlu0 %5141
      %vm5143 = vcmask 1022976
      %v5144 = vsel %vm5143, %v5044, %v5046
      %v5145 = vsel %vm5143, %v5046, %v5048
      %v5146 = vsel %vm5143, %v5048, %v5050
      %v5147 = vsel %vm5143, %v5050, %v5052
      %v5148 = vsel %vm5143, %v5052, %v5054
      %v5149 = vsel %vm5143, %v5054, %v5056
      %v5150 = vsel %vm5143, %v5056, %v5058
      %v5151 = vsel %vm5143, %v5058, %v5060
      %v5152 = vsel %vm5143, %v5060, %v5062
      %v5153 = vsel %vm5143, %v5062, %v5064
      %v5154 = vsel %vm5143, %v5064, %v5066
      %v5155 = vsel %vm5143, %v5066, %v5068
      %v5156 = vsel %vm5143, %v5068, %v5070
      %v5157 = vsel %vm5143, %v5070, %v5072
      %v5158 = vsel %vm5143, %v5072, %v5074
      %v5159 = vsel %vm5143, %v5074, %v5076
      %v5160 = vsel %vm5143, %v5076, %v5078
      %v5161 = vsel %vm5143, %v5078, %v5080
      %v5162 = vsel %vm5143, %v5080, %v5082
      %v5163 = vsel %vm5143, %v5082, %v5084
      %v5164 = vsel %vm5143, %v5084, %v5086
      %v5165 = vsel %vm5143, %v5086, %v5088
      %v5166 = vsel %vm5143, %v5088, %v5090
      %v5167 = vsel %vm5143, %v5090, %v5092
      %v5168 = vsel %vm5143, %v5092, %v5094
      %v5169 = vsel %vm5143, %v5094, %v5096
      %v5170 = vsel %vm5143, %v5096, %v5098
      %v5171 = vsel %vm5143, %v5098, %v5100
      %v5172 = vsel %vm5143, %v5100, %v5102
      %v5173 = vsel %vm5143, %v5102, %v5104
      %v5174 = vsel %vm5143, %v5104, %v5106
      %v5175 = vsel %vm5143, %v5106, %v5108
      %v5176 = vsel %vm5143, %v5108, %v5110
      %v5177 = vsel %vm5143, %v5110, %v5112
      %v5178 = vsel %vm5143, %v5112, %v5114
      %v5179 = vsel %vm5143, %v5114, %v5116
      %v5180 = vsel %vm5143, %v5116, %v5118
      %v5181 = vsel %vm5143, %v5118, %v5120
      %v5182 = vsel %vm5143, %v5120, %v5122
      %v5183 = vsel %vm5143, %v5122, %v5124
      %v5184 = vsel %vm5143, %v5124, %v5126
      %v5185 = vsel %vm5143, %v5126, %v5128
      %v5186 = vsel %vm5143, %v5128, %v5130
      %v5187 = vsel %vm5143, %v5130, %v5132
      %v5188 = vsel %vm5143, %v5132, %v5134
      %v5189 = vsel %vm5143, %v5134, %v5136
      %v5190 = vsel %vm5143, %v5136, %v5138
      %v5191 = vsel %vm5143, %v5138, %v5140
      %v5192 = vsel %vm5143, %v5140, %v5142
      %5242 = vst [vmem:[#allocation4 + $0x498] sm:$0xff] %v5144
      %5243 = vst [vmem:[#allocation4 + $0x4a0] sm:$0xff] %v5145
      %5244 = vst [vmem:[#allocation4 + $0x4a8] sm:$0xff] %v5146
      %5245 = vst [vmem:[#allocation4 + $0x4b0] sm:$0xff] %v5147
      %5246 = vst [vmem:[#allocation4 + $0x4b8] sm:$0xff] %v5148
      %5247 = vst [vmem:[#allocation4 + $0x4c0] sm:$0xff] %v5149
      %5248 = vst [vmem:[#allocation4 + $0x4c8] sm:$0xff] %v5150
      %5249 = vst [vmem:[#allocation4 + $0x4d0] sm:$0xff] %v5151
      %5250 = vst [vmem:[#allocation4 + $0x4d8] sm:$0xff] %v5152
      %5251 = vst [vmem:[#allocation4 + $0x4e0] sm:$0xff] %v5153
      %5252 = vst [vmem:[#allocation4 + $0x4e8] sm:$0xff] %v5154
      %5253 = vst [vmem:[#allocation4 + $0x4f0] sm:$0xff] %v5155
      %5254 = vst [vmem:[#allocation4 + $0x4f8] sm:$0xff] %v5156
      %5255 = vst [vmem:[#allocation4 + $0x500] sm:$0xff] %v5157
      %5256 = vst [vmem:[#allocation4 + $0x508] sm:$0xff] %v5158
      %5257 = vst [vmem:[#allocation4 + $0x510] sm:$0xff] %v5159
      %5258 = vst [vmem:[#allocation4 + $0x518] sm:$0xff] %v5160
      %5259 = vst [vmem:[#allocation4 + $0x520] sm:$0xff] %v5161
      %5260 = vst [vmem:[#allocation4 + $0x528] sm:$0xff] %v5162
      %5261 = vst [vmem:[#allocation4 + $0x530] sm:$0xff] %v5163
      %5262 = vst [vmem:[#allocation4 + $0x538] sm:$0xff] %v5164
      %5263 = vst [vmem:[#allocation4 + $0x540] sm:$0xff] %v5165
      %5264 = vst [vmem:[#allocation4 + $0x548] sm:$0xff] %v5166
      %5265 = vst [vmem:[#allocation4 + $0x550] sm:$0xff] %v5167
      %5266 = vst [vmem:[#allocation4 + $0x558] sm:$0xff] %v5168
      %5267 = vst [vmem:[#allocation4 + $0x560] sm:$0xff] %v5169
      %5268 = vst [vmem:[#allocation4 + $0x568] sm:$0xff] %v5170
      %5269 = vst [vmem:[#allocation4 + $0x570] sm:$0xff] %v5171
      %5270 = vst [vmem:[#allocation4 + $0x578] sm:$0xff] %v5172
      %5271 = vst [vmem:[#allocation4 + $0x580] sm:$0xff] %v5173
      %5272 = vst [vmem:[#allocation4 + $0x588] sm:$0xff] %v5174
      %5273 = vst [vmem:[#allocation4 + $0x590] sm:$0xff] %v5175
      %5274 = vst [vmem:[#allocation4 + $0x598] sm:$0xff] %v5176
      %5275 = vst [vmem:[#allocation4 + $0x5a0] sm:$0xff] %v5177
      %5276 = vst [vmem:[#allocation4 + $0x5a8] sm:$0xff] %v5178
      %5277 = vst [vmem:[#allocation4 + $0x5b0] sm:$0xff] %v5179
      %5278 = vst [vmem:[#allocation4 + $0x5b8] sm:$0xff] %v5180
      %5279 = vst [vmem:[#allocation4 + $0x5c0] sm:$0xff] %v5181
      %5280 = vst [vmem:[#allocation4 + $0x5c8] sm:$0xff] %v5182
      %5281 = vst [vmem:[#allocation4 + $0x5d0] sm:$0xff] %v5183
      %5282 = vst [vmem:[#allocation4 + $0x5d8] sm:$0xff] %v5184
      %5283 = vst [vmem:[#allocation4 + $0x5e0] sm:$0xff] %v5185
      %5284 = vst [vmem:[#allocation4 + $0x5e8] sm:$0xff] %v5186
      %5285 = vst [vmem:[#allocation4 + $0x5f0] sm:$0xff] %v5187
      %5286 = vst [vmem:[#allocation4 + $0x5f8] sm:$0xff] %v5188
      %5287 = vst [vmem:[#allocation4 + $0x600] sm:$0xff] %v5189
      %5288 = vst [vmem:[#allocation4 + $0x608] sm:$0xff] %v5190
      %5289 = vst [vmem:[#allocation4 + $0x610] sm:$0xff] %v5191
      %5290 = vst [vmem:[#allocation4 + $0x618] sm:$0xff] %v5192
      %v5291 = vld [vmem:[#allocation2] sm:$0xff]
      %v5292 = vld [vmem:[#allocation2 + $0x8] sm:$0xff]
      %v5293 = vld [vmem:[#allocation2 + $0x10] sm:$0xff]
      %v5294 = vld [vmem:[#allocation2 + $0x18] sm:$0xff]
      %v5295 = vld [vmem:[#allocation2 + $0x20] sm:$0xff]
      %v5296 = vld [vmem:[#allocation2 + $0x28] sm:$0xff]
      %v5297 = vld [vmem:[#allocation2 + $0x30] sm:$0xff]
      %v5298 = vld [vmem:[#allocation2 + $0x38] sm:$0xff]
      %v5299 = vld [vmem:[#allocation2 + $0x40] sm:$0xff]
      %v5300 = vld [vmem:[#allocation2 + $0x48] sm:$0xff]
      %v5301 = vld [vmem:[#allocation2 + $0x50] sm:$0xff]
      %v5302 = vld [vmem:[#allocation2 + $0x58] sm:$0xff]
      %v5303 = vld [vmem:[#allocation2 + $0x60] sm:$0xff]
      %v5304 = vld [vmem:[#allocation2 + $0x68] sm:$0xff]
      %v5305 = vld [vmem:[#allocation2 + $0x70] sm:$0xff]
      %v5306 = vld [vmem:[#allocation2 + $0x78] sm:$0xff]
      %v5307 = vld [vmem:[#allocation2 + $0x80] sm:$0xff]
      %v5308 = vld [vmem:[#allocation2 + $0x88] sm:$0xff]
      %v5309 = vld [vmem:[#allocation2 + $0x90] sm:$0xff]
      %v5310 = vld [vmem:[#allocation2 + $0x98] sm:$0xff]
      %v5311 = vld [vmem:[#allocation2 + $0xa0] sm:$0xff]
      %v5312 = vld [vmem:[#allocation2 + $0xa8] sm:$0xff]
      %v5313 = vld [vmem:[#allocation2 + $0xb0] sm:$0xff]
      %v5314 = vld [vmem:[#allocation2 + $0xb8] sm:$0xff]
      %v5315 = vld [vmem:[#allocation2 + $0xc0] sm:$0xff]
      %v5316 = vld [vmem:[#allocation2 + $0xc8] sm:$0xff]
      %v5317 = vld [vmem:[#allocation2 + $0xd0] sm:$0xff]
      %v5318 = vld [vmem:[#allocation2 + $0xd8] sm:$0xff]
      %v5319 = vld [vmem:[#allocation2 + $0xe0] sm:$0xff]
      %v5320 = vld [vmem:[#allocation2 + $0xe8] sm:$0xff]
      %v5321 = vld [vmem:[#allocation2 + $0xf0] sm:$0xff]
      %v5322 = vld [vmem:[#allocation2 + $0xf8] sm:$0xff]
      %v5323 = vld [vmem:[#allocation2 + $0x100] sm:$0xff]
      %v5324 = vld [vmem:[#allocation2 + $0x108] sm:$0xff]
      %v5325 = vld [vmem:[#allocation2 + $0x110] sm:$0xff]
      %v5326 = vld [vmem:[#allocation2 + $0x118] sm:$0xff]
      %v5327 = vld [vmem:[#allocation2 + $0x120] sm:$0xff]
      %v5328 = vld [vmem:[#allocation2 + $0x128] sm:$0xff]
      %v5329 = vld [vmem:[#allocation2 + $0x130] sm:$0xff]
      %v5330 = vld [vmem:[#allocation2 + $0x138] sm:$0xff]
      %v5331 = vld [vmem:[#allocation2 + $0x140] sm:$0xff]
      %v5332 = vld [vmem:[#allocation2 + $0x148] sm:$0xff]
      %v5333 = vld [vmem:[#allocation2 + $0x150] sm:$0xff]
      %v5334 = vld [vmem:[#allocation2 + $0x158] sm:$0xff]
      %v5335 = vld [vmem:[#allocation2 + $0x160] sm:$0xff]
      %v5336 = vld [vmem:[#allocation2 + $0x168] sm:$0xff]
      %v5337 = vld [vmem:[#allocation2 + $0x170] sm:$0xff]
      %v5338 = vld [vmem:[#allocation2 + $0x178] sm:$0xff]
      %v5339 = vld [vmem:[#allocation2 + $0x180] sm:$0xff]
      %v5340 = vld [vmem:[#allocation2 + $0x188] sm:$0xff]
      %5391 = vrot.lane.b32.xlu0 %v5291, 124
      %v5392 = vpop.permute.xlu0 %5391
      %5393 = vrot.lane.b32.xlu0 %v5292, 124
      %v5394 = vpop.permute.xlu0 %5393
      %5395 = vrot.lane.b32.xlu0 %v5293, 124
      %v5396 = vpop.permute.xlu0 %5395
      %5397 = vrot.lane.b32.xlu0 %v5294, 124
      %v5398 = vpop.permute.xlu0 %5397
      %5399 = vrot.lane.b32.xlu0 %v5295, 124
      %v5400 = vpop.permute.xlu0 %5399
      %5401 = vrot.lane.b32.xlu0 %v5296, 124
      %v5402 = vpop.permute.xlu0 %5401
      %5403 = vrot.lane.b32.xlu0 %v5297, 124
      %v5404 = vpop.permute.xlu0 %5403
      %5405 = vrot.lane.b32.xlu0 %v5298, 124
      %v5406 = vpop.permute.xlu0 %5405
      %5407 = vrot.lane.b32.xlu0 %v5299, 124
      %v5408 = vpop.permute.xlu0 %5407
      %5409 = vrot.lane.b32.xlu0 %v5300, 124
      %v5410 = vpop.permute.xlu0 %5409
      %5411 = vrot.lane.b32.xlu0 %v5301, 124
      %v5412 = vpop.permute.xlu0 %5411
      %5413 = vrot.lane.b32.xlu0 %v5302, 124
      %v5414 = vpop.permute.xlu0 %5413
      %5415 = vrot.lane.b32.xlu0 %v5303, 124
      %v5416 = vpop.permute.xlu0 %5415
      %5417 = vrot.lane.b32.xlu0 %v5304, 124
      %v5418 = vpop.permute.xlu0 %5417
      %5419 = vrot.lane.b32.xlu0 %v5305, 124
      %v5420 = vpop.permute.xlu0 %5419
      %5421 = vrot.lane.b32.xlu0 %v5306, 124
      %v5422 = vpop.permute.xlu0 %5421
      %5423 = vrot.lane.b32.xlu0 %v5307, 124
      %v5424 = vpop.permute.xlu0 %5423
      %5425 = vrot.lane.b32.xlu0 %v5308, 124
      %v5426 = vpop.permute.xlu0 %5425
      %5427 = vrot.lane.b32.xlu0 %v5309, 124
      %v5428 = vpop.permute.xlu0 %5427
      %5429 = vrot.lane.b32.xlu0 %v5310, 124
      %v5430 = vpop.permute.xlu0 %5429
      %5431 = vrot.lane.b32.xlu0 %v5311, 124
      %v5432 = vpop.permute.xlu0 %5431
      %5433 = vrot.lane.b32.xlu0 %v5312, 124
      %v5434 = vpop.permute.xlu0 %5433
      %5435 = vrot.lane.b32.xlu0 %v5313, 124
      %v5436 = vpop.permute.xlu0 %5435
      %5437 = vrot.lane.b32.xlu0 %v5314, 124
      %v5438 = vpop.permute.xlu0 %5437
      %5439 = vrot.lane.b32.xlu0 %v5315, 124
      %v5440 = vpop.permute.xlu0 %5439
      %5441 = vrot.lane.b32.xlu0 %v5316, 124
      %v5442 = vpop.permute.xlu0 %5441
      %5443 = vrot.lane.b32.xlu0 %v5317, 124
      %v5444 = vpop.permute.xlu0 %5443
      %5445 = vrot.lane.b32.xlu0 %v5318, 124
      %v5446 = vpop.permute.xlu0 %5445
      %5447 = vrot.lane.b32.xlu0 %v5319, 124
      %v5448 = vpop.permute.xlu0 %5447
      %5449 = vrot.lane.b32.xlu0 %v5320, 124
      %v5450 = vpop.permute.xlu0 %5449
      %5451 = vrot.lane.b32.xlu0 %v5321, 124
      %v5452 = vpop.permute.xlu0 %5451
      %5453 = vrot.lane.b32.xlu0 %v5322, 124
      %v5454 = vpop.permute.xlu0 %5453
      %5455 = vrot.lane.b32.xlu0 %v5323, 124
      %v5456 = vpop.permute.xlu0 %5455
      %5457 = vrot.lane.b32.xlu0 %v5324, 124
      %v5458 = vpop.permute.xlu0 %5457
      %5459 = vrot.lane.b32.xlu0 %v5325, 124
      %v5460 = vpop.permute.xlu0 %5459
      %5461 = vrot.lane.b32.xlu0 %v5326, 124
      %v5462 = vpop.permute.xlu0 %5461
      %5463 = vrot.lane.b32.xlu0 %v5327, 124
      %v5464 = vpop.permute.xlu0 %5463
      %5465 = vrot.lane.b32.xlu0 %v5328, 124
      %v5466 = vpop.permute.xlu0 %5465
      %5467 = vrot.lane.b32.xlu0 %v5329, 124
      %v5468 = vpop.permute.xlu0 %5467
      %5469 = vrot.lane.b32.xlu0 %v5330, 124
      %v5470 = vpop.permute.xlu0 %5469
      %5471 = vrot.lane.b32.xlu0 %v5331, 124
      %v5472 = vpop.permute.xlu0 %5471
      %5473 = vrot.lane.b32.xlu0 %v5332, 124
      %v5474 = vpop.permute.xlu0 %5473
      %5475 = vrot.lane.b32.xlu0 %v5333, 124
      %v5476 = vpop.permute.xlu0 %5475
      %5477 = vrot.lane.b32.xlu0 %v5334, 124
      %v5478 = vpop.permute.xlu0 %5477
      %5479 = vrot.lane.b32.xlu0 %v5335, 124
      %v5480 = vpop.permute.xlu0 %5479
      %5481 = vrot.lane.b32.xlu0 %v5336, 124
      %v5482 = vpop.permute.xlu0 %5481
      %5483 = vrot.lane.b32.xlu0 %v5337, 124
      %v5484 = vpop.permute.xlu0 %5483
      %5485 = vrot.lane.b32.xlu0 %v5338, 124
      %v5486 = vpop.permute.xlu0 %5485
      %5487 = vrot.lane.b32.xlu0 %v5339, 124
      %v5488 = vpop.permute.xlu0 %5487
      %5489 = vrot.lane.b32.xlu0 %v5340, 124
      %v5490 = vpop.permute.xlu0 %5489
      %vm5491 = vcmask 1014784
      %v5492 = vsel %vm5491, %v5392, %v5394
      %v5493 = vsel %vm5491, %v5394, %v5396
      %v5494 = vsel %vm5491, %v5396, %v5398
      %v5495 = vsel %vm5491, %v5398, %v5400
      %v5496 = vsel %vm5491, %v5400, %v5402
      %v5497 = vsel %vm5491, %v5402, %v5404
      %v5498 = vsel %vm5491, %v5404, %v5406
      %v5499 = vsel %vm5491, %v5406, %v5408
      %v5500 = vsel %vm5491, %v5408, %v5410
      %v5501 = vsel %vm5491, %v5410, %v5412
      %v5502 = vsel %vm5491, %v5412, %v5414
      %v5503 = vsel %vm5491, %v5414, %v5416
      %v5504 = vsel %vm5491, %v5416, %v5418
      %v5505 = vsel %vm5491, %v5418, %v5420
      %v5506 = vsel %vm5491, %v5420, %v5422
      %v5507 = vsel %vm5491, %v5422, %v5424
      %v5508 = vsel %vm5491, %v5424, %v5426
      %v5509 = vsel %vm5491, %v5426, %v5428
      %v5510 = vsel %vm5491, %v5428, %v5430
      %v5511 = vsel %vm5491, %v5430, %v5432
      %v5512 = vsel %vm5491, %v5432, %v5434
      %v5513 = vsel %vm5491, %v5434, %v5436
      %v5514 = vsel %vm5491, %v5436, %v5438
      %v5515 = vsel %vm5491, %v5438, %v5440
      %v5516 = vsel %vm5491, %v5440, %v5442
      %v5517 = vsel %vm5491, %v5442, %v5444
      %v5518 = vsel %vm5491, %v5444, %v5446
      %v5519 = vsel %vm5491, %v5446, %v5448
      %v5520 = vsel %vm5491, %v5448, %v5450
      %v5521 = vsel %vm5491, %v5450, %v5452
      %v5522 = vsel %vm5491, %v5452, %v5454
      %v5523 = vsel %vm5491, %v5454, %v5456
      %v5524 = vsel %vm5491, %v5456, %v5458
      %v5525 = vsel %vm5491, %v5458, %v5460
      %v5526 = vsel %vm5491, %v5460, %v5462
      %v5527 = vsel %vm5491, %v5462, %v5464
      %v5528 = vsel %vm5491, %v5464, %v5466
      %v5529 = vsel %vm5491, %v5466, %v5468
      %v5530 = vsel %vm5491, %v5468, %v5470
      %v5531 = vsel %vm5491, %v5470, %v5472
      %v5532 = vsel %vm5491, %v5472, %v5474
      %v5533 = vsel %vm5491, %v5474, %v5476
      %v5534 = vsel %vm5491, %v5476, %v5478
      %v5535 = vsel %vm5491, %v5478, %v5480
      %v5536 = vsel %vm5491, %v5480, %v5482
      %v5537 = vsel %vm5491, %v5482, %v5484
      %v5538 = vsel %vm5491, %v5484, %v5486
      %v5539 = vsel %vm5491, %v5486, %v5488
      %v5540 = vsel %vm5491, %v5488, %v5490
      %5590 = vst [vmem:[#allocation4 + $0x620] sm:$0xff] %v5492
      %5591 = vst [vmem:[#allocation4 + $0x628] sm:$0xff] %v5493
      %5592 = vst [vmem:[#allocation4 + $0x630] sm:$0xff] %v5494
      %5593 = vst [vmem:[#allocation4 + $0x638] sm:$0xff] %v5495
      %5594 = vst [vmem:[#allocation4 + $0x640] sm:$0xff] %v5496
      %5595 = vst [vmem:[#allocation4 + $0x648] sm:$0xff] %v5497
      %5596 = vst [vmem:[#allocation4 + $0x650] sm:$0xff] %v5498
      %5597 = vst [vmem:[#allocation4 + $0x658] sm:$0xff] %v5499
      %5598 = vst [vmem:[#allocation4 + $0x660] sm:$0xff] %v5500
      %5599 = vst [vmem:[#allocation4 + $0x668] sm:$0xff] %v5501
      %5600 = vst [vmem:[#allocation4 + $0x670] sm:$0xff] %v5502
      %5601 = vst [vmem:[#allocation4 + $0x678] sm:$0xff] %v5503
      %5602 = vst [vmem:[#allocation4 + $0x680] sm:$0xff] %v5504
      %5603 = vst [vmem:[#allocation4 + $0x688] sm:$0xff] %v5505
      %5604 = vst [vmem:[#allocation4 + $0x690] sm:$0xff] %v5506
      %5605 = vst [vmem:[#allocation4 + $0x698] sm:$0xff] %v5507
      %5606 = vst [vmem:[#allocation4 + $0x6a0] sm:$0xff] %v5508
      %5607 = vst [vmem:[#allocation4 + $0x6a8] sm:$0xff] %v5509
      %5608 = vst [vmem:[#allocation4 + $0x6b0] sm:$0xff] %v5510
      %5609 = vst [vmem:[#allocation4 + $0x6b8] sm:$0xff] %v5511
      %5610 = vst [vmem:[#allocation4 + $0x6c0] sm:$0xff] %v5512
      %5611 = vst [vmem:[#allocation4 + $0x6c8] sm:$0xff] %v5513
      %5612 = vst [vmem:[#allocation4 + $0x6d0] sm:$0xff] %v5514
      %5613 = vst [vmem:[#allocation4 + $0x6d8] sm:$0xff] %v5515
      %5614 = vst [vmem:[#allocation4 + $0x6e0] sm:$0xff] %v5516
      %5615 = vst [vmem:[#allocation4 + $0x6e8] sm:$0xff] %v5517
      %5616 = vst [vmem:[#allocation4 + $0x6f0] sm:$0xff] %v5518
      %5617 = vst [vmem:[#allocation4 + $0x6f8] sm:$0xff] %v5519
      %5618 = vst [vmem:[#allocation4 + $0x700] sm:$0xff] %v5520
      %5619 = vst [vmem:[#allocation4 + $0x708] sm:$0xff] %v5521
      %5620 = vst [vmem:[#allocation4 + $0x710] sm:$0xff] %v5522
      %5621 = vst [vmem:[#allocation4 + $0x718] sm:$0xff] %v5523
      %5622 = vst [vmem:[#allocation4 + $0x720] sm:$0xff] %v5524
      %5623 = vst [vmem:[#allocation4 + $0x728] sm:$0xff] %v5525
      %5624 = vst [vmem:[#allocation4 + $0x730] sm:$0xff] %v5526
      %5625 = vst [vmem:[#allocation4 + $0x738] sm:$0xff] %v5527
      %5626 = vst [vmem:[#allocation4 + $0x740] sm:$0xff] %v5528
      %5627 = vst [vmem:[#allocation4 + $0x748] sm:$0xff] %v5529
      %5628 = vst [vmem:[#allocation4 + $0x750] sm:$0xff] %v5530
      %5629 = vst [vmem:[#allocation4 + $0x758] sm:$0xff] %v5531
      %5630 = vst [vmem:[#allocation4 + $0x760] sm:$0xff] %v5532
      %5631 = vst [vmem:[#allocation4 + $0x768] sm:$0xff] %v5533
      %5632 = vst [vmem:[#allocation4 + $0x770] sm:$0xff] %v5534
      %5633 = vst [vmem:[#allocation4 + $0x778] sm:$0xff] %v5535
      %5634 = vst [vmem:[#allocation4 + $0x780] sm:$0xff] %v5536
      %5635 = vst [vmem:[#allocation4 + $0x788] sm:$0xff] %v5537
      %5636 = vst [vmem:[#allocation4 + $0x790] sm:$0xff] %v5538
      %5637 = vst [vmem:[#allocation4 + $0x798] sm:$0xff] %v5539
      %5638 = vst [vmem:[#allocation4 + $0x7a0] sm:$0xff] %v5540
      %v5639 = vld [vmem:[#allocation2] sm:$0xff]
      %v5640 = vld [vmem:[#allocation2 + $0x8] sm:$0xff]
      %v5641 = vld [vmem:[#allocation2 + $0x10] sm:$0xff]
      %v5642 = vld [vmem:[#allocation2 + $0x18] sm:$0xff]
      %v5643 = vld [vmem:[#allocation2 + $0x20] sm:$0xff]
      %v5644 = vld [vmem:[#allocation2 + $0x28] sm:$0xff]
      %v5645 = vld [vmem:[#allocation2 + $0x30] sm:$0xff]
      %v5646 = vld [vmem:[#allocation2 + $0x38] sm:$0xff]
      %v5647 = vld [vmem:[#allocation2 + $0x40] sm:$0xff]
      %v5648 = vld [vmem:[#allocation2 + $0x48] sm:$0xff]
      %v5649 = vld [vmem:[#allocation2 + $0x50] sm:$0xff]
      %v5650 = vld [vmem:[#allocation2 + $0x58] sm:$0xff]
      %v5651 = vld [vmem:[#allocation2 + $0x60] sm:$0xff]
      %v5652 = vld [vmem:[#allocation2 + $0x68] sm:$0xff]
      %v5653 = vld [vmem:[#allocation2 + $0x70] sm:$0xff]
      %v5654 = vld [vmem:[#allocation2 + $0x78] sm:$0xff]
      %v5655 = vld [vmem:[#allocation2 + $0x80] sm:$0xff]
      %v5656 = vld [vmem:[#allocation2 + $0x88] sm:$0xff]
      %v5657 = vld [vmem:[#allocation2 + $0x90] sm:$0xff]
      %v5658 = vld [vmem:[#allocation2 + $0x98] sm:$0xff]
      %v5659 = vld [vmem:[#allocation2 + $0xa0] sm:$0xff]
      %v5660 = vld [vmem:[#allocation2 + $0xa8] sm:$0xff]
      %v5661 = vld [vmem:[#allocation2 + $0xb0] sm:$0xff]
      %v5662 = vld [vmem:[#allocation2 + $0xb8] sm:$0xff]
      %v5663 = vld [vmem:[#allocation2 + $0xc0] sm:$0xff]
      %v5664 = vld [vmem:[#allocation2 + $0xc8] sm:$0xff]
      %v5665 = vld [vmem:[#allocation2 + $0xd0] sm:$0xff]
      %v5666 = vld [vmem:[#allocation2 + $0xd8] sm:$0xff]
      %v5667 = vld [vmem:[#allocation2 + $0xe0] sm:$0xff]
      %v5668 = vld [vmem:[#allocation2 + $0xe8] sm:$0xff]
      %v5669 = vld [vmem:[#allocation2 + $0xf0] sm:$0xff]
      %v5670 = vld [vmem:[#allocation2 + $0xf8] sm:$0xff]
      %v5671 = vld [vmem:[#allocation2 + $0x100] sm:$0xff]
      %v5672 = vld [vmem:[#allocation2 + $0x108] sm:$0xff]
      %v5673 = vld [vmem:[#allocation2 + $0x110] sm:$0xff]
      %v5674 = vld [vmem:[#allocation2 + $0x118] sm:$0xff]
      %v5675 = vld [vmem:[#allocation2 + $0x120] sm:$0xff]
      %v5676 = vld [vmem:[#allocation2 + $0x128] sm:$0xff]
      %v5677 = vld [vmem:[#allocation2 + $0x130] sm:$0xff]
      %v5678 = vld [vmem:[#allocation2 + $0x138] sm:$0xff]
      %v5679 = vld [vmem:[#allocation2 + $0x140] sm:$0xff]
      %v5680 = vld [vmem:[#allocation2 + $0x148] sm:$0xff]
      %v5681 = vld [vmem:[#allocation2 + $0x150] sm:$0xff]
      %v5682 = vld [vmem:[#allocation2 + $0x158] sm:$0xff]
      %v5683 = vld [vmem:[#allocation2 + $0x160] sm:$0xff]
      %v5684 = vld [vmem:[#allocation2 + $0x168] sm:$0xff]
      %v5685 = vld [vmem:[#allocation2 + $0x170] sm:$0xff]
      %v5686 = vld [vmem:[#allocation2 + $0x178] sm:$0xff]
      %v5687 = vld [vmem:[#allocation2 + $0x180] sm:$0xff]
      %v5688 = vld [vmem:[#allocation2 + $0x188] sm:$0xff]
      %5739 = vrot.lane.b32.xlu0 %v5639, 123
      %v5740 = vpop.permute.xlu0 %5739
      %5741 = vrot.lane.b32.xlu0 %v5640, 123
      %v5742 = vpop.permute.xlu0 %5741
      %5743 = vrot.lane.b32.xlu0 %v5641, 123
      %v5744 = vpop.permute.xlu0 %5743
      %5745 = vrot.lane.b32.xlu0 %v5642, 123
      %v5746 = vpop.permute.xlu0 %5745
      %5747 = vrot.lane.b32.xlu0 %v5643, 123
      %v5748 = vpop.permute.xlu0 %5747
      %5749 = vrot.lane.b32.xlu0 %v5644, 123
      %v5750 = vpop.permute.xlu0 %5749
      %5751 = vrot.lane.b32.xlu0 %v5645, 123
      %v5752 = vpop.permute.xlu0 %5751
      %5753 = vrot.lane.b32.xlu0 %v5646, 123
      %v5754 = vpop.permute.xlu0 %5753
      %5755 = vrot.lane.b32.xlu0 %v5647, 123
      %v5756 = vpop.permute.xlu0 %5755
      %5757 = vrot.lane.b32.xlu0 %v5648, 123
      %v5758 = vpop.permute.xlu0 %5757
      %5759 = vrot.lane.b32.xlu0 %v5649, 123
      %v5760 = vpop.permute.xlu0 %5759
      %5761 = vrot.lane.b32.xlu0 %v5650, 123
      %v5762 = vpop.permute.xlu0 %5761
      %5763 = vrot.lane.b32.xlu0 %v5651, 123
      %v5764 = vpop.permute.xlu0 %5763
      %5765 = vrot.lane.b32.xlu0 %v5652, 123
      %v5766 = vpop.permute.xlu0 %5765
      %5767 = vrot.lane.b32.xlu0 %v5653, 123
      %v5768 = vpop.permute.xlu0 %5767
      %5769 = vrot.lane.b32.xlu0 %v5654, 123
      %v5770 = vpop.permute.xlu0 %5769
      %5771 = vrot.lane.b32.xlu0 %v5655, 123
      %v5772 = vpop.permute.xlu0 %5771
      %5773 = vrot.lane.b32.xlu0 %v5656, 123
      %v5774 = vpop.permute.xlu0 %5773
      %5775 = vrot.lane.b32.xlu0 %v5657, 123
      %v5776 = vpop.permute.xlu0 %5775
      %5777 = vrot.lane.b32.xlu0 %v5658, 123
      %v5778 = vpop.permute.xlu0 %5777
      %5779 = vrot.lane.b32.xlu0 %v5659, 123
      %v5780 = vpop.permute.xlu0 %5779
      %5781 = vrot.lane.b32.xlu0 %v5660, 123
      %v5782 = vpop.permute.xlu0 %5781
      %5783 = vrot.lane.b32.xlu0 %v5661, 123
      %v5784 = vpop.permute.xlu0 %5783
      %5785 = vrot.lane.b32.xlu0 %v5662, 123
      %v5786 = vpop.permute.xlu0 %5785
      %5787 = vrot.lane.b32.xlu0 %v5663, 123
      %v5788 = vpop.permute.xlu0 %5787
      %5789 = vrot.lane.b32.xlu0 %v5664, 123
      %v5790 = vpop.permute.xlu0 %5789
      %5791 = vrot.lane.b32.xlu0 %v5665, 123
      %v5792 = vpop.permute.xlu0 %5791
      %5793 = vrot.lane.b32.xlu0 %v5666, 123
      %v5794 = vpop.permute.xlu0 %5793
      %5795 = vrot.lane.b32.xlu0 %v5667, 123
      %v5796 = vpop.permute.xlu0 %5795
      %5797 = vrot.lane.b32.xlu0 %v5668, 123
      %v5798 = vpop.permute.xlu0 %5797
      %5799 = vrot.lane.b32.xlu0 %v5669, 123
      %v5800 = vpop.permute.xlu0 %5799
      %5801 = vrot.lane.b32.xlu0 %v5670, 123
      %v5802 = vpop.permute.xlu0 %5801
      %5803 = vrot.lane.b32.xlu0 %v5671, 123
      %v5804 = vpop.permute.xlu0 %5803
      %5805 = vrot.lane.b32.xlu0 %v5672, 123
      %v5806 = vpop.permute.xlu0 %5805
      %5807 = vrot.lane.b32.xlu0 %v5673, 123
      %v5808 = vpop.permute.xlu0 %5807
      %5809 = vrot.lane.b32.xlu0 %v5674, 123
      %v5810 = vpop.permute.xlu0 %5809
      %5811 = vrot.lane.b32.xlu0 %v5675, 123
      %v5812 = vpop.permute.xlu0 %5811
      %5813 = vrot.lane.b32.xlu0 %v5676, 123
      %v5814 = vpop.permute.xlu0 %5813
      %5815 = vrot.lane.b32.xlu0 %v5677, 123
      %v5816 = vpop.permute.xlu0 %5815
      %5817 = vrot.lane.b32.xlu0 %v5678, 123
      %v5818 = vpop.permute.xlu0 %5817
      %5819 = vrot.lane.b32.xlu0 %v5679, 123
      %v5820 = vpop.permute.xlu0 %5819
      %5821 = vrot.lane.b32.xlu0 %v5680, 123
      %v5822 = vpop.permute.xlu0 %5821
      %5823 = vrot.lane.b32.xlu0 %v5681, 123
      %v5824 = vpop.permute.xlu0 %5823
      %5825 = vrot.lane.b32.xlu0 %v5682, 123
      %v5826 = vpop.permute.xlu0 %5825
      %5827 = vrot.lane.b32.xlu0 %v5683, 123
      %v5828 = vpop.permute.xlu0 %5827
      %5829 = vrot.lane.b32.xlu0 %v5684, 123
      %v5830 = vpop.permute.xlu0 %5829
      %5831 = vrot.lane.b32.xlu0 %v5685, 123
      %v5832 = vpop.permute.xlu0 %5831
      %5833 = vrot.lane.b32.xlu0 %v5686, 123
      %v5834 = vpop.permute.xlu0 %5833
      %5835 = vrot.lane.b32.xlu0 %v5687, 123
      %v5836 = vpop.permute.xlu0 %5835
      %5837 = vrot.lane.b32.xlu0 %v5688, 123
      %v5838 = vpop.permute.xlu0 %5837
      %vm5839 = vcmask 1006592
      %v5840 = vsel %vm5839, %v5740, %v5742
      %v5841 = vsel %vm5839, %v5742, %v5744
      %v5842 = vsel %vm5839, %v5744, %v5746
      %v5843 = vsel %vm5839, %v5746, %v5748
      %v5844 = vsel %vm5839, %v5748, %v5750
      %v5845 = vsel %vm5839, %v5750, %v5752
      %v5846 = vsel %vm5839, %v5752, %v5754
      %v5847 = vsel %vm5839, %v5754, %v5756
      %v5848 = vsel %vm5839, %v5756, %v5758
      %v5849 = vsel %vm5839, %v5758, %v5760
      %v5850 = vsel %vm5839, %v5760, %v5762
      %v5851 = vsel %vm5839, %v5762, %v5764
      %v5852 = vsel %vm5839, %v5764, %v5766
      %v5853 = vsel %vm5839, %v5766, %v5768
      %v5854 = vsel %vm5839, %v5768, %v5770
      %v5855 = vsel %vm5839, %v5770, %v5772
      %v5856 = vsel %vm5839, %v5772, %v5774
      %v5857 = vsel %vm5839, %v5774, %v5776
      %v5858 = vsel %vm5839, %v5776, %v5778
      %v5859 = vsel %vm5839, %v5778, %v5780
      %v5860 = vsel %vm5839, %v5780, %v5782
      %v5861 = vsel %vm5839, %v5782, %v5784
      %v5862 = vsel %vm5839, %v5784, %v5786
      %v5863 = vsel %vm5839, %v5786, %v5788
      %v5864 = vsel %vm5839, %v5788, %v5790
      %v5865 = vsel %vm5839, %v5790, %v5792
      %v5866 = vsel %vm5839, %v5792, %v5794
      %v5867 = vsel %vm5839, %v5794, %v5796
      %v5868 = vsel %vm5839, %v5796, %v5798
      %v5869 = vsel %vm5839, %v5798, %v5800
      %v5870 = vsel %vm5839, %v5800, %v5802
      %v5871 = vsel %vm5839, %v5802, %v5804
      %v5872 = vsel %vm5839, %v5804, %v5806
      %v5873 = vsel %vm5839, %v5806, %v5808
      %v5874 = vsel %vm5839, %v5808, %v5810
      %v5875 = vsel %vm5839, %v5810, %v5812
      %v5876 = vsel %vm5839, %v5812, %v5814
      %v5877 = vsel %vm5839, %v5814, %v5816
      %v5878 = vsel %vm5839, %v5816, %v5818
      %v5879 = vsel %vm5839, %v5818, %v5820
      %v5880 = vsel %vm5839, %v5820, %v5822
      %v5881 = vsel %vm5839, %v5822, %v5824
      %v5882 = vsel %vm5839, %v5824, %v5826
      %v5883 = vsel %vm5839, %v5826, %v5828
      %v5884 = vsel %vm5839, %v5828, %v5830
      %v5885 = vsel %vm5839, %v5830, %v5832
      %v5886 = vsel %vm5839, %v5832, %v5834
      %v5887 = vsel %vm5839, %v5834, %v5836
      %v5888 = vsel %vm5839, %v5836, %v5838
      %5938 = vst [vmem:[#allocation4 + $0x7a8] sm:$0xff] %v5840
      %5939 = vst [vmem:[#allocation4 + $0x7b0] sm:$0xff] %v5841
      %5940 = vst [vmem:[#allocation4 + $0x7b8] sm:$0xff] %v5842
      %5941 = vst [vmem:[#allocation4 + $0x7c0] sm:$0xff] %v5843
      %5942 = vst [vmem:[#allocation4 + $0x7c8] sm:$0xff] %v5844
      %5943 = vst [vmem:[#allocation4 + $0x7d0] sm:$0xff] %v5845
      %5944 = vst [vmem:[#allocation4 + $0x7d8] sm:$0xff] %v5846
      %5945 = vst [vmem:[#allocation4 + $0x7e0] sm:$0xff] %v5847
      %5946 = vst [vmem:[#allocation4 + $0x7e8] sm:$0xff] %v5848
      %5947 = vst [vmem:[#allocation4 + $0x7f0] sm:$0xff] %v5849
      %5948 = vst [vmem:[#allocation4 + $0x7f8] sm:$0xff] %v5850
      %5949 = vst [vmem:[#allocation4 + $0x800] sm:$0xff] %v5851
      %5950 = vst [vmem:[#allocation4 + $0x808] sm:$0xff] %v5852
      %5951 = vst [vmem:[#allocation4 + $0x810] sm:$0xff] %v5853
      %5952 = vst [vmem:[#allocation4 + $0x818] sm:$0xff] %v5854
      %5953 = vst [vmem:[#allocation4 + $0x820] sm:$0xff] %v5855
      %5954 = vst [vmem:[#allocation4 + $0x828] sm:$0xff] %v5856
      %5955 = vst [vmem:[#allocation4 + $0x830] sm:$0xff] %v5857
      %5956 = vst [vmem:[#allocation4 + $0x838] sm:$0xff] %v5858
      %5957 = vst [vmem:[#allocation4 + $0x840] sm:$0xff] %v5859
      %5958 = vst [vmem:[#allocation4 + $0x848] sm:$0xff] %v5860
      %5959 = vst [vmem:[#allocation4 + $0x850] sm:$0xff] %v5861
      %5960 = vst [vmem:[#allocation4 + $0x858] sm:$0xff] %v5862
      %5961 = vst [vmem:[#allocation4 + $0x860] sm:$0xff] %v5863
      %5962 = vst [vmem:[#allocation4 + $0x868] sm:$0xff] %v5864
      %5963 = vst [vmem:[#allocation4 + $0x870] sm:$0xff] %v5865
      %5964 = vst [vmem:[#allocation4 + $0x878] sm:$0xff] %v5866
      %5965 = vst [vmem:[#allocation4 + $0x880] sm:$0xff] %v5867
      %5966 = vst [vmem:[#allocation4 + $0x888] sm:$0xff] %v5868
      %5967 = vst [vmem:[#allocation4 + $0x890] sm:$0xff] %v5869
      %5968 = vst [vmem:[#allocation4 + $0x898] sm:$0xff] %v5870
      %5969 = vst [vmem:[#allocation4 + $0x8a0] sm:$0xff] %v5871
      %5970 = vst [vmem:[#allocation4 + $0x8a8] sm:$0xff] %v5872
      %5971 = vst [vmem:[#allocation4 + $0x8b0] sm:$0xff] %v5873
      %5972 = vst [vmem:[#allocation4 + $0x8b8] sm:$0xff] %v5874
      %5973 = vst [vmem:[#allocation4 + $0x8c0] sm:$0xff] %v5875
      %5974 = vst [vmem:[#allocation4 + $0x8c8] sm:$0xff] %v5876
      %5975 = vst [vmem:[#allocation4 + $0x8d0] sm:$0xff] %v5877
      %5976 = vst [vmem:[#allocation4 + $0x8d8] sm:$0xff] %v5878
      %5977 = vst [vmem:[#allocation4 + $0x8e0] sm:$0xff] %v5879
      %5978 = vst [vmem:[#allocation4 + $0x8e8] sm:$0xff] %v5880
      %5979 = vst [vmem:[#allocation4 + $0x8f0] sm:$0xff] %v5881
      %5980 = vst [vmem:[#allocation4 + $0x8f8] sm:$0xff] %v5882
      %5981 = vst [vmem:[#allocation4 + $0x900] sm:$0xff] %v5883
      %5982 = vst [vmem:[#allocation4 + $0x908] sm:$0xff] %v5884
      %5983 = vst [vmem:[#allocation4 + $0x910] sm:$0xff] %v5885
      %5984 = vst [vmem:[#allocation4 + $0x918] sm:$0xff] %v5886
      %5985 = vst [vmem:[#allocation4 + $0x920] sm:$0xff] %v5887
      %5986 = vst [vmem:[#allocation4 + $0x928] sm:$0xff] %v5888
      %v5987 = vld [vmem:[#allocation2] sm:$0xff]
      %v5988 = vld [vmem:[#allocation2 + $0x8] sm:$0xff]
      %v5989 = vld [vmem:[#allocation2 + $0x10] sm:$0xff]
      %v5990 = vld [vmem:[#allocation2 + $0x18] sm:$0xff]
      %v5991 = vld [vmem:[#allocation2 + $0x20] sm:$0xff]
      %v5992 = vld [vmem:[#allocation2 + $0x28] sm:$0xff]
      %v5993 = vld [vmem:[#allocation2 + $0x30] sm:$0xff]
      %v5994 = vld [vmem:[#allocation2 + $0x38] sm:$0xff]
      %v5995 = vld [vmem:[#allocation2 + $0x40] sm:$0xff]
      %v5996 = vld [vmem:[#allocation2 + $0x48] sm:$0xff]
      %v5997 = vld [vmem:[#allocation2 + $0x50] sm:$0xff]
      %v5998 = vld [vmem:[#allocation2 + $0x58] sm:$0xff]
      %v5999 = vld [vmem:[#allocation2 + $0x60] sm:$0xff]
      %v6000 = vld [vmem:[#allocation2 + $0x68] sm:$0xff]
      %v6001 = vld [vmem:[#allocation2 + $0x70] sm:$0xff]
      %v6002 = vld [vmem:[#allocation2 + $0x78] sm:$0xff]
      %v6003 = vld [vmem:[#allocation2 + $0x80] sm:$0xff]
      %v6004 = vld [vmem:[#allocation2 + $0x88] sm:$0xff]
      %v6005 = vld [vmem:[#allocation2 + $0x90] sm:$0xff]
      %v6006 = vld [vmem:[#allocation2 + $0x98] sm:$0xff]
      %v6007 = vld [vmem:[#allocation2 + $0xa0] sm:$0xff]
      %v6008 = vld [vmem:[#allocation2 + $0xa8] sm:$0xff]
      %v6009 = vld [vmem:[#allocation2 + $0xb0] sm:$0xff]
      %v6010 = vld [vmem:[#allocation2 + $0xb8] sm:$0xff]
      %v6011 = vld [vmem:[#allocation2 + $0xc0] sm:$0xff]
      %v6012 = vld [vmem:[#allocation2 + $0xc8] sm:$0xff]
      %v6013 = vld [vmem:[#allocation2 + $0xd0] sm:$0xff]
      %v6014 = vld [vmem:[#allocation2 + $0xd8] sm:$0xff]
      %v6015 = vld [vmem:[#allocation2 + $0xe0] sm:$0xff]
      %v6016 = vld [vmem:[#allocation2 + $0xe8] sm:$0xff]
      %v6017 = vld [vmem:[#allocation2 + $0xf0] sm:$0xff]
      %v6018 = vld [vmem:[#allocation2 + $0xf8] sm:$0xff]
      %v6019 = vld [vmem:[#allocation2 + $0x100] sm:$0xff]
      %v6020 = vld [vmem:[#allocation2 + $0x108] sm:$0xff]
      %v6021 = vld [vmem:[#allocation2 + $0x110] sm:$0xff]
      %v6022 = vld [vmem:[#allocation2 + $0x118] sm:$0xff]
      %v6023 = vld [vmem:[#allocation2 + $0x120] sm:$0xff]
      %v6024 = vld [vmem:[#allocation2 + $0x128] sm:$0xff]
      %v6025 = vld [vmem:[#allocation2 + $0x130] sm:$0xff]
      %v6026 = vld [vmem:[#allocation2 + $0x138] sm:$0xff]
      %v6027 = vld [vmem:[#allocation2 + $0x140] sm:$0xff]
      %v6028 = vld [vmem:[#allocation2 + $0x148] sm:$0xff]
      %v6029 = vld [vmem:[#allocation2 + $0x150] sm:$0xff]
      %v6030 = vld [vmem:[#allocation2 + $0x158] sm:$0xff]
      %v6031 = vld [vmem:[#allocation2 + $0x160] sm:$0xff]
      %v6032 = vld [vmem:[#allocation2 + $0x168] sm:$0xff]
      %v6033 = vld [vmem:[#allocation2 + $0x170] sm:$0xff]
      %v6034 = vld [vmem:[#allocation2 + $0x178] sm:$0xff]
      %v6035 = vld [vmem:[#allocation2 + $0x180] sm:$0xff]
      %v6036 = vld [vmem:[#allocation2 + $0x188] sm:$0xff]
      %6087 = vrot.lane.b32.xlu0 %v5987, 122
      %v6088 = vpop.permute.xlu0 %6087
      %6089 = vrot.lane.b32.xlu0 %v5988, 122
      %v6090 = vpop.permute.xlu0 %6089
      %6091 = vrot.lane.b32.xlu0 %v5989, 122
      %v6092 = vpop.permute.xlu0 %6091
      %6093 = vrot.lane.b32.xlu0 %v5990, 122
      %v6094 = vpop.permute.xlu0 %6093
      %6095 = vrot.lane.b32.xlu0 %v5991, 122
      %v6096 = vpop.permute.xlu0 %6095
      %6097 = vrot.lane.b32.xlu0 %v5992, 122
      %v6098 = vpop.permute.xlu0 %6097
      %6099 = vrot.lane.b32.xlu0 %v5993, 122
      %v6100 = vpop.permute.xlu0 %6099
      %6101 = vrot.lane.b32.xlu0 %v5994, 122
      %v6102 = vpop.permute.xlu0 %6101
      %6103 = vrot.lane.b32.xlu0 %v5995, 122
      %v6104 = vpop.permute.xlu0 %6103
      %6105 = vrot.lane.b32.xlu0 %v5996, 122
      %v6106 = vpop.permute.xlu0 %6105
      %6107 = vrot.lane.b32.xlu0 %v5997, 122
      %v6108 = vpop.permute.xlu0 %6107
      %6109 = vrot.lane.b32.xlu0 %v5998, 122
      %v6110 = vpop.permute.xlu0 %6109
      %6111 = vrot.lane.b32.xlu0 %v5999, 122
      %v6112 = vpop.permute.xlu0 %6111
      %6113 = vrot.lane.b32.xlu0 %v6000, 122
      %v6114 = vpop.permute.xlu0 %6113
      %6115 = vrot.lane.b32.xlu0 %v6001, 122
      %v6116 = vpop.permute.xlu0 %6115
      %6117 = vrot.lane.b32.xlu0 %v6002, 122
      %v6118 = vpop.permute.xlu0 %6117
      %6119 = vrot.lane.b32.xlu0 %v6003, 122
      %v6120 = vpop.permute.xlu0 %6119
      %6121 = vrot.lane.b32.xlu0 %v6004, 122
      %v6122 = vpop.permute.xlu0 %6121
      %6123 = vrot.lane.b32.xlu0 %v6005, 122
      %v6124 = vpop.permute.xlu0 %6123
      %6125 = vrot.lane.b32.xlu0 %v6006, 122
      %v6126 = vpop.permute.xlu0 %6125
      %6127 = vrot.lane.b32.xlu0 %v6007, 122
      %v6128 = vpop.permute.xlu0 %6127
      %6129 = vrot.lane.b32.xlu0 %v6008, 122
      %v6130 = vpop.permute.xlu0 %6129
      %6131 = vrot.lane.b32.xlu0 %v6009, 122
      %v6132 = vpop.permute.xlu0 %6131
      %6133 = vrot.lane.b32.xlu0 %v6010, 122
      %v6134 = vpop.permute.xlu0 %6133
      %6135 = vrot.lane.b32.xlu0 %v6011, 122
      %v6136 = vpop.permute.xlu0 %6135
      %6137 = vrot.lane.b32.xlu0 %v6012, 122
      %v6138 = vpop.permute.xlu0 %6137
      %6139 = vrot.lane.b32.xlu0 %v6013, 122
      %v6140 = vpop.permute.xlu0 %6139
      %6141 = vrot.lane.b32.xlu0 %v6014, 122
      %v6142 = vpop.permute.xlu0 %6141
      %6143 = vrot.lane.b32.xlu0 %v6015, 122
      %v6144 = vpop.permute.xlu0 %6143
      %6145 = vrot.lane.b32.xlu0 %v6016, 122
      %v6146 = vpop.permute.xlu0 %6145
      %6147 = vrot.lane.b32.xlu0 %v6017, 122
      %v6148 = vpop.permute.xlu0 %6147
      %6149 = vrot.lane.b32.xlu0 %v6018, 122
      %v6150 = vpop.permute.xlu0 %6149
      %6151 = vrot.lane.b32.xlu0 %v6019, 122
      %v6152 = vpop.permute.xlu0 %6151
      %6153 = vrot.lane.b32.xlu0 %v6020, 122
      %v6154 = vpop.permute.xlu0 %6153
      %6155 = vrot.lane.b32.xlu0 %v6021, 122
      %v6156 = vpop.permute.xlu0 %6155
      %6157 = vrot.lane.b32.xlu0 %v6022, 122
      %v6158 = vpop.permute.xlu0 %6157
      %6159 = vrot.lane.b32.xlu0 %v6023, 122
      %v6160 = vpop.permute.xlu0 %6159
      %6161 = vrot.lane.b32.xlu0 %v6024, 122
      %v6162 = vpop.permute.xlu0 %6161
      %6163 = vrot.lane.b32.xlu0 %v6025, 122
      %v6164 = vpop.permute.xlu0 %6163
      %6165 = vrot.lane.b32.xlu0 %v6026, 122
      %v6166 = vpop.permute.xlu0 %6165
      %6167 = vrot.lane.b32.xlu0 %v6027, 122
      %v6168 = vpop.permute.xlu0 %6167
      %6169 = vrot.lane.b32.xlu0 %v6028, 122
      %v6170 = vpop.permute.xlu0 %6169
      %6171 = vrot.lane.b32.xlu0 %v6029, 122
      %v6172 = vpop.permute.xlu0 %6171
      %6173 = vrot.lane.b32.xlu0 %v6030, 122
      %v6174 = vpop.permute.xlu0 %6173
      %6175 = vrot.lane.b32.xlu0 %v6031, 122
      %v6176 = vpop.permute.xlu0 %6175
      %6177 = vrot.lane.b32.xlu0 %v6032, 122
      %v6178 = vpop.permute.xlu0 %6177
      %6179 = vrot.lane.b32.xlu0 %v6033, 122
      %v6180 = vpop.permute.xlu0 %6179
      %6181 = vrot.lane.b32.xlu0 %v6034, 122
      %v6182 = vpop.permute.xlu0 %6181
      %6183 = vrot.lane.b32.xlu0 %v6035, 122
      %v6184 = vpop.permute.xlu0 %6183
      %6185 = vrot.lane.b32.xlu0 %v6036, 122
      %v6186 = vpop.permute.xlu0 %6185
      %vm6187 = vcmask 998400
      %v6188 = vsel %vm6187, %v6088, %v6090
      %v6189 = vsel %vm6187, %v6090, %v6092
      %v6190 = vsel %vm6187, %v6092, %v6094
      %v6191 = vsel %vm6187, %v6094, %v6096
      %v6192 = vsel %vm6187, %v6096, %v6098
      %v6193 = vsel %vm6187, %v6098, %v6100
      %v6194 = vsel %vm6187, %v6100, %v6102
      %v6195 = vsel %vm6187, %v6102, %v6104
      %v6196 = vsel %vm6187, %v6104, %v6106
      %v6197 = vsel %vm6187, %v6106, %v6108
      %v6198 = vsel %vm6187, %v6108, %v6110
      %v6199 = vsel %vm6187, %v6110, %v6112
      %v6200 = vsel %vm6187, %v6112, %v6114
      %v6201 = vsel %vm6187, %v6114, %v6116
      %v6202 = vsel %vm6187, %v6116, %v6118
      %v6203 = vsel %vm6187, %v6118, %v6120
      %v6204 = vsel %vm6187, %v6120, %v6122
      %v6205 = vsel %vm6187, %v6122, %v6124
      %v6206 = vsel %vm6187, %v6124, %v6126
      %v6207 = vsel %vm6187, %v6126, %v6128
      %v6208 = vsel %vm6187, %v6128, %v6130
      %v6209 = vsel %vm6187, %v6130, %v6132
      %v6210 = vsel %vm6187, %v6132, %v6134
      %v6211 = vsel %vm6187, %v6134, %v6136
      %v6212 = vsel %vm6187, %v6136, %v6138
      %v6213 = vsel %vm6187, %v6138, %v6140
      %v6214 = vsel %vm6187, %v6140, %v6142
      %v6215 = vsel %vm6187, %v6142, %v6144
      %v6216 = vsel %vm6187, %v6144, %v6146
      %v6217 = vsel %vm6187, %v6146, %v6148
      %v6218 = vsel %vm6187, %v6148, %v6150
      %v6219 = vsel %vm6187, %v6150, %v6152
      %v6220 = vsel %vm6187, %v6152, %v6154
      %v6221 = vsel %vm6187, %v6154, %v6156
      %v6222 = vsel %vm6187, %v6156, %v6158
      %v6223 = vsel %vm6187, %v6158, %v6160
      %v6224 = vsel %vm6187, %v6160, %v6162
      %v6225 = vsel %vm6187, %v6162, %v6164
      %v6226 = vsel %vm6187, %v6164, %v6166
      %v6227 = vsel %vm6187, %v6166, %v6168
      %v6228 = vsel %vm6187, %v6168, %v6170
      %v6229 = vsel %vm6187, %v6170, %v6172
      %v6230 = vsel %vm6187, %v6172, %v6174
      %v6231 = vsel %vm6187, %v6174, %v6176
      %v6232 = vsel %vm6187, %v6176, %v6178
      %v6233 = vsel %vm6187, %v6178, %v6180
      %v6234 = vsel %vm6187, %v6180, %v6182
      %v6235 = vsel %vm6187, %v6182, %v6184
      %v6236 = vsel %vm6187, %v6184, %v6186
      %6286 = vst [vmem:[#allocation4 + $0x930] sm:$0xff] %v6188
      %6287 = vst [vmem:[#allocation4 + $0x938] sm:$0xff] %v6189
      %6288 = vst [vmem:[#allocation4 + $0x940] sm:$0xff] %v6190
      %6289 = vst [vmem:[#allocation4 + $0x948] sm:$0xff] %v6191
      %6290 = vst [vmem:[#allocation4 + $0x950] sm:$0xff] %v6192
      %6291 = vst [vmem:[#allocation4 + $0x958] sm:$0xff] %v6193
      %6292 = vst [vmem:[#allocation4 + $0x960] sm:$0xff] %v6194
      %6293 = vst [vmem:[#allocation4 + $0x968] sm:$0xff] %v6195
      %6294 = vst [vmem:[#allocation4 + $0x970] sm:$0xff] %v6196
      %6295 = vst [vmem:[#allocation4 + $0x978] sm:$0xff] %v6197
      %6296 = vst [vmem:[#allocation4 + $0x980] sm:$0xff] %v6198
      %6297 = vst [vmem:[#allocation4 + $0x988] sm:$0xff] %v6199
      %6298 = vst [vmem:[#allocation4 + $0x990] sm:$0xff] %v6200
      %6299 = vst [vmem:[#allocation4 + $0x998] sm:$0xff] %v6201
      %6300 = vst [vmem:[#allocation4 + $0x9a0] sm:$0xff] %v6202
      %6301 = vst [vmem:[#allocation4 + $0x9a8] sm:$0xff] %v6203
      %6302 = vst [vmem:[#allocation4 + $0x9b0] sm:$0xff] %v6204
      %6303 = vst [vmem:[#allocation4 + $0x9b8] sm:$0xff] %v6205
      %6304 = vst [vmem:[#allocation4 + $0x9c0] sm:$0xff] %v6206
      %6305 = vst [vmem:[#allocation4 + $0x9c8] sm:$0xff] %v6207
      %6306 = vst [vmem:[#allocation4 + $0x9d0] sm:$0xff] %v6208
      %6307 = vst [vmem:[#allocation4 + $0x9d8] sm:$0xff] %v6209
      %6308 = vst [vmem:[#allocation4 + $0x9e0] sm:$0xff] %v6210
      %6309 = vst [vmem:[#allocation4 + $0x9e8] sm:$0xff] %v6211
      %6310 = vst [vmem:[#allocation4 + $0x9f0] sm:$0xff] %v6212
      %6311 = vst [vmem:[#allocation4 + $0x9f8] sm:$0xff] %v6213
      %6312 = vst [vmem:[#allocation4 + $0xa00] sm:$0xff] %v6214
      %6313 = vst [vmem:[#allocation4 + $0xa08] sm:$0xff] %v6215
      %6314 = vst [vmem:[#allocation4 + $0xa10] sm:$0xff] %v6216
      %6315 = vst [vmem:[#allocation4 + $0xa18] sm:$0xff] %v6217
      %6316 = vst [vmem:[#allocation4 + $0xa20] sm:$0xff] %v6218
      %6317 = vst [vmem:[#allocation4 + $0xa28] sm:$0xff] %v6219
      %6318 = vst [vmem:[#allocation4 + $0xa30] sm:$0xff] %v6220
      %6319 = vst [vmem:[#allocation4 + $0xa38] sm:$0xff] %v6221
      %6320 = vst [vmem:[#allocation4 + $0xa40] sm:$0xff] %v6222
      %6321 = vst [vmem:[#allocation4 + $0xa48] sm:$0xff] %v6223
      %6322 = vst [vmem:[#allocation4 + $0xa50] sm:$0xff] %v6224
      %6323 = vst [vmem:[#allocation4 + $0xa58] sm:$0xff] %v6225
      %6324 = vst [vmem:[#allocation4 + $0xa60] sm:$0xff] %v6226
      %6325 = vst [vmem:[#allocation4 + $0xa68] sm:$0xff] %v6227
      %6326 = vst [vmem:[#allocation4 + $0xa70] sm:$0xff] %v6228
      %6327 = vst [vmem:[#allocation4 + $0xa78] sm:$0xff] %v6229
      %6328 = vst [vmem:[#allocation4 + $0xa80] sm:$0xff] %v6230
      %6329 = vst [vmem:[#allocation4 + $0xa88] sm:$0xff] %v6231
      %6330 = vst [vmem:[#allocation4 + $0xa90] sm:$0xff] %v6232
      %6331 = vst [vmem:[#allocation4 + $0xa98] sm:$0xff] %v6233
      %6332 = vst [vmem:[#allocation4 + $0xaa0] sm:$0xff] %v6234
      %6333 = vst [vmem:[#allocation4 + $0xaa8] sm:$0xff] %v6235
      %6334 = vst [vmem:[#allocation4 + $0xab0] sm:$0xff] %v6236
      %v6335 = vld [vmem:[%s2] sm:$0xff]
      %v6336 = vld [vmem:[#allocation4] sm:$0xff]
      %v6337 = vld [vmem:[#allocation4 + $0x8] sm:$0xff]
      %v6338 = vld [vmem:[#allocation4 + $0x10] sm:$0xff]
      %v6339 = vld [vmem:[#allocation4 + $0x18] sm:$0xff]
      %v6340 = vld [vmem:[#allocation4 + $0x20] sm:$0xff]
      %v6341 = vld [vmem:[#allocation4 + $0x28] sm:$0xff]
      %v6342 = vld [vmem:[#allocation4 + $0x30] sm:$0xff]
      %v6343 = vld [vmem:[#allocation4 + $0x38] sm:$0xff]
      %v6344 = vld [vmem:[#allocation4 + $0x40] sm:$0xff]
      %v6345 = vld [vmem:[#allocation4 + $0x48] sm:$0xff]
      %v6346 = vld [vmem:[#allocation4 + $0x50] sm:$0xff]
      %v6347 = vld [vmem:[#allocation4 + $0x58] sm:$0xff]
      %v6348 = vld [vmem:[#allocation4 + $0x60] sm:$0xff]
      %v6349 = vld [vmem:[#allocation4 + $0x68] sm:$0xff]
      %v6350 = vld [vmem:[#allocation4 + $0x70] sm:$0xff]
      %v6351 = vld [vmem:[#allocation4 + $0x78] sm:$0xff]
      %v6352 = vld [vmem:[#allocation4 + $0x80] sm:$0xff]
      %v6353 = vld [vmem:[#allocation4 + $0x88] sm:$0xff]
      %v6354 = vld [vmem:[#allocation4 + $0x90] sm:$0xff]
      %v6355 = vld [vmem:[#allocation4 + $0x98] sm:$0xff]
      %v6356 = vld [vmem:[#allocation4 + $0xa0] sm:$0xff]
      %v6357 = vld [vmem:[#allocation4 + $0xa8] sm:$0xff]
      %v6358 = vld [vmem:[#allocation4 + $0xb0] sm:$0xff]
      %v6359 = vld [vmem:[#allocation4 + $0xb8] sm:$0xff]
      %v6360 = vld [vmem:[#allocation4 + $0xc0] sm:$0xff]
      %v6361 = vld [vmem:[#allocation4 + $0xc8] sm:$0xff]
      %v6362 = vld [vmem:[#allocation4 + $0xd0] sm:$0xff]
      %v6363 = vld [vmem:[#allocation4 + $0xd8] sm:$0xff]
      %v6364 = vld [vmem:[#allocation4 + $0xe0] sm:$0xff]
      %v6365 = vld [vmem:[#allocation4 + $0xe8] sm:$0xff]
      %v6366 = vld [vmem:[#allocation4 + $0xf0] sm:$0xff]
      %v6367 = vld [vmem:[#allocation4 + $0xf8] sm:$0xff]
      %v6368 = vld [vmem:[#allocation4 + $0x100] sm:$0xff]
      %v6369 = vld [vmem:[#allocation4 + $0x108] sm:$0xff]
      %v6370 = vld [vmem:[#allocation4 + $0x110] sm:$0xff]
      %v6371 = vld [vmem:[#allocation4 + $0x118] sm:$0xff]
      %v6372 = vld [vmem:[#allocation4 + $0x120] sm:$0xff]
      %v6373 = vld [vmem:[#allocation4 + $0x128] sm:$0xff]
      %v6374 = vld [vmem:[#allocation4 + $0x130] sm:$0xff]
      %v6375 = vld [vmem:[#allocation4 + $0x138] sm:$0xff]
      %v6376 = vld [vmem:[#allocation4 + $0x140] sm:$0xff]
      %v6377 = vld [vmem:[#allocation4 + $0x148] sm:$0xff]
      %v6378 = vld [vmem:[#allocation4 + $0x150] sm:$0xff]
      %v6379 = vld [vmem:[#allocation4 + $0x158] sm:$0xff]
      %v6380 = vld [vmem:[#allocation4 + $0x160] sm:$0xff]
      %v6381 = vld [vmem:[#allocation4 + $0x168] sm:$0xff]
      %v6382 = vld [vmem:[#allocation4 + $0x170] sm:$0xff]
      %v6383 = vld [vmem:[#allocation4 + $0x178] sm:$0xff]
      %v6384 = vld [vmem:[#allocation4 + $0x180] sm:$0xff]
      %v6385 = vld [vmem:[#allocation4 + $0x188] sm:$0xff]
      %v6386 = vld [vmem:[#allocation4 + $0x190] sm:$0xff]
      %v6387 = vld [vmem:[#allocation4 + $0x198] sm:$0xff]
      %v6388 = vld [vmem:[#allocation4 + $0x1a0] sm:$0xff]
      %v6389 = vld [vmem:[#allocation4 + $0x1a8] sm:$0xff]
      %v6390 = vld [vmem:[#allocation4 + $0x1b0] sm:$0xff]
      %v6391 = vld [vmem:[#allocation4 + $0x1b8] sm:$0xff]
      %v6392 = vld [vmem:[#allocation4 + $0x1c0] sm:$0xff]
      %v6393 = vld [vmem:[#allocation4 + $0x1c8] sm:$0xff]
      %v6394 = vld [vmem:[#allocation4 + $0x1d0] sm:$0xff]
      %v6395 = vld [vmem:[#allocation4 + $0x1d8] sm:$0xff]
      %v6396 = vld [vmem:[#allocation4 + $0x1e0] sm:$0xff]
      %v6397 = vld [vmem:[#allocation4 + $0x1e8] sm:$0xff]
      %v6398 = vld [vmem:[#allocation4 + $0x1f0] sm:$0xff]
      %v6399 = vld [vmem:[#allocation4 + $0x1f8] sm:$0xff]
      %v6400 = vld [vmem:[#allocation4 + $0x200] sm:$0xff]
      %v6401 = vld [vmem:[#allocation4 + $0x208] sm:$0xff]
      %v6402 = vld [vmem:[#allocation4 + $0x210] sm:$0xff]
      %v6403 = vld [vmem:[#allocation4 + $0x218] sm:$0xff]
      %v6404 = vld [vmem:[#allocation4 + $0x220] sm:$0xff]
      %v6405 = vld [vmem:[#allocation4 + $0x228] sm:$0xff]
      %v6406 = vld [vmem:[#allocation4 + $0x230] sm:$0xff]
      %v6407 = vld [vmem:[#allocation4 + $0x238] sm:$0xff]
      %v6408 = vld [vmem:[#allocation4 + $0x240] sm:$0xff]
      %v6409 = vld [vmem:[#allocation4 + $0x248] sm:$0xff]
      %v6410 = vld [vmem:[#allocation4 + $0x250] sm:$0xff]
      %v6411 = vld [vmem:[#allocation4 + $0x258] sm:$0xff]
      %v6412 = vld [vmem:[#allocation4 + $0x260] sm:$0xff]
      %v6413 = vld [vmem:[#allocation4 + $0x268] sm:$0xff]
      %v6414 = vld [vmem:[#allocation4 + $0x270] sm:$0xff]
      %v6415 = vld [vmem:[#allocation4 + $0x278] sm:$0xff]
      %v6416 = vld [vmem:[#allocation4 + $0x280] sm:$0xff]
      %v6417 = vld [vmem:[#allocation4 + $0x288] sm:$0xff]
      %v6418 = vld [vmem:[#allocation4 + $0x290] sm:$0xff]
      %v6419 = vld [vmem:[#allocation4 + $0x298] sm:$0xff]
      %v6420 = vld [vmem:[#allocation4 + $0x2a0] sm:$0xff]
      %v6421 = vld [vmem:[#allocation4 + $0x2a8] sm:$0xff]
      %v6422 = vld [vmem:[#allocation4 + $0x2b0] sm:$0xff]
      %v6423 = vld [vmem:[#allocation4 + $0x2b8] sm:$0xff]
      %v6424 = vld [vmem:[#allocation4 + $0x2c0] sm:$0xff]
      %v6425 = vld [vmem:[#allocation4 + $0x2c8] sm:$0xff]
      %v6426 = vld [vmem:[#allocation4 + $0x2d0] sm:$0xff]
      %v6427 = vld [vmem:[#allocation4 + $0x2d8] sm:$0xff]
      %v6428 = vld [vmem:[#allocation4 + $0x2e0] sm:$0xff]
      %v6429 = vld [vmem:[#allocation4 + $0x2e8] sm:$0xff]
      %v6430 = vld [vmem:[#allocation4 + $0x2f0] sm:$0xff]
      %v6431 = vld [vmem:[#allocation4 + $0x2f8] sm:$0xff]
      %v6432 = vld [vmem:[#allocation4 + $0x300] sm:$0xff]
      %v6433 = vld [vmem:[#allocation4 + $0x308] sm:$0xff]
      %v6434 = vld [vmem:[#allocation4 + $0x310] sm:$0xff]
      %v6435 = vld [vmem:[#allocation4 + $0x318] sm:$0xff]
      %v6436 = vld [vmem:[#allocation4 + $0x320] sm:$0xff]
      %v6437 = vld [vmem:[#allocation4 + $0x328] sm:$0xff]
      %v6438 = vld [vmem:[#allocation4 + $0x330] sm:$0xff]
      %v6439 = vld [vmem:[#allocation4 + $0x338] sm:$0xff]
      %v6440 = vld [vmem:[#allocation4 + $0x340] sm:$0xff]
      %v6441 = vld [vmem:[#allocation4 + $0x348] sm:$0xff]
      %v6442 = vld [vmem:[#allocation4 + $0x350] sm:$0xff]
      %v6443 = vld [vmem:[#allocation4 + $0x358] sm:$0xff]
      %v6444 = vld [vmem:[#allocation4 + $0x360] sm:$0xff]
      %v6445 = vld [vmem:[#allocation4 + $0x368] sm:$0xff]
      %v6446 = vld [vmem:[#allocation4 + $0x370] sm:$0xff]
      %v6447 = vld [vmem:[#allocation4 + $0x378] sm:$0xff]
      %v6448 = vld [vmem:[#allocation4 + $0x380] sm:$0xff]
      %v6449 = vld [vmem:[#allocation4 + $0x388] sm:$0xff]
      %v6450 = vld [vmem:[#allocation4 + $0x390] sm:$0xff]
      %v6451 = vld [vmem:[#allocation4 + $0x398] sm:$0xff]
      %v6452 = vld [vmem:[#allocation4 + $0x3a0] sm:$0xff]
      %v6453 = vld [vmem:[#allocation4 + $0x3a8] sm:$0xff]
      %v6454 = vld [vmem:[#allocation4 + $0x3b0] sm:$0xff]
      %v6455 = vld [vmem:[#allocation4 + $0x3b8] sm:$0xff]
      %v6456 = vld [vmem:[#allocation4 + $0x3c0] sm:$0xff]
      %v6457 = vld [vmem:[#allocation4 + $0x3c8] sm:$0xff]
      %v6458 = vld [vmem:[#allocation4 + $0x3d0] sm:$0xff]
      %v6459 = vld [vmem:[#allocation4 + $0x3d8] sm:$0xff]
      %v6460 = vld [vmem:[#allocation4 + $0x3e0] sm:$0xff]
      %v6461 = vld [vmem:[#allocation4 + $0x3e8] sm:$0xff]
      %v6462 = vld [vmem:[#allocation4 + $0x3f0] sm:$0xff]
      %v6463 = vld [vmem:[#allocation4 + $0x3f8] sm:$0xff]
      %v6464 = vld [vmem:[#allocation4 + $0x400] sm:$0xff]
      %v6465 = vld [vmem:[#allocation4 + $0x408] sm:$0xff]
      %v6466 = vld [vmem:[#allocation4 + $0x410] sm:$0xff]
      %v6467 = vld [vmem:[#allocation4 + $0x418] sm:$0xff]
      %v6468 = vld [vmem:[#allocation4 + $0x420] sm:$0xff]
      %v6469 = vld [vmem:[#allocation4 + $0x428] sm:$0xff]
      %v6470 = vld [vmem:[#allocation4 + $0x430] sm:$0xff]
      %v6471 = vld [vmem:[#allocation4 + $0x438] sm:$0xff]
      %v6472 = vld [vmem:[#allocation4 + $0x440] sm:$0xff]
      %v6473 = vld [vmem:[#allocation4 + $0x448] sm:$0xff]
      %v6474 = vld [vmem:[#allocation4 + $0x450] sm:$0xff]
      %v6475 = vld [vmem:[#allocation4 + $0x458] sm:$0xff]
      %v6476 = vld [vmem:[#allocation4 + $0x460] sm:$0xff]
      %v6477 = vld [vmem:[#allocation4 + $0x468] sm:$0xff]
      %v6478 = vld [vmem:[#allocation4 + $0x470] sm:$0xff]
      %v6479 = vld [vmem:[#allocation4 + $0x478] sm:$0xff]
      %v6480 = vld [vmem:[#allocation4 + $0x480] sm:$0xff]
      %v6481 = vld [vmem:[#allocation4 + $0x488] sm:$0xff]
      %v6482 = vld [vmem:[#allocation4 + $0x490] sm:$0xff]
      %v6483 = vld [vmem:[#allocation4 + $0x498] sm:$0xff]
      %v6484 = vld [vmem:[#allocation4 + $0x4a0] sm:$0xff]
      %v6485 = vld [vmem:[#allocation4 + $0x4a8] sm:$0xff]
      %v6486 = vld [vmem:[#allocation4 + $0x4b0] sm:$0xff]
      %v6487 = vld [vmem:[#allocation4 + $0x4b8] sm:$0xff]
      %v6488 = vld [vmem:[#allocation4 + $0x4c0] sm:$0xff]
      %v6489 = vld [vmem:[#allocation4 + $0x4c8] sm:$0xff]
      %v6490 = vld [vmem:[#allocation4 + $0x4d0] sm:$0xff]
      %v6491 = vld [vmem:[#allocation4 + $0x4d8] sm:$0xff]
      %v6492 = vld [vmem:[#allocation4 + $0x4e0] sm:$0xff]
      %v6493 = vld [vmem:[#allocation4 + $0x4e8] sm:$0xff]
      %v6494 = vld [vmem:[#allocation4 + $0x4f0] sm:$0xff]
      %v6495 = vld [vmem:[#allocation4 + $0x4f8] sm:$0xff]
      %v6496 = vld [vmem:[#allocation4 + $0x500] sm:$0xff]
      %v6497 = vld [vmem:[#allocation4 + $0x508] sm:$0xff]
      %v6498 = vld [vmem:[#allocation4 + $0x510] sm:$0xff]
      %v6499 = vld [vmem:[#allocation4 + $0x518] sm:$0xff]
      %v6500 = vld [vmem:[#allocation4 + $0x520] sm:$0xff]
      %v6501 = vld [vmem:[#allocation4 + $0x528] sm:$0xff]
      %v6502 = vld [vmem:[#allocation4 + $0x530] sm:$0xff]
      %v6503 = vld [vmem:[#allocation4 + $0x538] sm:$0xff]
      %v6504 = vld [vmem:[#allocation4 + $0x540] sm:$0xff]
      %v6505 = vld [vmem:[#allocation4 + $0x548] sm:$0xff]
      %v6506 = vld [vmem:[#allocation4 + $0x550] sm:$0xff]
      %v6507 = vld [vmem:[#allocation4 + $0x558] sm:$0xff]
      %v6508 = vld [vmem:[#allocation4 + $0x560] sm:$0xff]
      %v6509 = vld [vmem:[#allocation4 + $0x568] sm:$0xff]
      %v6510 = vld [vmem:[#allocation4 + $0x570] sm:$0xff]
      %v6511 = vld [vmem:[#allocation4 + $0x578] sm:$0xff]
      %v6512 = vld [vmem:[#allocation4 + $0x580] sm:$0xff]
      %v6513 = vld [vmem:[#allocation4 + $0x588] sm:$0xff]
      %v6514 = vld [vmem:[#allocation4 + $0x590] sm:$0xff]
      %v6515 = vld [vmem:[#allocation4 + $0x598] sm:$0xff]
      %v6516 = vld [vmem:[#allocation4 + $0x5a0] sm:$0xff]
      %v6517 = vld [vmem:[#allocation4 + $0x5a8] sm:$0xff]
      %v6518 = vld [vmem:[#allocation4 + $0x5b0] sm:$0xff]
      %v6519 = vld [vmem:[#allocation4 + $0x5b8] sm:$0xff]
      %v6520 = vld [vmem:[#allocation4 + $0x5c0] sm:$0xff]
      %v6521 = vld [vmem:[#allocation4 + $0x5c8] sm:$0xff]
      %v6522 = vld [vmem:[#allocation4 + $0x5d0] sm:$0xff]
      %v6523 = vld [vmem:[#allocation4 + $0x5d8] sm:$0xff]
      %v6524 = vld [vmem:[#allocation4 + $0x5e0] sm:$0xff]
      %v6525 = vld [vmem:[#allocation4 + $0x5e8] sm:$0xff]
      %v6526 = vld [vmem:[#allocation4 + $0x5f0] sm:$0xff]
      %v6527 = vld [vmem:[#allocation4 + $0x5f8] sm:$0xff]
      %v6528 = vld [vmem:[#allocation4 + $0x600] sm:$0xff]
      %v6529 = vld [vmem:[#allocation4 + $0x608] sm:$0xff]
      %v6530 = vld [vmem:[#allocation4 + $0x610] sm:$0xff]
      %v6531 = vld [vmem:[#allocation4 + $0x618] sm:$0xff]
      %v6532 = vld [vmem:[#allocation4 + $0x620] sm:$0xff]
      %v6533 = vld [vmem:[#allocation4 + $0x628] sm:$0xff]
      %v6534 = vld [vmem:[#allocation4 + $0x630] sm:$0xff]
      %v6535 = vld [vmem:[#allocation4 + $0x638] sm:$0xff]
      %v6536 = vld [vmem:[#allocation4 + $0x640] sm:$0xff]
      %v6537 = vld [vmem:[#allocation4 + $0x648] sm:$0xff]
      %v6538 = vld [vmem:[#allocation4 + $0x650] sm:$0xff]
      %v6539 = vld [vmem:[#allocation4 + $0x658] sm:$0xff]
      %v6540 = vld [vmem:[#allocation4 + $0x660] sm:$0xff]
      %v6541 = vld [vmem:[#allocation4 + $0x668] sm:$0xff]
      %v6542 = vld [vmem:[#allocation4 + $0x670] sm:$0xff]
      %v6543 = vld [vmem:[#allocation4 + $0x678] sm:$0xff]
      %v6544 = vld [vmem:[#allocation4 + $0x680] sm:$0xff]
      %v6545 = vld [vmem:[#allocation4 + $0x688] sm:$0xff]
      %v6546 = vld [vmem:[#allocation4 + $0x690] sm:$0xff]
      %v6547 = vld [vmem:[#allocation4 + $0x698] sm:$0xff]
      %v6548 = vld [vmem:[#allocation4 + $0x6a0] sm:$0xff]
      %v6549 = vld [vmem:[#allocation4 + $0x6a8] sm:$0xff]
      %v6550 = vld [vmem:[#allocation4 + $0x6b0] sm:$0xff]
      %v6551 = vld [vmem:[#allocation4 + $0x6b8] sm:$0xff]
      %v6552 = vld [vmem:[#allocation4 + $0x6c0] sm:$0xff]
      %v6553 = vld [vmem:[#allocation4 + $0x6c8] sm:$0xff]
      %v6554 = vld [vmem:[#allocation4 + $0x6d0] sm:$0xff]
      %v6555 = vld [vmem:[#allocation4 + $0x6d8] sm:$0xff]
      %v6556 = vld [vmem:[#allocation4 + $0x6e0] sm:$0xff]
      %v6557 = vld [vmem:[#allocation4 + $0x6e8] sm:$0xff]
      %v6558 = vld [vmem:[#allocation4 + $0x6f0] sm:$0xff]
      %v6559 = vld [vmem:[#allocation4 + $0x6f8] sm:$0xff]
      %v6560 = vld [vmem:[#allocation4 + $0x700] sm:$0xff]
      %v6561 = vld [vmem:[#allocation4 + $0x708] sm:$0xff]
      %v6562 = vld [vmem:[#allocation4 + $0x710] sm:$0xff]
      %v6563 = vld [vmem:[#allocation4 + $0x718] sm:$0xff]
      %v6564 = vld [vmem:[#allocation4 + $0x720] sm:$0xff]
      %v6565 = vld [vmem:[#allocation4 + $0x728] sm:$0xff]
      %v6566 = vld [vmem:[#allocation4 + $0x730] sm:$0xff]
      %v6567 = vld [vmem:[#allocation4 + $0x738] sm:$0xff]
      %v6568 = vld [vmem:[#allocation4 + $0x740] sm:$0xff]
      %v6569 = vld [vmem:[#allocation4 + $0x748] sm:$0xff]
      %v6570 = vld [vmem:[#allocation4 + $0x750] sm:$0xff]
      %v6571 = vld [vmem:[#allocation4 + $0x758] sm:$0xff]
      %v6572 = vld [vmem:[#allocation4 + $0x760] sm:$0xff]
      %v6573 = vld [vmem:[#allocation4 + $0x768] sm:$0xff]
      %v6574 = vld [vmem:[#allocation4 + $0x770] sm:$0xff]
      %v6575 = vld [vmem:[#allocation4 + $0x778] sm:$0xff]
      %v6576 = vld [vmem:[#allocation4 + $0x780] sm:$0xff]
      %v6577 = vld [vmem:[#allocation4 + $0x788] sm:$0xff]
      %v6578 = vld [vmem:[#allocation4 + $0x790] sm:$0xff]
      %v6579 = vld [vmem:[#allocation4 + $0x798] sm:$0xff]
      %v6580 = vld [vmem:[#allocation4 + $0x7a0] sm:$0xff]
      %v6581 = vld [vmem:[#allocation4 + $0x7a8] sm:$0xff]
      %v6582 = vld [vmem:[#allocation4 + $0x7b0] sm:$0xff]
      %v6583 = vld [vmem:[#allocation4 + $0x7b8] sm:$0xff]
      %v6584 = vld [vmem:[#allocation4 + $0x7c0] sm:$0xff]
      %v6585 = vld [vmem:[#allocation4 + $0x7c8] sm:$0xff]
      %v6586 = vld [vmem:[#allocation4 + $0x7d0] sm:$0xff]
      %v6587 = vld [vmem:[#allocation4 + $0x7d8] sm:$0xff]
      %v6588 = vld [vmem:[#allocation4 + $0x7e0] sm:$0xff]
      %v6589 = vld [vmem:[#allocation4 + $0x7e8] sm:$0xff]
      %v6590 = vld [vmem:[#allocation4 + $0x7f0] sm:$0xff]
      %v6591 = vld [vmem:[#allocation4 + $0x7f8] sm:$0xff]
      %v6592 = vld [vmem:[#allocation4 + $0x800] sm:$0xff]
      %v6593 = vld [vmem:[#allocation4 + $0x808] sm:$0xff]
      %v6594 = vld [vmem:[#allocation4 + $0x810] sm:$0xff]
      %v6595 = vld [vmem:[#allocation4 + $0x818] sm:$0xff]
      %v6596 = vld [vmem:[#allocation4 + $0x820] sm:$0xff]
      %v6597 = vld [vmem:[#allocation4 + $0x828] sm:$0xff]
      %v6598 = vld [vmem:[#allocation4 + $0x830] sm:$0xff]
      %v6599 = vld [vmem:[#allocation4 + $0x838] sm:$0xff]
      %v6600 = vld [vmem:[#allocation4 + $0x840] sm:$0xff]
      %v6601 = vld [vmem:[#allocation4 + $0x848] sm:$0xff]
      %v6602 = vld [vmem:[#allocation4 + $0x850] sm:$0xff]
      %v6603 = vld [vmem:[#allocation4 + $0x858] sm:$0xff]
      %v6604 = vld [vmem:[#allocation4 + $0x860] sm:$0xff]
      %v6605 = vld [vmem:[#allocation4 + $0x868] sm:$0xff]
      %v6606 = vld [vmem:[#allocation4 + $0x870] sm:$0xff]
      %v6607 = vld [vmem:[#allocation4 + $0x878] sm:$0xff]
      %v6608 = vld [vmem:[#allocation4 + $0x880] sm:$0xff]
      %v6609 = vld [vmem:[#allocation4 + $0x888] sm:$0xff]
      %v6610 = vld [vmem:[#allocation4 + $0x890] sm:$0xff]
      %v6611 = vld [vmem:[#allocation4 + $0x898] sm:$0xff]
      %v6612 = vld [vmem:[#allocation4 + $0x8a0] sm:$0xff]
      %v6613 = vld [vmem:[#allocation4 + $0x8a8] sm:$0xff]
      %v6614 = vld [vmem:[#allocation4 + $0x8b0] sm:$0xff]
      %v6615 = vld [vmem:[#allocation4 + $0x8b8] sm:$0xff]
      %v6616 = vld [vmem:[#allocation4 + $0x8c0] sm:$0xff]
      %v6617 = vld [vmem:[#allocation4 + $0x8c8] sm:$0xff]
      %v6618 = vld [vmem:[#allocation4 + $0x8d0] sm:$0xff]
      %v6619 = vld [vmem:[#allocation4 + $0x8d8] sm:$0xff]
      %v6620 = vld [vmem:[#allocation4 + $0x8e0] sm:$0xff]
      %v6621 = vld [vmem:[#allocation4 + $0x8e8] sm:$0xff]
      %v6622 = vld [vmem:[#allocation4 + $0x8f0] sm:$0xff]
      %v6623 = vld [vmem:[#allocation4 + $0x8f8] sm:$0xff]
      %v6624 = vld [vmem:[#allocation4 + $0x900] sm:$0xff]
      %v6625 = vld [vmem:[#allocation4 + $0x908] sm:$0xff]
      %v6626 = vld [vmem:[#allocation4 + $0x910] sm:$0xff]
      %v6627 = vld [vmem:[#allocation4 + $0x918] sm:$0xff]
      %v6628 = vld [vmem:[#allocation4 + $0x920] sm:$0xff]
      %v6629 = vld [vmem:[#allocation4 + $0x928] sm:$0xff]
      %v6630 = vld [vmem:[#allocation4 + $0x930] sm:$0xff]
      %v6631 = vld [vmem:[#allocation4 + $0x938] sm:$0xff]
      %v6632 = vld [vmem:[#allocation4 + $0x940] sm:$0xff]
      %v6633 = vld [vmem:[#allocation4 + $0x948] sm:$0xff]
      %v6634 = vld [vmem:[#allocation4 + $0x950] sm:$0xff]
      %v6635 = vld [vmem:[#allocation4 + $0x958] sm:$0xff]
      %v6636 = vld [vmem:[#allocation4 + $0x960] sm:$0xff]
      %v6637 = vld [vmem:[#allocation4 + $0x968] sm:$0xff]
      %v6638 = vld [vmem:[#allocation4 + $0x970] sm:$0xff]
      %v6639 = vld [vmem:[#allocation4 + $0x978] sm:$0xff]
      %v6640 = vld [vmem:[#allocation4 + $0x980] sm:$0xff]
      %v6641 = vld [vmem:[#allocation4 + $0x988] sm:$0xff]
      %v6642 = vld [vmem:[#allocation4 + $0x990] sm:$0xff]
      %v6643 = vld [vmem:[#allocation4 + $0x998] sm:$0xff]
      %v6644 = vld [vmem:[#allocation4 + $0x9a0] sm:$0xff]
      %v6645 = vld [vmem:[#allocation4 + $0x9a8] sm:$0xff]
      %v6646 = vld [vmem:[#allocation4 + $0x9b0] sm:$0xff]
      %v6647 = vld [vmem:[#allocation4 + $0x9b8] sm:$0xff]
      %v6648 = vld [vmem:[#allocation4 + $0x9c0] sm:$0xff]
      %v6649 = vld [vmem:[#allocation4 + $0x9c8] sm:$0xff]
      %v6650 = vld [vmem:[#allocation4 + $0x9d0] sm:$0xff]
      %v6651 = vld [vmem:[#allocation4 + $0x9d8] sm:$0xff]
      %v6652 = vld [vmem:[#allocation4 + $0x9e0] sm:$0xff]
      %v6653 = vld [vmem:[#allocation4 + $0x9e8] sm:$0xff]
      %v6654 = vld [vmem:[#allocation4 + $0x9f0] sm:$0xff]
      %v6655 = vld [vmem:[#allocation4 + $0x9f8] sm:$0xff]
      %v6656 = vld [vmem:[#allocation4 + $0xa00] sm:$0xff]
      %v6657 = vld [vmem:[#allocation4 + $0xa08] sm:$0xff]
      %v6658 = vld [vmem:[#allocation4 + $0xa10] sm:$0xff]
      %v6659 = vld [vmem:[#allocation4 + $0xa18] sm:$0xff]
      %v6660 = vld [vmem:[#allocation4 + $0xa20] sm:$0xff]
      %v6661 = vld [vmem:[#allocation4 + $0xa28] sm:$0xff]
      %v6662 = vld [vmem:[#allocation4 + $0xa30] sm:$0xff]
      %v6663 = vld [vmem:[#allocation4 + $0xa38] sm:$0xff]
      %v6664 = vld [vmem:[#allocation4 + $0xa40] sm:$0xff]
      %v6665 = vld [vmem:[#allocation4 + $0xa48] sm:$0xff]
      %v6666 = vld [vmem:[#allocation4 + $0xa50] sm:$0xff]
      %v6667 = vld [vmem:[#allocation4 + $0xa58] sm:$0xff]
      %v6668 = vld [vmem:[#allocation4 + $0xa60] sm:$0xff]
      %v6669 = vld [vmem:[#allocation4 + $0xa68] sm:$0xff]
      %v6670 = vld [vmem:[#allocation4 + $0xa70] sm:$0xff]
      %v6671 = vld [vmem:[#allocation4 + $0xa78] sm:$0xff]
      %v6672 = vld [vmem:[#allocation4 + $0xa80] sm:$0xff]
      %v6673 = vld [vmem:[#allocation4 + $0xa88] sm:$0xff]
      %v6674 = vld [vmem:[#allocation4 + $0xa90] sm:$0xff]
      %v6675 = vld [vmem:[#allocation4 + $0xa98] sm:$0xff]
      %v6676 = vld [vmem:[#allocation4 + $0xaa0] sm:$0xff]
      %v6677 = vld [vmem:[#allocation4 + $0xaa8] sm:$0xff]
      %v6678 = vld [vmem:[#allocation4 + $0xab0] sm:$0xff]
      %v6679 = vld [vmem:[%s4] sm:$0xff]
      %v6680 = vld [vmem:[%s4 + $0x8] sm:$0xff]
      %v6681 = vld [vmem:[%s4 + $0x10] sm:$0xff]
      %v6682 = vld [vmem:[%s4 + $0x18] sm:$0xff]
      %v6683 = vld [vmem:[%s4 + $0x20] sm:$0xff]
      %v6684 = vld [vmem:[%s4 + $0x28] sm:$0xff]
      %v6685 = vld [vmem:[%s4 + $0x30] sm:$0xff]
      %v6686 = vld [vmem:[%s4 + $0x38] sm:$0xff]
      %v6687 = vld [vmem:[%s4 + $0x40] sm:$0xff]
      %v6688 = vld [vmem:[%s4 + $0x48] sm:$0xff]
      %v6689 = vld [vmem:[%s4 + $0x50] sm:$0xff]
      %v6690 = vld [vmem:[%s4 + $0x58] sm:$0xff]
      %v6691 = vld [vmem:[%s4 + $0x60] sm:$0xff]
      %v6692 = vld [vmem:[%s4 + $0x68] sm:$0xff]
      %v6693 = vld [vmem:[%s4 + $0x70] sm:$0xff]
      %v6694 = vld [vmem:[%s4 + $0x78] sm:$0xff]
      %v6695 = vld [vmem:[%s4 + $0x80] sm:$0xff]
      %v6696 = vld [vmem:[%s4 + $0x88] sm:$0xff]
      %v6697 = vld [vmem:[%s4 + $0x90] sm:$0xff]
      %v6698 = vld [vmem:[%s4 + $0x98] sm:$0xff]
      %v6699 = vld [vmem:[%s4 + $0xa0] sm:$0xff]
      %v6700 = vld [vmem:[%s4 + $0xa8] sm:$0xff]
      %v6701 = vld [vmem:[%s4 + $0xb0] sm:$0xff]
      %v6702 = vld [vmem:[%s4 + $0xb8] sm:$0xff]
      %v6703 = vld [vmem:[%s4 + $0xc0] sm:$0xff]
      %v6704 = vld [vmem:[%s4 + $0xc8] sm:$0xff]
      %v6705 = vld [vmem:[%s4 + $0xd0] sm:$0xff]
      %v6706 = vld [vmem:[%s4 + $0xd8] sm:$0xff]
      %v6707 = vld [vmem:[%s4 + $0xe0] sm:$0xff]
      %v6708 = vld [vmem:[%s4 + $0xe8] sm:$0xff]
      %v6709 = vld [vmem:[%s4 + $0xf0] sm:$0xff]
      %v6710 = vld [vmem:[%s4 + $0xf8] sm:$0xff]
      %v6711 = vld [vmem:[%s4 + $0x100] sm:$0xff]
      %v6712 = vld [vmem:[%s4 + $0x108] sm:$0xff]
      %v6713 = vld [vmem:[%s4 + $0x110] sm:$0xff]
      %v6714 = vld [vmem:[%s4 + $0x118] sm:$0xff]
      %v6715 = vld [vmem:[%s4 + $0x120] sm:$0xff]
      %v6716 = vld [vmem:[%s4 + $0x128] sm:$0xff]
      %v6717 = vld [vmem:[%s4 + $0x130] sm:$0xff]
      %v6718 = vld [vmem:[%s4 + $0x138] sm:$0xff]
      %v6719 = vld [vmem:[%s4 + $0x140] sm:$0xff]
      %v6720 = vld [vmem:[%s4 + $0x148] sm:$0xff]
      %v6721 = vld [vmem:[%s4 + $0x150] sm:$0xff]
      %v6722 = vld [vmem:[%s4 + $0x158] sm:$0xff]
      %v6723 = vld [vmem:[%s4 + $0x160] sm:$0xff]
      %v6724 = vld [vmem:[%s4 + $0x168] sm:$0xff]
      %v6725 = vld [vmem:[%s4 + $0x170] sm:$0xff]
      %v6726 = vld [vmem:[%s4 + $0x178] sm:$0xff]
      %v6727 = vld [vmem:[%s4 + $0x180] sm:$0xff]
      %v6729 = vsel %vm2729, %v6335, 0
      %6731 = vmatpush.msra.mxu0 0.0
      %6732 = vmatpush.msra.mxu0 0.0
      %6733 = vmatpush.msra.mxu0 0.0
      %6734 = vmatpush.msra.mxu0 0.0
      %6735 = vmatpush.msra.mxu0 0.0
      %6736 = vmatpush.msra.mxu0 0.0
      %6737 = vmatpush.msra.mxu0 0.0
      %6738 = vmatpush.msra.mxu0 0.0
      %6739 = vmatpush.msra.mxu0 0.0
      %6740 = vmatpush.msra.mxu0 %v6630
      %6741 = vmatpush.msra.mxu0 %v6581
      %6742 = vmatpush.msra.mxu0 %v6532
      %6743 = vmatpush.msra.mxu0 %v6483
      %6744 = vmatpush.msra.mxu0 %v6434
      %6745 = vmatpush.msra.mxu0 %v6385
      %6746 = vmatpush.msra.mxu0 %v6336
      %6747 = vmatmul.f32.gmra.mxu0 %v6729
      %v6748 = vpop.f32.mrf.mxu0
      %v6749 = vadd.f32 %v6679, %v6748
      %6750 = vdwg.mxu0
      %6751 = vmatpush.msra.mxu0 0.0
      %6752 = vmatpush.msra.mxu0 0.0
      %6753 = vmatpush.msra.mxu0 0.0
      %6754 = vmatpush.msra.mxu0 0.0
      %6755 = vmatpush.msra.mxu0 0.0
      %6756 = vmatpush.msra.mxu0 0.0
      %6757 = vmatpush.msra.mxu0 0.0
      %6758 = vmatpush.msra.mxu0 0.0
      %6759 = vmatpush.msra.mxu0 0.0
      %6760 = vmatpush.msra.mxu0 %v6631
      %6761 = vmatpush.msra.mxu0 %v6582
      %6762 = vmatpush.msra.mxu0 %v6533
      %6763 = vmatpush.msra.mxu0 %v6484
      %6764 = vmatpush.msra.mxu0 %v6435
      %6765 = vmatpush.msra.mxu0 %v6386
      %6766 = vmatpush.msra.mxu0 %v6337
      %6767 = vmatmul.f32.gmra.mxu0 %v6729
      %v6768 = vpop.f32.mrf.mxu0
      %v6769 = vadd.f32 %v6680, %v6768
      %6770 = vdwg.mxu0
      %6771 = vmatpush.msra.mxu0 0.0
      %6772 = vmatpush.msra.mxu0 0.0
      %6773 = vmatpush.msra.mxu0 0.0
      %6774 = vmatpush.msra.mxu0 0.0
      %6775 = vmatpush.msra.mxu0 0.0
      %6776 = vmatpush.msra.mxu0 0.0
      %6777 = vmatpush.msra.mxu0 0.0
      %6778 = vmatpush.msra.mxu0 0.0
      %6779 = vmatpush.msra.mxu0 0.0
      %6780 = vmatpush.msra.mxu0 %v6632
      %6781 = vmatpush.msra.mxu0 %v6583
      %6782 = vmatpush.msra.mxu0 %v6534
      %6783 = vmatpush.msra.mxu0 %v6485
      %6784 = vmatpush.msra.mxu0 %v6436
      %6785 = vmatpush.msra.mxu0 %v6387
      %6786 = vmatpush.msra.mxu0 %v6338
      %6787 = vmatmul.f32.gmra.mxu0 %v6729
      %v6788 = vpop.f32.mrf.mxu0
      %v6789 = vadd.f32 %v6681, %v6788
      %6790 = vdwg.mxu0
      %6791 = vmatpush.msra.mxu0 0.0
      %6792 = vmatpush.msra.mxu0 0.0
      %6793 = vmatpush.msra.mxu0 0.0
      %6794 = vmatpush.msra.mxu0 0.0
      %6795 = vmatpush.msra.mxu0 0.0
      %6796 = vmatpush.msra.mxu0 0.0
      %6797 = vmatpush.msra.mxu0 0.0
      %6798 = vmatpush.msra.mxu0 0.0
      %6799 = vmatpush.msra.mxu0 0.0
      %6800 = vmatpush.msra.mxu0 %v6633
      %6801 = vmatpush.msra.mxu0 %v6584
      %6802 = vmatpush.msra.mxu0 %v6535
      %6803 = vmatpush.msra.mxu0 %v6486
      %6804 = vmatpush.msra.mxu0 %v6437
      %6805 = vmatpush.msra.mxu0 %v6388
      %6806 = vmatpush.msra.mxu0 %v6339
      %6807 = vmatmul.f32.gmra.mxu0 %v6729
      %v6808 = vpop.f32.mrf.mxu0
      %v6809 = vadd.f32 %v6682, %v6808
      %6810 = vdwg.mxu0
      %6811 = vmatpush.msra.mxu0 0.0
      %6812 = vmatpush.msra.mxu0 0.0
      %6813 = vmatpush.msra.mxu0 0.0
      %6814 = vmatpush.msra.mxu0 0.0
      %6815 = vmatpush.msra.mxu0 0.0
      %6816 = vmatpush.msra.mxu0 0.0
      %6817 = vmatpush.msra.mxu0 0.0
      %6818 = vmatpush.msra.mxu0 0.0
      %6819 = vmatpush.msra.mxu0 0.0
      %6820 = vmatpush.msra.mxu0 %v6634
      %6821 = vmatpush.msra.mxu0 %v6585
      %6822 = vmatpush.msra.mxu0 %v6536
      %6823 = vmatpush.msra.mxu0 %v6487
      %6824 = vmatpush.msra.mxu0 %v6438
      %6825 = vmatpush.msra.mxu0 %v6389
      %6826 = vmatpush.msra.mxu0 %v6340
      %6827 = vmatmul.f32.gmra.mxu0 %v6729
      %v6828 = vpop.f32.mrf.mxu0
      %v6829 = vadd.f32 %v6683, %v6828
      %6830 = vdwg.mxu0
      %6831 = vmatpush.msra.mxu0 0.0
      %6832 = vmatpush.msra.mxu0 0.0
      %6833 = vmatpush.msra.mxu0 0.0
      %6834 = vmatpush.msra.mxu0 0.0
      %6835 = vmatpush.msra.mxu0 0.0
      %6836 = vmatpush.msra.mxu0 0.0
      %6837 = vmatpush.msra.mxu0 0.0
      %6838 = vmatpush.msra.mxu0 0.0
      %6839 = vmatpush.msra.mxu0 0.0
      %6840 = vmatpush.msra.mxu0 %v6635
      %6841 = vmatpush.msra.mxu0 %v6586
      %6842 = vmatpush.msra.mxu0 %v6537
      %6843 = vmatpush.msra.mxu0 %v6488
      %6844 = vmatpush.msra.mxu0 %v6439
      %6845 = vmatpush.msra.mxu0 %v6390
      %6846 = vmatpush.msra.mxu0 %v6341
      %6847 = vmatmul.f32.gmra.mxu0 %v6729
      %v6848 = vpop.f32.mrf.mxu0
      %v6849 = vadd.f32 %v6684, %v6848
      %6850 = vdwg.mxu0
      %6851 = vmatpush.msra.mxu0 0.0
      %6852 = vmatpush.msra.mxu0 0.0
      %6853 = vmatpush.msra.mxu0 0.0
      %6854 = vmatpush.msra.mxu0 0.0
      %6855 = vmatpush.msra.mxu0 0.0
      %6856 = vmatpush.msra.mxu0 0.0
      %6857 = vmatpush.msra.mxu0 0.0
      %6858 = vmatpush.msra.mxu0 0.0
      %6859 = vmatpush.msra.mxu0 0.0
      %6860 = vmatpush.msra.mxu0 %v6636
      %6861 = vmatpush.msra.mxu0 %v6587
      %6862 = vmatpush.msra.mxu0 %v6538
      %6863 = vmatpush.msra.mxu0 %v6489
      %6864 = vmatpush.msra.mxu0 %v6440
      %6865 = vmatpush.msra.mxu0 %v6391
      %6866 = vmatpush.msra.mxu0 %v6342
      %6867 = vmatmul.f32.gmra.mxu0 %v6729
      %v6868 = vpop.f32.mrf.mxu0
      %v6869 = vadd.f32 %v6685, %v6868
      %6870 = vdwg.mxu0
      %6871 = vmatpush.msra.mxu0 0.0
      %6872 = vmatpush.msra.mxu0 0.0
      %6873 = vmatpush.msra.mxu0 0.0
      %6874 = vmatpush.msra.mxu0 0.0
      %6875 = vmatpush.msra.mxu0 0.0
      %6876 = vmatpush.msra.mxu0 0.0
      %6877 = vmatpush.msra.mxu0 0.0
      %6878 = vmatpush.msra.mxu0 0.0
      %6879 = vmatpush.msra.mxu0 0.0
      %6880 = vmatpush.msra.mxu0 %v6637
      %6881 = vmatpush.msra.mxu0 %v6588
      %6882 = vmatpush.msra.mxu0 %v6539
      %6883 = vmatpush.msra.mxu0 %v6490
      %6884 = vmatpush.msra.mxu0 %v6441
      %6885 = vmatpush.msra.mxu0 %v6392
      %6886 = vmatpush.msra.mxu0 %v6343
      %6887 = vmatmul.f32.gmra.mxu0 %v6729
      %v6888 = vpop.f32.mrf.mxu0
      %v6889 = vadd.f32 %v6686, %v6888
      %6890 = vdwg.mxu0
      %6891 = vmatpush.msra.mxu0 0.0
      %6892 = vmatpush.msra.mxu0 0.0
      %6893 = vmatpush.msra.mxu0 0.0
      %6894 = vmatpush.msra.mxu0 0.0
      %6895 = vmatpush.msra.mxu0 0.0
      %6896 = vmatpush.msra.mxu0 0.0
      %6897 = vmatpush.msra.mxu0 0.0
      %6898 = vmatpush.msra.mxu0 0.0
      %6899 = vmatpush.msra.mxu0 0.0
      %6900 = vmatpush.msra.mxu0 %v6638
      %6901 = vmatpush.msra.mxu0 %v6589
      %6902 = vmatpush.msra.mxu0 %v6540
      %6903 = vmatpush.msra.mxu0 %v6491
      %6904 = vmatpush.msra.mxu0 %v6442
      %6905 = vmatpush.msra.mxu0 %v6393
      %6906 = vmatpush.msra.mxu0 %v6344
      %6907 = vmatmul.f32.gmra.mxu0 %v6729
      %v6908 = vpop.f32.mrf.mxu0
      %v6909 = vadd.f32 %v6687, %v6908
      %6910 = vdwg.mxu0
      %6911 = vmatpush.msra.mxu0 0.0
      %6912 = vmatpush.msra.mxu0 0.0
      %6913 = vmatpush.msra.mxu0 0.0
      %6914 = vmatpush.msra.mxu0 0.0
      %6915 = vmatpush.msra.mxu0 0.0
      %6916 = vmatpush.msra.mxu0 0.0
      %6917 = vmatpush.msra.mxu0 0.0
      %6918 = vmatpush.msra.mxu0 0.0
      %6919 = vmatpush.msra.mxu0 0.0
      %6920 = vmatpush.msra.mxu0 %v6639
      %6921 = vmatpush.msra.mxu0 %v6590
      %6922 = vmatpush.msra.mxu0 %v6541
      %6923 = vmatpush.msra.mxu0 %v6492
      %6924 = vmatpush.msra.mxu0 %v6443
      %6925 = vmatpush.msra.mxu0 %v6394
      %6926 = vmatpush.msra.mxu0 %v6345
      %6927 = vmatmul.f32.gmra.mxu0 %v6729
      %v6928 = vpop.f32.mrf.mxu0
      %v6929 = vadd.f32 %v6688, %v6928
      %6930 = vdwg.mxu0
      %6931 = vmatpush.msra.mxu0 0.0
      %6932 = vmatpush.msra.mxu0 0.0
      %6933 = vmatpush.msra.mxu0 0.0
      %6934 = vmatpush.msra.mxu0 0.0
      %6935 = vmatpush.msra.mxu0 0.0
      %6936 = vmatpush.msra.mxu0 0.0
      %6937 = vmatpush.msra.mxu0 0.0
      %6938 = vmatpush.msra.mxu0 0.0
      %6939 = vmatpush.msra.mxu0 0.0
      %6940 = vmatpush.msra.mxu0 %v6640
      %6941 = vmatpush.msra.mxu0 %v6591
      %6942 = vmatpush.msra.mxu0 %v6542
      %6943 = vmatpush.msra.mxu0 %v6493
      %6944 = vmatpush.msra.mxu0 %v6444
      %6945 = vmatpush.msra.mxu0 %v6395
      %6946 = vmatpush.msra.mxu0 %v6346
      %6947 = vmatmul.f32.gmra.mxu0 %v6729
      %v6948 = vpop.f32.mrf.mxu0
      %v6949 = vadd.f32 %v6689, %v6948
      %6950 = vdwg.mxu0
      %6951 = vmatpush.msra.mxu0 0.0
      %6952 = vmatpush.msra.mxu0 0.0
      %6953 = vmatpush.msra.mxu0 0.0
      %6954 = vmatpush.msra.mxu0 0.0
      %6955 = vmatpush.msra.mxu0 0.0
      %6956 = vmatpush.msra.mxu0 0.0
      %6957 = vmatpush.msra.mxu0 0.0
      %6958 = vmatpush.msra.mxu0 0.0
      %6959 = vmatpush.msra.mxu0 0.0
      %6960 = vmatpush.msra.mxu0 %v6641
      %6961 = vmatpush.msra.mxu0 %v6592
      %6962 = vmatpush.msra.mxu0 %v6543
      %6963 = vmatpush.msra.mxu0 %v6494
      %6964 = vmatpush.msra.mxu0 %v6445
      %6965 = vmatpush.msra.mxu0 %v6396
      %6966 = vmatpush.msra.mxu0 %v6347
      %6967 = vmatmul.f32.gmra.mxu0 %v6729
      %v6968 = vpop.f32.mrf.mxu0
      %v6969 = vadd.f32 %v6690, %v6968
      %6970 = vdwg.mxu0
      %6971 = vmatpush.msra.mxu0 0.0
      %6972 = vmatpush.msra.mxu0 0.0
      %6973 = vmatpush.msra.mxu0 0.0
      %6974 = vmatpush.msra.mxu0 0.0
      %6975 = vmatpush.msra.mxu0 0.0
      %6976 = vmatpush.msra.mxu0 0.0
      %6977 = vmatpush.msra.mxu0 0.0
      %6978 = vmatpush.msra.mxu0 0.0
      %6979 = vmatpush.msra.mxu0 0.0
      %6980 = vmatpush.msra.mxu0 %v6642
      %6981 = vmatpush.msra.mxu0 %v6593
      %6982 = vmatpush.msra.mxu0 %v6544
      %6983 = vmatpush.msra.mxu0 %v6495
      %6984 = vmatpush.msra.mxu0 %v6446
      %6985 = vmatpush.msra.mxu0 %v6397
      %6986 = vmatpush.msra.mxu0 %v6348
      %6987 = vmatmul.f32.gmra.mxu0 %v6729
      %v6988 = vpop.f32.mrf.mxu0
      %v6989 = vadd.f32 %v6691, %v6988
      %6990 = vdwg.mxu0
      %6991 = vmatpush.msra.mxu0 0.0
      %6992 = vmatpush.msra.mxu0 0.0
      %6993 = vmatpush.msra.mxu0 0.0
      %6994 = vmatpush.msra.mxu0 0.0
      %6995 = vmatpush.msra.mxu0 0.0
      %6996 = vmatpush.msra.mxu0 0.0
      %6997 = vmatpush.msra.mxu0 0.0
      %6998 = vmatpush.msra.mxu0 0.0
      %6999 = vmatpush.msra.mxu0 0.0
      %7000 = vmatpush.msra.mxu0 %v6643
      %7001 = vmatpush.msra.mxu0 %v6594
      %7002 = vmatpush.msra.mxu0 %v6545
      %7003 = vmatpush.msra.mxu0 %v6496
      %7004 = vmatpush.msra.mxu0 %v6447
      %7005 = vmatpush.msra.mxu0 %v6398
      %7006 = vmatpush.msra.mxu0 %v6349
      %7007 = vmatmul.f32.gmra.mxu0 %v6729
      %v7008 = vpop.f32.mrf.mxu0
      %v7009 = vadd.f32 %v6692, %v7008
      %7010 = vdwg.mxu0
      %7011 = vmatpush.msra.mxu0 0.0
      %7012 = vmatpush.msra.mxu0 0.0
      %7013 = vmatpush.msra.mxu0 0.0
      %7014 = vmatpush.msra.mxu0 0.0
      %7015 = vmatpush.msra.mxu0 0.0
      %7016 = vmatpush.msra.mxu0 0.0
      %7017 = vmatpush.msra.mxu0 0.0
      %7018 = vmatpush.msra.mxu0 0.0
      %7019 = vmatpush.msra.mxu0 0.0
      %7020 = vmatpush.msra.mxu0 %v6644
      %7021 = vmatpush.msra.mxu0 %v6595
      %7022 = vmatpush.msra.mxu0 %v6546
      %7023 = vmatpush.msra.mxu0 %v6497
      %7024 = vmatpush.msra.mxu0 %v6448
      %7025 = vmatpush.msra.mxu0 %v6399
      %7026 = vmatpush.msra.mxu0 %v6350
      %7027 = vmatmul.f32.gmra.mxu0 %v6729
      %v7028 = vpop.f32.mrf.mxu0
      %v7029 = vadd.f32 %v6693, %v7028
      %7030 = vdwg.mxu0
      %7031 = vmatpush.msra.mxu0 0.0
      %7032 = vmatpush.msra.mxu0 0.0
      %7033 = vmatpush.msra.mxu0 0.0
      %7034 = vmatpush.msra.mxu0 0.0
      %7035 = vmatpush.msra.mxu0 0.0
      %7036 = vmatpush.msra.mxu0 0.0
      %7037 = vmatpush.msra.mxu0 0.0
      %7038 = vmatpush.msra.mxu0 0.0
      %7039 = vmatpush.msra.mxu0 0.0
      %7040 = vmatpush.msra.mxu0 %v6645
      %7041 = vmatpush.msra.mxu0 %v6596
      %7042 = vmatpush.msra.mxu0 %v6547
      %7043 = vmatpush.msra.mxu0 %v6498
      %7044 = vmatpush.msra.mxu0 %v6449
      %7045 = vmatpush.msra.mxu0 %v6400
      %7046 = vmatpush.msra.mxu0 %v6351
      %7047 = vmatmul.f32.gmra.mxu0 %v6729
      %v7048 = vpop.f32.mrf.mxu0
      %v7049 = vadd.f32 %v6694, %v7048
      %7050 = vdwg.mxu0
      %7051 = vmatpush.msra.mxu0 0.0
      %7052 = vmatpush.msra.mxu0 0.0
      %7053 = vmatpush.msra.mxu0 0.0
      %7054 = vmatpush.msra.mxu0 0.0
      %7055 = vmatpush.msra.mxu0 0.0
      %7056 = vmatpush.msra.mxu0 0.0
      %7057 = vmatpush.msra.mxu0 0.0
      %7058 = vmatpush.msra.mxu0 0.0
      %7059 = vmatpush.msra.mxu0 0.0
      %7060 = vmatpush.msra.mxu0 %v6646
      %7061 = vmatpush.msra.mxu0 %v6597
      %7062 = vmatpush.msra.mxu0 %v6548
      %7063 = vmatpush.msra.mxu0 %v6499
      %7064 = vmatpush.msra.mxu0 %v6450
      %7065 = vmatpush.msra.mxu0 %v6401
      %7066 = vmatpush.msra.mxu0 %v6352
      %7067 = vmatmul.f32.gmra.mxu0 %v6729
      %v7068 = vpop.f32.mrf.mxu0
      %v7069 = vadd.f32 %v6695, %v7068
      %7070 = vdwg.mxu0
      %7071 = vmatpush.msra.mxu0 0.0
      %7072 = vmatpush.msra.mxu0 0.0
      %7073 = vmatpush.msra.mxu0 0.0
      %7074 = vmatpush.msra.mxu0 0.0
      %7075 = vmatpush.msra.mxu0 0.0
      %7076 = vmatpush.msra.mxu0 0.0
      %7077 = vmatpush.msra.mxu0 0.0
      %7078 = vmatpush.msra.mxu0 0.0
      %7079 = vmatpush.msra.mxu0 0.0
      %7080 = vmatpush.msra.mxu0 %v6647
      %7081 = vmatpush.msra.mxu0 %v6598
      %7082 = vmatpush.msra.mxu0 %v6549
      %7083 = vmatpush.msra.mxu0 %v6500
      %7084 = vmatpush.msra.mxu0 %v6451
      %7085 = vmatpush.msra.mxu0 %v6402
      %7086 = vmatpush.msra.mxu0 %v6353
      %7087 = vmatmul.f32.gmra.mxu0 %v6729
      %v7088 = vpop.f32.mrf.mxu0
      %v7089 = vadd.f32 %v6696, %v7088
      %7090 = vdwg.mxu0
      %7091 = vmatpush.msra.mxu0 0.0
      %7092 = vmatpush.msra.mxu0 0.0
      %7093 = vmatpush.msra.mxu0 0.0
      %7094 = vmatpush.msra.mxu0 0.0
      %7095 = vmatpush.msra.mxu0 0.0
      %7096 = vmatpush.msra.mxu0 0.0
      %7097 = vmatpush.msra.mxu0 0.0
      %7098 = vmatpush.msra.mxu0 0.0
      %7099 = vmatpush.msra.mxu0 0.0
      %7100 = vmatpush.msra.mxu0 %v6648
      %7101 = vmatpush.msra.mxu0 %v6599
      %7102 = vmatpush.msra.mxu0 %v6550
      %7103 = vmatpush.msra.mxu0 %v6501
      %7104 = vmatpush.msra.mxu0 %v6452
      %7105 = vmatpush.msra.mxu0 %v6403
      %7106 = vmatpush.msra.mxu0 %v6354
      %7107 = vmatmul.f32.gmra.mxu0 %v6729
      %v7108 = vpop.f32.mrf.mxu0
      %v7109 = vadd.f32 %v6697, %v7108
      %7110 = vdwg.mxu0
      %7111 = vmatpush.msra.mxu0 0.0
      %7112 = vmatpush.msra.mxu0 0.0
      %7113 = vmatpush.msra.mxu0 0.0
      %7114 = vmatpush.msra.mxu0 0.0
      %7115 = vmatpush.msra.mxu0 0.0
      %7116 = vmatpush.msra.mxu0 0.0
      %7117 = vmatpush.msra.mxu0 0.0
      %7118 = vmatpush.msra.mxu0 0.0
      %7119 = vmatpush.msra.mxu0 0.0
      %7120 = vmatpush.msra.mxu0 %v6649
      %7121 = vmatpush.msra.mxu0 %v6600
      %7122 = vmatpush.msra.mxu0 %v6551
      %7123 = vmatpush.msra.mxu0 %v6502
      %7124 = vmatpush.msra.mxu0 %v6453
      %7125 = vmatpush.msra.mxu0 %v6404
      %7126 = vmatpush.msra.mxu0 %v6355
      %7127 = vmatmul.f32.gmra.mxu0 %v6729
      %v7128 = vpop.f32.mrf.mxu0
      %v7129 = vadd.f32 %v6698, %v7128
      %7130 = vdwg.mxu0
      %7131 = vmatpush.msra.mxu0 0.0
      %7132 = vmatpush.msra.mxu0 0.0
      %7133 = vmatpush.msra.mxu0 0.0
      %7134 = vmatpush.msra.mxu0 0.0
      %7135 = vmatpush.msra.mxu0 0.0
      %7136 = vmatpush.msra.mxu0 0.0
      %7137 = vmatpush.msra.mxu0 0.0
      %7138 = vmatpush.msra.mxu0 0.0
      %7139 = vmatpush.msra.mxu0 0.0
      %7140 = vmatpush.msra.mxu0 %v6650
      %7141 = vmatpush.msra.mxu0 %v6601
      %7142 = vmatpush.msra.mxu0 %v6552
      %7143 = vmatpush.msra.mxu0 %v6503
      %7144 = vmatpush.msra.mxu0 %v6454
      %7145 = vmatpush.msra.mxu0 %v6405
      %7146 = vmatpush.msra.mxu0 %v6356
      %7147 = vmatmul.f32.gmra.mxu0 %v6729
      %v7148 = vpop.f32.mrf.mxu0
      %v7149 = vadd.f32 %v6699, %v7148
      %7150 = vdwg.mxu0
      %7151 = vmatpush.msra.mxu0 0.0
      %7152 = vmatpush.msra.mxu0 0.0
      %7153 = vmatpush.msra.mxu0 0.0
      %7154 = vmatpush.msra.mxu0 0.0
      %7155 = vmatpush.msra.mxu0 0.0
      %7156 = vmatpush.msra.mxu0 0.0
      %7157 = vmatpush.msra.mxu0 0.0
      %7158 = vmatpush.msra.mxu0 0.0
      %7159 = vmatpush.msra.mxu0 0.0
      %7160 = vmatpush.msra.mxu0 %v6651
      %7161 = vmatpush.msra.mxu0 %v6602
      %7162 = vmatpush.msra.mxu0 %v6553
      %7163 = vmatpush.msra.mxu0 %v6504
      %7164 = vmatpush.msra.mxu0 %v6455
      %7165 = vmatpush.msra.mxu0 %v6406
      %7166 = vmatpush.msra.mxu0 %v6357
      %7167 = vmatmul.f32.gmra.mxu0 %v6729
      %v7168 = vpop.f32.mrf.mxu0
      %v7169 = vadd.f32 %v6700, %v7168
      %7170 = vdwg.mxu0
      %7171 = vmatpush.msra.mxu0 0.0
      %7172 = vmatpush.msra.mxu0 0.0
      %7173 = vmatpush.msra.mxu0 0.0
      %7174 = vmatpush.msra.mxu0 0.0
      %7175 = vmatpush.msra.mxu0 0.0
      %7176 = vmatpush.msra.mxu0 0.0
      %7177 = vmatpush.msra.mxu0 0.0
      %7178 = vmatpush.msra.mxu0 0.0
      %7179 = vmatpush.msra.mxu0 0.0
      %7180 = vmatpush.msra.mxu0 %v6652
      %7181 = vmatpush.msra.mxu0 %v6603
      %7182 = vmatpush.msra.mxu0 %v6554
      %7183 = vmatpush.msra.mxu0 %v6505
      %7184 = vmatpush.msra.mxu0 %v6456
      %7185 = vmatpush.msra.mxu0 %v6407
      %7186 = vmatpush.msra.mxu0 %v6358
      %7187 = vmatmul.f32.gmra.mxu0 %v6729
      %v7188 = vpop.f32.mrf.mxu0
      %v7189 = vadd.f32 %v6701, %v7188
      %7190 = vdwg.mxu0
      %7191 = vmatpush.msra.mxu0 0.0
      %7192 = vmatpush.msra.mxu0 0.0
      %7193 = vmatpush.msra.mxu0 0.0
      %7194 = vmatpush.msra.mxu0 0.0
      %7195 = vmatpush.msra.mxu0 0.0
      %7196 = vmatpush.msra.mxu0 0.0
      %7197 = vmatpush.msra.mxu0 0.0
      %7198 = vmatpush.msra.mxu0 0.0
      %7199 = vmatpush.msra.mxu0 0.0
      %7200 = vmatpush.msra.mxu0 %v6653
      %7201 = vmatpush.msra.mxu0 %v6604
      %7202 = vmatpush.msra.mxu0 %v6555
      %7203 = vmatpush.msra.mxu0 %v6506
      %7204 = vmatpush.msra.mxu0 %v6457
      %7205 = vmatpush.msra.mxu0 %v6408
      %7206 = vmatpush.msra.mxu0 %v6359
      %7207 = vmatmul.f32.gmra.mxu0 %v6729
      %v7208 = vpop.f32.mrf.mxu0
      %v7209 = vadd.f32 %v6702, %v7208
      %7210 = vdwg.mxu0
      %7211 = vmatpush.msra.mxu0 0.0
      %7212 = vmatpush.msra.mxu0 0.0
      %7213 = vmatpush.msra.mxu0 0.0
      %7214 = vmatpush.msra.mxu0 0.0
      %7215 = vmatpush.msra.mxu0 0.0
      %7216 = vmatpush.msra.mxu0 0.0
      %7217 = vmatpush.msra.mxu0 0.0
      %7218 = vmatpush.msra.mxu0 0.0
      %7219 = vmatpush.msra.mxu0 0.0
      %7220 = vmatpush.msra.mxu0 %v6654
      %7221 = vmatpush.msra.mxu0 %v6605
      %7222 = vmatpush.msra.mxu0 %v6556
      %7223 = vmatpush.msra.mxu0 %v6507
      %7224 = vmatpush.msra.mxu0 %v6458
      %7225 = vmatpush.msra.mxu0 %v6409
      %7226 = vmatpush.msra.mxu0 %v6360
      %7227 = vmatmul.f32.gmra.mxu0 %v6729
      %v7228 = vpop.f32.mrf.mxu0
      %v7229 = vadd.f32 %v6703, %v7228
      %7230 = vdwg.mxu0
      %7231 = vmatpush.msra.mxu0 0.0
      %7232 = vmatpush.msra.mxu0 0.0
      %7233 = vmatpush.msra.mxu0 0.0
      %7234 = vmatpush.msra.mxu0 0.0
      %7235 = vmatpush.msra.mxu0 0.0
      %7236 = vmatpush.msra.mxu0 0.0
      %7237 = vmatpush.msra.mxu0 0.0
      %7238 = vmatpush.msra.mxu0 0.0
      %7239 = vmatpush.msra.mxu0 0.0
      %7240 = vmatpush.msra.mxu0 %v6655
      %7241 = vmatpush.msra.mxu0 %v6606
      %7242 = vmatpush.msra.mxu0 %v6557
      %7243 = vmatpush.msra.mxu0 %v6508
      %7244 = vmatpush.msra.mxu0 %v6459
      %7245 = vmatpush.msra.mxu0 %v6410
      %7246 = vmatpush.msra.mxu0 %v6361
      %7247 = vmatmul.f32.gmra.mxu0 %v6729
      %v7248 = vpop.f32.mrf.mxu0
      %v7249 = vadd.f32 %v6704, %v7248
      %7250 = vdwg.mxu0
      %7251 = vmatpush.msra.mxu0 0.0
      %7252 = vmatpush.msra.mxu0 0.0
      %7253 = vmatpush.msra.mxu0 0.0
      %7254 = vmatpush.msra.mxu0 0.0
      %7255 = vmatpush.msra.mxu0 0.0
      %7256 = vmatpush.msra.mxu0 0.0
      %7257 = vmatpush.msra.mxu0 0.0
      %7258 = vmatpush.msra.mxu0 0.0
      %7259 = vmatpush.msra.mxu0 0.0
      %7260 = vmatpush.msra.mxu0 %v6656
      %7261 = vmatpush.msra.mxu0 %v6607
      %7262 = vmatpush.msra.mxu0 %v6558
      %7263 = vmatpush.msra.mxu0 %v6509
      %7264 = vmatpush.msra.mxu0 %v6460
      %7265 = vmatpush.msra.mxu0 %v6411
      %7266 = vmatpush.msra.mxu0 %v6362
      %7267 = vmatmul.f32.gmra.mxu0 %v6729
      %v7268 = vpop.f32.mrf.mxu0
      %v7269 = vadd.f32 %v6705, %v7268
      %7270 = vdwg.mxu0
      %7271 = vmatpush.msra.mxu0 0.0
      %7272 = vmatpush.msra.mxu0 0.0
      %7273 = vmatpush.msra.mxu0 0.0
      %7274 = vmatpush.msra.mxu0 0.0
      %7275 = vmatpush.msra.mxu0 0.0
      %7276 = vmatpush.msra.mxu0 0.0
      %7277 = vmatpush.msra.mxu0 0.0
      %7278 = vmatpush.msra.mxu0 0.0
      %7279 = vmatpush.msra.mxu0 0.0
      %7280 = vmatpush.msra.mxu0 %v6657
      %7281 = vmatpush.msra.mxu0 %v6608
      %7282 = vmatpush.msra.mxu0 %v6559
      %7283 = vmatpush.msra.mxu0 %v6510
      %7284 = vmatpush.msra.mxu0 %v6461
      %7285 = vmatpush.msra.mxu0 %v6412
      %7286 = vmatpush.msra.mxu0 %v6363
      %7287 = vmatmul.f32.gmra.mxu0 %v6729
      %v7288 = vpop.f32.mrf.mxu0
      %v7289 = vadd.f32 %v6706, %v7288
      %7290 = vdwg.mxu0
      %7291 = vmatpush.msra.mxu0 0.0
      %7292 = vmatpush.msra.mxu0 0.0
      %7293 = vmatpush.msra.mxu0 0.0
      %7294 = vmatpush.msra.mxu0 0.0
      %7295 = vmatpush.msra.mxu0 0.0
      %7296 = vmatpush.msra.mxu0 0.0
      %7297 = vmatpush.msra.mxu0 0.0
      %7298 = vmatpush.msra.mxu0 0.0
      %7299 = vmatpush.msra.mxu0 0.0
      %7300 = vmatpush.msra.mxu0 %v6658
      %7301 = vmatpush.msra.mxu0 %v6609
      %7302 = vmatpush.msra.mxu0 %v6560
      %7303 = vmatpush.msra.mxu0 %v6511
      %7304 = vmatpush.msra.mxu0 %v6462
      %7305 = vmatpush.msra.mxu0 %v6413
      %7306 = vmatpush.msra.mxu0 %v6364
      %7307 = vmatmul.f32.gmra.mxu0 %v6729
      %v7308 = vpop.f32.mrf.mxu0
      %v7309 = vadd.f32 %v6707, %v7308
      %7310 = vdwg.mxu0
      %7311 = vmatpush.msra.mxu0 0.0
      %7312 = vmatpush.msra.mxu0 0.0
      %7313 = vmatpush.msra.mxu0 0.0
      %7314 = vmatpush.msra.mxu0 0.0
      %7315 = vmatpush.msra.mxu0 0.0
      %7316 = vmatpush.msra.mxu0 0.0
      %7317 = vmatpush.msra.mxu0 0.0
      %7318 = vmatpush.msra.mxu0 0.0
      %7319 = vmatpush.msra.mxu0 0.0
      %7320 = vmatpush.msra.mxu0 %v6659
      %7321 = vmatpush.msra.mxu0 %v6610
      %7322 = vmatpush.msra.mxu0 %v6561
      %7323 = vmatpush.msra.mxu0 %v6512
      %7324 = vmatpush.msra.mxu0 %v6463
      %7325 = vmatpush.msra.mxu0 %v6414
      %7326 = vmatpush.msra.mxu0 %v6365
      %7327 = vmatmul.f32.gmra.mxu0 %v6729
      %v7328 = vpop.f32.mrf.mxu0
      %v7329 = vadd.f32 %v6708, %v7328
      %7330 = vdwg.mxu0
      %7331 = vmatpush.msra.mxu0 0.0
      %7332 = vmatpush.msra.mxu0 0.0
      %7333 = vmatpush.msra.mxu0 0.0
      %7334 = vmatpush.msra.mxu0 0.0
      %7335 = vmatpush.msra.mxu0 0.0
      %7336 = vmatpush.msra.mxu0 0.0
      %7337 = vmatpush.msra.mxu0 0.0
      %7338 = vmatpush.msra.mxu0 0.0
      %7339 = vmatpush.msra.mxu0 0.0
      %7340 = vmatpush.msra.mxu0 %v6660
      %7341 = vmatpush.msra.mxu0 %v6611
      %7342 = vmatpush.msra.mxu0 %v6562
      %7343 = vmatpush.msra.mxu0 %v6513
      %7344 = vmatpush.msra.mxu0 %v6464
      %7345 = vmatpush.msra.mxu0 %v6415
      %7346 = vmatpush.msra.mxu0 %v6366
      %7347 = vmatmul.f32.gmra.mxu0 %v6729
      %v7348 = vpop.f32.mrf.mxu0
      %v7349 = vadd.f32 %v6709, %v7348
      %7350 = vdwg.mxu0
      %7351 = vmatpush.msra.mxu0 0.0
      %7352 = vmatpush.msra.mxu0 0.0
      %7353 = vmatpush.msra.mxu0 0.0
      %7354 = vmatpush.msra.mxu0 0.0
      %7355 = vmatpush.msra.mxu0 0.0
      %7356 = vmatpush.msra.mxu0 0.0
      %7357 = vmatpush.msra.mxu0 0.0
      %7358 = vmatpush.msra.mxu0 0.0
      %7359 = vmatpush.msra.mxu0 0.0
      %7360 = vmatpush.msra.mxu0 %v6661
      %7361 = vmatpush.msra.mxu0 %v6612
      %7362 = vmatpush.msra.mxu0 %v6563
      %7363 = vmatpush.msra.mxu0 %v6514
      %7364 = vmatpush.msra.mxu0 %v6465
      %7365 = vmatpush.msra.mxu0 %v6416
      %7366 = vmatpush.msra.mxu0 %v6367
      %7367 = vmatmul.f32.gmra.mxu0 %v6729
      %v7368 = vpop.f32.mrf.mxu0
      %v7369 = vadd.f32 %v6710, %v7368
      %7370 = vdwg.mxu0
      %7371 = vmatpush.msra.mxu0 0.0
      %7372 = vmatpush.msra.mxu0 0.0
      %7373 = vmatpush.msra.mxu0 0.0
      %7374 = vmatpush.msra.mxu0 0.0
      %7375 = vmatpush.msra.mxu0 0.0
      %7376 = vmatpush.msra.mxu0 0.0
      %7377 = vmatpush.msra.mxu0 0.0
      %7378 = vmatpush.msra.mxu0 0.0
      %7379 = vmatpush.msra.mxu0 0.0
      %7380 = vmatpush.msra.mxu0 %v6662
      %7381 = vmatpush.msra.mxu0 %v6613
      %7382 = vmatpush.msra.mxu0 %v6564
      %7383 = vmatpush.msra.mxu0 %v6515
      %7384 = vmatpush.msra.mxu0 %v6466
      %7385 = vmatpush.msra.mxu0 %v6417
      %7386 = vmatpush.msra.mxu0 %v6368
      %7387 = vmatmul.f32.gmra.mxu0 %v6729
      %v7388 = vpop.f32.mrf.mxu0
      %v7389 = vadd.f32 %v6711, %v7388
      %7390 = vdwg.mxu0
      %7391 = vmatpush.msra.mxu0 0.0
      %7392 = vmatpush.msra.mxu0 0.0
      %7393 = vmatpush.msra.mxu0 0.0
      %7394 = vmatpush.msra.mxu0 0.0
      %7395 = vmatpush.msra.mxu0 0.0
      %7396 = vmatpush.msra.mxu0 0.0
      %7397 = vmatpush.msra.mxu0 0.0
      %7398 = vmatpush.msra.mxu0 0.0
      %7399 = vmatpush.msra.mxu0 0.0
      %7400 = vmatpush.msra.mxu0 %v6663
      %7401 = vmatpush.msra.mxu0 %v6614
      %7402 = vmatpush.msra.mxu0 %v6565
      %7403 = vmatpush.msra.mxu0 %v6516
      %7404 = vmatpush.msra.mxu0 %v6467
      %7405 = vmatpush.msra.mxu0 %v6418
      %7406 = vmatpush.msra.mxu0 %v6369
      %7407 = vmatmul.f32.gmra.mxu0 %v6729
      %v7408 = vpop.f32.mrf.mxu0
      %v7409 = vadd.f32 %v6712, %v7408
      %7410 = vdwg.mxu0
      %7411 = vmatpush.msra.mxu0 0.0
      %7412 = vmatpush.msra.mxu0 0.0
      %7413 = vmatpush.msra.mxu0 0.0
      %7414 = vmatpush.msra.mxu0 0.0
      %7415 = vmatpush.msra.mxu0 0.0
      %7416 = vmatpush.msra.mxu0 0.0
      %7417 = vmatpush.msra.mxu0 0.0
      %7418 = vmatpush.msra.mxu0 0.0
      %7419 = vmatpush.msra.mxu0 0.0
      %7420 = vmatpush.msra.mxu0 %v6664
      %7421 = vmatpush.msra.mxu0 %v6615
      %7422 = vmatpush.msra.mxu0 %v6566
      %7423 = vmatpush.msra.mxu0 %v6517
      %7424 = vmatpush.msra.mxu0 %v6468
      %7425 = vmatpush.msra.mxu0 %v6419
      %7426 = vmatpush.msra.mxu0 %v6370
      %7427 = vmatmul.f32.gmra.mxu0 %v6729
      %v7428 = vpop.f32.mrf.mxu0
      %v7429 = vadd.f32 %v6713, %v7428
      %7430 = vdwg.mxu0
      %7431 = vmatpush.msra.mxu0 0.0
      %7432 = vmatpush.msra.mxu0 0.0
      %7433 = vmatpush.msra.mxu0 0.0
      %7434 = vmatpush.msra.mxu0 0.0
      %7435 = vmatpush.msra.mxu0 0.0
      %7436 = vmatpush.msra.mxu0 0.0
      %7437 = vmatpush.msra.mxu0 0.0
      %7438 = vmatpush.msra.mxu0 0.0
      %7439 = vmatpush.msra.mxu0 0.0
      %7440 = vmatpush.msra.mxu0 %v6665
      %7441 = vmatpush.msra.mxu0 %v6616
      %7442 = vmatpush.msra.mxu0 %v6567
      %7443 = vmatpush.msra.mxu0 %v6518
      %7444 = vmatpush.msra.mxu0 %v6469
      %7445 = vmatpush.msra.mxu0 %v6420
      %7446 = vmatpush.msra.mxu0 %v6371
      %7447 = vmatmul.f32.gmra.mxu0 %v6729
      %v7448 = vpop.f32.mrf.mxu0
      %v7449 = vadd.f32 %v6714, %v7448
      %7450 = vdwg.mxu0
      %7451 = vmatpush.msra.mxu0 0.0
      %7452 = vmatpush.msra.mxu0 0.0
      %7453 = vmatpush.msra.mxu0 0.0
      %7454 = vmatpush.msra.mxu0 0.0
      %7455 = vmatpush.msra.mxu0 0.0
      %7456 = vmatpush.msra.mxu0 0.0
      %7457 = vmatpush.msra.mxu0 0.0
      %7458 = vmatpush.msra.mxu0 0.0
      %7459 = vmatpush.msra.mxu0 0.0
      %7460 = vmatpush.msra.mxu0 %v6666
      %7461 = vmatpush.msra.mxu0 %v6617
      %7462 = vmatpush.msra.mxu0 %v6568
      %7463 = vmatpush.msra.mxu0 %v6519
      %7464 = vmatpush.msra.mxu0 %v6470
      %7465 = vmatpush.msra.mxu0 %v6421
      %7466 = vmatpush.msra.mxu0 %v6372
      %7467 = vmatmul.f32.gmra.mxu0 %v6729
      %v7468 = vpop.f32.mrf.mxu0
      %v7469 = vadd.f32 %v6715, %v7468
      %7470 = vdwg.mxu0
      %7471 = vmatpush.msra.mxu0 0.0
      %7472 = vmatpush.msra.mxu0 0.0
      %7473 = vmatpush.msra.mxu0 0.0
      %7474 = vmatpush.msra.mxu0 0.0
      %7475 = vmatpush.msra.mxu0 0.0
      %7476 = vmatpush.msra.mxu0 0.0
      %7477 = vmatpush.msra.mxu0 0.0
      %7478 = vmatpush.msra.mxu0 0.0
      %7479 = vmatpush.msra.mxu0 0.0
      %7480 = vmatpush.msra.mxu0 %v6667
      %7481 = vmatpush.msra.mxu0 %v6618
      %7482 = vmatpush.msra.mxu0 %v6569
      %7483 = vmatpush.msra.mxu0 %v6520
      %7484 = vmatpush.msra.mxu0 %v6471
      %7485 = vmatpush.msra.mxu0 %v6422
      %7486 = vmatpush.msra.mxu0 %v6373
      %7487 = vmatmul.f32.gmra.mxu0 %v6729
      %v7488 = vpop.f32.mrf.mxu0
      %v7489 = vadd.f32 %v6716, %v7488
      %7490 = vdwg.mxu0
      %7491 = vmatpush.msra.mxu0 0.0
      %7492 = vmatpush.msra.mxu0 0.0
      %7493 = vmatpush.msra.mxu0 0.0
      %7494 = vmatpush.msra.mxu0 0.0
      %7495 = vmatpush.msra.mxu0 0.0
      %7496 = vmatpush.msra.mxu0 0.0
      %7497 = vmatpush.msra.mxu0 0.0
      %7498 = vmatpush.msra.mxu0 0.0
      %7499 = vmatpush.msra.mxu0 0.0
      %7500 = vmatpush.msra.mxu0 %v6668
      %7501 = vmatpush.msra.mxu0 %v6619
      %7502 = vmatpush.msra.mxu0 %v6570
      %7503 = vmatpush.msra.mxu0 %v6521
      %7504 = vmatpush.msra.mxu0 %v6472
      %7505 = vmatpush.msra.mxu0 %v6423
      %7506 = vmatpush.msra.mxu0 %v6374
      %7507 = vmatmul.f32.gmra.mxu0 %v6729
      %v7508 = vpop.f32.mrf.mxu0
      %v7509 = vadd.f32 %v6717, %v7508
      %7510 = vdwg.mxu0
      %7511 = vmatpush.msra.mxu0 0.0
      %7512 = vmatpush.msra.mxu0 0.0
      %7513 = vmatpush.msra.mxu0 0.0
      %7514 = vmatpush.msra.mxu0 0.0
      %7515 = vmatpush.msra.mxu0 0.0
      %7516 = vmatpush.msra.mxu0 0.0
      %7517 = vmatpush.msra.mxu0 0.0
      %7518 = vmatpush.msra.mxu0 0.0
      %7519 = vmatpush.msra.mxu0 0.0
      %7520 = vmatpush.msra.mxu0 %v6669
      %7521 = vmatpush.msra.mxu0 %v6620
      %7522 = vmatpush.msra.mxu0 %v6571
      %7523 = vmatpush.msra.mxu0 %v6522
      %7524 = vmatpush.msra.mxu0 %v6473
      %7525 = vmatpush.msra.mxu0 %v6424
      %7526 = vmatpush.msra.mxu0 %v6375
      %7527 = vmatmul.f32.gmra.mxu0 %v6729
      %v7528 = vpop.f32.mrf.mxu0
      %v7529 = vadd.f32 %v6718, %v7528
      %7530 = vdwg.mxu0
      %7531 = vmatpush.msra.mxu0 0.0
      %7532 = vmatpush.msra.mxu0 0.0
      %7533 = vmatpush.msra.mxu0 0.0
      %7534 = vmatpush.msra.mxu0 0.0
      %7535 = vmatpush.msra.mxu0 0.0
      %7536 = vmatpush.msra.mxu0 0.0
      %7537 = vmatpush.msra.mxu0 0.0
      %7538 = vmatpush.msra.mxu0 0.0
      %7539 = vmatpush.msra.mxu0 0.0
      %7540 = vmatpush.msra.mxu0 %v6670
      %7541 = vmatpush.msra.mxu0 %v6621
      %7542 = vmatpush.msra.mxu0 %v6572
      %7543 = vmatpush.msra.mxu0 %v6523
      %7544 = vmatpush.msra.mxu0 %v6474
      %7545 = vmatpush.msra.mxu0 %v6425
      %7546 = vmatpush.msra.mxu0 %v6376
      %7547 = vmatmul.f32.gmra.mxu0 %v6729
      %v7548 = vpop.f32.mrf.mxu0
      %v7549 = vadd.f32 %v6719, %v7548
      %7550 = vdwg.mxu0
      %7551 = vmatpush.msra.mxu0 0.0
      %7552 = vmatpush.msra.mxu0 0.0
      %7553 = vmatpush.msra.mxu0 0.0
      %7554 = vmatpush.msra.mxu0 0.0
      %7555 = vmatpush.msra.mxu0 0.0
      %7556 = vmatpush.msra.mxu0 0.0
      %7557 = vmatpush.msra.mxu0 0.0
      %7558 = vmatpush.msra.mxu0 0.0
      %7559 = vmatpush.msra.mxu0 0.0
      %7560 = vmatpush.msra.mxu0 %v6671
      %7561 = vmatpush.msra.mxu0 %v6622
      %7562 = vmatpush.msra.mxu0 %v6573
      %7563 = vmatpush.msra.mxu0 %v6524
      %7564 = vmatpush.msra.mxu0 %v6475
      %7565 = vmatpush.msra.mxu0 %v6426
      %7566 = vmatpush.msra.mxu0 %v6377
      %7567 = vmatmul.f32.gmra.mxu0 %v6729
      %v7568 = vpop.f32.mrf.mxu0
      %v7569 = vadd.f32 %v6720, %v7568
      %7570 = vdwg.mxu0
      %7571 = vmatpush.msra.mxu0 0.0
      %7572 = vmatpush.msra.mxu0 0.0
      %7573 = vmatpush.msra.mxu0 0.0
      %7574 = vmatpush.msra.mxu0 0.0
      %7575 = vmatpush.msra.mxu0 0.0
      %7576 = vmatpush.msra.mxu0 0.0
      %7577 = vmatpush.msra.mxu0 0.0
      %7578 = vmatpush.msra.mxu0 0.0
      %7579 = vmatpush.msra.mxu0 0.0
      %7580 = vmatpush.msra.mxu0 %v6672
      %7581 = vmatpush.msra.mxu0 %v6623
      %7582 = vmatpush.msra.mxu0 %v6574
      %7583 = vmatpush.msra.mxu0 %v6525
      %7584 = vmatpush.msra.mxu0 %v6476
      %7585 = vmatpush.msra.mxu0 %v6427
      %7586 = vmatpush.msra.mxu0 %v6378
      %7587 = vmatmul.f32.gmra.mxu0 %v6729
      %v7588 = vpop.f32.mrf.mxu0
      %v7589 = vadd.f32 %v6721, %v7588
      %7590 = vdwg.mxu0
      %7591 = vmatpush.msra.mxu0 0.0
      %7592 = vmatpush.msra.mxu0 0.0
      %7593 = vmatpush.msra.mxu0 0.0
      %7594 = vmatpush.msra.mxu0 0.0
      %7595 = vmatpush.msra.mxu0 0.0
      %7596 = vmatpush.msra.mxu0 0.0
      %7597 = vmatpush.msra.mxu0 0.0
      %7598 = vmatpush.msra.mxu0 0.0
      %7599 = vmatpush.msra.mxu0 0.0
      %7600 = vmatpush.msra.mxu0 %v6673
      %7601 = vmatpush.msra.mxu0 %v6624
      %7602 = vmatpush.msra.mxu0 %v6575
      %7603 = vmatpush.msra.mxu0 %v6526
      %7604 = vmatpush.msra.mxu0 %v6477
      %7605 = vmatpush.msra.mxu0 %v6428
      %7606 = vmatpush.msra.mxu0 %v6379
      %7607 = vmatmul.f32.gmra.mxu0 %v6729
      %v7608 = vpop.f32.mrf.mxu0
      %v7609 = vadd.f32 %v6722, %v7608
      %7610 = vdwg.mxu0
      %7611 = vmatpush.msra.mxu0 0.0
      %7612 = vmatpush.msra.mxu0 0.0
      %7613 = vmatpush.msra.mxu0 0.0
      %7614 = vmatpush.msra.mxu0 0.0
      %7615 = vmatpush.msra.mxu0 0.0
      %7616 = vmatpush.msra.mxu0 0.0
      %7617 = vmatpush.msra.mxu0 0.0
      %7618 = vmatpush.msra.mxu0 0.0
      %7619 = vmatpush.msra.mxu0 0.0
      %7620 = vmatpush.msra.mxu0 %v6674
      %7621 = vmatpush.msra.mxu0 %v6625
      %7622 = vmatpush.msra.mxu0 %v6576
      %7623 = vmatpush.msra.mxu0 %v6527
      %7624 = vmatpush.msra.mxu0 %v6478
      %7625 = vmatpush.msra.mxu0 %v6429
      %7626 = vmatpush.msra.mxu0 %v6380
      %7627 = vmatmul.f32.gmra.mxu0 %v6729
      %v7628 = vpop.f32.mrf.mxu0
      %v7629 = vadd.f32 %v6723, %v7628
      %7630 = vdwg.mxu0
      %7631 = vmatpush.msra.mxu0 0.0
      %7632 = vmatpush.msra.mxu0 0.0
      %7633 = vmatpush.msra.mxu0 0.0
      %7634 = vmatpush.msra.mxu0 0.0
      %7635 = vmatpush.msra.mxu0 0.0
      %7636 = vmatpush.msra.mxu0 0.0
      %7637 = vmatpush.msra.mxu0 0.0
      %7638 = vmatpush.msra.mxu0 0.0
      %7639 = vmatpush.msra.mxu0 0.0
      %7640 = vmatpush.msra.mxu0 %v6675
      %7641 = vmatpush.msra.mxu0 %v6626
      %7642 = vmatpush.msra.mxu0 %v6577
      %7643 = vmatpush.msra.mxu0 %v6528
      %7644 = vmatpush.msra.mxu0 %v6479
      %7645 = vmatpush.msra.mxu0 %v6430
      %7646 = vmatpush.msra.mxu0 %v6381
      %7647 = vmatmul.f32.gmra.mxu0 %v6729
      %v7648 = vpop.f32.mrf.mxu0
      %v7649 = vadd.f32 %v6724, %v7648
      %7650 = vdwg.mxu0
      %7651 = vmatpush.msra.mxu0 0.0
      %7652 = vmatpush.msra.mxu0 0.0
      %7653 = vmatpush.msra.mxu0 0.0
      %7654 = vmatpush.msra.mxu0 0.0
      %7655 = vmatpush.msra.mxu0 0.0
      %7656 = vmatpush.msra.mxu0 0.0
      %7657 = vmatpush.msra.mxu0 0.0
      %7658 = vmatpush.msra.mxu0 0.0
      %7659 = vmatpush.msra.mxu0 0.0
      %7660 = vmatpush.msra.mxu0 %v6676
      %7661 = vmatpush.msra.mxu0 %v6627
      %7662 = vmatpush.msra.mxu0 %v6578
      %7663 = vmatpush.msra.mxu0 %v6529
      %7664 = vmatpush.msra.mxu0 %v6480
      %7665 = vmatpush.msra.mxu0 %v6431
      %7666 = vmatpush.msra.mxu0 %v6382
      %7667 = vmatmul.f32.gmra.mxu0 %v6729
      %v7668 = vpop.f32.mrf.mxu0
      %v7669 = vadd.f32 %v6725, %v7668
      %7670 = vdwg.mxu0
      %7671 = vmatpush.msra.mxu0 0.0
      %7672 = vmatpush.msra.mxu0 0.0
      %7673 = vmatpush.msra.mxu0 0.0
      %7674 = vmatpush.msra.mxu0 0.0
      %7675 = vmatpush.msra.mxu0 0.0
      %7676 = vmatpush.msra.mxu0 0.0
      %7677 = vmatpush.msra.mxu0 0.0
      %7678 = vmatpush.msra.mxu0 0.0
      %7679 = vmatpush.msra.mxu0 0.0
      %7680 = vmatpush.msra.mxu0 %v6677
      %7681 = vmatpush.msra.mxu0 %v6628
      %7682 = vmatpush.msra.mxu0 %v6579
      %7683 = vmatpush.msra.mxu0 %v6530
      %7684 = vmatpush.msra.mxu0 %v6481
      %7685 = vmatpush.msra.mxu0 %v6432
      %7686 = vmatpush.msra.mxu0 %v6383
      %7687 = vmatmul.f32.gmra.mxu0 %v6729
      %v7688 = vpop.f32.mrf.mxu0
      %v7689 = vadd.f32 %v6726, %v7688
      %7690 = vdwg.mxu0
      %7691 = vmatpush.msra.mxu0 0.0
      %7692 = vmatpush.msra.mxu0 0.0
      %7693 = vmatpush.msra.mxu0 0.0
      %7694 = vmatpush.msra.mxu0 0.0
      %7695 = vmatpush.msra.mxu0 0.0
      %7696 = vmatpush.msra.mxu0 0.0
      %7697 = vmatpush.msra.mxu0 0.0
      %7698 = vmatpush.msra.mxu0 0.0
      %7699 = vmatpush.msra.mxu0 0.0
      %7700 = vmatpush.msra.mxu0 %v6678
      %7701 = vmatpush.msra.mxu0 %v6629
      %7702 = vmatpush.msra.mxu0 %v6580
      %7703 = vmatpush.msra.mxu0 %v6531
      %7704 = vmatpush.msra.mxu0 %v6482
      %7705 = vmatpush.msra.mxu0 %v6433
      %7706 = vmatpush.msra.mxu0 %v6384
      %7707 = vmatmul.f32.gmra.mxu0 %v6729
      %v7708 = vpop.f32.mrf.mxu0
      %v7709 = vadd.f32 %v6727, %v7708
      %7710 = vdwg.mxu0
      %vm7711 = vcmp.ge.f32.partialorder %v6749, 0.0
      %vm7712 = vcmp.ge.f32.partialorder %v6769, 0.0
      %vm7713 = vcmp.ge.f32.partialorder %v6789, 0.0
      %vm7714 = vcmp.ge.f32.partialorder %v6809, 0.0
      %vm7715 = vcmp.ge.f32.partialorder %v6829, 0.0
      %vm7716 = vcmp.ge.f32.partialorder %v6849, 0.0
      %vm7717 = vcmp.ge.f32.partialorder %v6869, 0.0
      %vm7718 = vcmp.ge.f32.partialorder %v6889, 0.0
      %vm7719 = vcmp.ge.f32.partialorder %v6909, 0.0
      %vm7720 = vcmp.ge.f32.partialorder %v6929, 0.0
      %vm7721 = vcmp.ge.f32.partialorder %v6949, 0.0
      %vm7722 = vcmp.ge.f32.partialorder %v6969, 0.0
      %vm7723 = vcmp.ge.f32.partialorder %v6989, 0.0
      %vm7724 = vcmp.ge.f32.partialorder %v7009, 0.0
      %vm7725 = vcmp.ge.f32.partialorder %v7029, 0.0
      %vm7726 = vcmp.ge.f32.partialorder %v7049, 0.0
      %vm7727 = vcmp.ge.f32.partialorder %v7069, 0.0
      %vm7728 = vcmp.ge.f32.partialorder %v7089, 0.0
      %vm7729 = vcmp.ge.f32.partialorder %v7109, 0.0
      %vm7730 = vcmp.ge.f32.partialorder %v7129, 0.0
      %vm7731 = vcmp.ge.f32.partialorder %v7149, 0.0
      %vm7732 = vcmp.ge.f32.partialorder %v7169, 0.0
      %vm7733 = vcmp.ge.f32.partialorder %v7189, 0.0
      %vm7734 = vcmp.ge.f32.partialorder %v7209, 0.0
      %vm7735 = vcmp.ge.f32.partialorder %v7229, 0.0
      %vm7736 = vcmp.ge.f32.partialorder %v7249, 0.0
      %vm7737 = vcmp.ge.f32.partialorder %v7269, 0.0
      %vm7738 = vcmp.ge.f32.partialorder %v7289, 0.0
      %vm7739 = vcmp.ge.f32.partialorder %v7309, 0.0
      %vm7740 = vcmp.ge.f32.partialorder %v7329, 0.0
      %vm7741 = vcmp.ge.f32.partialorder %v7349, 0.0
      %vm7742 = vcmp.ge.f32.partialorder %v7369, 0.0
      %vm7743 = vcmp.ge.f32.partialorder %v7389, 0.0
      %vm7744 = vcmp.ge.f32.partialorder %v7409, 0.0
      %vm7745 = vcmp.ge.f32.partialorder %v7429, 0.0
      %vm7746 = vcmp.ge.f32.partialorder %v7449, 0.0
      %vm7747 = vcmp.ge.f32.partialorder %v7469, 0.0
      %vm7748 = vcmp.ge.f32.partialorder %v7489, 0.0
      %vm7749 = vcmp.ge.f32.partialorder %v7509, 0.0
      %vm7750 = vcmp.ge.f32.partialorder %v7529, 0.0
      %vm7751 = vcmp.ge.f32.partialorder %v7549, 0.0
      %vm7752 = vcmp.ge.f32.partialorder %v7569, 0.0
      %vm7753 = vcmp.ge.f32.partialorder %v7589, 0.0
      %vm7754 = vcmp.ge.f32.partialorder %v7609, 0.0
      %vm7755 = vcmp.ge.f32.partialorder %v7629, 0.0
      %vm7756 = vcmp.ge.f32.partialorder %v7649, 0.0
      %vm7757 = vcmp.ge.f32.partialorder %v7669, 0.0
      %vm7758 = vcmp.ge.f32.partialorder %v7689, 0.0
      %vm7759 = vcmp.ge.f32.partialorder %v7709, 0.0
      %7760 = vset.pattern.permute.xlu0 4
      %7761 = vperm.xlu0 %7760, %v255
      %v7762 = vpop.permute.xlu0 %7761
      %v7764 = vmul.f32 %v7762, %v6749
      %v7765 = vmul.f32 %v7762, %v6769
      %v7766 = vmul.f32 %v7762, %v6789
      %v7767 = vmul.f32 %v7762, %v6809
      %v7768 = vmul.f32 %v7762, %v6829
      %v7769 = vmul.f32 %v7762, %v6849
      %v7770 = vmul.f32 %v7762, %v6869
      %v7771 = vmul.f32 %v7762, %v6889
      %v7772 = vmul.f32 %v7762, %v6909
      %v7773 = vmul.f32 %v7762, %v6929
      %v7774 = vmul.f32 %v7762, %v6949
      %v7775 = vmul.f32 %v7762, %v6969
      %v7776 = vmul.f32 %v7762, %v6989
      %v7777 = vmul.f32 %v7762, %v7009
      %v7778 = vmul.f32 %v7762, %v7029
      %v7779 = vmul.f32 %v7762, %v7049
      %v7780 = vmul.f32 %v7762, %v7069
      %v7781 = vmul.f32 %v7762, %v7089
      %v7782 = vmul.f32 %v7762, %v7109
      %v7783 = vmul.f32 %v7762, %v7129
      %v7784 = vmul.f32 %v7762, %v7149
      %v7785 = vmul.f32 %v7762, %v7169
      %v7786 = vmul.f32 %v7762, %v7189
      %v7787 = vmul.f32 %v7762, %v7209
      %v7788 = vmul.f32 %v7762, %v7229
      %v7789 = vmul.f32 %v7762, %v7249
      %v7790 = vmul.f32 %v7762, %v7269
      %v7791 = vmul.f32 %v7762, %v7289
      %v7792 = vmul.f32 %v7762, %v7309
      %v7793 = vmul.f32 %v7762, %v7329
      %v7794 = vmul.f32 %v7762, %v7349
      %v7795 = vmul.f32 %v7762, %v7369
      %v7796 = vmul.f32 %v7762, %v7389
      %v7797 = vmul.f32 %v7762, %v7409
      %v7798 = vmul.f32 %v7762, %v7429
      %v7799 = vmul.f32 %v7762, %v7449
      %v7800 = vmul.f32 %v7762, %v7469
      %v7801 = vmul.f32 %v7762, %v7489
      %v7802 = vmul.f32 %v7762, %v7509
      %v7803 = vmul.f32 %v7762, %v7529
      %v7804 = vmul.f32 %v7762, %v7549
      %v7805 = vmul.f32 %v7762, %v7569
      %v7806 = vmul.f32 %v7762, %v7589
      %v7807 = vmul.f32 %v7762, %v7609
      %v7808 = vmul.f32 %v7762, %v7629
      %v7809 = vmul.f32 %v7762, %v7649
      %v7810 = vmul.f32 %v7762, %v7669
      %v7811 = vmul.f32 %v7762, %v7689
      %v7812 = vmul.f32 %v7762, %v7709
      %v7813 = vsel %vm7711, %v6749, %v7764
      %v7814 = vsel %vm7712, %v6769, %v7765
      %v7815 = vsel %vm7713, %v6789, %v7766
      %v7816 = vsel %vm7714, %v6809, %v7767
      %v7817 = vsel %vm7715, %v6829, %v7768
      %v7818 = vsel %vm7716, %v6849, %v7769
      %v7819 = vsel %vm7717, %v6869, %v7770
      %v7820 = vsel %vm7718, %v6889, %v7771
      %v7821 = vsel %vm7719, %v6909, %v7772
      %v7822 = vsel %vm7720, %v6929, %v7773
      %v7823 = vsel %vm7721, %v6949, %v7774
      %v7824 = vsel %vm7722, %v6969, %v7775
      %v7825 = vsel %vm7723, %v6989, %v7776
      %v7826 = vsel %vm7724, %v7009, %v7777
      %v7827 = vsel %vm7725, %v7029, %v7778
      %v7828 = vsel %vm7726, %v7049, %v7779
      %v7829 = vsel %vm7727, %v7069, %v7780
      %v7830 = vsel %vm7728, %v7089, %v7781
      %v7831 = vsel %vm7729, %v7109, %v7782
      %v7832 = vsel %vm7730, %v7129, %v7783
      %v7833 = vsel %vm7731, %v7149, %v7784
      %v7834 = vsel %vm7732, %v7169, %v7785
      %v7835 = vsel %vm7733, %v7189, %v7786
      %v7836 = vsel %vm7734, %v7209, %v7787
      %v7837 = vsel %vm7735, %v7229, %v7788
      %v7838 = vsel %vm7736, %v7249, %v7789
      %v7839 = vsel %vm7737, %v7269, %v7790
      %v7840 = vsel %vm7738, %v7289, %v7791
      %v7841 = vsel %vm7739, %v7309, %v7792
      %v7842 = vsel %vm7740, %v7329, %v7793
      %v7843 = vsel %vm7741, %v7349, %v7794
      %v7844 = vsel %vm7742, %v7369, %v7795
      %v7845 = vsel %vm7743, %v7389, %v7796
      %v7846 = vsel %vm7744, %v7409, %v7797
      %v7847 = vsel %vm7745, %v7429, %v7798
      %v7848 = vsel %vm7746, %v7449, %v7799
      %v7849 = vsel %vm7747, %v7469, %v7800
      %v7850 = vsel %vm7748, %v7489, %v7801
      %v7851 = vsel %vm7749, %v7509, %v7802
      %v7852 = vsel %vm7750, %v7529, %v7803
      %v7853 = vsel %vm7751, %v7549, %v7804
      %v7854 = vsel %vm7752, %v7569, %v7805
      %v7855 = vsel %vm7753, %v7589, %v7806
      %v7856 = vsel %vm7754, %v7609, %v7807
      %v7857 = vsel %vm7755, %v7629, %v7808
      %v7858 = vsel %vm7756, %v7649, %v7809
      %v7859 = vsel %vm7757, %v7669, %v7810
      %v7860 = vsel %vm7758, %v7689, %v7811
      %v7861 = vsel %vm7759, %v7709, %v7812
      %7862 = vst [vmem:[%s253] sm:$0xff] %v7813
      %7863 = vst [vmem:[%s253 + $0x8] sm:$0xff] %v7814
      %7864 = vst [vmem:[%s253 + $0x10] sm:$0xff] %v7815
      %7865 = vst [vmem:[%s253 + $0x18] sm:$0xff] %v7816
      %7866 = vst [vmem:[%s253 + $0x20] sm:$0xff] %v7817
      %7867 = vst [vmem:[%s253 + $0x28] sm:$0xff] %v7818
      %7868 = vst [vmem:[%s253 + $0x30] sm:$0xff] %v7819
      %7869 = vst [vmem:[%s253 + $0x38] sm:$0xff] %v7820
      %7870 = vst [vmem:[%s253 + $0x40] sm:$0xff] %v7821
      %7871 = vst [vmem:[%s253 + $0x48] sm:$0xff] %v7822
      %7872 = vst [vmem:[%s253 + $0x50] sm:$0xff] %v7823
      %7873 = vst [vmem:[%s253 + $0x58] sm:$0xff] %v7824
      %7874 = vst [vmem:[%s253 + $0x60] sm:$0xff] %v7825
      %7875 = vst [vmem:[%s253 + $0x68] sm:$0xff] %v7826
      %7876 = vst [vmem:[%s253 + $0x70] sm:$0xff] %v7827
      %7877 = vst [vmem:[%s253 + $0x78] sm:$0xff] %v7828
      %7878 = vst [vmem:[%s253 + $0x80] sm:$0xff] %v7829
      %7879 = vst [vmem:[%s253 + $0x88] sm:$0xff] %v7830
      %7880 = vst [vmem:[%s253 + $0x90] sm:$0xff] %v7831
      %7881 = vst [vmem:[%s253 + $0x98] sm:$0xff] %v7832
      %7882 = vst [vmem:[%s253 + $0xa0] sm:$0xff] %v7833
      %7883 = vst [vmem:[%s253 + $0xa8] sm:$0xff] %v7834
      %7884 = vst [vmem:[%s253 + $0xb0] sm:$0xff] %v7835
      %7885 = vst [vmem:[%s253 + $0xb8] sm:$0xff] %v7836
      %7886 = vst [vmem:[%s253 + $0xc0] sm:$0xff] %v7837
      %7887 = vst [vmem:[%s253 + $0xc8] sm:$0xff] %v7838
      %7888 = vst [vmem:[%s253 + $0xd0] sm:$0xff] %v7839
      %7889 = vst [vmem:[%s253 + $0xd8] sm:$0xff] %v7840
      %7890 = vst [vmem:[%s253 + $0xe0] sm:$0xff] %v7841
      %7891 = vst [vmem:[%s253 + $0xe8] sm:$0xff] %v7842
      %7892 = vst [vmem:[%s253 + $0xf0] sm:$0xff] %v7843
      %7893 = vst [vmem:[%s253 + $0xf8] sm:$0xff] %v7844
      %7894 = vst [vmem:[%s253 + $0x100] sm:$0xff] %v7845
      %7895 = vst [vmem:[%s253 + $0x108] sm:$0xff] %v7846
      %7896 = vst [vmem:[%s253 + $0x110] sm:$0xff] %v7847
      %7897 = vst [vmem:[%s253 + $0x118] sm:$0xff] %v7848
      %7898 = vst [vmem:[%s253 + $0x120] sm:$0xff] %v7849
      %7899 = vst [vmem:[%s253 + $0x128] sm:$0xff] %v7850
      %7900 = vst [vmem:[%s253 + $0x130] sm:$0xff] %v7851
      %7901 = vst [vmem:[%s253 + $0x138] sm:$0xff] %v7852
      %7902 = vst [vmem:[%s253 + $0x140] sm:$0xff] %v7853
      %7903 = vst [vmem:[%s253 + $0x148] sm:$0xff] %v7854
      %7904 = vst [vmem:[%s253 + $0x150] sm:$0xff] %v7855
      %7905 = vst [vmem:[%s253 + $0x158] sm:$0xff] %v7856
      %7906 = vst [vmem:[%s253 + $0x160] sm:$0xff] %v7857
      %7907 = vst [vmem:[%s253 + $0x168] sm:$0xff] %v7858
      %7908 = vst [vmem:[%s253 + $0x170] sm:$0xff] %v7859
      %7909 = vst [vmem:[%s253 + $0x178] sm:$0xff] %v7860
      %7910 = vst [vmem:[%s253 + $0x180] sm:$0xff] %v7861
      %s7911 = smul.u32 49, %s17
      %p7912 = scmp.lt.s32.totalorder %s7911, 97
      %s7913 = scalar_select %p7912, %s7911, 97
      %s7914 = smul.addr %s7913, 8
      %s7915 = scalar_lea.vmem %s6, %s7914
      // Predicated region
      $region45: #{fac_conv_forward.1} parent=43 // pred_check
        %p7916 = pneg %p166
      $region46: #{fac_conv_forward.1} parent=43 // pred_check_branch
        %7918 = sbr.rel (%p7916) target = $region48
      $region47: #{fac_conv_forward.1} parent=43 // pred_region
        %s7919 = smul.u32 49, %s17
      $region48: #{fac_conv_forward.1} parent=43 // pred_fallthru
        _
    $region44: #{fac_conv_forward.1} parent=5 // pred_fallthru
      _
    %p7920 = scmp.le.s32.totalorder 2, %s12
    // Predicated region
    $region49: #{fac_conv_forward.1} parent=5 // pred_check
      %p7921 = pneg %p7920
    $region50: #{fac_conv_forward.1} parent=5 // pred_check_branch
      %7923 = sbr.rel (%p7921) target = $region52
    $region51: #{fac_conv_forward.1} parent=5 // pred_region
      %s7924 = ssub.s32 %s12, 2
      // Predicated region
      $region53: #{fac_conv_forward.1} parent=51 // pred_check
        %p7925 = pneg %p172
      $region54: #{fac_conv_forward.1} parent=51 // pred_check_branch
        %7927 = sbr.rel (%p7925) target = $region56
      $region55: #{fac_conv_forward.1} parent=51 // pred_region
        %s7928 = smul.u32 49, %s18
        %p7929 = scmp.lt.s32.totalorder %s7928, 97
        %s7930 = scalar_select %p7929, %s7928, 97
        %s7931 = smul.addr %s7930, 8
        %s7932 = scalar_lea.vmem %s6, %s7931
      $region56: #{fac_conv_forward.1} parent=51 // pred_fallthru
        _
    $region52: #{fac_conv_forward.1} parent=5 // pred_fallthru
      _
  $region6: #{fac_conv_forward.1} parent=0 // loop_footer
    %s16 = sadd.s32 1, %s12
  $region7: #{fac_conv_forward.1} parent=0 // loop_footer_branch
    %11 = sbr.rel target = $region3
  $region8: #{fac_conv_forward.1} parent=0 // loop_exit
    _

</llo_original>
